<compile_context>
chip_gen: v6e
topology: v6e:2x2x1
jax: 0.10.0
libtpu: 0.0.40
codegen_flags: <defaults>
</compile_context>

<pallas_src>
import jax
import jax.numpy as jnp
from jax.experimental import pallas as pl
from jax.experimental.pallas import tpu as pltpu

EPS = 1e-5
LANE = 128


def _round_up(x, m):
    return (x + m - 1) // m * m


def _pad_to(a, shape):
    return jnp.pad(a, [(0, t - s) for s, t in zip(a.shape, shape)])


# ---------------------------------------------------------------------------
# Stage 1: conv1 (1x1) + per-tile BN1 partial sums
# ---------------------------------------------------------------------------
def _conv1_kernel(x_ref, w1_ref, h1_ref, s1_ref):
    _, H, W, C = x_ref.shape
    P = w1_ref.shape[1]
    xm = x_ref[...].reshape(H * W, C)                                  # bf16
    h = jnp.dot(xm, w1_ref[...], preferred_element_type=jnp.float32)  # (HW, P) f32
    hq = h.astype(jnp.bfloat16)
    h1_ref[...] = hq.reshape(1, H, W, P)
    hf = hq.astype(jnp.float32)
    s1_ref[...] = jnp.concatenate(
        [jnp.sum(hf, axis=0, keepdims=True),
         jnp.sum(hf * hf, axis=0, keepdims=True)], axis=0)[None]


# ---------------------------------------------------------------------------
# Stage 2: BN1-apply + ReLU + conv2 (3x3, pad=1) via im2col + BN2 partial sums
# ---------------------------------------------------------------------------
def _conv2_kernel(h1_ref, sc_ref, sh_ref, w2_ref, h2_ref, s2_ref,
                  pad_ref, col_ref):
    _, H, W, P = h1_ref.shape
    h1 = h1_ref[...].reshape(H * W, P).astype(jnp.float32)
    a1 = jnp.maximum(h1 * sc_ref[...] + sh_ref[...], 0.0)   # BN1 + ReLU in f32

    # Zero only the 1-wide border of the padded scratch, then fill the interior
    # (no redundant full-buffer zero fill).
    zrow = jnp.zeros((1, W + 2, P), jnp.float32)
    zcol = jnp.zeros((H + 2, 1, P), jnp.float32)
    pad_ref[0:1, :, :] = zrow
    pad_ref[H + 1:H + 2, :, :] = zrow
    pad_ref[:, 0:1, :] = zcol
    pad_ref[:, W + 1:W + 2, :] = zcol
    pad_ref[1:H + 1, 1:W + 1, :] = a1.reshape(H, W, P)

    # im2col: nine shifted windows -> (H*W, 9P). Destination lane offsets are
    # multiples of 128, so all col stores are aligned, unmasked stores.
    for k in range(9):
        dh, dw = divmod(k, 3)
        win = pad_ref[dh:dh + H, dw:dw + W, :]
        col_ref[:, k * P:(k + 1) * P] = win.reshape(H * W, P).astype(jnp.bfloat16)

    # Single MXU matmul with K = 9P instead of nine tiny-K matmuls.
    h2 = jnp.dot(col_ref[...], w2_ref[...], preferred_element_type=jnp.float32)
    hq = h2.astype(jnp.bfloat16)
    h2_ref[...] = hq.reshape(1, H, W, P)
    hf = hq.astype(jnp.float32)
    s2_ref[...] = jnp.concatenate(
        [jnp.sum(hf, axis=0, keepdims=True),
         jnp.sum(hf * hf, axis=0, keepdims=True)], axis=0)[None]


# ---------------------------------------------------------------------------
# Stage 3: BN2-apply + ReLU + conv3 (1x1) + per-tile BN3 partial sums
# ---------------------------------------------------------------------------
def _conv3_kernel(h2_ref, sc_ref, sh_ref, w3_ref, h3_ref, s3_ref):
    _, H, W, P = h2_ref.shape
    C4 = w3_ref.shape[1]
    h2 = h2_ref[...].reshape(H * W, P).astype(jnp.float32)
    a2 = jnp.maximum(h2 * sc_ref[...] + sh_ref[...], 0.0).astype(jnp.bfloat16)
    h3 = jnp.dot(a2, w3_ref[...], preferred_element_type=jnp.float32)
    hq = h3.astype(jnp.bfloat16)
    h3_ref[...] = hq.reshape(1, H, W, C4)
    hf = hq.astype(jnp.float32)
    s3_ref[...] = jnp.concatenate(
        [jnp.sum(hf, axis=0, keepdims=True),
         jnp.sum(hf * hf, axis=0, keepdims=True)], axis=0)[None]


# ---------------------------------------------------------------------------
# Stage 4: BN3-apply + residual add + ReLU
# ---------------------------------------------------------------------------
def _bn3_residual_kernel(h3_ref, sc_ref, sh_ref, x_ref, out_ref):
    _, H, W, C = h3_ref.shape
    h3 = h3_ref[...].reshape(H * W, C).astype(jnp.float32)
    y = h3 * sc_ref[...] + sh_ref[...]
    res = x_ref[...].reshape(H * W, C)
    out_ref[...] = jnp.maximum(y + res, 0.0).reshape(1, H, W, C)


# ---------------------------------------------------------------------------
# JAX glue: reduce per-tile [sum, sumsq] into BN scale/shift (tiny per-channel)
# ---------------------------------------------------------------------------
def _bn_scale_shift(stats, gamma, beta, count):
    s = jnp.sum(stats[:, 0, :], axis=0)
    sq = jnp.sum(stats[:, 1, :], axis=0)
    mean = s / count
    var = jnp.maximum(sq / count - mean * mean, 0.0)   # biased var (training BN)
    inv = jax.lax.rsqrt(var + EPS)
    scale = gamma.reshape(-1) * inv
    shift = beta.reshape(-1) - mean * scale
    return (scale.reshape(1, -1).astype(jnp.float32),
            shift.reshape(1, -1).astype(jnp.float32))


# ---------------------------------------------------------------------------
# Forward wrapper
# ---------------------------------------------------------------------------
def bottleneck_forward(x_nchw, params):
    """x_nchw: (N, Cin, H, W) float32, Cin == planes*4 (stride=1, downsample=None)."""
    w1, g1, b1, w2, g2, b2, w3, g3, b3 = params
    N, Cin, H, W = x_nchw.shape
    P = w1.shape[1]
    assert Cin == 4 * P, "residual add requires inplanes == planes * expansion"

    Cp = _round_up(Cin, LANE)
    Pp = _round_up(P, LANE)
    C4p = _round_up(4 * P, LANE)
    assert Cp == C4p

    # NCHW -> NHWC; pad channels to lane-dense multiples of 128.
    x_nhwc = jnp.transpose(x_nchw, (0, 2, 3, 1)).astype(jnp.float32)
    x_pad = _pad_to(x_nhwc, (N, H, W, Cp))          # f32 residual path
    x_bf = x_pad.astype(jnp.bfloat16)               # bf16 matmul path

    # Pad weights / affine params with zeros (padded channels stay exactly 0).
    w1p = _pad_to(w1, (Cp, Pp)).astype(jnp.bfloat16)
    w2p = _pad_to(w2, (9, Pp, Pp)).reshape(9 * Pp, Pp).astype(jnp.bfloat16)
    w3p = _pad_to(w3, (Pp, C4p)).astype(jnp.bfloat16)
    g1p, b1p = _pad_to(g1, (1, Pp)), _pad_to(b1, (1, Pp))
    g2p, b2p = _pad_to(g2, (1, Pp)), _pad_to(b2, (1, Pp))
    g3p, b3p = _pad_to(g3, (1, C4p)), _pad_to(b3, (1, C4p))

    count = jnp.float32(N * H * W)
    grid = (N,)
    par = pltpu.CompilerParams(dimension_semantics=("parallel",))

    def img(C):
        return pl.BlockSpec((1, H, W, C), lambda n: (n, 0, 0, 0))

    def const2d(a, b):
        return pl.BlockSpec((a, b), lambda n: (0, 0))     # resident across grid

    def stats_spec(C):
        return pl.BlockSpec((1, 2, C), lambda n: (n, 0, 0))

    # ---- stage 1: conv1 (1x1) + BN1 partial stats ---------------------------
    h1_raw, st1 = pl.pallas_call(
        _conv1_kernel,
        out_shape=(jax.ShapeDtypeStruct((N, H, W, Pp), jnp.bfloat16),
                   jax.ShapeDtypeStruct((N, 2, Pp), jnp.float32)),
        grid_spec=pltpu.PrefetchScalarGridSpec(
            num_scalar_prefetch=0, grid=grid,
            in_specs=[img(Cp), const2d(Cp, Pp)],
            out_specs=[img(Pp), stats_spec(Pp)]),
        compiler_params=par,
    )(x_bf, w1p)
    sc1, sh1 = _bn_scale_shift(st1, g1p, b1p, count)

    # ---- stage 2: BN1+ReLU -> conv2 (3x3) via im2col + BN2 partial stats ----
    h2_raw, st2 = pl.pallas_call(
        _conv2_kernel,
        out_shape=(jax.ShapeDtypeStruct((N, H, W, Pp), jnp.bfloat16),
                   jax.ShapeDtypeStruct((N, 2, Pp), jnp.float32)),
        grid_spec=pltpu.PrefetchScalarGridSpec(
            num_scalar_prefetch=0, grid=grid,
            in_specs=[img(Pp), const2d(1, Pp), const2d(1, Pp),
                      const2d(9 * Pp, Pp)],
            out_specs=[img(Pp), stats_spec(Pp)],
            scratch_shapes=[pltpu.VMEM((H + 2, W + 2, Pp), jnp.float32),
                            pltpu.VMEM((H * W, 9 * Pp), jnp.bfloat16)]),
        compiler_params=par,
    )(h1_raw, sc1, sh1, w2p)
    sc2, sh2 = _bn_scale_shift(st2, g2p, b2p, count)

    # ---- stage 3: BN2+ReLU -> conv3 (1x1) + BN3 partial stats ---------------
    h3_raw, st3 = pl.pallas_call(
        _conv3_kernel,
        out_shape=(jax.ShapeDtypeStruct((N, H, W, C4p), jnp.bfloat16),
                   jax.ShapeDtypeStruct((N, 2, C4p), jnp.float32)),
        grid_spec=pltpu.PrefetchScalarGridSpec(
            num_scalar_prefetch=0, grid=grid,
            in_specs=[img(Pp), const2d(1, Pp), const2d(1, Pp),
                      const2d(Pp, C4p)],
            out_specs=[img(C4p), stats_spec(C4p)]),
        compiler_params=par,
    )(h2_raw, sc2, sh2, w3p)
    sc3, sh3 = _bn_scale_shift(st3, g3p, b3p, count)

    # ---- stage 4: BN3 -> residual add -> ReLU -------------------------------
    out_pad = pl.pallas_call(
        _bn3_residual_kernel,
        out_shape=jax.ShapeDtypeStruct((N, H, W, Cp), jnp.float32),
        grid_spec=pltpu.PrefetchScalarGridSpec(
            num_scalar_prefetch=0, grid=grid,
            in_specs=[img(C4p), const2d(1, C4p), const2d(1, C4p), img(Cp)],
            out_specs=img(Cp)),
        compiler_params=par,
    )(h3_raw, sc3, sh3, x_pad)

    out_nhwc = out_pad[..., :Cin]
    return jnp.transpose(out_nhwc, (0, 3, 1, 2))


# ---------------------------------------------------------------------------
# Parameters & pure-JAX reference
# ---------------------------------------------------------------------------
def init_params(key, inplanes, planes):
    """Deterministic synthetic parameters matching the module's shapes."""
    k1, k2, k3 = jax.random.split(key, 3)
    # conv1: torch (planes, inplanes, 1, 1) -> (inplanes, planes)
    w1 = jax.random.normal(k1, (inplanes, planes), jnp.float32) * (2.0 / inplanes) ** 0.5
    # conv2: torch (planes, planes, 3, 3) -> (9, planes, planes)  [k = 3*dh+dw, (cin,cout)]
    w2 = jax.random.normal(k2, (9, planes, planes), jnp.float32) * (2.0 / (9 * planes)) ** 0.5
    # conv3: torch (planes*4, planes, 1, 1) -> (planes, planes*4)
    w3 = jax.random.normal(k3, (planes, planes * 4), jnp.float32) * (2.0 / planes) ** 0.5
    # BatchNorm affine params: PyTorch default init (gamma=1, beta=0)
    g1 = jnp.ones((1, planes), jnp.float32)
    b1 = jnp.zeros((1, planes), jnp.float32)
    g2 = jnp.ones((1, planes), jnp.float32)
    b2 = jnp.zeros((1, planes), jnp.float32)
    g3 = jnp.ones((1, planes * 4), jnp.float32)
    b3 = jnp.zeros((1, planes * 4), jnp.float32)
    return (w1, g1, b1, w2, g2, b2, w3, g3, b3)


def bottleneck_ref(x_nchw, params):
    """Pure-JAX f32 reference of the Bottleneck forward (training-mode BN)."""
    w1, g1, b1, w2, g2, b2, w3, g3, b3 = params
    P = w1.shape[1]
    x = jnp.transpose(x_nchw, (0, 2, 3, 1)).astype(jnp.float32)

    def bn(h, g, b):
        mean = jnp.mean(h, axis=(0, 1, 2), keepdims=True)
        var = jnp.mean(jnp.square(h - mean), axis=(0, 1, 2), keepdims=True)
        return ((h - mean) * jax.lax.rsqrt(var + EPS) * g.reshape(1, 1, 1, -1)
                + b.reshape(1, 1, 1, -1))

    hp = jax.lax.Precision.HIGHEST
    h = jnp.einsum('nhwc,cp->nhwp', x, w1, precision=hp)
    h = jax.nn.relu(bn(h, g1, b1))
    w2_hwio = w2.reshape(3, 3, P, P)          # (dh, dw, cin, cout)
    h = jax.lax.conv_general_dilated(h, w2_hwio, (1, 1), 'SAME',
                                     dimension_numbers=('NHWC', 'HWIO', 'NHWC'),
                                     precision=hp)
    h = jax.nn.relu(bn(h, g2, b2))
    h = jnp.einsum('nhwp,pc->nhwc', h, w3, precision=hp)
    h = bn(h, g3, b3)
    out = jax.nn.relu(h + x)
    return jnp.transpose(out, (0, 3, 1, 2))


if __name__ == "__main__":
    # Small shapes: batch=2, inplanes=16, planes=4 (planes*4 == inplanes),
    # spatial 16x16, stride=1, downsample=None. Input is NCHW like PyTorch.
    N, H, W = 2, 16, 16
    planes = 4
    inplanes = planes * 4

    key = jax.random.PRNGKey(0)
    kx, kp = jax.random.split(key)
    x = jax.random.normal(kx, (N, inplanes, H, W), jnp.float32)
    params = init_params(kp, inplanes, planes)

    fwd = jax.jit(bottleneck_forward)
    out = jax.block_until_ready(fwd(x, params))

    assert out.shape == (N, inplanes, H, W)
    assert bool(jnp.isfinite(out).all()) and bool(jnp.all(out >= 0.0))

    ref = bottleneck_ref(x, params)
    max_diff = float(jnp.max(jnp.abs(out - ref)))
    # bf16 matmul operands -> small deviation from the f32 reference is expected.
    assert max_diff < 0.35, f"max abs diff vs reference too large: {max_diff}"

    print("KERNEL_OK")
</pallas_src>

<mosaic_0001>
module attributes {stable_mosaic.version = 11 : i64} {
  func.func @_conv1_kernel(%arg0: i32, %arg1: memref<1x16x16x128xbf16, #tpu.memory_space<vmem>>, %arg2: memref<128x128xbf16, #tpu.memory_space<vmem>>, %arg3: memref<1x16x16x128xbf16, #tpu.memory_space<vmem>>, %arg4: memref<1x2x128xf32, #tpu.memory_space<vmem>>) attributes {dimension_semantics = [#tpu.dimension_semantics<parallel>], iteration_bounds = array<i64: 2>, scalar_prefetch = 0 : i64, scratch_operands = 0 : i64, tpu.core_type = #tpu.core_type<tc>, window_params = [{transform_indices = @transform_0, window_bounds = array<i64: 1, 16, 16, 128>}, {pipeline_mode = #tpu.pipeline_mode<synchronous>, transform_indices = @transform_1, window_bounds = array<i64: 128, 128>}, {transform_indices = @transform_2, window_bounds = array<i64: 1, 16, 16, 128>}, {transform_indices = @transform_3, window_bounds = array<i64: 1, 2, 128>}]} {
    %c0 = arith.constant 0 : index
    %c0_0 = arith.constant 0 : index
    %c0_1 = arith.constant 0 : index
    %c0_2 = arith.constant 0 : index
    %0 = vector.load %arg1[%c0, %c0_0, %c0_1, %c0_2] : memref<1x16x16x128xbf16, #tpu.memory_space<vmem>>, vector<1x16x16x128xbf16>
    %1 = vector.shape_cast %0 : vector<1x16x16x128xbf16> to vector<256x128xbf16>
    %c0_3 = arith.constant 0 : index
    %c0_4 = arith.constant 0 : index
    %2 = vector.load %arg2[%c0_3, %c0_4] : memref<128x128xbf16, #tpu.memory_space<vmem>>, vector<128x128xbf16>
    %cst = arith.constant dense<0.000000e+00> : vector<256x128xf32>
    %3 = tpu.matmul %1, %2, %cst {dimension_numbers = #tpu.dot_dimension_numbers<[1], [0], [0], [1], [0, 0, 1, 1], [], []>} : vector<256x128xbf16>, vector<128x128xbf16>, vector<256x128xf32> -> vector<256x128xf32>
    %4 = arith.truncf %3 : vector<256x128xf32> to vector<256x128xbf16>
    %5 = vector.shape_cast %4 : vector<256x128xbf16> to vector<1x16x16x128xbf16>
    %c0_5 = arith.constant 0 : index
    %c0_6 = arith.constant 0 : index
    %c0_7 = arith.constant 0 : index
    %c0_8 = arith.constant 0 : index
    %6 = vector.load %arg3[%c0_5, %c0_6, %c0_7, %c0_8] : memref<1x16x16x128xbf16, #tpu.memory_space<vmem>>, vector<1x16x16x128xbf16>
    tpu.vector_store %arg3[%c0_5, %c0_6, %c0_7, %c0_8], %5 {strides = array<i32>} : memref<1x16x16x128xbf16, #tpu.memory_space<vmem>>, vector<1x16x16x128xbf16>,
    %7 = arith.extf %4 : vector<256x128xbf16> to vector<256x128xf32>
    %cst_9 = arith.constant dense<0.000000e+00> : vector<128xf32>
    %8 = vector.multi_reduction <add>, %7, %cst_9 [0] : vector<256x128xf32> to vector<128xf32>
    %9 = vector.shape_cast %8 : vector<128xf32> to vector<1x128xf32>
    %10 = arith.mulf %7, %7 : vector<256x128xf32>
    %cst_10 = arith.constant dense<0.000000e+00> : vector<128xf32>
    %11 = vector.multi_reduction <add>, %10, %cst_10 [0] : vector<256x128xf32> to vector<128xf32>
    %12 = vector.shape_cast %11 : vector<128xf32> to vector<1x128xf32>
    %13 = tpu.concatenate %9, %12 in 0 : vector<1x128xf32>, vector<1x128xf32> -> vector<2x128xf32>
    %14 = vector.shape_cast %13 : vector<2x128xf32> to vector<1x2x128xf32>
    %c0_11 = arith.constant 0 : index
    %c0_12 = arith.constant 0 : index
    %c0_13 = arith.constant 0 : index
    %15 = vector.load %arg4[%c0_11, %c0_12, %c0_13] : memref<1x2x128xf32, #tpu.memory_space<vmem>>, vector<1x2x128xf32>
    tpu.vector_store %arg4[%c0_11, %c0_12, %c0_13], %14 {strides = array<i32>} : memref<1x2x128xf32, #tpu.memory_space<vmem>>, vector<1x2x128xf32>,
    return
  }
  func.func @transform_0(%arg0: i32) -> (i32, i32, i32, i32) {
    %c0_i32 = arith.constant 0 : i32
    %c0_i32_0 = arith.constant 0 : i32
    %c0_i32_1 = arith.constant 0 : i32
    %c0_i32_2 = arith.constant 0 : i32
    return %arg0, %c0_i32, %c0_i32_0, %c0_i32_1 : i32, i32, i32, i32
  }
  func.func @transform_1(%arg0: i32) -> (i32, i32) {
    %c0_i32 = arith.constant 0 : i32
    %c0_i32_0 = arith.constant 0 : i32
    %c0_i32_1 = arith.constant 0 : i32
    return %c0_i32, %c0_i32_0 : i32, i32
  }
  func.func @transform_2(%arg0: i32) -> (i32, i32, i32, i32) {
    %c0_i32 = arith.constant 0 : i32
    %c0_i32_0 = arith.constant 0 : i32
    %c0_i32_1 = arith.constant 0 : i32
    %c0_i32_2 = arith.constant 0 : i32
    return %arg0, %c0_i32, %c0_i32_0, %c0_i32_1 : i32, i32, i32, i32
  }
  func.func @transform_3(%arg0: i32) -> (i32, i32, i32) {
    %c0_i32 = arith.constant 0 : i32
    %c0_i32_0 = arith.constant 0 : i32
    %c0_i32_1 = arith.constant 0 : i32
    return %arg0, %c0_i32, %c0_i32_0 : i32, i32, i32
  }
}

module attributes {stable_mosaic.version = 11 : i64} {
  func.func @_conv2_kernel(%arg0: i32, %arg1: memref<1x16x16x128xbf16, #tpu.memory_space<vmem>>, %arg2: memref<1x128xf32, #tpu.memory_space<vmem>>, %arg3: memref<1x128xf32, #tpu.memory_space<vmem>>, %arg4: memref<1152x128xbf16, #tpu.memory_space<vmem>>, %arg5: memref<1x16x16x128xbf16, #tpu.memory_space<vmem>>, %arg6: memref<1x2x128xf32, #tpu.memory_space<vmem>>, %arg7: memref<18x18x128xf32, #tpu.memory_space<vmem>>, %arg8: memref<256x1152xbf16, #tpu.memory_space<vmem>>) attributes {dimension_semantics = [#tpu.dimension_semantics<parallel>], iteration_bounds = array<i64: 2>, scalar_prefetch = 0 : i64, scratch_operands = 2 : i64, tpu.core_type = #tpu.core_type<tc>, window_params = [{transform_indices = @transform_0, window_bounds = array<i64: 1, 16, 16, 128>}, {pipeline_mode = #tpu.pipeline_mode<synchronous>, transform_indices = @transform_1, window_bounds = array<i64: 1, 128>}, {pipeline_mode = #tpu.pipeline_mode<synchronous>, transform_indices = @transform_2, window_bounds = array<i64: 1, 128>}, {pipeline_mode = #tpu.pipeline_mode<synchronous>, transform_indices = @transform_3, window_bounds = array<i64: 1152, 128>}, {transform_indices = @transform_4, window_bounds = array<i64: 1, 16, 16, 128>}, {transform_indices = @transform_5, window_bounds = array<i64: 1, 2, 128>}]} {
    %c0 = arith.constant 0 : index
    %c0_0 = arith.constant 0 : index
    %c0_1 = arith.constant 0 : index
    %c0_2 = arith.constant 0 : index
    %0 = vector.load %arg1[%c0, %c0_0, %c0_1, %c0_2] : memref<1x16x16x128xbf16, #tpu.memory_space<vmem>>, vector<1x16x16x128xbf16>
    %1 = vector.shape_cast %0 : vector<1x16x16x128xbf16> to vector<256x128xbf16>
    %2 = arith.extf %1 : vector<256x128xbf16> to vector<256x128xf32>
    %c0_3 = arith.constant 0 : index
    %c0_4 = arith.constant 0 : index
    %3 = vector.load %arg2[%c0_3, %c0_4] : memref<1x128xf32, #tpu.memory_space<vmem>>, vector<1x128xf32>
    %4 = vector.broadcast %3 : vector<1x128xf32> to vector<256x128xf32>
    %5 = arith.mulf %2, %4 : vector<256x128xf32>
    %c0_5 = arith.constant 0 : index
    %c0_6 = arith.constant 0 : index
    %6 = vector.load %arg3[%c0_5, %c0_6] : memref<1x128xf32, #tpu.memory_space<vmem>>, vector<1x128xf32>
    %7 = vector.broadcast %6 : vector<1x128xf32> to vector<256x128xf32>
    %8 = arith.addf %5, %7 : vector<256x128xf32>
    %cst = arith.constant 0.000000e+00 : f32
    %9 = vector.broadcast %cst : f32 to vector<256x128xf32>
    %10 = arith.maximumf %8, %9 : vector<256x128xf32>
    %cst_7 = arith.constant 0.000000e+00 : f32
    %11 = vector.broadcast %cst_7 : f32 to vector<1x18x128xf32>
    %cst_8 = arith.constant 0.000000e+00 : f32
    %12 = vector.broadcast %cst_8 : f32 to vector<18x1x128xf32>
    %c0_9 = arith.constant 0 : index
    %c0_10 = arith.constant 0 : index
    %c0_11 = arith.constant 0 : index
    %13 = vector.load %arg7[%c0_9, %c0_10, %c0_11] : memref<18x18x128xf32, #tpu.memory_space<vmem>>, vector<1x18x128xf32>
    tpu.vector_store %arg7[%c0_9, %c0_10, %c0_11], %11 {strides = array<i32>} : memref<18x18x128xf32, #tpu.memory_space<vmem>>, vector<1x18x128xf32>,
    %c17 = arith.constant 17 : index
    %c0_12 = arith.constant 0 : index
    %c0_13 = arith.constant 0 : index
    %14 = vector.load %arg7[%c17, %c0_12, %c0_13] : memref<18x18x128xf32, #tpu.memory_space<vmem>>, vector<1x18x128xf32>
    tpu.vector_store %arg7[%c17, %c0_12, %c0_13], %11 {strides = array<i32>} : memref<18x18x128xf32, #tpu.memory_space<vmem>>, vector<1x18x128xf32>,
    %c0_14 = arith.constant 0 : index
    %c0_15 = arith.constant 0 : index
    %c0_16 = arith.constant 0 : index
    %15 = vector.load %arg7[%c0_14, %c0_15, %c0_16] : memref<18x18x128xf32, #tpu.memory_space<vmem>>, vector<18x1x128xf32>
    tpu.vector_store %arg7[%c0_14, %c0_15, %c0_16], %12 {strides = array<i32>} : memref<18x18x128xf32, #tpu.memory_space<vmem>>, vector<18x1x128xf32>,
    %c0_17 = arith.constant 0 : index
    %c17_18 = arith.constant 17 : index
    %c0_19 = arith.constant 0 : index
    %16 = vector.load %arg7[%c0_17, %c17_18, %c0_19] : memref<18x18x128xf32, #tpu.memory_space<vmem>>, vector<18x1x128xf32>
    tpu.vector_store %arg7[%c0_17, %c17_18, %c0_19], %12 {strides = array<i32>} : memref<18x18x128xf32, #tpu.memory_space<vmem>>, vector<18x1x128xf32>,
    %17 = vector.shape_cast %10 : vector<256x128xf32> to vector<16x16x128xf32>
    %c1 = arith.constant 1 : index
    %c1_20 = arith.constant 1 : index
    %c0_21 = arith.constant 0 : index
    %18 = vector.load %arg7[%c1, %c1_20, %c0_21] : memref<18x18x128xf32, #tpu.memory_space<vmem>>, vector<16x16x128xf32>
    tpu.vector_store %arg7[%c1, %c1_20, %c0_21], %17 {strides = array<i32>} : memref<18x18x128xf32, #tpu.memory_space<vmem>>, vector<16x16x128xf32>,
    %c0_22 = arith.constant 0 : index
    %c0_23 = arith.constant 0 : index
    %c0_24 = arith.constant 0 : index
    %19 = vector.load %arg7[%c0_22, %c0_23, %c0_24] : memref<18x18x128xf32, #tpu.memory_space<vmem>>, vector<16x16x128xf32>
    %20 = vector.shape_cast %19 : vector<16x16x128xf32> to vector<256x128xf32>
    %21 = arith.truncf %20 : vector<256x128xf32> to vector<256x128xbf16>
    %c0_25 = arith.constant 0 : index
    %c0_26 = arith.constant 0 : index
    %22 = vector.load %arg8[%c0_25, %c0_26] : memref<256x1152xbf16, #tpu.memory_space<vmem>>, vector<256x128xbf16>
    tpu.vector_store %arg8[%c0_25, %c0_26], %21 {strides = array<i32>} : memref<256x1152xbf16, #tpu.memory_space<vmem>>, vector<256x128xbf16>,
    %c0_27 = arith.constant 0 : index
    %c1_28 = arith.constant 1 : index
    %c0_29 = arith.constant 0 : index
    %23 = vector.load %arg7[%c0_27, %c1_28, %c0_29] : memref<18x18x128xf32, #tpu.memory_space<vmem>>, vector<16x16x128xf32>
    %24 = vector.shape_cast %23 : vector<16x16x128xf32> to vector<256x128xf32>
    %25 = arith.truncf %24 : vector<256x128xf32> to vector<256x128xbf16>
    %c0_30 = arith.constant 0 : index
    %c128 = arith.constant 128 : index
    %26 = vector.load %arg8[%c0_30, %c128] : memref<256x1152xbf16, #tpu.memory_space<vmem>>, vector<256x128xbf16>
    tpu.vector_store %arg8[%c0_30, %c128], %25 {strides = array<i32>} : memref<256x1152xbf16, #tpu.memory_space<vmem>>, vector<256x128xbf16>,
    %c0_31 = arith.constant 0 : index
    %c2 = arith.constant 2 : index
    %c0_32 = arith.constant 0 : index
    %27 = vector.load %arg7[%c0_31, %c2, %c0_32] : memref<18x18x128xf32, #tpu.memory_space<vmem>>, vector<16x16x128xf32>
    %28 = vector.shape_cast %27 : vector<16x16x128xf32> to vector<256x128xf32>
    %29 = arith.truncf %28 : vector<256x128xf32> to vector<256x128xbf16>
    %c0_33 = arith.constant 0 : index
    %c256 = arith.constant 256 : index
    %30 = vector.load %arg8[%c0_33, %c256] : memref<256x1152xbf16, #tpu.memory_space<vmem>>, vector<256x128xbf16>
    tpu.vector_store %arg8[%c0_33, %c256], %29 {strides = array<i32>} : memref<256x1152xbf16, #tpu.memory_space<vmem>>, vector<256x128xbf16>,
    %c1_34 = arith.constant 1 : index
    %c0_35 = arith.constant 0 : index
    %c0_36 = arith.constant 0 : index
    %31 = vector.load %arg7[%c1_34, %c0_35, %c0_36] : memref<18x18x128xf32, #tpu.memory_space<vmem>>, vector<16x16x128xf32>
    %32 = vector.shape_cast %31 : vector<16x16x128xf32> to vector<256x128xf32>
    %33 = arith.truncf %32 : vector<256x128xf32> to vector<256x128xbf16>
    %c0_37 = arith.constant 0 : index
    %c384 = arith.constant 384 : index
    %34 = vector.load %arg8[%c0_37, %c384] : memref<256x1152xbf16, #tpu.memory_space<vmem>>, vector<256x128xbf16>
    tpu.vector_store %arg8[%c0_37, %c384], %33 {strides = array<i32>} : memref<256x1152xbf16, #tpu.memory_space<vmem>>, vector<256x128xbf16>,
    %c1_38 = arith.constant 1 : index
    %c1_39 = arith.constant 1 : index
    %c0_40 = arith.constant 0 : index
    %35 = vector.load %arg7[%c1_38, %c1_39, %c0_40] : memref<18x18x128xf32, #tpu.memory_space<vmem>>, vector<16x16x128xf32>
    %36 = vector.shape_cast %35 : vector<16x16x128xf32> to vector<256x128xf32>
    %37 = arith.truncf %36 : vector<256x128xf32> to vector<256x128xbf16>
    %c0_41 = arith.constant 0 : index
    %c512 = arith.constant 512 : index
    %38 = vector.load %arg8[%c0_41, %c512] : memref<256x1152xbf16, #tpu.memory_space<vmem>>, vector<256x128xbf16>
    tpu.vector_store %arg8[%c0_41, %c512], %37 {strides = array<i32>} : memref<256x1152xbf16, #tpu.memory_space<vmem>>, vector<256x128xbf16>,
    %c1_42 = arith.constant 1 : index
    %c2_43 = arith.constant 2 : index
    %c0_44 = arith.constant 0 : index
    %39 = vector.load %arg7[%c1_42, %c2_43, %c0_44] : memref<18x18x128xf32, #tpu.memory_space<vmem>>, vector<16x16x128xf32>
    %40 = vector.shape_cast %39 : vector<16x16x128xf32> to vector<256x128xf32>
    %41 = arith.truncf %40 : vector<256x128xf32> to vector<256x128xbf16>
    %c0_45 = arith.constant 0 : index
    %c640 = arith.constant 640 : index
    %42 = vector.load %arg8[%c0_45, %c640] : memref<256x1152xbf16, #tpu.memory_space<vmem>>, vector<256x128xbf16>
    tpu.vector_store %arg8[%c0_45, %c640], %41 {strides = array<i32>} : memref<256x1152xbf16, #tpu.memory_space<vmem>>, vector<256x128xbf16>,
    %c2_46 = arith.constant 2 : index
    %c0_47 = arith.constant 0 : index
    %c0_48 = arith.constant 0 : index
    %43 = vector.load %arg7[%c2_46, %c0_47, %c0_48] : memref<18x18x128xf32, #tpu.memory_space<vmem>>, vector<16x16x128xf32>
    %44 = vector.shape_cast %43 : vector<16x16x128xf32> to vector<256x128xf32>
    %45 = arith.truncf %44 : vector<256x128xf32> to vector<256x128xbf16>
    %c0_49 = arith.constant 0 : index
    %c768 = arith.constant 768 : index
    %46 = vector.load %arg8[%c0_49, %c768] : memref<256x1152xbf16, #tpu.memory_space<vmem>>, vector<256x128xbf16>
    tpu.vector_store %arg8[%c0_49, %c768], %45 {strides = array<i32>} : memref<256x1152xbf16, #tpu.memory_space<vmem>>, vector<256x128xbf16>,
    %c2_50 = arith.constant 2 : index
    %c1_51 = arith.constant 1 : index
    %c0_52 = arith.constant 0 : index
    %47 = vector.load %arg7[%c2_50, %c1_51, %c0_52] : memref<18x18x128xf32, #tpu.memory_space<vmem>>, vector<16x16x128xf32>
    %48 = vector.shape_cast %47 : vector<16x16x128xf32> to vector<256x128xf32>
    %49 = arith.truncf %48 : vector<256x128xf32> to vector<256x128xbf16>
    %c0_53 = arith.constant 0 : index
    %c896 = arith.constant 896 : index
    %50 = vector.load %arg8[%c0_53, %c896] : memref<256x1152xbf16, #tpu.memory_space<vmem>>, vector<256x128xbf16>
    tpu.vector_store %arg8[%c0_53, %c896], %49 {strides = array<i32>} : memref<256x1152xbf16, #tpu.memory_space<vmem>>, vector<256x128xbf16>,
    %c2_54 = arith.constant 2 : index
    %c2_55 = arith.constant 2 : index
    %c0_56 = arith.constant 0 : index
    %51 = vector.load %arg7[%c2_54, %c2_55, %c0_56] : memref<18x18x128xf32, #tpu.memory_space<vmem>>, vector<16x16x128xf32>
    %52 = vector.shape_cast %51 : vector<16x16x128xf32> to vector<256x128xf32>
    %53 = arith.truncf %52 : vector<256x128xf32> to vector<256x128xbf16>
    %c0_57 = arith.constant 0 : index
    %c1024 = arith.constant 1024 : index
    %54 = vector.load %arg8[%c0_57, %c1024] : memref<256x1152xbf16, #tpu.memory_space<vmem>>, vector<256x128xbf16>
    tpu.vector_store %arg8[%c0_57, %c1024], %53 {strides = array<i32>} : memref<256x1152xbf16, #tpu.memory_space<vmem>>, vector<256x128xbf16>,
    %c0_58 = arith.constant 0 : index
    %c0_59 = arith.constant 0 : index
    %55 = vector.load %arg8[%c0_58, %c0_59] : memref<256x1152xbf16, #tpu.memory_space<vmem>>, vector<256x1152xbf16>
    %c0_60 = arith.constant 0 : index
    %c0_61 = arith.constant 0 : index
    %56 = vector.load %arg4[%c0_60, %c0_61] : memref<1152x128xbf16, #tpu.memory_space<vmem>>, vector<1152x128xbf16>
    %cst_62 = arith.constant dense<0.000000e+00> : vector<256x128xf32>
    %57 = tpu.matmul %55, %56, %cst_62 {dimension_numbers = #tpu.dot_dimension_numbers<[1], [0], [0], [1], [0, 0, 1, 1], [], []>} : vector<256x1152xbf16>, vector<1152x128xbf16>, vector<256x128xf32> -> vector<256x128xf32>
    %58 = arith.truncf %57 : vector<256x128xf32> to vector<256x128xbf16>
    %59 = vector.shape_cast %58 : vector<256x128xbf16> to vector<1x16x16x128xbf16>
    %c0_63 = arith.constant 0 : index
    %c0_64 = arith.constant 0 : index
    %c0_65 = arith.constant 0 : index
    %c0_66 = arith.constant 0 : index
    %60 = vector.load %arg5[%c0_63, %c0_64, %c0_65, %c0_66] : memref<1x16x16x128xbf16, #tpu.memory_space<vmem>>, vector<1x16x16x128xbf16>
    tpu.vector_store %arg5[%c0_63, %c0_64, %c0_65, %c0_66], %59 {strides = array<i32>} : memref<1x16x16x128xbf16, #tpu.memory_space<vmem>>, vector<1x16x16x128xbf16>,
    %61 = arith.extf %58 : vector<256x128xbf16> to vector<256x128xf32>
    %cst_67 = arith.constant dense<0.000000e+00> : vector<128xf32>
    %62 = vector.multi_reduction <add>, %61, %cst_67 [0] : vector<256x128xf32> to vector<128xf32>
    %63 = vector.shape_cast %62 : vector<128xf32> to vector<1x128xf32>
    %64 = arith.mulf %61, %61 : vector<256x128xf32>
    %cst_68 = arith.constant dense<0.000000e+00> : vector<128xf32>
    %65 = vector.multi_reduction <add>, %64, %cst_68 [0] : vector<256x128xf32> to vector<128xf32>
    %66 = vector.shape_cast %65 : vector<128xf32> to vector<1x128xf32>
    %67 = tpu.concatenate %63, %66 in 0 : vector<1x128xf32>, vector<1x128xf32> -> vector<2x128xf32>
    %68 = vector.shape_cast %67 : vector<2x128xf32> to vector<1x2x128xf32>
    %c0_69 = arith.constant 0 : index
    %c0_70 = arith.constant 0 : index
    %c0_71 = arith.constant 0 : index
    %69 = vector.load %arg6[%c0_69, %c0_70, %c0_71] : memref<1x2x128xf32, #tpu.memory_space<vmem>>, vector<1x2x128xf32>
    tpu.vector_store %arg6[%c0_69, %c0_70, %c0_71], %68 {strides = array<i32>} : memref<1x2x128xf32, #tpu.memory_space<vmem>>, vector<1x2x128xf32>,
    return
  }
  func.func @transform_0(%arg0: i32) -> (i32, i32, i32, i32) {
    %c0_i32 = arith.constant 0 : i32
    %c0_i32_0 = arith.constant 0 : i32
    %c0_i32_1 = arith.constant 0 : i32
    %c0_i32_2 = arith.constant 0 : i32
    return %arg0, %c0_i32, %c0_i32_0, %c0_i32_1 : i32, i32, i32, i32
  }
  func.func @transform_1(%arg0: i32) -> (i32, i32) {
    %c0_i32 = arith.constant 0 : i32
    %c0_i32_0 = arith.constant 0 : i32
    %c0_i32_1 = arith.constant 0 : i32
    return %c0_i32, %c0_i32_0 : i32, i32
  }
  func.func @transform_2(%arg0: i32) -> (i32, i32) {
    %c0_i32 = arith.constant 0 : i32
    %c0_i32_0 = arith.constant 0 : i32
    %c0_i32_1 = arith.constant 0 : i32
    return %c0_i32, %c0_i32_0 : i32, i32
  }
  func.func @transform_3(%arg0: i32) -> (i32, i32) {
    %c0_i32 = arith.constant 0 : i32
    %c0_i32_0 = arith.constant 0 : i32
    %c0_i32_1 = arith.constant 0 : i32
    return %c0_i32, %c0_i32_0 : i32, i32
  }
  func.func @transform_4(%arg0: i32) -> (i32, i32, i32, i32) {
    %c0_i32 = arith.constant 0 : i32
    %c0_i32_0 = arith.constant 0 : i32
    %c0_i32_1 = arith.constant 0 : i32
    %c0_i32_2 = arith.constant 0 : i32
    return %arg0, %c0_i32, %c0_i32_0, %c0_i32_1 : i32, i32, i32, i32
  }
  func.func @transform_5(%arg0: i32) -> (i32, i32, i32) {
    %c0_i32 = arith.constant 0 : i32
    %c0_i32_0 = arith.constant 0 : i32
    %c0_i32_1 = arith.constant 0 : i32
    return %arg0, %c0_i32, %c0_i32_0 : i32, i32, i32
  }
}

module attributes {stable_mosaic.version = 11 : i64} {
  func.func @_conv3_kernel(%arg0: i32, %arg1: memref<1x16x16x128xbf16, #tpu.memory_space<vmem>>, %arg2: memref<1x128xf32, #tpu.memory_space<vmem>>, %arg3: memref<1x128xf32, #tpu.memory_space<vmem>>, %arg4: memref<128x128xbf16, #tpu.memory_space<vmem>>, %arg5: memref<1x16x16x128xbf16, #tpu.memory_space<vmem>>, %arg6: memref<1x2x128xf32, #tpu.memory_space<vmem>>) attributes {dimension_semantics = [#tpu.dimension_semantics<parallel>], iteration_bounds = array<i64: 2>, scalar_prefetch = 0 : i64, scratch_operands = 0 : i64, tpu.core_type = #tpu.core_type<tc>, window_params = [{transform_indices = @transform_0, window_bounds = array<i64: 1, 16, 16, 128>}, {pipeline_mode = #tpu.pipeline_mode<synchronous>, transform_indices = @transform_1, window_bounds = array<i64: 1, 128>}, {pipeline_mode = #tpu.pipeline_mode<synchronous>, transform_indices = @transform_2, window_bounds = array<i64: 1, 128>}, {pipeline_mode = #tpu.pipeline_mode<synchronous>, transform_indices = @transform_3, window_bounds = array<i64: 128, 128>}, {transform_indices = @transform_4, window_bounds = array<i64: 1, 16, 16, 128>}, {transform_indices = @transform_5, window_bounds = array<i64: 1, 2, 128>}]} {
    %c0 = arith.constant 0 : index
    %c0_0 = arith.constant 0 : index
    %c0_1 = arith.constant 0 : index
    %c0_2 = arith.constant 0 : index
    %0 = vector.load %arg1[%c0, %c0_0, %c0_1, %c0_2] : memref<1x16x16x128xbf16, #tpu.memory_space<vmem>>, vector<1x16x16x128xbf16>
    %1 = vector.shape_cast %0 : vector<1x16x16x128xbf16> to vector<256x128xbf16>
    %2 = arith.extf %1 : vector<256x128xbf16> to vector<256x128xf32>
    %c0_3 = arith.constant 0 : index
    %c0_4 = arith.constant 0 : index
    %3 = vector.load %arg2[%c0_3, %c0_4] : memref<1x128xf32, #tpu.memory_space<vmem>>, vector<1x128xf32>
    %4 = vector.broadcast %3 : vector<1x128xf32> to vector<256x128xf32>
    %5 = arith.mulf %2, %4 : vector<256x128xf32>
    %c0_5 = arith.constant 0 : index
    %c0_6 = arith.constant 0 : index
    %6 = vector.load %arg3[%c0_5, %c0_6] : memref<1x128xf32, #tpu.memory_space<vmem>>, vector<1x128xf32>
    %7 = vector.broadcast %6 : vector<1x128xf32> to vector<256x128xf32>
    %8 = arith.addf %5, %7 : vector<256x128xf32>
    %cst = arith.constant 0.000000e+00 : f32
    %9 = vector.broadcast %cst : f32 to vector<256x128xf32>
    %10 = arith.maximumf %8, %9 : vector<256x128xf32>
    %11 = arith.truncf %10 : vector<256x128xf32> to vector<256x128xbf16>
    %c0_7 = arith.constant 0 : index
    %c0_8 = arith.constant 0 : index
    %12 = vector.load %arg4[%c0_7, %c0_8] : memref<128x128xbf16, #tpu.memory_space<vmem>>, vector<128x128xbf16>
    %cst_9 = arith.constant dense<0.000000e+00> : vector<256x128xf32>
    %13 = tpu.matmul %11, %12, %cst_9 {dimension_numbers = #tpu.dot_dimension_numbers<[1], [0], [0], [1], [0, 0, 1, 1], [], []>} : vector<256x128xbf16>, vector<128x128xbf16>, vector<256x128xf32> -> vector<256x128xf32>
    %14 = arith.truncf %13 : vector<256x128xf32> to vector<256x128xbf16>
    %15 = vector.shape_cast %14 : vector<256x128xbf16> to vector<1x16x16x128xbf16>
    %c0_10 = arith.constant 0 : index
    %c0_11 = arith.constant 0 : index
    %c0_12 = arith.constant 0 : index
    %c0_13 = arith.constant 0 : index
    %16 = vector.load %arg5[%c0_10, %c0_11, %c0_12, %c0_13] : memref<1x16x16x128xbf16, #tpu.memory_space<vmem>>, vector<1x16x16x128xbf16>
    tpu.vector_store %arg5[%c0_10, %c0_11, %c0_12, %c0_13], %15 {strides = array<i32>} : memref<1x16x16x128xbf16, #tpu.memory_space<vmem>>, vector<1x16x16x128xbf16>,
    %17 = arith.extf %14 : vector<256x128xbf16> to vector<256x128xf32>
    %cst_14 = arith.constant dense<0.000000e+00> : vector<128xf32>
    %18 = vector.multi_reduction <add>, %17, %cst_14 [0] : vector<256x128xf32> to vector<128xf32>
    %19 = vector.shape_cast %18 : vector<128xf32> to vector<1x128xf32>
    %20 = arith.mulf %17, %17 : vector<256x128xf32>
    %cst_15 = arith.constant dense<0.000000e+00> : vector<128xf32>
    %21 = vector.multi_reduction <add>, %20, %cst_15 [0] : vector<256x128xf32> to vector<128xf32>
    %22 = vector.shape_cast %21 : vector<128xf32> to vector<1x128xf32>
    %23 = tpu.concatenate %19, %22 in 0 : vector<1x128xf32>, vector<1x128xf32> -> vector<2x128xf32>
    %24 = vector.shape_cast %23 : vector<2x128xf32> to vector<1x2x128xf32>
    %c0_16 = arith.constant 0 : index
    %c0_17 = arith.constant 0 : index
    %c0_18 = arith.constant 0 : index
    %25 = vector.load %arg6[%c0_16, %c0_17, %c0_18] : memref<1x2x128xf32, #tpu.memory_space<vmem>>, vector<1x2x128xf32>
    tpu.vector_store %arg6[%c0_16, %c0_17, %c0_18], %24 {strides = array<i32>} : memref<1x2x128xf32, #tpu.memory_space<vmem>>, vector<1x2x128xf32>,
    return
  }
  func.func @transform_0(%arg0: i32) -> (i32, i32, i32, i32) {
    %c0_i32 = arith.constant 0 : i32
    %c0_i32_0 = arith.constant 0 : i32
    %c0_i32_1 = arith.constant 0 : i32
    %c0_i32_2 = arith.constant 0 : i32
    return %arg0, %c0_i32, %c0_i32_0, %c0_i32_1 : i32, i32, i32, i32
  }
  func.func @transform_1(%arg0: i32) -> (i32, i32) {
    %c0_i32 = arith.constant 0 : i32
    %c0_i32_0 = arith.constant 0 : i32
    %c0_i32_1 = arith.constant 0 : i32
    return %c0_i32, %c0_i32_0 : i32, i32
  }
  func.func @transform_2(%arg0: i32) -> (i32, i32) {
    %c0_i32 = arith.constant 0 : i32
    %c0_i32_0 = arith.constant 0 : i32
    %c0_i32_1 = arith.constant 0 : i32
    return %c0_i32, %c0_i32_0 : i32, i32
  }
  func.func @transform_3(%arg0: i32) -> (i32, i32) {
    %c0_i32 = arith.constant 0 : i32
    %c0_i32_0 = arith.constant 0 : i32
    %c0_i32_1 = arith.constant 0 : i32
    return %c0_i32, %c0_i32_0 : i32, i32
  }
  func.func @transform_4(%arg0: i32) -> (i32, i32, i32, i32) {
    %c0_i32 = arith.constant 0 : i32
    %c0_i32_0 = arith.constant 0 : i32
    %c0_i32_1 = arith.constant 0 : i32
    %c0_i32_2 = arith.constant 0 : i32
    return %arg0, %c0_i32, %c0_i32_0, %c0_i32_1 : i32, i32, i32, i32
  }
  func.func @transform_5(%arg0: i32) -> (i32, i32, i32) {
    %c0_i32 = arith.constant 0 : i32
    %c0_i32_0 = arith.constant 0 : i32
    %c0_i32_1 = arith.constant 0 : i32
    return %arg0, %c0_i32, %c0_i32_0 : i32, i32, i32
  }
}

module attributes {stable_mosaic.version = 11 : i64} {
  func.func @_bn3_residual_kernel(%arg0: i32, %arg1: memref<1x16x16x128xbf16, #tpu.memory_space<vmem>>, %arg2: memref<1x128xf32, #tpu.memory_space<vmem>>, %arg3: memref<1x128xf32, #tpu.memory_space<vmem>>, %arg4: memref<1x16x16x128xf32, #tpu.memory_space<vmem>>, %arg5: memref<1x16x16x128xf32, #tpu.memory_space<vmem>>) attributes {dimension_semantics = [#tpu.dimension_semantics<parallel>], iteration_bounds = array<i64: 2>, scalar_prefetch = 0 : i64, scratch_operands = 0 : i64, tpu.core_type = #tpu.core_type<tc>, window_params = [{transform_indices = @transform_0, window_bounds = array<i64: 1, 16, 16, 128>}, {pipeline_mode = #tpu.pipeline_mode<synchronous>, transform_indices = @transform_1, window_bounds = array<i64: 1, 128>}, {pipeline_mode = #tpu.pipeline_mode<synchronous>, transform_indices = @transform_2, window_bounds = array<i64: 1, 128>}, {transform_indices = @transform_3, window_bounds = array<i64: 1, 16, 16, 128>}, {transform_indices = @transform_4, window_bounds = array<i64: 1, 16, 16, 128>}]} {
    %c0 = arith.constant 0 : index
    %c0_0 = arith.constant 0 : index
    %c0_1 = arith.constant 0 : index
    %c0_2 = arith.constant 0 : index
    %0 = vector.load %arg1[%c0, %c0_0, %c0_1, %c0_2] : memref<1x16x16x128xbf16, #tpu.memory_space<vmem>>, vector<1x16x16x128xbf16>
    %1 = vector.shape_cast %0 : vector<1x16x16x128xbf16> to vector<256x128xbf16>
    %2 = arith.extf %1 : vector<256x128xbf16> to vector<256x128xf32>
    %c0_3 = arith.constant 0 : index
    %c0_4 = arith.constant 0 : index
    %3 = vector.load %arg2[%c0_3, %c0_4] : memref<1x128xf32, #tpu.memory_space<vmem>>, vector<1x128xf32>
    %4 = vector.broadcast %3 : vector<1x128xf32> to vector<256x128xf32>
    %5 = arith.mulf %2, %4 : vector<256x128xf32>
    %c0_5 = arith.constant 0 : index
    %c0_6 = arith.constant 0 : index
    %6 = vector.load %arg3[%c0_5, %c0_6] : memref<1x128xf32, #tpu.memory_space<vmem>>, vector<1x128xf32>
    %7 = vector.broadcast %6 : vector<1x128xf32> to vector<256x128xf32>
    %8 = arith.addf %5, %7 : vector<256x128xf32>
    %c0_7 = arith.constant 0 : index
    %c0_8 = arith.constant 0 : index
    %c0_9 = arith.constant 0 : index
    %c0_10 = arith.constant 0 : index
    %9 = vector.load %arg4[%c0_7, %c0_8, %c0_9, %c0_10] : memref<1x16x16x128xf32, #tpu.memory_space<vmem>>, vector<1x16x16x128xf32>
    %10 = vector.shape_cast %9 : vector<1x16x16x128xf32> to vector<256x128xf32>
    %11 = arith.addf %8, %10 : vector<256x128xf32>
    %cst = arith.constant 0.000000e+00 : f32
    %12 = vector.broadcast %cst : f32 to vector<256x128xf32>
    %13 = arith.maximumf %11, %12 : vector<256x128xf32>
    %14 = vector.shape_cast %13 : vector<256x128xf32> to vector<1x16x16x128xf32>
    %c0_11 = arith.constant 0 : index
    %c0_12 = arith.constant 0 : index
    %c0_13 = arith.constant 0 : index
    %c0_14 = arith.constant 0 : index
    %15 = vector.load %arg5[%c0_11, %c0_12, %c0_13, %c0_14] : memref<1x16x16x128xf32, #tpu.memory_space<vmem>>, vector<1x16x16x128xf32>
    tpu.vector_store %arg5[%c0_11, %c0_12, %c0_13, %c0_14], %14 {strides = array<i32>} : memref<1x16x16x128xf32, #tpu.memory_space<vmem>>, vector<1x16x16x128xf32>,
    return
  }
  func.func @transform_0(%arg0: i32) -> (i32, i32, i32, i32) {
    %c0_i32 = arith.constant 0 : i32
    %c0_i32_0 = arith.constant 0 : i32
    %c0_i32_1 = arith.constant 0 : i32
    %c0_i32_2 = arith.constant 0 : i32
    return %arg0, %c0_i32, %c0_i32_0, %c0_i32_1 : i32, i32, i32, i32
  }
  func.func @transform_1(%arg0: i32) -> (i32, i32) {
    %c0_i32 = arith.constant 0 : i32
    %c0_i32_0 = arith.constant 0 : i32
    %c0_i32_1 = arith.constant 0 : i32
    return %c0_i32, %c0_i32_0 : i32, i32
  }
  func.func @transform_2(%arg0: i32) -> (i32, i32) {
    %c0_i32 = arith.constant 0 : i32
    %c0_i32_0 = arith.constant 0 : i32
    %c0_i32_1 = arith.constant 0 : i32
    return %c0_i32, %c0_i32_0 : i32, i32
  }
  func.func @transform_3(%arg0: i32) -> (i32, i32, i32, i32) {
    %c0_i32 = arith.constant 0 : i32
    %c0_i32_0 = arith.constant 0 : i32
    %c0_i32_1 = arith.constant 0 : i32
    %c0_i32_2 = arith.constant 0 : i32
    return %arg0, %c0_i32, %c0_i32_0, %c0_i32_1 : i32, i32, i32, i32
  }
  func.func @transform_4(%arg0: i32) -> (i32, i32, i32, i32) {
    %c0_i32 = arith.constant 0 : i32
    %c0_i32_0 = arith.constant 0 : i32
    %c0_i32_1 = arith.constant 0 : i32
    %c0_i32_2 = arith.constant 0 : i32
    return %arg0, %c0_i32, %c0_i32_0, %c0_i32_1 : i32, i32, i32, i32
  }
}

</mosaic_0001>

<llo_original>
// kernel: bottleneck_forward.4
$region0: #{bottleneck_forward.4}
  #allocation0 [shape = 'u32[]', space=smem, size = 0x4, offset = 0x4, fixed_abs, tag = 'smem constant byte address 0x4 - core index']
  #allocation1 [shape = 'u32[144,128]{1,0:T(1,128)}', space=vmem, size = 0x12000, scoped, tag = 'internal scratch']
  %s0 = inlined_call_operand.vmem [shape: bf16[2,16,16,128], index: 0, kind: input, shape index: {}]
  %s1 = inlined_call_operand.vmem [shape: bf16[128,128], index: 1, kind: input, shape index: {}]
  %s2 = inlined_call_operand.vmem [shape: bf16[2,16,16,128], index: 2, kind: output, shape index: {0}]
  %s3 = inlined_call_operand.vmem [shape: f32[2,2,128], index: 3, kind: output, shape index: {1}]
  %4 = xla_tuple %s2, %s3
  %s5 = sld [smem:[#allocation0]]
  $region49: #{bottleneck_forward.4} parent=0
    _
  %s7 = ssub.s32 1, %s5
  %s8 = scalar_select 0, %s7, %s5
  loop: start=0, step=1, limit=4
  $region2: #{bottleneck_forward.4} parent=0 // loop_pre_header
    _
  $region3: #{bottleneck_forward.4} parent=0 // loop_header
    %s10 = sphi 0, %s14
    %p11 = scmp.ge.s32.totalorder %s10, 4
    %s20 = sphi 0, %s22
    %s23 = sphi 0, %s20
    %s24 = sphi 0, %s23
    %s40 = sphi 0, %s24
    %s44 = sphi 0, %s44
    %s46 = sphi 0, %s44
    %s47 = sphi 0, %s46
    %s61 = sphi 0, %s47
    %s67 = sphi 0, %s69
    %s70 = sphi 0, %s67
    %s71 = sphi 0, %s70
    %s87 = sphi 0, %s71
    %s93 = sphi 0, %s95
    %s96 = sphi 0, %s93
    %s97 = sphi 0, %s96
    %s113 = sphi 0, %s97
  $region4: #{bottleneck_forward.4} parent=0 // loop_header_branch
    %13 = sbr.rel (%p11) target = $region8
  $region5: #{bottleneck_forward.4} parent=0 // loop_body
    %s15 = ssub.s32 %s10, 1
    %s16 = ssub.s32 %s10, 2
    %s17 = sadd.s32 %s10, 1
    %s18 = ssub.s32 %s10, %s17
    %p19 = scmp.eq.s32.totalorder %s18, 0
    %s21 = sadd.s32 %s20, 1
    %s22 = scalar_select %p19, %s20, %s21
    %p25 = pneg %p19
    %p26 = scmp.eq.s32.totalorder %s10, 1
    %p27 = por %p25, %p26
    %p28 = scmp.ne.s32.totalorder %s20, %s23
    %p29 = scmp.eq.s32.totalorder %s10, 0
    %p30 = por %p28, %p29
    %p31 = scmp.ne.s32.totalorder %s20, %s23
    %p32 = scmp.eq.s32.totalorder %s15, 1
    %p33 = por %p31, %p32
    %p34 = scmp.ne.s32.totalorder %s23, %s24
    %p35 = scmp.eq.s32.totalorder %s15, 0
    %p36 = por %p34, %p35
    %p37 = scmp.ne.s32.totalorder %s23, %s24
    %p38 = scmp.eq.s32.totalorder %s16, 1
    %p39 = por %p37, %p38
    %p41 = scmp.ne.s32.totalorder %s24, %s40
    %p42 = scmp.eq.s32.totalorder %s16, 0
    %p43 = por %p41, %p42
    %s45 = sadd.s32 %s44, 1
    %p48 = scmp.eq.s32.totalorder %s10, 1
    %p49 = scmp.ne.s32.totalorder %s44, %s46
    %p50 = scmp.eq.s32.totalorder %s10, 0
    %p51 = por %p49, %p50
    %p52 = scmp.ne.s32.totalorder %s44, %s46
    %p53 = scmp.eq.s32.totalorder %s15, 1
    %p54 = por %p52, %p53
    %p55 = scmp.ne.s32.totalorder %s46, %s47
    %p56 = scmp.eq.s32.totalorder %s15, 0
    %p57 = por %p55, %p56
    %p58 = scmp.ne.s32.totalorder %s46, %s47
    %p59 = scmp.eq.s32.totalorder %s16, 1
    %p60 = por %p58, %p59
    %p62 = scmp.ne.s32.totalorder %s47, %s61
    %p63 = scmp.eq.s32.totalorder %s16, 0
    %p64 = por %p62, %p63
    %s65 = ssub.s32 %s10, %s17
    %p66 = scmp.eq.s32.totalorder %s65, 0
    %s68 = sadd.s32 %s67, 1
    %s69 = scalar_select %p66, %s67, %s68
    %p72 = pneg %p66
    %p73 = scmp.eq.s32.totalorder %s10, 1
    %p74 = por %p72, %p73
    %p75 = scmp.ne.s32.totalorder %s67, %s70
    %p76 = scmp.eq.s32.totalorder %s10, 0
    %p77 = por %p75, %p76
    %p78 = scmp.ne.s32.totalorder %s67, %s70
    %p79 = scmp.eq.s32.totalorder %s15, 1
    %p80 = por %p78, %p79
    %p81 = scmp.ne.s32.totalorder %s70, %s71
    %p82 = scmp.eq.s32.totalorder %s15, 0
    %p83 = por %p81, %p82
    %p84 = scmp.ne.s32.totalorder %s70, %s71
    %p85 = scmp.eq.s32.totalorder %s16, 1
    %p86 = por %p84, %p85
    %p88 = scmp.ne.s32.totalorder %s71, %s87
    %p89 = scmp.eq.s32.totalorder %s16, 0
    %p90 = por %p88, %p89
    %s91 = ssub.s32 %s10, %s17
    %p92 = scmp.eq.s32.totalorder %s91, 0
    %s94 = sadd.s32 %s93, 1
    %s95 = scalar_select %p92, %s93, %s94
    %p98 = pneg %p92
    %p99 = scmp.eq.s32.totalorder %s10, 1
    %p100 = por %p98, %p99
    %p101 = scmp.ne.s32.totalorder %s93, %s96
    %p102 = scmp.eq.s32.totalorder %s10, 0
    %p103 = por %p101, %p102
    %p104 = scmp.ne.s32.totalorder %s93, %s96
    %p105 = scmp.eq.s32.totalorder %s15, 1
    %p106 = por %p104, %p105
    %p107 = scmp.ne.s32.totalorder %s96, %s97
    %p108 = scmp.eq.s32.totalorder %s15, 0
    %p109 = por %p107, %p108
    %p110 = scmp.ne.s32.totalorder %s96, %s97
    %p111 = scmp.eq.s32.totalorder %s16, 1
    %p112 = por %p110, %p111
    %p114 = scmp.ne.s32.totalorder %s97, %s113
    %p115 = scmp.eq.s32.totalorder %s16, 0
    %p116 = por %p114, %p115
    %p117 = scmp.le.s32.totalorder 1, %s10
    %p118 = scmp.lt.s32.totalorder %s10, 3
    %p119 = pnand %p117, %p118
    %p120 = pneg %p119
    // Predicated region
    $region9: #{bottleneck_forward.4} parent=5 // pred_check
      _
    $region10: #{bottleneck_forward.4} parent=5 // pred_check_branch
      %122 = sbr.rel (%p119) target = $region12
    $region11: #{bottleneck_forward.4} parent=5 // pred_region
      %s123 = ssub.s32 %s10, 1
      // Predicated region
      $region13: #{bottleneck_forward.4} parent=11 // pred_check
        %p124 = pneg %p57
      $region14: #{bottleneck_forward.4} parent=11 // pred_check_branch
        %126 = sbr.rel (%p124) target = $region16
      $region15: #{bottleneck_forward.4} parent=11 // pred_region
        _
      $region16: #{bottleneck_forward.4} parent=11 // pred_fallthru
        _
    $region12: #{bottleneck_forward.4} parent=5 // pred_fallthru
      _
    %p127 = scmp.lt.s32.totalorder %s10, 2
    // Predicated region
    $region17: #{bottleneck_forward.4} parent=5 // pred_check
      %p128 = pneg %p127
    $region18: #{bottleneck_forward.4} parent=5 // pred_check_branch
      %130 = sbr.rel (%p128) target = $region20
    $region19: #{bottleneck_forward.4} parent=5 // pred_region
      // Predicated region
      $region21: #{bottleneck_forward.4} parent=19 // pred_check
        %p131 = pneg %p30
      $region22: #{bottleneck_forward.4} parent=19 // pred_check_branch
        %133 = sbr.rel (%p131) target = $region24
      $region23: #{bottleneck_forward.4} parent=19 // pred_region
        %p134 = scmp.lt.s32.totalorder %s10, 1
        %s135 = scalar_select %p134, %s10, 1
        %s136 = smul.addr %s135, 32
        %s137 = smul.addr %s136, 4
        %s138 = scalar_lea.vmem %s0, %s137
      $region24: #{bottleneck_forward.4} parent=19 // pred_fallthru
        _
    $region20: #{bottleneck_forward.4} parent=5 // pred_fallthru
      _
    %p139 = scmp.le.s32.totalorder 1, %s10
    %p140 = scmp.lt.s32.totalorder %s10, 3
    %p141 = pnand %p139, %p140
    %p142 = pneg %p141
    // Predicated region
    $region25: #{bottleneck_forward.4} parent=5 // pred_check
      _
    $region26: #{bottleneck_forward.4} parent=5 // pred_check_branch
      %144 = sbr.rel (%p141) target = $region28
    $region27: #{bottleneck_forward.4} parent=5 // pred_region
      %s145 = ssub.s32 %s10, 1
      %p146 = scmp.lt.s32.totalorder %s15, 1
      %s147 = scalar_select %p146, %s15, 1
      %s148 = smul.addr %s147, 32
      %s149 = smul.addr %s148, 4
      %s150 = scalar_lea.vmem %s0, %s149
      %p151 = pneg %p36
      %p152 = pneg %p33
      %p153 = pneg %p57
      %p154 = pneg %p54
      %p155 = pneg %p83
      %p156 = pneg %p80
      %p157 = scmp.lt.s32.totalorder %s15, 1
      %s158 = scalar_select %p157, %s15, 1
      %s159 = smul.addr %s158, 32
      %s160 = smul.addr %s159, 4
      %s161 = scalar_lea.vmem %s2, %s160
      %p162 = pneg %p109
      %p163 = pneg %p106
      %p164 = scmp.lt.s32.totalorder %s15, 1
      %s165 = scalar_select %p164, %s15, 1
      %s166 = smul.addr %s165, 2
      %s167 = scalar_lea.vmem %s3, %s166
      %p168 = scmp.lt.s32.totalorder %s15, 1
      %s169 = scalar_select %p168, %s15, 1
      %s170 = smul.addr %s169, 32
      %s171 = smul.addr %s170, 4
      %s172 = scalar_lea.vmem %s0, %s171
      %p173 = scmp.lt.s32.totalorder %s15, 1
      %s174 = scalar_select %p173, %s15, 1
      %s175 = smul.addr %s174, 32
      %s176 = smul.addr %s175, 4
      %s177 = scalar_lea.vmem %s2, %s176
      %p178 = scmp.lt.s32.totalorder %s15, 1
      %s179 = scalar_select %p178, %s15, 1
      %s180 = smul.addr %s179, 2
      %s181 = scalar_lea.vmem %s3, %s180
      %v183 = vld [vmem:[%s172] sm:$0xf]
      %v184 = vld [vmem:[%s172 + $0x4] sm:$0xf]
      %v185 = vld [vmem:[%s172 + $0x8] sm:$0xf]
      %v186 = vld [vmem:[%s172 + $0xc] sm:$0xf]
      %v187 = vld [vmem:[%s172 + $0x10] sm:$0xf]
      %v188 = vld [vmem:[%s172 + $0x14] sm:$0xf]
      %v189 = vld [vmem:[%s172 + $0x18] sm:$0xf]
      %v190 = vld [vmem:[%s172 + $0x1c] sm:$0xf]
      %v191 = vld [vmem:[%s172 + $0x20] sm:$0xf]
      %v192 = vld [vmem:[%s172 + $0x24] sm:$0xf]
      %v193 = vld [vmem:[%s172 + $0x28] sm:$0xf]
      %v194 = vld [vmem:[%s172 + $0x2c] sm:$0xf]
      %v195 = vld [vmem:[%s172 + $0x30] sm:$0xf]
      %v196 = vld [vmem:[%s172 + $0x34] sm:$0xf]
      %v197 = vld [vmem:[%s172 + $0x38] sm:$0xf]
      %v198 = vld [vmem:[%s172 + $0x3c] sm:$0xf]
      %v199 = vld [vmem:[%s172 + $0x40] sm:$0xf]
      %v200 = vld [vmem:[%s172 + $0x44] sm:$0xf]
      %v201 = vld [vmem:[%s172 + $0x48] sm:$0xf]
      %v202 = vld [vmem:[%s172 + $0x4c] sm:$0xf]
      %v203 = vld [vmem:[%s172 + $0x50] sm:$0xf]
      %v204 = vld [vmem:[%s172 + $0x54] sm:$0xf]
      %v205 = vld [vmem:[%s172 + $0x58] sm:$0xf]
      %v206 = vld [vmem:[%s172 + $0x5c] sm:$0xf]
      %v207 = vld [vmem:[%s172 + $0x60] sm:$0xf]
      %v208 = vld [vmem:[%s172 + $0x64] sm:$0xf]
      %v209 = vld [vmem:[%s172 + $0x68] sm:$0xf]
      %v210 = vld [vmem:[%s172 + $0x6c] sm:$0xf]
      %v211 = vld [vmem:[%s172 + $0x70] sm:$0xf]
      %v212 = vld [vmem:[%s172 + $0x74] sm:$0xf]
      %v213 = vld [vmem:[%s172 + $0x78] sm:$0xf]
      %v214 = vld [vmem:[%s172 + $0x7c] sm:$0xf]
      %v215 = vld [vmem:[%s1] sm:$0xf]
      %v216 = vld [vmem:[%s1 + $0x4] sm:$0xf]
      %v217 = vld [vmem:[%s1 + $0x8] sm:$0xf]
      %v218 = vld [vmem:[%s1 + $0xc] sm:$0xf]
      %v219 = vld [vmem:[%s1 + $0x10] sm:$0xf]
      %v220 = vld [vmem:[%s1 + $0x14] sm:$0xf]
      %v221 = vld [vmem:[%s1 + $0x18] sm:$0xf]
      %v222 = vld [vmem:[%s1 + $0x1c] sm:$0xf]
      %v223 = vld [vmem:[%s1 + $0x20] sm:$0xf]
      %v224 = vld [vmem:[%s1 + $0x24] sm:$0xf]
      %v225 = vld [vmem:[%s1 + $0x28] sm:$0xf]
      %v226 = vld [vmem:[%s1 + $0x2c] sm:$0xf]
      %v227 = vld [vmem:[%s1 + $0x30] sm:$0xf]
      %v228 = vld [vmem:[%s1 + $0x34] sm:$0xf]
      %v229 = vld [vmem:[%s1 + $0x38] sm:$0xf]
      %v230 = vld [vmem:[%s1 + $0x3c] sm:$0xf]
      %v263 = vunpack.c.l.b16 %v183
      %v264 = vunpack.c.l.b16 %v184
      %v265 = vunpack.c.l.b16 %v185
      %v266 = vunpack.c.l.b16 %v186
      %v267 = vunpack.c.l.b16 %v187
      %v268 = vunpack.c.l.b16 %v188
      %v269 = vunpack.c.l.b16 %v189
      %v270 = vunpack.c.l.b16 %v190
      %v271 = vunpack.c.l.b16 %v191
      %v272 = vunpack.c.l.b16 %v192
      %v273 = vunpack.c.l.b16 %v193
      %v274 = vunpack.c.l.b16 %v194
      %v275 = vunpack.c.l.b16 %v195
      %v276 = vunpack.c.l.b16 %v196
      %v277 = vunpack.c.l.b16 %v197
      %v278 = vunpack.c.l.b16 %v198
      %v279 = vunpack.c.l.b16 %v199
      %v280 = vunpack.c.l.b16 %v200
      %v281 = vunpack.c.l.b16 %v201
      %v282 = vunpack.c.l.b16 %v202
      %v283 = vunpack.c.l.b16 %v203
      %v284 = vunpack.c.l.b16 %v204
      %v285 = vunpack.c.l.b16 %v205
      %v286 = vunpack.c.l.b16 %v206
      %v287 = vunpack.c.l.b16 %v207
      %v288 = vunpack.c.l.b16 %v208
      %v289 = vunpack.c.l.b16 %v209
      %v290 = vunpack.c.l.b16 %v210
      %v291 = vunpack.c.l.b16 %v211
      %v292 = vunpack.c.l.b16 %v212
      %v293 = vunpack.c.l.b16 %v213
      %v294 = vunpack.c.l.b16 %v214
      %v295 = vpack.c.b16 %v264, %v263
      %v296 = vpack.c.b16 %v266, %v265
      %v297 = vpack.c.b16 %v268, %v267
      %v298 = vpack.c.b16 %v270, %v269
      %v299 = vpack.c.b16 %v272, %v271
      %v300 = vpack.c.b16 %v274, %v273
      %v301 = vpack.c.b16 %v276, %v275
      %v302 = vpack.c.b16 %v278, %v277
      %v303 = vpack.c.b16 %v280, %v279
      %v304 = vpack.c.b16 %v282, %v281
      %v305 = vpack.c.b16 %v284, %v283
      %v306 = vpack.c.b16 %v286, %v285
      %v307 = vpack.c.b16 %v288, %v287
      %v308 = vpack.c.b16 %v290, %v289
      %v309 = vpack.c.b16 %v292, %v291
      %v310 = vpack.c.b16 %v294, %v293
      %v343 = vunpack.c.l.b16 %v215
      %v344 = vunpack.c.l.b16 %v216
      %v345 = vunpack.c.l.b16 %v217
      %v346 = vunpack.c.l.b16 %v218
      %v347 = vunpack.c.l.b16 %v219
      %v348 = vunpack.c.l.b16 %v220
      %v349 = vunpack.c.l.b16 %v221
      %v350 = vunpack.c.l.b16 %v222
      %v351 = vunpack.c.l.b16 %v223
      %v352 = vunpack.c.l.b16 %v224
      %v353 = vunpack.c.l.b16 %v225
      %v354 = vunpack.c.l.b16 %v226
      %v355 = vunpack.c.l.b16 %v227
      %v356 = vunpack.c.l.b16 %v228
      %v357 = vunpack.c.l.b16 %v229
      %v358 = vunpack.c.l.b16 %v230
      %v359 = vpack.c.b16 %v344, %v343
      %v360 = vpack.c.b16 %v346, %v345
      %v361 = vpack.c.b16 %v348, %v347
      %v362 = vpack.c.b16 %v350, %v349
      %v363 = vpack.c.b16 %v352, %v351
      %v364 = vpack.c.b16 %v354, %v353
      %v365 = vpack.c.b16 %v356, %v355
      %v366 = vpack.c.b16 %v358, %v357
      %375 = vmatprep.subr.bf16.mxu0 0
      %376 = vmatpush1.bf16.msra.mxu0 %v366
      %377 = vmatprep.subr.bf16.mxu0 0
      %378 = vmatpush1.bf16.msra.mxu0 %v365
      %379 = vmatprep.subr.bf16.mxu0 0
      %380 = vmatpush1.bf16.msra.mxu0 %v364
      %381 = vmatprep.subr.bf16.mxu0 0
      %382 = vmatpush1.bf16.msra.mxu0 %v363
      %383 = vmatprep.subr.bf16.mxu0 0
      %384 = vmatpush1.bf16.msra.mxu0 %v362
      %385 = vmatprep.subr.bf16.mxu0 0
      %386 = vmatpush1.bf16.msra.mxu0 %v361
      %387 = vmatprep.subr.bf16.mxu0 0
      %388 = vmatpush1.bf16.msra.mxu0 %v360
      %389 = vmatprep.subr.bf16.mxu0 0
      %390 = vmatpush1.bf16.msra.mxu0 %v359
      %391 = vmatprep.subr.bf16.mxu0 0
      %392 = vmatpush2.bf16.msra.mxu0 0
      %393 = vmatprep.subr.bf16.mxu0 0
      %394 = vmatpush2.bf16.msra.mxu0 0
      %395 = vmatprep.subr.bf16.mxu0 0
      %396 = vmatpush2.bf16.msra.mxu0 0
      %397 = vmatprep.subr.bf16.mxu0 0
      %398 = vmatpush2.bf16.msra.mxu0 0
      %399 = vmatprep.subr.bf16.mxu0 0
      %400 = vmatpush2.bf16.msra.mxu0 0
      %401 = vmatprep.subr.bf16.mxu0 0
      %402 = vmatpush2.bf16.msra.mxu0 0
      %403 = vmatprep.subr.bf16.mxu0 0
      %404 = vmatpush2.bf16.msra.mxu0 0
      %405 = vmatprep.subr.bf16.mxu0 0
      %406 = vmatpush2.bf16.msra.mxu0 0
      %407 = vmatprep.mubr.bf16.mxu0 0
      %408 = vmatmul.mubr.bf16.gmra.mxu0 %v295
      %v409 = vpop.f32.mrf.mxu0
      %v410 = vadd.f32 0.0, %v409
      %v411 = vpop.f32.mrf.mxu0
      %v412 = vpop.f32.mrf.mxu0
      %v413 = vadd.f32 0.0, %v412
      %v414 = vpop.f32.mrf.mxu0
      %415 = vmatprep.mubr.bf16.mxu0 0
      %416 = vmatmul.mubr.bf16.gmra.mxu0 %v296
      %v417 = vpop.f32.mrf.mxu0
      %v418 = vadd.f32 0.0, %v417
      %v419 = vpop.f32.mrf.mxu0
      %v420 = vpop.f32.mrf.mxu0
      %v421 = vadd.f32 0.0, %v420
      %v422 = vpop.f32.mrf.mxu0
      %423 = vmatprep.mubr.bf16.mxu0 0
      %424 = vmatmul.mubr.bf16.gmra.mxu0 %v297
      %v425 = vpop.f32.mrf.mxu0
      %v426 = vadd.f32 0.0, %v425
      %v427 = vpop.f32.mrf.mxu0
      %v428 = vpop.f32.mrf.mxu0
      %v429 = vadd.f32 0.0, %v428
      %v430 = vpop.f32.mrf.mxu0
      %431 = vmatprep.mubr.bf16.mxu0 0
      %432 = vmatmul.mubr.bf16.gmra.mxu0 %v298
      %v433 = vpop.f32.mrf.mxu0
      %v434 = vadd.f32 0.0, %v433
      %v435 = vpop.f32.mrf.mxu0
      %v436 = vpop.f32.mrf.mxu0
      %v437 = vadd.f32 0.0, %v436
      %v438 = vpop.f32.mrf.mxu0
      %439 = vmatprep.mubr.bf16.mxu0 0
      %440 = vmatmul.mubr.bf16.gmra.mxu0 %v299
      %v441 = vpop.f32.mrf.mxu0
      %v442 = vadd.f32 0.0, %v441
      %v443 = vpop.f32.mrf.mxu0
      %v444 = vpop.f32.mrf.mxu0
      %v445 = vadd.f32 0.0, %v444
      %v446 = vpop.f32.mrf.mxu0
      %447 = vmatprep.mubr.bf16.mxu0 0
      %448 = vmatmul.mubr.bf16.gmra.mxu0 %v300
      %v449 = vpop.f32.mrf.mxu0
      %v450 = vadd.f32 0.0, %v449
      %v451 = vpop.f32.mrf.mxu0
      %v452 = vpop.f32.mrf.mxu0
      %v453 = vadd.f32 0.0, %v452
      %v454 = vpop.f32.mrf.mxu0
      %455 = vmatprep.mubr.bf16.mxu0 0
      %456 = vmatmul.mubr.bf16.gmra.mxu0 %v301
      %v457 = vpop.f32.mrf.mxu0
      %v458 = vadd.f32 0.0, %v457
      %v459 = vpop.f32.mrf.mxu0
      %v460 = vpop.f32.mrf.mxu0
      %v461 = vadd.f32 0.0, %v460
      %v462 = vpop.f32.mrf.mxu0
      %463 = vmatprep.mubr.bf16.mxu0 0
      %464 = vmatmul.mubr.bf16.gmra.mxu0 %v302
      %v465 = vpop.f32.mrf.mxu0
      %v466 = vadd.f32 0.0, %v465
      %v467 = vpop.f32.mrf.mxu0
      %v468 = vpop.f32.mrf.mxu0
      %v469 = vadd.f32 0.0, %v468
      %v470 = vpop.f32.mrf.mxu0
      %471 = vmatprep.mubr.bf16.mxu0 0
      %472 = vmatmul.mubr.bf16.gmra.mxu0 %v303
      %v473 = vpop.f32.mrf.mxu0
      %v474 = vadd.f32 0.0, %v473
      %v475 = vpop.f32.mrf.mxu0
      %v476 = vpop.f32.mrf.mxu0
      %v477 = vadd.f32 0.0, %v476
      %v478 = vpop.f32.mrf.mxu0
      %479 = vmatprep.mubr.bf16.mxu0 0
      %480 = vmatmul.mubr.bf16.gmra.mxu0 %v304
      %v481 = vpop.f32.mrf.mxu0
      %v482 = vadd.f32 0.0, %v481
      %v483 = vpop.f32.mrf.mxu0
      %v484 = vpop.f32.mrf.mxu0
      %v485 = vadd.f32 0.0, %v484
      %v486 = vpop.f32.mrf.mxu0
      %487 = vmatprep.mubr.bf16.mxu0 0
      %488 = vmatmul.mubr.bf16.gmra.mxu0 %v305
      %v489 = vpop.f32.mrf.mxu0
      %v490 = vadd.f32 0.0, %v489
      %v491 = vpop.f32.mrf.mxu0
      %v492 = vpop.f32.mrf.mxu0
      %v493 = vadd.f32 0.0, %v492
      %v494 = vpop.f32.mrf.mxu0
      %495 = vmatprep.mubr.bf16.mxu0 0
      %496 = vmatmul.mubr.bf16.gmra.mxu0 %v306
      %v497 = vpop.f32.mrf.mxu0
      %v498 = vadd.f32 0.0, %v497
      %v499 = vpop.f32.mrf.mxu0
      %v500 = vpop.f32.mrf.mxu0
      %v501 = vadd.f32 0.0, %v500
      %v502 = vpop.f32.mrf.mxu0
      %503 = vmatprep.mubr.bf16.mxu0 0
      %504 = vmatmul.mubr.bf16.gmra.mxu0 %v307
      %v505 = vpop.f32.mrf.mxu0
      %v506 = vadd.f32 0.0, %v505
      %v507 = vpop.f32.mrf.mxu0
      %v508 = vpop.f32.mrf.mxu0
      %v509 = vadd.f32 0.0, %v508
      %v510 = vpop.f32.mrf.mxu0
      %511 = vmatprep.mubr.bf16.mxu0 0
      %512 = vmatmul.mubr.bf16.gmra.mxu0 %v308
      %v513 = vpop.f32.mrf.mxu0
      %v514 = vadd.f32 0.0, %v513
      %v515 = vpop.f32.mrf.mxu0
      %v516 = vpop.f32.mrf.mxu0
      %v517 = vadd.f32 0.0, %v516
      %v518 = vpop.f32.mrf.mxu0
      %519 = vmatprep.mubr.bf16.mxu0 0
      %520 = vmatmul.mubr.bf16.gmra.mxu0 %v309
      %v521 = vpop.f32.mrf.mxu0
      %v522 = vadd.f32 0.0, %v521
      %v523 = vpop.f32.mrf.mxu0
      %v524 = vpop.f32.mrf.mxu0
      %v525 = vadd.f32 0.0, %v524
      %v526 = vpop.f32.mrf.mxu0
      %527 = vmatprep.mubr.bf16.mxu0 0
      %528 = vmatmul.mubr.bf16.gmra.mxu0 %v310
      %v529 = vpop.f32.mrf.mxu0
      %v530 = vadd.f32 0.0, %v529
      %v531 = vpop.f32.mrf.mxu0
      %v532 = vpop.f32.mrf.mxu0
      %v533 = vadd.f32 0.0, %v532
      %v534 = vpop.f32.mrf.mxu0
      %535 = vdwg.mxu0
      %v536 = vpack.c.bf16 %v413, %v410
      %v537 = vpack.c.bf16 %v421, %v418
      %v538 = vpack.c.bf16 %v429, %v426
      %v539 = vpack.c.bf16 %v437, %v434
      %v540 = vpack.c.bf16 %v445, %v442
      %v541 = vpack.c.bf16 %v453, %v450
      %v542 = vpack.c.bf16 %v461, %v458
      %v543 = vpack.c.bf16 %v469, %v466
      %v544 = vpack.c.bf16 %v477, %v474
      %v545 = vpack.c.bf16 %v485, %v482
      %v546 = vpack.c.bf16 %v493, %v490
      %v547 = vpack.c.bf16 %v501, %v498
      %v548 = vpack.c.bf16 %v509, %v506
      %v549 = vpack.c.bf16 %v517, %v514
      %v550 = vpack.c.bf16 %v525, %v522
      %v551 = vpack.c.bf16 %v533, %v530
      %v568 = vunpack.c.l.b16 %v536
      %v569 = vunpack.c.h.b16 %v536
      %v570 = vunpack.c.l.b16 %v537
      %v571 = vunpack.c.h.b16 %v537
      %v572 = vunpack.c.l.b16 %v538
      %v573 = vunpack.c.h.b16 %v538
      %v574 = vunpack.c.l.b16 %v539
      %v575 = vunpack.c.h.b16 %v539
      %v576 = vunpack.c.l.b16 %v540
      %v577 = vunpack.c.h.b16 %v540
      %v578 = vunpack.c.l.b16 %v541
      %v579 = vunpack.c.h.b16 %v541
      %v580 = vunpack.c.l.b16 %v542
      %v581 = vunpack.c.h.b16 %v542
      %v582 = vunpack.c.l.b16 %v543
      %v583 = vunpack.c.h.b16 %v543
      %v584 = vunpack.c.l.b16 %v544
      %v585 = vunpack.c.h.b16 %v544
      %v586 = vunpack.c.l.b16 %v545
      %v587 = vunpack.c.h.b16 %v545
      %v588 = vunpack.c.l.b16 %v546
      %v589 = vunpack.c.h.b16 %v546
      %v590 = vunpack.c.l.b16 %v547
      %v591 = vunpack.c.h.b16 %v547
      %v592 = vunpack.c.l.b16 %v548
      %v593 = vunpack.c.h.b16 %v548
      %v594 = vunpack.c.l.b16 %v549
      %v595 = vunpack.c.h.b16 %v549
      %v596 = vunpack.c.l.b16 %v550
      %v597 = vunpack.c.h.b16 %v550
      %v598 = vunpack.c.l.b16 %v551
      %v599 = vunpack.c.h.b16 %v551
      %v600 = vpack.c.b16 %v568, %v568
      %v601 = vpack.c.b16 %v569, %v569
      %v602 = vpack.c.b16 %v570, %v570
      %v603 = vpack.c.b16 %v571, %v571
      %v604 = vpack.c.b16 %v572, %v572
      %v605 = vpack.c.b16 %v573, %v573
      %v606 = vpack.c.b16 %v574, %v574
      %v607 = vpack.c.b16 %v575, %v575
      %v608 = vpack.c.b16 %v576, %v576
      %v609 = vpack.c.b16 %v577, %v577
      %v610 = vpack.c.b16 %v578, %v578
      %v611 = vpack.c.b16 %v579, %v579
      %v612 = vpack.c.b16 %v580, %v580
      %v613 = vpack.c.b16 %v581, %v581
      %v614 = vpack.c.b16 %v582, %v582
      %v615 = vpack.c.b16 %v583, %v583
      %v616 = vpack.c.b16 %v584, %v584
      %v617 = vpack.c.b16 %v585, %v585
      %v618 = vpack.c.b16 %v586, %v586
      %v619 = vpack.c.b16 %v587, %v587
      %v620 = vpack.c.b16 %v588, %v588
      %v621 = vpack.c.b16 %v589, %v589
      %v622 = vpack.c.b16 %v590, %v590
      %v623 = vpack.c.b16 %v591, %v591
      %v624 = vpack.c.b16 %v592, %v592
      %v625 = vpack.c.b16 %v593, %v593
      %v626 = vpack.c.b16 %v594, %v594
      %v627 = vpack.c.b16 %v595, %v595
      %v628 = vpack.c.b16 %v596, %v596
      %v629 = vpack.c.b16 %v597, %v597
      %v630 = vpack.c.b16 %v598, %v598
      %v631 = vpack.c.b16 %v599, %v599
      %664 = vst [vmem:[%s177] sm:$0xf] %v600
      %665 = vst [vmem:[%s177 + $0x4] sm:$0xf] %v601
      %666 = vst [vmem:[%s177 + $0x8] sm:$0xf] %v602
      %667 = vst [vmem:[%s177 + $0xc] sm:$0xf] %v603
      %668 = vst [vmem:[%s177 + $0x10] sm:$0xf] %v604
      %669 = vst [vmem:[%s177 + $0x14] sm:$0xf] %v605
      %670 = vst [vmem:[%s177 + $0x18] sm:$0xf] %v606
      %671 = vst [vmem:[%s177 + $0x1c] sm:$0xf] %v607
      %672 = vst [vmem:[%s177 + $0x20] sm:$0xf] %v608
      %673 = vst [vmem:[%s177 + $0x24] sm:$0xf] %v609
      %674 = vst [vmem:[%s177 + $0x28] sm:$0xf] %v610
      %675 = vst [vmem:[%s177 + $0x2c] sm:$0xf] %v611
      %676 = vst [vmem:[%s177 + $0x30] sm:$0xf] %v612
      %677 = vst [vmem:[%s177 + $0x34] sm:$0xf] %v613
      %678 = vst [vmem:[%s177 + $0x38] sm:$0xf] %v614
      %679 = vst [vmem:[%s177 + $0x3c] sm:$0xf] %v615
      %680 = vst [vmem:[%s177 + $0x40] sm:$0xf] %v616
      %681 = vst [vmem:[%s177 + $0x44] sm:$0xf] %v617
      %682 = vst [vmem:[%s177 + $0x48] sm:$0xf] %v618
      %683 = vst [vmem:[%s177 + $0x4c] sm:$0xf] %v619
      %684 = vst [vmem:[%s177 + $0x50] sm:$0xf] %v620
      %685 = vst [vmem:[%s177 + $0x54] sm:$0xf] %v621
      %686 = vst [vmem:[%s177 + $0x58] sm:$0xf] %v622
      %687 = vst [vmem:[%s177 + $0x5c] sm:$0xf] %v623
      %688 = vst [vmem:[%s177 + $0x60] sm:$0xf] %v624
      %689 = vst [vmem:[%s177 + $0x64] sm:$0xf] %v625
      %690 = vst [vmem:[%s177 + $0x68] sm:$0xf] %v626
      %691 = vst [vmem:[%s177 + $0x6c] sm:$0xf] %v627
      %692 = vst [vmem:[%s177 + $0x70] sm:$0xf] %v628
      %693 = vst [vmem:[%s177 + $0x74] sm:$0xf] %v629
      %694 = vst [vmem:[%s177 + $0x78] sm:$0xf] %v630
      %695 = vst [vmem:[%s177 + $0x7c] sm:$0xf] %v631
      %v696 = vunpack.c.l.bf16 %v536
      %v697 = vunpack.c.h.bf16 %v536
      %v698 = vunpack.c.l.bf16 %v537
      %v699 = vunpack.c.h.bf16 %v537
      %v700 = vunpack.c.l.bf16 %v538
      %v701 = vunpack.c.h.bf16 %v538
      %v702 = vunpack.c.l.bf16 %v539
      %v703 = vunpack.c.h.bf16 %v539
      %v704 = vunpack.c.l.bf16 %v540
      %v705 = vunpack.c.h.bf16 %v540
      %v706 = vunpack.c.l.bf16 %v541
      %v707 = vunpack.c.h.bf16 %v541
      %v708 = vunpack.c.l.bf16 %v542
      %v709 = vunpack.c.h.bf16 %v542
      %v710 = vunpack.c.l.bf16 %v543
      %v711 = vunpack.c.h.bf16 %v543
      %v712 = vunpack.c.l.bf16 %v544
      %v713 = vunpack.c.h.bf16 %v544
      %v714 = vunpack.c.l.bf16 %v545
      %v715 = vunpack.c.h.bf16 %v545
      %v716 = vunpack.c.l.bf16 %v546
      %v717 = vunpack.c.h.bf16 %v546
      %v718 = vunpack.c.l.bf16 %v547
      %v719 = vunpack.c.h.bf16 %v547
      %v720 = vunpack.c.l.bf16 %v548
      %v721 = vunpack.c.h.bf16 %v548
      %v722 = vunpack.c.l.bf16 %v549
      %v723 = vunpack.c.h.bf16 %v549
      %v724 = vunpack.c.l.bf16 %v550
      %v725 = vunpack.c.h.bf16 %v550
      %v726 = vunpack.c.l.bf16 %v551
      %v727 = vunpack.c.h.bf16 %v551
      %v728 = vadd.f32 %v696, %v697
      %v729 = vadd.f32 %v728, %v698
      %v730 = vadd.f32 %v729, %v699
      %v731 = vadd.f32 %v730, %v700
      %v732 = vadd.f32 %v731, %v701
      %v733 = vadd.f32 %v732, %v702
      %v734 = vadd.f32 %v733, %v703
      %v735 = vadd.f32 %v734, %v704
      %v736 = vadd.f32 %v735, %v705
      %v737 = vadd.f32 %v736, %v706
      %v738 = vadd.f32 %v737, %v707
      %v739 = vadd.f32 %v738, %v708
      %v740 = vadd.f32 %v739, %v709
      %v741 = vadd.f32 %v740, %v710
      %v742 = vadd.f32 %v741, %v711
      %v743 = vadd.f32 %v742, %v712
      %v744 = vadd.f32 %v743, %v713
      %v745 = vadd.f32 %v744, %v714
      %v746 = vadd.f32 %v745, %v715
      %v747 = vadd.f32 %v746, %v716
      %v748 = vadd.f32 %v747, %v717
      %v749 = vadd.f32 %v748, %v718
      %v750 = vadd.f32 %v749, %v719
      %v751 = vadd.f32 %v750, %v720
      %v752 = vadd.f32 %v751, %v721
      %v753 = vadd.f32 %v752, %v722
      %v754 = vadd.f32 %v753, %v723
      %v755 = vadd.f32 %v754, %v724
      %v756 = vadd.f32 %v755, %v725
      %v757 = vadd.f32 %v756, %v726
      %v758 = vadd.f32 %v757, %v727
      %v759 = vrot.slane %v758, 4
      %v760 = vadd.f32 %v758, %v759
      %v761 = vrot.slane %v760, 2
      %v762 = vadd.f32 %v760, %v761
      %v763 = vrot.slane %v762, 1
      %v764 = vadd.f32 %v762, %v763
      %v765 = vmul.f32 %v696, %v696
      %v766 = vmul.f32 %v697, %v697
      %v767 = vmul.f32 %v698, %v698
      %v768 = vmul.f32 %v699, %v699
      %v769 = vmul.f32 %v700, %v700
      %v770 = vmul.f32 %v701, %v701
      %v771 = vmul.f32 %v702, %v702
      %v772 = vmul.f32 %v703, %v703
      %v773 = vmul.f32 %v704, %v704
      %v774 = vmul.f32 %v705, %v705
      %v775 = vmul.f32 %v706, %v706
      %v776 = vmul.f32 %v707, %v707
      %v777 = vmul.f32 %v708, %v708
      %v778 = vmul.f32 %v709, %v709
      %v779 = vmul.f32 %v710, %v710
      %v780 = vmul.f32 %v711, %v711
      %v781 = vmul.f32 %v712, %v712
      %v782 = vmul.f32 %v713, %v713
      %v783 = vmul.f32 %v714, %v714
      %v784 = vmul.f32 %v715, %v715
      %v785 = vmul.f32 %v716, %v716
      %v786 = vmul.f32 %v717, %v717
      %v787 = vmul.f32 %v718, %v718
      %v788 = vmul.f32 %v719, %v719
      %v789 = vmul.f32 %v720, %v720
      %v790 = vmul.f32 %v721, %v721
      %v791 = vmul.f32 %v722, %v722
      %v792 = vmul.f32 %v723, %v723
      %v793 = vmul.f32 %v724, %v724
      %v794 = vmul.f32 %v725, %v725
      %v795 = vmul.f32 %v726, %v726
      %v796 = vmul.f32 %v727, %v727
      %v797 = vadd.f32 %v765, %v766
      %v798 = vadd.f32 %v797, %v767
      %v799 = vadd.f32 %v798, %v768
      %v800 = vadd.f32 %v799, %v769
      %v801 = vadd.f32 %v800, %v770
      %v802 = vadd.f32 %v801, %v771
      %v803 = vadd.f32 %v802, %v772
      %v804 = vadd.f32 %v803, %v773
      %v805 = vadd.f32 %v804, %v774
      %v806 = vadd.f32 %v805, %v775
      %v807 = vadd.f32 %v806, %v776
      %v808 = vadd.f32 %v807, %v777
      %v809 = vadd.f32 %v808, %v778
      %v810 = vadd.f32 %v809, %v779
      %v811 = vadd.f32 %v810, %v780
      %v812 = vadd.f32 %v811, %v781
      %v813 = vadd.f32 %v812, %v782
      %v814 = vadd.f32 %v813, %v783
      %v815 = vadd.f32 %v814, %v784
      %v816 = vadd.f32 %v815, %v785
      %v817 = vadd.f32 %v816, %v786
      %v818 = vadd.f32 %v817, %v787
      %v819 = vadd.f32 %v818, %v788
      %v820 = vadd.f32 %v819, %v789
      %v821 = vadd.f32 %v820, %v790
      %v822 = vadd.f32 %v821, %v791
      %v823 = vadd.f32 %v822, %v792
      %v824 = vadd.f32 %v823, %v793
      %v825 = vadd.f32 %v824, %v794
      %v826 = vadd.f32 %v825, %v795
      %v827 = vadd.f32 %v826, %v796
      %v828 = vrot.slane %v827, 4
      %v829 = vadd.f32 %v827, %v828
      %v830 = vrot.slane %v829, 2
      %v831 = vadd.f32 %v829, %v830
      %v832 = vrot.slane %v831, 1
      %v833 = vadd.f32 %v831, %v832
      %vm834 = vcmask 1040384
      %v835 = vsel %vm834, %v764, %v833
      %836 = vst [vmem:[%s181] sm:$0x3] %v835
      %p837 = scmp.lt.s32.totalorder %s15, 1
      %s838 = scalar_select %p837, %s15, 1
      %s839 = smul.addr %s838, 32
      %s840 = smul.addr %s839, 4
      %s841 = scalar_lea.vmem %s2, %s840
      %p842 = scmp.lt.s32.totalorder %s15, 1
      %s843 = scalar_select %p842, %s15, 1
      %s844 = smul.addr %s843, 2
      %s845 = scalar_lea.vmem %s3, %s844
      // Predicated region
      $region29: #{bottleneck_forward.4} parent=27 // pred_check
        %p846 = pneg %p80
      $region30: #{bottleneck_forward.4} parent=27 // pred_check_branch
        %848 = sbr.rel (%p846) target = $region32
      $region31: #{bottleneck_forward.4} parent=27 // pred_region
        _
      $region32: #{bottleneck_forward.4} parent=27 // pred_fallthru
        _
      // Predicated region
      $region33: #{bottleneck_forward.4} parent=27 // pred_check
        %p849 = pneg %p106
      $region34: #{bottleneck_forward.4} parent=27 // pred_check_branch
        %851 = sbr.rel (%p849) target = $region36
      $region35: #{bottleneck_forward.4} parent=27 // pred_region
        _
      $region36: #{bottleneck_forward.4} parent=27 // pred_fallthru
        _
    $region28: #{bottleneck_forward.4} parent=5 // pred_fallthru
      _
    %p852 = scmp.le.s32.totalorder 2, %s10
    // Predicated region
    $region37: #{bottleneck_forward.4} parent=5 // pred_check
      %p853 = pneg %p852
    $region38: #{bottleneck_forward.4} parent=5 // pred_check_branch
      %855 = sbr.rel (%p853) target = $region40
    $region39: #{bottleneck_forward.4} parent=5 // pred_region
      %s856 = ssub.s32 %s10, 2
      // Predicated region
      $region41: #{bottleneck_forward.4} parent=39 // pred_check
        %p857 = pneg %p86
      $region42: #{bottleneck_forward.4} parent=39 // pred_check_branch
        %859 = sbr.rel (%p857) target = $region44
      $region43: #{bottleneck_forward.4} parent=39 // pred_region
        %p860 = scmp.lt.s32.totalorder %s16, 1
        %s861 = scalar_select %p860, %s16, 1
        %s862 = smul.addr %s861, 32
        %s863 = smul.addr %s862, 4
        %s864 = scalar_lea.vmem %s2, %s863
      $region44: #{bottleneck_forward.4} parent=39 // pred_fallthru
        _
      // Predicated region
      $region45: #{bottleneck_forward.4} parent=39 // pred_check
        %p865 = pneg %p112
      $region46: #{bottleneck_forward.4} parent=39 // pred_check_branch
        %867 = sbr.rel (%p865) target = $region48
      $region47: #{bottleneck_forward.4} parent=39 // pred_region
        %p868 = scmp.lt.s32.totalorder %s16, 1
        %s869 = scalar_select %p868, %s16, 1
        %s870 = smul.addr %s869, 2
        %s871 = scalar_lea.vmem %s3, %s870
      $region48: #{bottleneck_forward.4} parent=39 // pred_fallthru
        _
    $region40: #{bottleneck_forward.4} parent=5 // pred_fallthru
      _
  $region6: #{bottleneck_forward.4} parent=0 // loop_footer
    %s14 = sadd.s32 1, %s10
  $region7: #{bottleneck_forward.4} parent=0 // loop_footer_branch
    %9 = sbr.rel target = $region3
  $region8: #{bottleneck_forward.4} parent=0 // loop_exit
    _

// kernel: bottleneck_forward.6
$region0: #{bottleneck_forward.6}
  #allocation0 [shape = 'u32[]', space=smem, size = 0x4, offset = 0x4, fixed_abs, tag = 'smem constant byte address 0x4 - core index']
  #allocation1 [shape = 'u32[144,128]{1,0:T(1,128)}', space=vmem, size = 0x12000, scoped, tag = 'internal scratch']
  %s0 = inlined_call_operand.vmem [shape: bf16[2,16,16,128], index: 0, kind: input, shape index: {}]
  %s1 = inlined_call_operand.vmem [shape: f32[1,128], index: 1, kind: input, shape index: {}]
  %s2 = inlined_call_operand.vmem [shape: f32[1,128], index: 2, kind: input, shape index: {}]
  %s3 = inlined_call_operand.vmem [shape: bf16[128,128], index: 3, kind: input, shape index: {}]
  %s4 = inlined_call_operand.vmem [shape: bf16[2,16,16,128], index: 4, kind: output, shape index: {0}]
  %s5 = inlined_call_operand.vmem [shape: f32[2,2,128], index: 5, kind: output, shape index: {1}]
  %6 = xla_tuple %s4, %s5
  %s7 = sld [smem:[#allocation0]]
  $region57: #{bottleneck_forward.6} parent=0
    _
  %s9 = ssub.s32 1, %s7
  %s10 = scalar_select 0, %s9, %s7
  loop: start=0, step=1, limit=4
  $region2: #{bottleneck_forward.6} parent=0 // loop_pre_header
    _
  $region3: #{bottleneck_forward.6} parent=0 // loop_header
    %s12 = sphi 0, %s16
    %p13 = scmp.ge.s32.totalorder %s12, 4
    %s22 = sphi 0, %s24
    %s25 = sphi 0, %s22
    %s26 = sphi 0, %s25
    %s42 = sphi 0, %s26
    %s46 = sphi 0, %s46
    %s48 = sphi 0, %s46
    %s49 = sphi 0, %s48
    %s63 = sphi 0, %s49
    %s67 = sphi 0, %s67
    %s69 = sphi 0, %s67
    %s70 = sphi 0, %s69
    %s84 = sphi 0, %s70
    %s88 = sphi 0, %s88
    %s90 = sphi 0, %s88
    %s91 = sphi 0, %s90
    %s105 = sphi 0, %s91
    %s111 = sphi 0, %s113
    %s114 = sphi 0, %s111
    %s115 = sphi 0, %s114
    %s131 = sphi 0, %s115
    %s137 = sphi 0, %s139
    %s140 = sphi 0, %s137
    %s141 = sphi 0, %s140
    %s157 = sphi 0, %s141
  $region4: #{bottleneck_forward.6} parent=0 // loop_header_branch
    %15 = sbr.rel (%p13) target = $region8
  $region5: #{bottleneck_forward.6} parent=0 // loop_body
    %s17 = ssub.s32 %s12, 1
    %s18 = ssub.s32 %s12, 2
    %s19 = sadd.s32 %s12, 1
    %s20 = ssub.s32 %s12, %s19
    %p21 = scmp.eq.s32.totalorder %s20, 0
    %s23 = sadd.s32 %s22, 1
    %s24 = scalar_select %p21, %s22, %s23
    %p27 = pneg %p21
    %p28 = scmp.eq.s32.totalorder %s12, 1
    %p29 = por %p27, %p28
    %p30 = scmp.ne.s32.totalorder %s22, %s25
    %p31 = scmp.eq.s32.totalorder %s12, 0
    %p32 = por %p30, %p31
    %p33 = scmp.ne.s32.totalorder %s22, %s25
    %p34 = scmp.eq.s32.totalorder %s17, 1
    %p35 = por %p33, %p34
    %p36 = scmp.ne.s32.totalorder %s25, %s26
    %p37 = scmp.eq.s32.totalorder %s17, 0
    %p38 = por %p36, %p37
    %p39 = scmp.ne.s32.totalorder %s25, %s26
    %p40 = scmp.eq.s32.totalorder %s18, 1
    %p41 = por %p39, %p40
    %p43 = scmp.ne.s32.totalorder %s26, %s42
    %p44 = scmp.eq.s32.totalorder %s18, 0
    %p45 = por %p43, %p44
    %s47 = sadd.s32 %s46, 1
    %p50 = scmp.eq.s32.totalorder %s12, 1
    %p51 = scmp.ne.s32.totalorder %s46, %s48
    %p52 = scmp.eq.s32.totalorder %s12, 0
    %p53 = por %p51, %p52
    %p54 = scmp.ne.s32.totalorder %s46, %s48
    %p55 = scmp.eq.s32.totalorder %s17, 1
    %p56 = por %p54, %p55
    %p57 = scmp.ne.s32.totalorder %s48, %s49
    %p58 = scmp.eq.s32.totalorder %s17, 0
    %p59 = por %p57, %p58
    %p60 = scmp.ne.s32.totalorder %s48, %s49
    %p61 = scmp.eq.s32.totalorder %s18, 1
    %p62 = por %p60, %p61
    %p64 = scmp.ne.s32.totalorder %s49, %s63
    %p65 = scmp.eq.s32.totalorder %s18, 0
    %p66 = por %p64, %p65
    %s68 = sadd.s32 %s67, 1
    %p71 = scmp.eq.s32.totalorder %s12, 1
    %p72 = scmp.ne.s32.totalorder %s67, %s69
    %p73 = scmp.eq.s32.totalorder %s12, 0
    %p74 = por %p72, %p73
    %p75 = scmp.ne.s32.totalorder %s67, %s69
    %p76 = scmp.eq.s32.totalorder %s17, 1
    %p77 = por %p75, %p76
    %p78 = scmp.ne.s32.totalorder %s69, %s70
    %p79 = scmp.eq.s32.totalorder %s17, 0
    %p80 = por %p78, %p79
    %p81 = scmp.ne.s32.totalorder %s69, %s70
    %p82 = scmp.eq.s32.totalorder %s18, 1
    %p83 = por %p81, %p82
    %p85 = scmp.ne.s32.totalorder %s70, %s84
    %p86 = scmp.eq.s32.totalorder %s18, 0
    %p87 = por %p85, %p86
    %s89 = sadd.s32 %s88, 1
    %p92 = scmp.eq.s32.totalorder %s12, 1
    %p93 = scmp.ne.s32.totalorder %s88, %s90
    %p94 = scmp.eq.s32.totalorder %s12, 0
    %p95 = por %p93, %p94
    %p96 = scmp.ne.s32.totalorder %s88, %s90
    %p97 = scmp.eq.s32.totalorder %s17, 1
    %p98 = por %p96, %p97
    %p99 = scmp.ne.s32.totalorder %s90, %s91
    %p100 = scmp.eq.s32.totalorder %s17, 0
    %p101 = por %p99, %p100
    %p102 = scmp.ne.s32.totalorder %s90, %s91
    %p103 = scmp.eq.s32.totalorder %s18, 1
    %p104 = por %p102, %p103
    %p106 = scmp.ne.s32.totalorder %s91, %s105
    %p107 = scmp.eq.s32.totalorder %s18, 0
    %p108 = por %p106, %p107
    %s109 = ssub.s32 %s12, %s19
    %p110 = scmp.eq.s32.totalorder %s109, 0
    %s112 = sadd.s32 %s111, 1
    %s113 = scalar_select %p110, %s111, %s112
    %p116 = pneg %p110
    %p117 = scmp.eq.s32.totalorder %s12, 1
    %p118 = por %p116, %p117
    %p119 = scmp.ne.s32.totalorder %s111, %s114
    %p120 = scmp.eq.s32.totalorder %s12, 0
    %p121 = por %p119, %p120
    %p122 = scmp.ne.s32.totalorder %s111, %s114
    %p123 = scmp.eq.s32.totalorder %s17, 1
    %p124 = por %p122, %p123
    %p125 = scmp.ne.s32.totalorder %s114, %s115
    %p126 = scmp.eq.s32.totalorder %s17, 0
    %p127 = por %p125, %p126
    %p128 = scmp.ne.s32.totalorder %s114, %s115
    %p129 = scmp.eq.s32.totalorder %s18, 1
    %p130 = por %p128, %p129
    %p132 = scmp.ne.s32.totalorder %s115, %s131
    %p133 = scmp.eq.s32.totalorder %s18, 0
    %p134 = por %p132, %p133
    %s135 = ssub.s32 %s12, %s19
    %p136 = scmp.eq.s32.totalorder %s135, 0
    %s138 = sadd.s32 %s137, 1
    %s139 = scalar_select %p136, %s137, %s138
    %p142 = pneg %p136
    %p143 = scmp.eq.s32.totalorder %s12, 1
    %p144 = por %p142, %p143
    %p145 = scmp.ne.s32.totalorder %s137, %s140
    %p146 = scmp.eq.s32.totalorder %s12, 0
    %p147 = por %p145, %p146
    %p148 = scmp.ne.s32.totalorder %s137, %s140
    %p149 = scmp.eq.s32.totalorder %s17, 1
    %p150 = por %p148, %p149
    %p151 = scmp.ne.s32.totalorder %s140, %s141
    %p152 = scmp.eq.s32.totalorder %s17, 0
    %p153 = por %p151, %p152
    %p154 = scmp.ne.s32.totalorder %s140, %s141
    %p155 = scmp.eq.s32.totalorder %s18, 1
    %p156 = por %p154, %p155
    %p158 = scmp.ne.s32.totalorder %s141, %s157
    %p159 = scmp.eq.s32.totalorder %s18, 0
    %p160 = por %p158, %p159
    %p161 = scmp.le.s32.totalorder 1, %s12
    %p162 = scmp.lt.s32.totalorder %s12, 3
    %p163 = pnand %p161, %p162
    %p164 = pneg %p163
    // Predicated region
    $region9: #{bottleneck_forward.6} parent=5 // pred_check
      _
    $region10: #{bottleneck_forward.6} parent=5 // pred_check_branch
      %166 = sbr.rel (%p163) target = $region12
    $region11: #{bottleneck_forward.6} parent=5 // pred_region
      %s167 = ssub.s32 %s12, 1
      // Predicated region
      $region13: #{bottleneck_forward.6} parent=11 // pred_check
        %p168 = pneg %p59
      $region14: #{bottleneck_forward.6} parent=11 // pred_check_branch
        %170 = sbr.rel (%p168) target = $region16
      $region15: #{bottleneck_forward.6} parent=11 // pred_region
        _
      $region16: #{bottleneck_forward.6} parent=11 // pred_fallthru
        _
      // Predicated region
      $region17: #{bottleneck_forward.6} parent=11 // pred_check
        %p171 = pneg %p80
      $region18: #{bottleneck_forward.6} parent=11 // pred_check_branch
        %173 = sbr.rel (%p171) target = $region20
      $region19: #{bottleneck_forward.6} parent=11 // pred_region
        _
      $region20: #{bottleneck_forward.6} parent=11 // pred_fallthru
        _
      // Predicated region
      $region21: #{bottleneck_forward.6} parent=11 // pred_check
        %p174 = pneg %p101
      $region22: #{bottleneck_forward.6} parent=11 // pred_check_branch
        %176 = sbr.rel (%p174) target = $region24
      $region23: #{bottleneck_forward.6} parent=11 // pred_region
        _
      $region24: #{bottleneck_forward.6} parent=11 // pred_fallthru
        _
    $region12: #{bottleneck_forward.6} parent=5 // pred_fallthru
      _
    %p177 = scmp.lt.s32.totalorder %s12, 2
    // Predicated region
    $region25: #{bottleneck_forward.6} parent=5 // pred_check
      %p178 = pneg %p177
    $region26: #{bottleneck_forward.6} parent=5 // pred_check_branch
      %180 = sbr.rel (%p178) target = $region28
    $region27: #{bottleneck_forward.6} parent=5 // pred_region
      // Predicated region
      $region29: #{bottleneck_forward.6} parent=27 // pred_check
        %p181 = pneg %p32
      $region30: #{bottleneck_forward.6} parent=27 // pred_check_branch
        %183 = sbr.rel (%p181) target = $region32
      $region31: #{bottleneck_forward.6} parent=27 // pred_region
        %p184 = scmp.lt.s32.totalorder %s12, 1
        %s185 = scalar_select %p184, %s12, 1
        %s186 = smul.addr %s185, 32
        %s187 = smul.addr %s186, 4
        %s188 = scalar_lea.vmem %s0, %s187
      $region32: #{bottleneck_forward.6} parent=27 // pred_fallthru
        _
    $region28: #{bottleneck_forward.6} parent=5 // pred_fallthru
      _
    %p189 = scmp.le.s32.totalorder 1, %s12
    %p190 = scmp.lt.s32.totalorder %s12, 3
    %p191 = pnand %p189, %p190
    %p192 = pneg %p191
    // Predicated region
    $region33: #{bottleneck_forward.6} parent=5 // pred_check
      _
    $region34: #{bottleneck_forward.6} parent=5 // pred_check_branch
      %194 = sbr.rel (%p191) target = $region36
    $region35: #{bottleneck_forward.6} parent=5 // pred_region
      %s195 = ssub.s32 %s12, 1
      %p196 = scmp.lt.s32.totalorder %s17, 1
      %s197 = scalar_select %p196, %s17, 1
      %s198 = smul.addr %s197, 32
      %s199 = smul.addr %s198, 4
      %s200 = scalar_lea.vmem %s0, %s199
      %p201 = pneg %p38
      %p202 = pneg %p35
      %p203 = pneg %p59
      %p204 = pneg %p56
      %p205 = pneg %p80
      %p206 = pneg %p77
      %p207 = pneg %p101
      %p208 = pneg %p98
      %p209 = pneg %p127
      %p210 = pneg %p124
      %p211 = scmp.lt.s32.totalorder %s17, 1
      %s212 = scalar_select %p211, %s17, 1
      %s213 = smul.addr %s212, 32
      %s214 = smul.addr %s213, 4
      %s215 = scalar_lea.vmem %s4, %s214
      %p216 = pneg %p153
      %p217 = pneg %p150
      %p218 = scmp.lt.s32.totalorder %s17, 1
      %s219 = scalar_select %p218, %s17, 1
      %s220 = smul.addr %s219, 2
      %s221 = scalar_lea.vmem %s5, %s220
      %p222 = scmp.lt.s32.totalorder %s17, 1
      %s223 = scalar_select %p222, %s17, 1
      %s224 = smul.addr %s223, 32
      %s225 = smul.addr %s224, 4
      %s226 = scalar_lea.vmem %s0, %s225
      %p227 = scmp.lt.s32.totalorder %s17, 1
      %s228 = scalar_select %p227, %s17, 1
      %s229 = smul.addr %s228, 32
      %s230 = smul.addr %s229, 4
      %s231 = scalar_lea.vmem %s4, %s230
      %p232 = scmp.lt.s32.totalorder %s17, 1
      %s233 = scalar_select %p232, %s17, 1
      %s234 = smul.addr %s233, 2
      %s235 = scalar_lea.vmem %s5, %s234
      %v237 = vld [vmem:[%s226] sm:$0xf]
      %v238 = vld [vmem:[%s226 + $0x4] sm:$0xf]
      %v239 = vld [vmem:[%s226 + $0x8] sm:$0xf]
      %v240 = vld [vmem:[%s226 + $0xc] sm:$0xf]
      %v241 = vld [vmem:[%s226 + $0x10] sm:$0xf]
      %v242 = vld [vmem:[%s226 + $0x14] sm:$0xf]
      %v243 = vld [vmem:[%s226 + $0x18] sm:$0xf]
      %v244 = vld [vmem:[%s226 + $0x1c] sm:$0xf]
      %v245 = vld [vmem:[%s226 + $0x20] sm:$0xf]
      %v246 = vld [vmem:[%s226 + $0x24] sm:$0xf]
      %v247 = vld [vmem:[%s226 + $0x28] sm:$0xf]
      %v248 = vld [vmem:[%s226 + $0x2c] sm:$0xf]
      %v249 = vld [vmem:[%s226 + $0x30] sm:$0xf]
      %v250 = vld [vmem:[%s226 + $0x34] sm:$0xf]
      %v251 = vld [vmem:[%s226 + $0x38] sm:$0xf]
      %v252 = vld [vmem:[%s226 + $0x3c] sm:$0xf]
      %v253 = vld [vmem:[%s226 + $0x40] sm:$0xf]
      %v254 = vld [vmem:[%s226 + $0x44] sm:$0xf]
      %v255 = vld [vmem:[%s226 + $0x48] sm:$0xf]
      %v256 = vld [vmem:[%s226 + $0x4c] sm:$0xf]
      %v257 = vld [vmem:[%s226 + $0x50] sm:$0xf]
      %v258 = vld [vmem:[%s226 + $0x54] sm:$0xf]
      %v259 = vld [vmem:[%s226 + $0x58] sm:$0xf]
      %v260 = vld [vmem:[%s226 + $0x5c] sm:$0xf]
      %v261 = vld [vmem:[%s226 + $0x60] sm:$0xf]
      %v262 = vld [vmem:[%s226 + $0x64] sm:$0xf]
      %v263 = vld [vmem:[%s226 + $0x68] sm:$0xf]
      %v264 = vld [vmem:[%s226 + $0x6c] sm:$0xf]
      %v265 = vld [vmem:[%s226 + $0x70] sm:$0xf]
      %v266 = vld [vmem:[%s226 + $0x74] sm:$0xf]
      %v267 = vld [vmem:[%s226 + $0x78] sm:$0xf]
      %v268 = vld [vmem:[%s226 + $0x7c] sm:$0xf]
      %v269 = vunpack.c.l.bf16 %v237
      %v270 = vunpack.c.l.bf16 %v238
      %v271 = vunpack.c.l.bf16 %v239
      %v272 = vunpack.c.l.bf16 %v240
      %v273 = vunpack.c.l.bf16 %v241
      %v274 = vunpack.c.l.bf16 %v242
      %v275 = vunpack.c.l.bf16 %v243
      %v276 = vunpack.c.l.bf16 %v244
      %v277 = vunpack.c.l.bf16 %v245
      %v278 = vunpack.c.l.bf16 %v246
      %v279 = vunpack.c.l.bf16 %v247
      %v280 = vunpack.c.l.bf16 %v248
      %v281 = vunpack.c.l.bf16 %v249
      %v282 = vunpack.c.l.bf16 %v250
      %v283 = vunpack.c.l.bf16 %v251
      %v284 = vunpack.c.l.bf16 %v252
      %v285 = vunpack.c.l.bf16 %v253
      %v286 = vunpack.c.l.bf16 %v254
      %v287 = vunpack.c.l.bf16 %v255
      %v288 = vunpack.c.l.bf16 %v256
      %v289 = vunpack.c.l.bf16 %v257
      %v290 = vunpack.c.l.bf16 %v258
      %v291 = vunpack.c.l.bf16 %v259
      %v292 = vunpack.c.l.bf16 %v260
      %v293 = vunpack.c.l.bf16 %v261
      %v294 = vunpack.c.l.bf16 %v262
      %v295 = vunpack.c.l.bf16 %v263
      %v296 = vunpack.c.l.bf16 %v264
      %v297 = vunpack.c.l.bf16 %v265
      %v298 = vunpack.c.l.bf16 %v266
      %v299 = vunpack.c.l.bf16 %v267
      %v300 = vunpack.c.l.bf16 %v268
      %v301 = vld [vmem:[%s1] sm:$0x1]
      %v303 = vlaneseq
      %v304 = vshrl.u32 %v303, 7
      %v305 = vsub.s32 0, %v304
      %v306 = vrot.slane %v301, %v305
      %v308 = vmul.f32 %v269, %v306
      %v309 = vmul.f32 %v270, %v306
      %v310 = vmul.f32 %v271, %v306
      %v311 = vmul.f32 %v272, %v306
      %v312 = vmul.f32 %v273, %v306
      %v313 = vmul.f32 %v274, %v306
      %v314 = vmul.f32 %v275, %v306
      %v315 = vmul.f32 %v276, %v306
      %v316 = vmul.f32 %v277, %v306
      %v317 = vmul.f32 %v278, %v306
      %v318 = vmul.f32 %v279, %v306
      %v319 = vmul.f32 %v280, %v306
      %v320 = vmul.f32 %v281, %v306
      %v321 = vmul.f32 %v282, %v306
      %v322 = vmul.f32 %v283, %v306
      %v323 = vmul.f32 %v284, %v306
      %v324 = vmul.f32 %v285, %v306
      %v325 = vmul.f32 %v286, %v306
      %v326 = vmul.f32 %v287, %v306
      %v327 = vmul.f32 %v288, %v306
      %v328 = vmul.f32 %v289, %v306
      %v329 = vmul.f32 %v290, %v306
      %v330 = vmul.f32 %v291, %v306
      %v331 = vmul.f32 %v292, %v306
      %v332 = vmul.f32 %v293, %v306
      %v333 = vmul.f32 %v294, %v306
      %v334 = vmul.f32 %v295, %v306
      %v335 = vmul.f32 %v296, %v306
      %v336 = vmul.f32 %v297, %v306
      %v337 = vmul.f32 %v298, %v306
      %v338 = vmul.f32 %v299, %v306
      %v339 = vmul.f32 %v300, %v306
      %v340 = vld [vmem:[%s2] sm:$0x1]
      %v342 = vlaneseq
      %v343 = vshrl.u32 %v342, 7
      %v344 = vsub.s32 0, %v343
      %v345 = vrot.slane %v340, %v344
      %v347 = vadd.f32 %v308, %v345
      %v348 = vadd.f32 %v309, %v345
      %v349 = vadd.f32 %v310, %v345
      %v350 = vadd.f32 %v311, %v345
      %v351 = vadd.f32 %v312, %v345
      %v352 = vadd.f32 %v313, %v345
      %v353 = vadd.f32 %v314, %v345
      %v354 = vadd.f32 %v315, %v345
      %v355 = vadd.f32 %v316, %v345
      %v356 = vadd.f32 %v317, %v345
      %v357 = vadd.f32 %v318, %v345
      %v358 = vadd.f32 %v319, %v345
      %v359 = vadd.f32 %v320, %v345
      %v360 = vadd.f32 %v321, %v345
      %v361 = vadd.f32 %v322, %v345
      %v362 = vadd.f32 %v323, %v345
      %v363 = vadd.f32 %v324, %v345
      %v364 = vadd.f32 %v325, %v345
      %v365 = vadd.f32 %v326, %v345
      %v366 = vadd.f32 %v327, %v345
      %v367 = vadd.f32 %v328, %v345
      %v368 = vadd.f32 %v329, %v345
      %v369 = vadd.f32 %v330, %v345
      %v370 = vadd.f32 %v331, %v345
      %v371 = vadd.f32 %v332, %v345
      %v372 = vadd.f32 %v333, %v345
      %v373 = vadd.f32 %v334, %v345
      %v374 = vadd.f32 %v335, %v345
      %v375 = vadd.f32 %v336, %v345
      %v376 = vadd.f32 %v337, %v345
      %v377 = vadd.f32 %v338, %v345
      %v378 = vadd.f32 %v339, %v345
      %v379 = vmax.f32 %v347, 0.0
      %v380 = vmax.f32 %v348, 0.0
      %v381 = vmax.f32 %v349, 0.0
      %v382 = vmax.f32 %v350, 0.0
      %v383 = vmax.f32 %v351, 0.0
      %v384 = vmax.f32 %v352, 0.0
      %v385 = vmax.f32 %v353, 0.0
      %v386 = vmax.f32 %v354, 0.0
      %v387 = vmax.f32 %v355, 0.0
      %v388 = vmax.f32 %v356, 0.0
      %v389 = vmax.f32 %v357, 0.0
      %v390 = vmax.f32 %v358, 0.0
      %v391 = vmax.f32 %v359, 0.0
      %v392 = vmax.f32 %v360, 0.0
      %v393 = vmax.f32 %v361, 0.0
      %v394 = vmax.f32 %v362, 0.0
      %v395 = vmax.f32 %v363, 0.0
      %v396 = vmax.f32 %v364, 0.0
      %v397 = vmax.f32 %v365, 0.0
      %v398 = vmax.f32 %v366, 0.0
      %v399 = vmax.f32 %v367, 0.0
      %v400 = vmax.f32 %v368, 0.0
      %v401 = vmax.f32 %v369, 0.0
      %v402 = vmax.f32 %v370, 0.0
      %v403 = vmax.f32 %v371, 0.0
      %v404 = vmax.f32 %v372, 0.0
      %v405 = vmax.f32 %v373, 0.0
      %v406 = vmax.f32 %v374, 0.0
      %v407 = vmax.f32 %v375, 0.0
      %v408 = vmax.f32 %v376, 0.0
      %v409 = vmax.f32 %v377, 0.0
      %v410 = vmax.f32 %v378, 0.0
      %v411 = vpack.c.bf16 %v380, %v379
      %v412 = vpack.c.bf16 %v382, %v381
      %v413 = vpack.c.bf16 %v384, %v383
      %v414 = vpack.c.bf16 %v386, %v385
      %v415 = vpack.c.bf16 %v388, %v387
      %v416 = vpack.c.bf16 %v390, %v389
      %v417 = vpack.c.bf16 %v392, %v391
      %v418 = vpack.c.bf16 %v394, %v393
      %v419 = vpack.c.bf16 %v396, %v395
      %v420 = vpack.c.bf16 %v398, %v397
      %v421 = vpack.c.bf16 %v400, %v399
      %v422 = vpack.c.bf16 %v402, %v401
      %v423 = vpack.c.bf16 %v404, %v403
      %v424 = vpack.c.bf16 %v406, %v405
      %v425 = vpack.c.bf16 %v408, %v407
      %v426 = vpack.c.bf16 %v410, %v409
      %v427 = vld [vmem:[%s3] sm:$0xf]
      %v428 = vld [vmem:[%s3 + $0x4] sm:$0xf]
      %v429 = vld [vmem:[%s3 + $0x8] sm:$0xf]
      %v430 = vld [vmem:[%s3 + $0xc] sm:$0xf]
      %v431 = vld [vmem:[%s3 + $0x10] sm:$0xf]
      %v432 = vld [vmem:[%s3 + $0x14] sm:$0xf]
      %v433 = vld [vmem:[%s3 + $0x18] sm:$0xf]
      %v434 = vld [vmem:[%s3 + $0x1c] sm:$0xf]
      %v435 = vld [vmem:[%s3 + $0x20] sm:$0xf]
      %v436 = vld [vmem:[%s3 + $0x24] sm:$0xf]
      %v437 = vld [vmem:[%s3 + $0x28] sm:$0xf]
      %v438 = vld [vmem:[%s3 + $0x2c] sm:$0xf]
      %v439 = vld [vmem:[%s3 + $0x30] sm:$0xf]
      %v440 = vld [vmem:[%s3 + $0x34] sm:$0xf]
      %v441 = vld [vmem:[%s3 + $0x38] sm:$0xf]
      %v442 = vld [vmem:[%s3 + $0x3c] sm:$0xf]
      %v459 = vunpack.c.l.b16 %v427
      %v460 = vunpack.c.l.b16 %v428
      %v461 = vunpack.c.l.b16 %v429
      %v462 = vunpack.c.l.b16 %v430
      %v463 = vunpack.c.l.b16 %v431
      %v464 = vunpack.c.l.b16 %v432
      %v465 = vunpack.c.l.b16 %v433
      %v466 = vunpack.c.l.b16 %v434
      %v467 = vunpack.c.l.b16 %v435
      %v468 = vunpack.c.l.b16 %v436
      %v469 = vunpack.c.l.b16 %v437
      %v470 = vunpack.c.l.b16 %v438
      %v471 = vunpack.c.l.b16 %v439
      %v472 = vunpack.c.l.b16 %v440
      %v473 = vunpack.c.l.b16 %v441
      %v474 = vunpack.c.l.b16 %v442
      %v475 = vpack.c.b16 %v460, %v459
      %v476 = vpack.c.b16 %v462, %v461
      %v477 = vpack.c.b16 %v464, %v463
      %v478 = vpack.c.b16 %v466, %v465
      %v479 = vpack.c.b16 %v468, %v467
      %v480 = vpack.c.b16 %v470, %v469
      %v481 = vpack.c.b16 %v472, %v471
      %v482 = vpack.c.b16 %v474, %v473
      %491 = vmatprep.subr.bf16.mxu0 0
      %492 = vmatpush1.bf16.msra.mxu0 %v482
      %493 = vmatprep.subr.bf16.mxu0 0
      %494 = vmatpush1.bf16.msra.mxu0 %v481
      %495 = vmatprep.subr.bf16.mxu0 0
      %496 = vmatpush1.bf16.msra.mxu0 %v480
      %497 = vmatprep.subr.bf16.mxu0 0
      %498 = vmatpush1.bf16.msra.mxu0 %v479
      %499 = vmatprep.subr.bf16.mxu0 0
      %500 = vmatpush1.bf16.msra.mxu0 %v478
      %501 = vmatprep.subr.bf16.mxu0 0
      %502 = vmatpush1.bf16.msra.mxu0 %v477
      %503 = vmatprep.subr.bf16.mxu0 0
      %504 = vmatpush1.bf16.msra.mxu0 %v476
      %505 = vmatprep.subr.bf16.mxu0 0
      %506 = vmatpush1.bf16.msra.mxu0 %v475
      %507 = vmatprep.subr.bf16.mxu0 0
      %508 = vmatpush2.bf16.msra.mxu0 0
      %509 = vmatprep.subr.bf16.mxu0 0
      %510 = vmatpush2.bf16.msra.mxu0 0
      %511 = vmatprep.subr.bf16.mxu0 0
      %512 = vmatpush2.bf16.msra.mxu0 0
      %513 = vmatprep.subr.bf16.mxu0 0
      %514 = vmatpush2.bf16.msra.mxu0 0
      %515 = vmatprep.subr.bf16.mxu0 0
      %516 = vmatpush2.bf16.msra.mxu0 0
      %517 = vmatprep.subr.bf16.mxu0 0
      %518 = vmatpush2.bf16.msra.mxu0 0
      %519 = vmatprep.subr.bf16.mxu0 0
      %520 = vmatpush2.bf16.msra.mxu0 0
      %521 = vmatprep.subr.bf16.mxu0 0
      %522 = vmatpush2.bf16.msra.mxu0 0
      %523 = vmatprep.mubr.bf16.mxu0 0
      %524 = vmatmul.mubr.bf16.gmra.mxu0 %v411
      %v525 = vpop.f32.mrf.mxu0
      %v526 = vadd.f32 0.0, %v525
      %v527 = vpop.f32.mrf.mxu0
      %v528 = vpop.f32.mrf.mxu0
      %v529 = vadd.f32 0.0, %v528
      %v530 = vpop.f32.mrf.mxu0
      %531 = vmatprep.mubr.bf16.mxu0 0
      %532 = vmatmul.mubr.bf16.gmra.mxu0 %v412
      %v533 = vpop.f32.mrf.mxu0
      %v534 = vadd.f32 0.0, %v533
      %v535 = vpop.f32.mrf.mxu0
      %v536 = vpop.f32.mrf.mxu0
      %v537 = vadd.f32 0.0, %v536
      %v538 = vpop.f32.mrf.mxu0
      %539 = vmatprep.mubr.bf16.mxu0 0
      %540 = vmatmul.mubr.bf16.gmra.mxu0 %v413
      %v541 = vpop.f32.mrf.mxu0
      %v542 = vadd.f32 0.0, %v541
      %v543 = vpop.f32.mrf.mxu0
      %v544 = vpop.f32.mrf.mxu0
      %v545 = vadd.f32 0.0, %v544
      %v546 = vpop.f32.mrf.mxu0
      %547 = vmatprep.mubr.bf16.mxu0 0
      %548 = vmatmul.mubr.bf16.gmra.mxu0 %v414
      %v549 = vpop.f32.mrf.mxu0
      %v550 = vadd.f32 0.0, %v549
      %v551 = vpop.f32.mrf.mxu0
      %v552 = vpop.f32.mrf.mxu0
      %v553 = vadd.f32 0.0, %v552
      %v554 = vpop.f32.mrf.mxu0
      %555 = vmatprep.mubr.bf16.mxu0 0
      %556 = vmatmul.mubr.bf16.gmra.mxu0 %v415
      %v557 = vpop.f32.mrf.mxu0
      %v558 = vadd.f32 0.0, %v557
      %v559 = vpop.f32.mrf.mxu0
      %v560 = vpop.f32.mrf.mxu0
      %v561 = vadd.f32 0.0, %v560
      %v562 = vpop.f32.mrf.mxu0
      %563 = vmatprep.mubr.bf16.mxu0 0
      %564 = vmatmul.mubr.bf16.gmra.mxu0 %v416
      %v565 = vpop.f32.mrf.mxu0
      %v566 = vadd.f32 0.0, %v565
      %v567 = vpop.f32.mrf.mxu0
      %v568 = vpop.f32.mrf.mxu0
      %v569 = vadd.f32 0.0, %v568
      %v570 = vpop.f32.mrf.mxu0
      %571 = vmatprep.mubr.bf16.mxu0 0
      %572 = vmatmul.mubr.bf16.gmra.mxu0 %v417
      %v573 = vpop.f32.mrf.mxu0
      %v574 = vadd.f32 0.0, %v573
      %v575 = vpop.f32.mrf.mxu0
      %v576 = vpop.f32.mrf.mxu0
      %v577 = vadd.f32 0.0, %v576
      %v578 = vpop.f32.mrf.mxu0
      %579 = vmatprep.mubr.bf16.mxu0 0
      %580 = vmatmul.mubr.bf16.gmra.mxu0 %v418
      %v581 = vpop.f32.mrf.mxu0
      %v582 = vadd.f32 0.0, %v581
      %v583 = vpop.f32.mrf.mxu0
      %v584 = vpop.f32.mrf.mxu0
      %v585 = vadd.f32 0.0, %v584
      %v586 = vpop.f32.mrf.mxu0
      %587 = vmatprep.mubr.bf16.mxu0 0
      %588 = vmatmul.mubr.bf16.gmra.mxu0 %v419
      %v589 = vpop.f32.mrf.mxu0
      %v590 = vadd.f32 0.0, %v589
      %v591 = vpop.f32.mrf.mxu0
      %v592 = vpop.f32.mrf.mxu0
      %v593 = vadd.f32 0.0, %v592
      %v594 = vpop.f32.mrf.mxu0
      %595 = vmatprep.mubr.bf16.mxu0 0
      %596 = vmatmul.mubr.bf16.gmra.mxu0 %v420
      %v597 = vpop.f32.mrf.mxu0
      %v598 = vadd.f32 0.0, %v597
      %v599 = vpop.f32.mrf.mxu0
      %v600 = vpop.f32.mrf.mxu0
      %v601 = vadd.f32 0.0, %v600
      %v602 = vpop.f32.mrf.mxu0
      %603 = vmatprep.mubr.bf16.mxu0 0
      %604 = vmatmul.mubr.bf16.gmra.mxu0 %v421
      %v605 = vpop.f32.mrf.mxu0
      %v606 = vadd.f32 0.0, %v605
      %v607 = vpop.f32.mrf.mxu0
      %v608 = vpop.f32.mrf.mxu0
      %v609 = vadd.f32 0.0, %v608
      %v610 = vpop.f32.mrf.mxu0
      %611 = vmatprep.mubr.bf16.mxu0 0
      %612 = vmatmul.mubr.bf16.gmra.mxu0 %v422
      %v613 = vpop.f32.mrf.mxu0
      %v614 = vadd.f32 0.0, %v613
      %v615 = vpop.f32.mrf.mxu0
      %v616 = vpop.f32.mrf.mxu0
      %v617 = vadd.f32 0.0, %v616
      %v618 = vpop.f32.mrf.mxu0
      %619 = vmatprep.mubr.bf16.mxu0 0
      %620 = vmatmul.mubr.bf16.gmra.mxu0 %v423
      %v621 = vpop.f32.mrf.mxu0
      %v622 = vadd.f32 0.0, %v621
      %v623 = vpop.f32.mrf.mxu0
      %v624 = vpop.f32.mrf.mxu0
      %v625 = vadd.f32 0.0, %v624
      %v626 = vpop.f32.mrf.mxu0
      %627 = vmatprep.mubr.bf16.mxu0 0
      %628 = vmatmul.mubr.bf16.gmra.mxu0 %v424
      %v629 = vpop.f32.mrf.mxu0
      %v630 = vadd.f32 0.0, %v629
      %v631 = vpop.f32.mrf.mxu0
      %v632 = vpop.f32.mrf.mxu0
      %v633 = vadd.f32 0.0, %v632
      %v634 = vpop.f32.mrf.mxu0
      %635 = vmatprep.mubr.bf16.mxu0 0
      %636 = vmatmul.mubr.bf16.gmra.mxu0 %v425
      %v637 = vpop.f32.mrf.mxu0
      %v638 = vadd.f32 0.0, %v637
      %v639 = vpop.f32.mrf.mxu0
      %v640 = vpop.f32.mrf.mxu0
      %v641 = vadd.f32 0.0, %v640
      %v642 = vpop.f32.mrf.mxu0
      %643 = vmatprep.mubr.bf16.mxu0 0
      %644 = vmatmul.mubr.bf16.gmra.mxu0 %v426
      %v645 = vpop.f32.mrf.mxu0
      %v646 = vadd.f32 0.0, %v645
      %v647 = vpop.f32.mrf.mxu0
      %v648 = vpop.f32.mrf.mxu0
      %v649 = vadd.f32 0.0, %v648
      %v650 = vpop.f32.mrf.mxu0
      %651 = vdwg.mxu0
      %v652 = vpack.c.bf16 %v529, %v526
      %v653 = vpack.c.bf16 %v537, %v534
      %v654 = vpack.c.bf16 %v545, %v542
      %v655 = vpack.c.bf16 %v553, %v550
      %v656 = vpack.c.bf16 %v561, %v558
      %v657 = vpack.c.bf16 %v569, %v566
      %v658 = vpack.c.bf16 %v577, %v574
      %v659 = vpack.c.bf16 %v585, %v582
      %v660 = vpack.c.bf16 %v593, %v590
      %v661 = vpack.c.bf16 %v601, %v598
      %v662 = vpack.c.bf16 %v609, %v606
      %v663 = vpack.c.bf16 %v617, %v614
      %v664 = vpack.c.bf16 %v625, %v622
      %v665 = vpack.c.bf16 %v633, %v630
      %v666 = vpack.c.bf16 %v641, %v638
      %v667 = vpack.c.bf16 %v649, %v646
      %v684 = vunpack.c.l.b16 %v652
      %v685 = vunpack.c.h.b16 %v652
      %v686 = vunpack.c.l.b16 %v653
      %v687 = vunpack.c.h.b16 %v653
      %v688 = vunpack.c.l.b16 %v654
      %v689 = vunpack.c.h.b16 %v654
      %v690 = vunpack.c.l.b16 %v655
      %v691 = vunpack.c.h.b16 %v655
      %v692 = vunpack.c.l.b16 %v656
      %v693 = vunpack.c.h.b16 %v656
      %v694 = vunpack.c.l.b16 %v657
      %v695 = vunpack.c.h.b16 %v657
      %v696 = vunpack.c.l.b16 %v658
      %v697 = vunpack.c.h.b16 %v658
      %v698 = vunpack.c.l.b16 %v659
      %v699 = vunpack.c.h.b16 %v659
      %v700 = vunpack.c.l.b16 %v660
      %v701 = vunpack.c.h.b16 %v660
      %v702 = vunpack.c.l.b16 %v661
      %v703 = vunpack.c.h.b16 %v661
      %v704 = vunpack.c.l.b16 %v662
      %v705 = vunpack.c.h.b16 %v662
      %v706 = vunpack.c.l.b16 %v663
      %v707 = vunpack.c.h.b16 %v663
      %v708 = vunpack.c.l.b16 %v664
      %v709 = vunpack.c.h.b16 %v664
      %v710 = vunpack.c.l.b16 %v665
      %v711 = vunpack.c.h.b16 %v665
      %v712 = vunpack.c.l.b16 %v666
      %v713 = vunpack.c.h.b16 %v666
      %v714 = vunpack.c.l.b16 %v667
      %v715 = vunpack.c.h.b16 %v667
      %v716 = vpack.c.b16 %v684, %v684
      %v717 = vpack.c.b16 %v685, %v685
      %v718 = vpack.c.b16 %v686, %v686
      %v719 = vpack.c.b16 %v687, %v687
      %v720 = vpack.c.b16 %v688, %v688
      %v721 = vpack.c.b16 %v689, %v689
      %v722 = vpack.c.b16 %v690, %v690
      %v723 = vpack.c.b16 %v691, %v691
      %v724 = vpack.c.b16 %v692, %v692
      %v725 = vpack.c.b16 %v693, %v693
      %v726 = vpack.c.b16 %v694, %v694
      %v727 = vpack.c.b16 %v695, %v695
      %v728 = vpack.c.b16 %v696, %v696
      %v729 = vpack.c.b16 %v697, %v697
      %v730 = vpack.c.b16 %v698, %v698
      %v731 = vpack.c.b16 %v699, %v699
      %v732 = vpack.c.b16 %v700, %v700
      %v733 = vpack.c.b16 %v701, %v701
      %v734 = vpack.c.b16 %v702, %v702
      %v735 = vpack.c.b16 %v703, %v703
      %v736 = vpack.c.b16 %v704, %v704
      %v737 = vpack.c.b16 %v705, %v705
      %v738 = vpack.c.b16 %v706, %v706
      %v739 = vpack.c.b16 %v707, %v707
      %v740 = vpack.c.b16 %v708, %v708
      %v741 = vpack.c.b16 %v709, %v709
      %v742 = vpack.c.b16 %v710, %v710
      %v743 = vpack.c.b16 %v711, %v711
      %v744 = vpack.c.b16 %v712, %v712
      %v745 = vpack.c.b16 %v713, %v713
      %v746 = vpack.c.b16 %v714, %v714
      %v747 = vpack.c.b16 %v715, %v715
      %780 = vst [vmem:[%s231] sm:$0xf] %v716
      %781 = vst [vmem:[%s231 + $0x4] sm:$0xf] %v717
      %782 = vst [vmem:[%s231 + $0x8] sm:$0xf] %v718
      %783 = vst [vmem:[%s231 + $0xc] sm:$0xf] %v719
      %784 = vst [vmem:[%s231 + $0x10] sm:$0xf] %v720
      %785 = vst [vmem:[%s231 + $0x14] sm:$0xf] %v721
      %786 = vst [vmem:[%s231 + $0x18] sm:$0xf] %v722
      %787 = vst [vmem:[%s231 + $0x1c] sm:$0xf] %v723
      %788 = vst [vmem:[%s231 + $0x20] sm:$0xf] %v724
      %789 = vst [vmem:[%s231 + $0x24] sm:$0xf] %v725
      %790 = vst [vmem:[%s231 + $0x28] sm:$0xf] %v726
      %791 = vst [vmem:[%s231 + $0x2c] sm:$0xf] %v727
      %792 = vst [vmem:[%s231 + $0x30] sm:$0xf] %v728
      %793 = vst [vmem:[%s231 + $0x34] sm:$0xf] %v729
      %794 = vst [vmem:[%s231 + $0x38] sm:$0xf] %v730
      %795 = vst [vmem:[%s231 + $0x3c] sm:$0xf] %v731
      %796 = vst [vmem:[%s231 + $0x40] sm:$0xf] %v732
      %797 = vst [vmem:[%s231 + $0x44] sm:$0xf] %v733
      %798 = vst [vmem:[%s231 + $0x48] sm:$0xf] %v734
      %799 = vst [vmem:[%s231 + $0x4c] sm:$0xf] %v735
      %800 = vst [vmem:[%s231 + $0x50] sm:$0xf] %v736
      %801 = vst [vmem:[%s231 + $0x54] sm:$0xf] %v737
      %802 = vst [vmem:[%s231 + $0x58] sm:$0xf] %v738
      %803 = vst [vmem:[%s231 + $0x5c] sm:$0xf] %v739
      %804 = vst [vmem:[%s231 + $0x60] sm:$0xf] %v740
      %805 = vst [vmem:[%s231 + $0x64] sm:$0xf] %v741
      %806 = vst [vmem:[%s231 + $0x68] sm:$0xf] %v742
      %807 = vst [vmem:[%s231 + $0x6c] sm:$0xf] %v743
      %808 = vst [vmem:[%s231 + $0x70] sm:$0xf] %v744
      %809 = vst [vmem:[%s231 + $0x74] sm:$0xf] %v745
      %810 = vst [vmem:[%s231 + $0x78] sm:$0xf] %v746
      %811 = vst [vmem:[%s231 + $0x7c] sm:$0xf] %v747
      %v812 = vunpack.c.l.bf16 %v652
      %v813 = vunpack.c.h.bf16 %v652
      %v814 = vunpack.c.l.bf16 %v653
      %v815 = vunpack.c.h.bf16 %v653
      %v816 = vunpack.c.l.bf16 %v654
      %v817 = vunpack.c.h.bf16 %v654
      %v818 = vunpack.c.l.bf16 %v655
      %v819 = vunpack.c.h.bf16 %v655
      %v820 = vunpack.c.l.bf16 %v656
      %v821 = vunpack.c.h.bf16 %v656
      %v822 = vunpack.c.l.bf16 %v657
      %v823 = vunpack.c.h.bf16 %v657
      %v824 = vunpack.c.l.bf16 %v658
      %v825 = vunpack.c.h.bf16 %v658
      %v826 = vunpack.c.l.bf16 %v659
      %v827 = vunpack.c.h.bf16 %v659
      %v828 = vunpack.c.l.bf16 %v660
      %v829 = vunpack.c.h.bf16 %v660
      %v830 = vunpack.c.l.bf16 %v661
      %v831 = vunpack.c.h.bf16 %v661
      %v832 = vunpack.c.l.bf16 %v662
      %v833 = vunpack.c.h.bf16 %v662
      %v834 = vunpack.c.l.bf16 %v663
      %v835 = vunpack.c.h.bf16 %v663
      %v836 = vunpack.c.l.bf16 %v664
      %v837 = vunpack.c.h.bf16 %v664
      %v838 = vunpack.c.l.bf16 %v665
      %v839 = vunpack.c.h.bf16 %v665
      %v840 = vunpack.c.l.bf16 %v666
      %v841 = vunpack.c.h.bf16 %v666
      %v842 = vunpack.c.l.bf16 %v667
      %v843 = vunpack.c.h.bf16 %v667
      %v844 = vadd.f32 %v812, %v813
      %v845 = vadd.f32 %v844, %v814
      %v846 = vadd.f32 %v845, %v815
      %v847 = vadd.f32 %v846, %v816
      %v848 = vadd.f32 %v847, %v817
      %v849 = vadd.f32 %v848, %v818
      %v850 = vadd.f32 %v849, %v819
      %v851 = vadd.f32 %v850, %v820
      %v852 = vadd.f32 %v851, %v821
      %v853 = vadd.f32 %v852, %v822
      %v854 = vadd.f32 %v853, %v823
      %v855 = vadd.f32 %v854, %v824
      %v856 = vadd.f32 %v855, %v825
      %v857 = vadd.f32 %v856, %v826
      %v858 = vadd.f32 %v857, %v827
      %v859 = vadd.f32 %v858, %v828
      %v860 = vadd.f32 %v859, %v829
      %v861 = vadd.f32 %v860, %v830
      %v862 = vadd.f32 %v861, %v831
      %v863 = vadd.f32 %v862, %v832
      %v864 = vadd.f32 %v863, %v833
      %v865 = vadd.f32 %v864, %v834
      %v866 = vadd.f32 %v865, %v835
      %v867 = vadd.f32 %v866, %v836
      %v868 = vadd.f32 %v867, %v837
      %v869 = vadd.f32 %v868, %v838
      %v870 = vadd.f32 %v869, %v839
      %v871 = vadd.f32 %v870, %v840
      %v872 = vadd.f32 %v871, %v841
      %v873 = vadd.f32 %v872, %v842
      %v874 = vadd.f32 %v873, %v843
      %v875 = vrot.slane %v874, 4
      %v876 = vadd.f32 %v874, %v875
      %v877 = vrot.slane %v876, 2
      %v878 = vadd.f32 %v876, %v877
      %v879 = vrot.slane %v878, 1
      %v880 = vadd.f32 %v878, %v879
      %v881 = vmul.f32 %v812, %v812
      %v882 = vmul.f32 %v813, %v813
      %v883 = vmul.f32 %v814, %v814
      %v884 = vmul.f32 %v815, %v815
      %v885 = vmul.f32 %v816, %v816
      %v886 = vmul.f32 %v817, %v817
      %v887 = vmul.f32 %v818, %v818
      %v888 = vmul.f32 %v819, %v819
      %v889 = vmul.f32 %v820, %v820
      %v890 = vmul.f32 %v821, %v821
      %v891 = vmul.f32 %v822, %v822
      %v892 = vmul.f32 %v823, %v823
      %v893 = vmul.f32 %v824, %v824
      %v894 = vmul.f32 %v825, %v825
      %v895 = vmul.f32 %v826, %v826
      %v896 = vmul.f32 %v827, %v827
      %v897 = vmul.f32 %v828, %v828
      %v898 = vmul.f32 %v829, %v829
      %v899 = vmul.f32 %v830, %v830
      %v900 = vmul.f32 %v831, %v831
      %v901 = vmul.f32 %v832, %v832
      %v902 = vmul.f32 %v833, %v833
      %v903 = vmul.f32 %v834, %v834
      %v904 = vmul.f32 %v835, %v835
      %v905 = vmul.f32 %v836, %v836
      %v906 = vmul.f32 %v837, %v837
      %v907 = vmul.f32 %v838, %v838
      %v908 = vmul.f32 %v839, %v839
      %v909 = vmul.f32 %v840, %v840
      %v910 = vmul.f32 %v841, %v841
      %v911 = vmul.f32 %v842, %v842
      %v912 = vmul.f32 %v843, %v843
      %v913 = vadd.f32 %v881, %v882
      %v914 = vadd.f32 %v913, %v883
      %v915 = vadd.f32 %v914, %v884
      %v916 = vadd.f32 %v915, %v885
      %v917 = vadd.f32 %v916, %v886
      %v918 = vadd.f32 %v917, %v887
      %v919 = vadd.f32 %v918, %v888
      %v920 = vadd.f32 %v919, %v889
      %v921 = vadd.f32 %v920, %v890
      %v922 = vadd.f32 %v921, %v891
      %v923 = vadd.f32 %v922, %v892
      %v924 = vadd.f32 %v923, %v893
      %v925 = vadd.f32 %v924, %v894
      %v926 = vadd.f32 %v925, %v895
      %v927 = vadd.f32 %v926, %v896
      %v928 = vadd.f32 %v927, %v897
      %v929 = vadd.f32 %v928, %v898
      %v930 = vadd.f32 %v929, %v899
      %v931 = vadd.f32 %v930, %v900
      %v932 = vadd.f32 %v931, %v901
      %v933 = vadd.f32 %v932, %v902
      %v934 = vadd.f32 %v933, %v903
      %v935 = vadd.f32 %v934, %v904
      %v936 = vadd.f32 %v935, %v905
      %v937 = vadd.f32 %v936, %v906
      %v938 = vadd.f32 %v937, %v907
      %v939 = vadd.f32 %v938, %v908
      %v940 = vadd.f32 %v939, %v909
      %v941 = vadd.f32 %v940, %v910
      %v942 = vadd.f32 %v941, %v911
      %v943 = vadd.f32 %v942, %v912
      %v944 = vrot.slane %v943, 4
      %v945 = vadd.f32 %v943, %v944
      %v946 = vrot.slane %v945, 2
      %v947 = vadd.f32 %v945, %v946
      %v948 = vrot.slane %v947, 1
      %v949 = vadd.f32 %v947, %v948
      %vm950 = vcmask 1040384
      %v951 = vsel %vm950, %v880, %v949
      %952 = vst [vmem:[%s235] sm:$0x3] %v951
      %p953 = scmp.lt.s32.totalorder %s17, 1
      %s954 = scalar_select %p953, %s17, 1
      %s955 = smul.addr %s954, 32
      %s956 = smul.addr %s955, 4
      %s957 = scalar_lea.vmem %s4, %s956
      %p958 = scmp.lt.s32.totalorder %s17, 1
      %s959 = scalar_select %p958, %s17, 1
      %s960 = smul.addr %s959, 2
      %s961 = scalar_lea.vmem %s5, %s960
      // Predicated region
      $region37: #{bottleneck_forward.6} parent=35 // pred_check
        %p962 = pneg %p124
      $region38: #{bottleneck_forward.6} parent=35 // pred_check_branch
        %964 = sbr.rel (%p962) target = $region40
      $region39: #{bottleneck_forward.6} parent=35 // pred_region
        _
      $region40: #{bottleneck_forward.6} parent=35 // pred_fallthru
        _
      // Predicated region
      $region41: #{bottleneck_forward.6} parent=35 // pred_check
        %p965 = pneg %p150
      $region42: #{bottleneck_forward.6} parent=35 // pred_check_branch
        %967 = sbr.rel (%p965) target = $region44
      $region43: #{bottleneck_forward.6} parent=35 // pred_region
        _
      $region44: #{bottleneck_forward.6} parent=35 // pred_fallthru
        _
    $region36: #{bottleneck_forward.6} parent=5 // pred_fallthru
      _
    %p968 = scmp.le.s32.totalorder 2, %s12
    // Predicated region
    $region45: #{bottleneck_forward.6} parent=5 // pred_check
      %p969 = pneg %p968
    $region46: #{bottleneck_forward.6} parent=5 // pred_check_branch
      %971 = sbr.rel (%p969) target = $region48
    $region47: #{bottleneck_forward.6} parent=5 // pred_region
      %s972 = ssub.s32 %s12, 2
      // Predicated region
      $region49: #{bottleneck_forward.6} parent=47 // pred_check
        %p973 = pneg %p130
      $region50: #{bottleneck_forward.6} parent=47 // pred_check_branch
        %975 = sbr.rel (%p973) target = $region52
      $region51: #{bottleneck_forward.6} parent=47 // pred_region
        %p976 = scmp.lt.s32.totalorder %s18, 1
        %s977 = scalar_select %p976, %s18, 1
        %s978 = smul.addr %s977, 32
        %s979 = smul.addr %s978, 4
        %s980 = scalar_lea.vmem %s4, %s979
      $region52: #{bottleneck_forward.6} parent=47 // pred_fallthru
        _
      // Predicated region
      $region53: #{bottleneck_forward.6} parent=47 // pred_check
        %p981 = pneg %p156
      $region54: #{bottleneck_forward.6} parent=47 // pred_check_branch
        %983 = sbr.rel (%p981) target = $region56
      $region55: #{bottleneck_forward.6} parent=47 // pred_region
        %p984 = scmp.lt.s32.totalorder %s18, 1
        %s985 = scalar_select %p984, %s18, 1
        %s986 = smul.addr %s985, 2
        %s987 = scalar_lea.vmem %s5, %s986
      $region56: #{bottleneck_forward.6} parent=47 // pred_fallthru
        _
    $region48: #{bottleneck_forward.6} parent=5 // pred_fallthru
      _
  $region6: #{bottleneck_forward.6} parent=0 // loop_footer
    %s16 = sadd.s32 1, %s12
  $region7: #{bottleneck_forward.6} parent=0 // loop_footer_branch
    %11 = sbr.rel target = $region3
  $region8: #{bottleneck_forward.6} parent=0 // loop_exit
    _

// kernel: bottleneck_forward.7
$region0: #{bottleneck_forward.7}
  #allocation0 [shape = 'u32[]', space=smem, size = 0x4, offset = 0x4, fixed_abs, tag = 'smem constant byte address 0x4 - core index']
  #allocation1 [shape = 'u32[144,128]{1,0:T(1,128)}', space=vmem, size = 0x12000, scoped, tag = 'internal scratch']
  %s0 = inlined_call_operand.vmem [shape: bf16[2,16,16,128], index: 0, kind: input, shape index: {}]
  %s1 = inlined_call_operand.vmem [shape: f32[1,128], index: 1, kind: input, shape index: {}]
  %s2 = inlined_call_operand.vmem [shape: f32[1,128], index: 2, kind: input, shape index: {}]
  %s3 = inlined_call_operand.vmem [shape: f32[2,16,16,128], index: 3, kind: input, shape index: {}]
  %s4 = inlined_call_operand.vmem [shape: f32[2,16,16,128], index: 4, kind: output, shape index: {}]
  %s5 = sld [smem:[#allocation0]]
  $region49: #{bottleneck_forward.7} parent=0
    _
  %s7 = ssub.s32 1, %s5
  %s8 = scalar_select 0, %s7, %s5
  loop: start=0, step=1, limit=4
  $region2: #{bottleneck_forward.7} parent=0 // loop_pre_header
    _
  $region3: #{bottleneck_forward.7} parent=0 // loop_header
    %s10 = sphi 0, %s14
    %p11 = scmp.ge.s32.totalorder %s10, 4
    %s20 = sphi 0, %s22
    %s23 = sphi 0, %s20
    %s24 = sphi 0, %s23
    %s40 = sphi 0, %s24
    %s44 = sphi 0, %s44
    %s46 = sphi 0, %s44
    %s47 = sphi 0, %s46
    %s61 = sphi 0, %s47
    %s65 = sphi 0, %s65
    %s67 = sphi 0, %s65
    %s68 = sphi 0, %s67
    %s82 = sphi 0, %s68
    %s88 = sphi 0, %s90
    %s91 = sphi 0, %s88
    %s92 = sphi 0, %s91
    %s108 = sphi 0, %s92
    %s114 = sphi 0, %s116
    %s117 = sphi 0, %s114
    %s118 = sphi 0, %s117
    %s134 = sphi 0, %s118
  $region4: #{bottleneck_forward.7} parent=0 // loop_header_branch
    %13 = sbr.rel (%p11) target = $region8
  $region5: #{bottleneck_forward.7} parent=0 // loop_body
    %s15 = ssub.s32 %s10, 1
    %s16 = ssub.s32 %s10, 2
    %s17 = sadd.s32 %s10, 1
    %s18 = ssub.s32 %s10, %s17
    %p19 = scmp.eq.s32.totalorder %s18, 0
    %s21 = sadd.s32 %s20, 1
    %s22 = scalar_select %p19, %s20, %s21
    %p25 = pneg %p19
    %p26 = scmp.eq.s32.totalorder %s10, 1
    %p27 = por %p25, %p26
    %p28 = scmp.ne.s32.totalorder %s20, %s23
    %p29 = scmp.eq.s32.totalorder %s10, 0
    %p30 = por %p28, %p29
    %p31 = scmp.ne.s32.totalorder %s20, %s23
    %p32 = scmp.eq.s32.totalorder %s15, 1
    %p33 = por %p31, %p32
    %p34 = scmp.ne.s32.totalorder %s23, %s24
    %p35 = scmp.eq.s32.totalorder %s15, 0
    %p36 = por %p34, %p35
    %p37 = scmp.ne.s32.totalorder %s23, %s24
    %p38 = scmp.eq.s32.totalorder %s16, 1
    %p39 = por %p37, %p38
    %p41 = scmp.ne.s32.totalorder %s24, %s40
    %p42 = scmp.eq.s32.totalorder %s16, 0
    %p43 = por %p41, %p42
    %s45 = sadd.s32 %s44, 1
    %p48 = scmp.eq.s32.totalorder %s10, 1
    %p49 = scmp.ne.s32.totalorder %s44, %s46
    %p50 = scmp.eq.s32.totalorder %s10, 0
    %p51 = por %p49, %p50
    %p52 = scmp.ne.s32.totalorder %s44, %s46
    %p53 = scmp.eq.s32.totalorder %s15, 1
    %p54 = por %p52, %p53
    %p55 = scmp.ne.s32.totalorder %s46, %s47
    %p56 = scmp.eq.s32.totalorder %s15, 0
    %p57 = por %p55, %p56
    %p58 = scmp.ne.s32.totalorder %s46, %s47
    %p59 = scmp.eq.s32.totalorder %s16, 1
    %p60 = por %p58, %p59
    %p62 = scmp.ne.s32.totalorder %s47, %s61
    %p63 = scmp.eq.s32.totalorder %s16, 0
    %p64 = por %p62, %p63
    %s66 = sadd.s32 %s65, 1
    %p69 = scmp.eq.s32.totalorder %s10, 1
    %p70 = scmp.ne.s32.totalorder %s65, %s67
    %p71 = scmp.eq.s32.totalorder %s10, 0
    %p72 = por %p70, %p71
    %p73 = scmp.ne.s32.totalorder %s65, %s67
    %p74 = scmp.eq.s32.totalorder %s15, 1
    %p75 = por %p73, %p74
    %p76 = scmp.ne.s32.totalorder %s67, %s68
    %p77 = scmp.eq.s32.totalorder %s15, 0
    %p78 = por %p76, %p77
    %p79 = scmp.ne.s32.totalorder %s67, %s68
    %p80 = scmp.eq.s32.totalorder %s16, 1
    %p81 = por %p79, %p80
    %p83 = scmp.ne.s32.totalorder %s68, %s82
    %p84 = scmp.eq.s32.totalorder %s16, 0
    %p85 = por %p83, %p84
    %s86 = ssub.s32 %s10, %s17
    %p87 = scmp.eq.s32.totalorder %s86, 0
    %s89 = sadd.s32 %s88, 1
    %s90 = scalar_select %p87, %s88, %s89
    %p93 = pneg %p87
    %p94 = scmp.eq.s32.totalorder %s10, 1
    %p95 = por %p93, %p94
    %p96 = scmp.ne.s32.totalorder %s88, %s91
    %p97 = scmp.eq.s32.totalorder %s10, 0
    %p98 = por %p96, %p97
    %p99 = scmp.ne.s32.totalorder %s88, %s91
    %p100 = scmp.eq.s32.totalorder %s15, 1
    %p101 = por %p99, %p100
    %p102 = scmp.ne.s32.totalorder %s91, %s92
    %p103 = scmp.eq.s32.totalorder %s15, 0
    %p104 = por %p102, %p103
    %p105 = scmp.ne.s32.totalorder %s91, %s92
    %p106 = scmp.eq.s32.totalorder %s16, 1
    %p107 = por %p105, %p106
    %p109 = scmp.ne.s32.totalorder %s92, %s108
    %p110 = scmp.eq.s32.totalorder %s16, 0
    %p111 = por %p109, %p110
    %s112 = ssub.s32 %s10, %s17
    %p113 = scmp.eq.s32.totalorder %s112, 0
    %s115 = sadd.s32 %s114, 1
    %s116 = scalar_select %p113, %s114, %s115
    %p119 = pneg %p113
    %p120 = scmp.eq.s32.totalorder %s10, 1
    %p121 = por %p119, %p120
    %p122 = scmp.ne.s32.totalorder %s114, %s117
    %p123 = scmp.eq.s32.totalorder %s10, 0
    %p124 = por %p122, %p123
    %p125 = scmp.ne.s32.totalorder %s114, %s117
    %p126 = scmp.eq.s32.totalorder %s15, 1
    %p127 = por %p125, %p126
    %p128 = scmp.ne.s32.totalorder %s117, %s118
    %p129 = scmp.eq.s32.totalorder %s15, 0
    %p130 = por %p128, %p129
    %p131 = scmp.ne.s32.totalorder %s117, %s118
    %p132 = scmp.eq.s32.totalorder %s16, 1
    %p133 = por %p131, %p132
    %p135 = scmp.ne.s32.totalorder %s118, %s134
    %p136 = scmp.eq.s32.totalorder %s16, 0
    %p137 = por %p135, %p136
    %p138 = scmp.le.s32.totalorder 1, %s10
    %p139 = scmp.lt.s32.totalorder %s10, 3
    %p140 = pnand %p138, %p139
    %p141 = pneg %p140
    // Predicated region
    $region9: #{bottleneck_forward.7} parent=5 // pred_check
      _
    $region10: #{bottleneck_forward.7} parent=5 // pred_check_branch
      %143 = sbr.rel (%p140) target = $region12
    $region11: #{bottleneck_forward.7} parent=5 // pred_region
      %s144 = ssub.s32 %s10, 1
      // Predicated region
      $region13: #{bottleneck_forward.7} parent=11 // pred_check
        %p145 = pneg %p57
      $region14: #{bottleneck_forward.7} parent=11 // pred_check_branch
        %147 = sbr.rel (%p145) target = $region16
      $region15: #{bottleneck_forward.7} parent=11 // pred_region
        _
      $region16: #{bottleneck_forward.7} parent=11 // pred_fallthru
        _
      // Predicated region
      $region17: #{bottleneck_forward.7} parent=11 // pred_check
        %p148 = pneg %p78
      $region18: #{bottleneck_forward.7} parent=11 // pred_check_branch
        %150 = sbr.rel (%p148) target = $region20
      $region19: #{bottleneck_forward.7} parent=11 // pred_region
        _
      $region20: #{bottleneck_forward.7} parent=11 // pred_fallthru
        _
    $region12: #{bottleneck_forward.7} parent=5 // pred_fallthru
      _
    %p151 = scmp.lt.s32.totalorder %s10, 2
    // Predicated region
    $region21: #{bottleneck_forward.7} parent=5 // pred_check
      %p152 = pneg %p151
    $region22: #{bottleneck_forward.7} parent=5 // pred_check_branch
      %154 = sbr.rel (%p152) target = $region24
    $region23: #{bottleneck_forward.7} parent=5 // pred_region
      // Predicated region
      $region25: #{bottleneck_forward.7} parent=23 // pred_check
        %p155 = pneg %p30
      $region26: #{bottleneck_forward.7} parent=23 // pred_check_branch
        %157 = sbr.rel (%p155) target = $region28
      $region27: #{bottleneck_forward.7} parent=23 // pred_region
        %p158 = scmp.lt.s32.totalorder %s10, 1
        %s159 = scalar_select %p158, %s10, 1
        %s160 = smul.addr %s159, 32
        %s161 = smul.addr %s160, 4
        %s162 = scalar_lea.vmem %s0, %s161
      $region28: #{bottleneck_forward.7} parent=23 // pred_fallthru
        _
      // Predicated region
      $region29: #{bottleneck_forward.7} parent=23 // pred_check
        %p163 = pneg %p98
      $region30: #{bottleneck_forward.7} parent=23 // pred_check_branch
        %165 = sbr.rel (%p163) target = $region32
      $region31: #{bottleneck_forward.7} parent=23 // pred_region
        %p166 = scmp.lt.s32.totalorder %s10, 1
        %s167 = scalar_select %p166, %s10, 1
        %s168 = smul.addr %s167, 32
        %s169 = smul.addr %s168, 8
        %s170 = scalar_lea.vmem %s3, %s169
      $region32: #{bottleneck_forward.7} parent=23 // pred_fallthru
        _
    $region24: #{bottleneck_forward.7} parent=5 // pred_fallthru
      _
    %p171 = scmp.le.s32.totalorder 1, %s10
    %p172 = scmp.lt.s32.totalorder %s10, 3
    %p173 = pnand %p171, %p172
    %p174 = pneg %p173
    // Predicated region
    $region33: #{bottleneck_forward.7} parent=5 // pred_check
      _
    $region34: #{bottleneck_forward.7} parent=5 // pred_check_branch
      %176 = sbr.rel (%p173) target = $region36
    $region35: #{bottleneck_forward.7} parent=5 // pred_region
      %s177 = ssub.s32 %s10, 1
      %p178 = scmp.lt.s32.totalorder %s15, 1
      %s179 = scalar_select %p178, %s15, 1
      %s180 = smul.addr %s179, 32
      %s181 = smul.addr %s180, 4
      %s182 = scalar_lea.vmem %s0, %s181
      %p183 = pneg %p36
      %p184 = pneg %p33
      %p185 = pneg %p57
      %p186 = pneg %p54
      %p187 = pneg %p78
      %p188 = pneg %p75
      %p189 = scmp.lt.s32.totalorder %s15, 1
      %s190 = scalar_select %p189, %s15, 1
      %s191 = smul.addr %s190, 32
      %s192 = smul.addr %s191, 8
      %s193 = scalar_lea.vmem %s3, %s192
      %p194 = pneg %p104
      %p195 = pneg %p101
      %p196 = pneg %p130
      %p197 = pneg %p127
      %p198 = scmp.lt.s32.totalorder %s15, 1
      %s199 = scalar_select %p198, %s15, 1
      %s200 = smul.addr %s199, 32
      %s201 = smul.addr %s200, 8
      %s202 = scalar_lea.vmem %s4, %s201
      %p203 = scmp.lt.s32.totalorder %s15, 1
      %s204 = scalar_select %p203, %s15, 1
      %s205 = smul.addr %s204, 32
      %s206 = smul.addr %s205, 4
      %s207 = scalar_lea.vmem %s0, %s206
      %p208 = scmp.lt.s32.totalorder %s15, 1
      %s209 = scalar_select %p208, %s15, 1
      %s210 = smul.addr %s209, 32
      %s211 = smul.addr %s210, 8
      %s212 = scalar_lea.vmem %s3, %s211
      %p213 = scmp.lt.s32.totalorder %s15, 1
      %s214 = scalar_select %p213, %s15, 1
      %s215 = smul.addr %s214, 32
      %s216 = smul.addr %s215, 8
      %s217 = scalar_lea.vmem %s4, %s216
      %v218 = vld [vmem:[%s207] sm:$0xf]
      %v219 = vld [vmem:[%s207 + $0x4] sm:$0xf]
      %v220 = vld [vmem:[%s207 + $0x8] sm:$0xf]
      %v221 = vld [vmem:[%s207 + $0xc] sm:$0xf]
      %v222 = vld [vmem:[%s207 + $0x10] sm:$0xf]
      %v223 = vld [vmem:[%s207 + $0x14] sm:$0xf]
      %v224 = vld [vmem:[%s207 + $0x18] sm:$0xf]
      %v225 = vld [vmem:[%s207 + $0x1c] sm:$0xf]
      %v226 = vld [vmem:[%s207 + $0x20] sm:$0xf]
      %v227 = vld [vmem:[%s207 + $0x24] sm:$0xf]
      %v228 = vld [vmem:[%s207 + $0x28] sm:$0xf]
      %v229 = vld [vmem:[%s207 + $0x2c] sm:$0xf]
      %v230 = vld [vmem:[%s207 + $0x30] sm:$0xf]
      %v231 = vld [vmem:[%s207 + $0x34] sm:$0xf]
      %v232 = vld [vmem:[%s207 + $0x38] sm:$0xf]
      %v233 = vld [vmem:[%s207 + $0x3c] sm:$0xf]
      %v234 = vld [vmem:[%s207 + $0x40] sm:$0xf]
      %v235 = vld [vmem:[%s207 + $0x44] sm:$0xf]
      %v236 = vld [vmem:[%s207 + $0x48] sm:$0xf]
      %v237 = vld [vmem:[%s207 + $0x4c] sm:$0xf]
      %v238 = vld [vmem:[%s207 + $0x50] sm:$0xf]
      %v239 = vld [vmem:[%s207 + $0x54] sm:$0xf]
      %v240 = vld [vmem:[%s207 + $0x58] sm:$0xf]
      %v241 = vld [vmem:[%s207 + $0x5c] sm:$0xf]
      %v242 = vld [vmem:[%s207 + $0x60] sm:$0xf]
      %v243 = vld [vmem:[%s207 + $0x64] sm:$0xf]
      %v244 = vld [vmem:[%s207 + $0x68] sm:$0xf]
      %v245 = vld [vmem:[%s207 + $0x6c] sm:$0xf]
      %v246 = vld [vmem:[%s207 + $0x70] sm:$0xf]
      %v247 = vld [vmem:[%s207 + $0x74] sm:$0xf]
      %v248 = vld [vmem:[%s207 + $0x78] sm:$0xf]
      %v249 = vld [vmem:[%s207 + $0x7c] sm:$0xf]
      %v250 = vunpack.c.l.bf16 %v218
      %v251 = vunpack.c.l.bf16 %v219
      %v252 = vunpack.c.l.bf16 %v220
      %v253 = vunpack.c.l.bf16 %v221
      %v254 = vunpack.c.l.bf16 %v222
      %v255 = vunpack.c.l.bf16 %v223
      %v256 = vunpack.c.l.bf16 %v224
      %v257 = vunpack.c.l.bf16 %v225
      %v258 = vunpack.c.l.bf16 %v226
      %v259 = vunpack.c.l.bf16 %v227
      %v260 = vunpack.c.l.bf16 %v228
      %v261 = vunpack.c.l.bf16 %v229
      %v262 = vunpack.c.l.bf16 %v230
      %v263 = vunpack.c.l.bf16 %v231
      %v264 = vunpack.c.l.bf16 %v232
      %v265 = vunpack.c.l.bf16 %v233
      %v266 = vunpack.c.l.bf16 %v234
      %v267 = vunpack.c.l.bf16 %v235
      %v268 = vunpack.c.l.bf16 %v236
      %v269 = vunpack.c.l.bf16 %v237
      %v270 = vunpack.c.l.bf16 %v238
      %v271 = vunpack.c.l.bf16 %v239
      %v272 = vunpack.c.l.bf16 %v240
      %v273 = vunpack.c.l.bf16 %v241
      %v274 = vunpack.c.l.bf16 %v242
      %v275 = vunpack.c.l.bf16 %v243
      %v276 = vunpack.c.l.bf16 %v244
      %v277 = vunpack.c.l.bf16 %v245
      %v278 = vunpack.c.l.bf16 %v246
      %v279 = vunpack.c.l.bf16 %v247
      %v280 = vunpack.c.l.bf16 %v248
      %v281 = vunpack.c.l.bf16 %v249
      %v282 = vld [vmem:[%s1] sm:$0x1]
      %v284 = vlaneseq
      %v285 = vshrl.u32 %v284, 7
      %v286 = vsub.s32 0, %v285
      %v287 = vrot.slane %v282, %v286
      %v289 = vmul.f32 %v250, %v287
      %v290 = vmul.f32 %v251, %v287
      %v291 = vmul.f32 %v252, %v287
      %v292 = vmul.f32 %v253, %v287
      %v293 = vmul.f32 %v254, %v287
      %v294 = vmul.f32 %v255, %v287
      %v295 = vmul.f32 %v256, %v287
      %v296 = vmul.f32 %v257, %v287
      %v297 = vmul.f32 %v258, %v287
      %v298 = vmul.f32 %v259, %v287
      %v299 = vmul.f32 %v260, %v287
      %v300 = vmul.f32 %v261, %v287
      %v301 = vmul.f32 %v262, %v287
      %v302 = vmul.f32 %v263, %v287
      %v303 = vmul.f32 %v264, %v287
      %v304 = vmul.f32 %v265, %v287
      %v305 = vmul.f32 %v266, %v287
      %v306 = vmul.f32 %v267, %v287
      %v307 = vmul.f32 %v268, %v287
      %v308 = vmul.f32 %v269, %v287
      %v309 = vmul.f32 %v270, %v287
      %v310 = vmul.f32 %v271, %v287
      %v311 = vmul.f32 %v272, %v287
      %v312 = vmul.f32 %v273, %v287
      %v313 = vmul.f32 %v274, %v287
      %v314 = vmul.f32 %v275, %v287
      %v315 = vmul.f32 %v276, %v287
      %v316 = vmul.f32 %v277, %v287
      %v317 = vmul.f32 %v278, %v287
      %v318 = vmul.f32 %v279, %v287
      %v319 = vmul.f32 %v280, %v287
      %v320 = vmul.f32 %v281, %v287
      %v321 = vld [vmem:[%s2] sm:$0x1]
      %v323 = vlaneseq
      %v324 = vshrl.u32 %v323, 7
      %v325 = vsub.s32 0, %v324
      %v326 = vrot.slane %v321, %v325
      %v328 = vadd.f32 %v289, %v326
      %v329 = vadd.f32 %v290, %v326
      %v330 = vadd.f32 %v291, %v326
      %v331 = vadd.f32 %v292, %v326
      %v332 = vadd.f32 %v293, %v326
      %v333 = vadd.f32 %v294, %v326
      %v334 = vadd.f32 %v295, %v326
      %v335 = vadd.f32 %v296, %v326
      %v336 = vadd.f32 %v297, %v326
      %v337 = vadd.f32 %v298, %v326
      %v338 = vadd.f32 %v299, %v326
      %v339 = vadd.f32 %v300, %v326
      %v340 = vadd.f32 %v301, %v326
      %v341 = vadd.f32 %v302, %v326
      %v342 = vadd.f32 %v303, %v326
      %v343 = vadd.f32 %v304, %v326
      %v344 = vadd.f32 %v305, %v326
      %v345 = vadd.f32 %v306, %v326
      %v346 = vadd.f32 %v307, %v326
      %v347 = vadd.f32 %v308, %v326
      %v348 = vadd.f32 %v309, %v326
      %v349 = vadd.f32 %v310, %v326
      %v350 = vadd.f32 %v311, %v326
      %v351 = vadd.f32 %v312, %v326
      %v352 = vadd.f32 %v313, %v326
      %v353 = vadd.f32 %v314, %v326
      %v354 = vadd.f32 %v315, %v326
      %v355 = vadd.f32 %v316, %v326
      %v356 = vadd.f32 %v317, %v326
      %v357 = vadd.f32 %v318, %v326
      %v358 = vadd.f32 %v319, %v326
      %v359 = vadd.f32 %v320, %v326
      %v360 = vld [vmem:[%s212] sm:$0xff]
      %v361 = vld [vmem:[%s212 + $0x8] sm:$0xff]
      %v362 = vld [vmem:[%s212 + $0x10] sm:$0xff]
      %v363 = vld [vmem:[%s212 + $0x18] sm:$0xff]
      %v364 = vld [vmem:[%s212 + $0x20] sm:$0xff]
      %v365 = vld [vmem:[%s212 + $0x28] sm:$0xff]
      %v366 = vld [vmem:[%s212 + $0x30] sm:$0xff]
      %v367 = vld [vmem:[%s212 + $0x38] sm:$0xff]
      %v368 = vld [vmem:[%s212 + $0x40] sm:$0xff]
      %v369 = vld [vmem:[%s212 + $0x48] sm:$0xff]
      %v370 = vld [vmem:[%s212 + $0x50] sm:$0xff]
      %v371 = vld [vmem:[%s212 + $0x58] sm:$0xff]
      %v372 = vld [vmem:[%s212 + $0x60] sm:$0xff]
      %v373 = vld [vmem:[%s212 + $0x68] sm:$0xff]
      %v374 = vld [vmem:[%s212 + $0x70] sm:$0xff]
      %v375 = vld [vmem:[%s212 + $0x78] sm:$0xff]
      %v376 = vld [vmem:[%s212 + $0x80] sm:$0xff]
      %v377 = vld [vmem:[%s212 + $0x88] sm:$0xff]
      %v378 = vld [vmem:[%s212 + $0x90] sm:$0xff]
      %v379 = vld [vmem:[%s212 + $0x98] sm:$0xff]
      %v380 = vld [vmem:[%s212 + $0xa0] sm:$0xff]
      %v381 = vld [vmem:[%s212 + $0xa8] sm:$0xff]
      %v382 = vld [vmem:[%s212 + $0xb0] sm:$0xff]
      %v383 = vld [vmem:[%s212 + $0xb8] sm:$0xff]
      %v384 = vld [vmem:[%s212 + $0xc0] sm:$0xff]
      %v385 = vld [vmem:[%s212 + $0xc8] sm:$0xff]
      %v386 = vld [vmem:[%s212 + $0xd0] sm:$0xff]
      %v387 = vld [vmem:[%s212 + $0xd8] sm:$0xff]
      %v388 = vld [vmem:[%s212 + $0xe0] sm:$0xff]
      %v389 = vld [vmem:[%s212 + $0xe8] sm:$0xff]
      %v390 = vld [vmem:[%s212 + $0xf0] sm:$0xff]
      %v391 = vld [vmem:[%s212 + $0xf8] sm:$0xff]
      %v392 = vadd.f32 %v328, %v360
      %v393 = vadd.f32 %v329, %v361
      %v394 = vadd.f32 %v330, %v362
      %v395 = vadd.f32 %v331, %v363
      %v396 = vadd.f32 %v332, %v364
      %v397 = vadd.f32 %v333, %v365
      %v398 = vadd.f32 %v334, %v366
      %v399 = vadd.f32 %v335, %v367
      %v400 = vadd.f32 %v336, %v368
      %v401 = vadd.f32 %v337, %v369
      %v402 = vadd.f32 %v338, %v370
      %v403 = vadd.f32 %v339, %v371
      %v404 = vadd.f32 %v340, %v372
      %v405 = vadd.f32 %v341, %v373
      %v406 = vadd.f32 %v342, %v374
      %v407 = vadd.f32 %v343, %v375
      %v408 = vadd.f32 %v344, %v376
      %v409 = vadd.f32 %v345, %v377
      %v410 = vadd.f32 %v346, %v378
      %v411 = vadd.f32 %v347, %v379
      %v412 = vadd.f32 %v348, %v380
      %v413 = vadd.f32 %v349, %v381
      %v414 = vadd.f32 %v350, %v382
      %v415 = vadd.f32 %v351, %v383
      %v416 = vadd.f32 %v352, %v384
      %v417 = vadd.f32 %v353, %v385
      %v418 = vadd.f32 %v354, %v386
      %v419 = vadd.f32 %v355, %v387
      %v420 = vadd.f32 %v356, %v388
      %v421 = vadd.f32 %v357, %v389
      %v422 = vadd.f32 %v358, %v390
      %v423 = vadd.f32 %v359, %v391
      %v424 = vmax.f32 %v392, 0.0
      %v425 = vmax.f32 %v393, 0.0
      %v426 = vmax.f32 %v394, 0.0
      %v427 = vmax.f32 %v395, 0.0
      %v428 = vmax.f32 %v396, 0.0
      %v429 = vmax.f32 %v397, 0.0
      %v430 = vmax.f32 %v398, 0.0
      %v431 = vmax.f32 %v399, 0.0
      %v432 = vmax.f32 %v400, 0.0
      %v433 = vmax.f32 %v401, 0.0
      %v434 = vmax.f32 %v402, 0.0
      %v435 = vmax.f32 %v403, 0.0
      %v436 = vmax.f32 %v404, 0.0
      %v437 = vmax.f32 %v405, 0.0
      %v438 = vmax.f32 %v406, 0.0
      %v439 = vmax.f32 %v407, 0.0
      %v440 = vmax.f32 %v408, 0.0
      %v441 = vmax.f32 %v409, 0.0
      %v442 = vmax.f32 %v410, 0.0
      %v443 = vmax.f32 %v411, 0.0
      %v444 = vmax.f32 %v412, 0.0
      %v445 = vmax.f32 %v413, 0.0
      %v446 = vmax.f32 %v414, 0.0
      %v447 = vmax.f32 %v415, 0.0
      %v448 = vmax.f32 %v416, 0.0
      %v449 = vmax.f32 %v417, 0.0
      %v450 = vmax.f32 %v418, 0.0
      %v451 = vmax.f32 %v419, 0.0
      %v452 = vmax.f32 %v420, 0.0
      %v453 = vmax.f32 %v421, 0.0
      %v454 = vmax.f32 %v422, 0.0
      %v455 = vmax.f32 %v423, 0.0
      %456 = vst [vmem:[%s217] sm:$0xff] %v424
      %457 = vst [vmem:[%s217 + $0x8] sm:$0xff] %v425
      %458 = vst [vmem:[%s217 + $0x10] sm:$0xff] %v426
      %459 = vst [vmem:[%s217 + $0x18] sm:$0xff] %v427
      %460 = vst [vmem:[%s217 + $0x20] sm:$0xff] %v428
      %461 = vst [vmem:[%s217 + $0x28] sm:$0xff] %v429
      %462 = vst [vmem:[%s217 + $0x30] sm:$0xff] %v430
      %463 = vst [vmem:[%s217 + $0x38] sm:$0xff] %v431
      %464 = vst [vmem:[%s217 + $0x40] sm:$0xff] %v432
      %465 = vst [vmem:[%s217 + $0x48] sm:$0xff] %v433
      %466 = vst [vmem:[%s217 + $0x50] sm:$0xff] %v434
      %467 = vst [vmem:[%s217 + $0x58] sm:$0xff] %v435
      %468 = vst [vmem:[%s217 + $0x60] sm:$0xff] %v436
      %469 = vst [vmem:[%s217 + $0x68] sm:$0xff] %v437
      %470 = vst [vmem:[%s217 + $0x70] sm:$0xff] %v438
      %471 = vst [vmem:[%s217 + $0x78] sm:$0xff] %v439
      %472 = vst [vmem:[%s217 + $0x80] sm:$0xff] %v440
      %473 = vst [vmem:[%s217 + $0x88] sm:$0xff] %v441
      %474 = vst [vmem:[%s217 + $0x90] sm:$0xff] %v442
      %475 = vst [vmem:[%s217 + $0x98] sm:$0xff] %v443
      %476 = vst [vmem:[%s217 + $0xa0] sm:$0xff] %v444
      %477 = vst [vmem:[%s217 + $0xa8] sm:$0xff] %v445
      %478 = vst [vmem:[%s217 + $0xb0] sm:$0xff] %v446
      %479 = vst [vmem:[%s217 + $0xb8] sm:$0xff] %v447
      %480 = vst [vmem:[%s217 + $0xc0] sm:$0xff] %v448
      %481 = vst [vmem:[%s217 + $0xc8] sm:$0xff] %v449
      %482 = vst [vmem:[%s217 + $0xd0] sm:$0xff] %v450
      %483 = vst [vmem:[%s217 + $0xd8] sm:$0xff] %v451
      %484 = vst [vmem:[%s217 + $0xe0] sm:$0xff] %v452
      %485 = vst [vmem:[%s217 + $0xe8] sm:$0xff] %v453
      %486 = vst [vmem:[%s217 + $0xf0] sm:$0xff] %v454
      %487 = vst [vmem:[%s217 + $0xf8] sm:$0xff] %v455
      %p488 = scmp.lt.s32.totalorder %s15, 1
      %s489 = scalar_select %p488, %s15, 1
      %s490 = smul.addr %s489, 32
      %s491 = smul.addr %s490, 8
      %s492 = scalar_lea.vmem %s4, %s491
      // Predicated region
      $region37: #{bottleneck_forward.7} parent=35 // pred_check
        %p493 = pneg %p127
      $region38: #{bottleneck_forward.7} parent=35 // pred_check_branch
        %495 = sbr.rel (%p493) target = $region40
      $region39: #{bottleneck_forward.7} parent=35 // pred_region
        _
      $region40: #{bottleneck_forward.7} parent=35 // pred_fallthru
        _
    $region36: #{bottleneck_forward.7} parent=5 // pred_fallthru
      _
    %p496 = scmp.le.s32.totalorder 2, %s10
    // Predicated region
    $region41: #{bottleneck_forward.7} parent=5 // pred_check
      %p497 = pneg %p496
    $region42: #{bottleneck_forward.7} parent=5 // pred_check_branch
      %499 = sbr.rel (%p497) target = $region44
    $region43: #{bottleneck_forward.7} parent=5 // pred_region
      %s500 = ssub.s32 %s10, 2
      // Predicated region
      $region45: #{bottleneck_forward.7} parent=43 // pred_check
        %p501 = pneg %p133
      $region46: #{bottleneck_forward.7} parent=43 // pred_check_branch
        %503 = sbr.rel (%p501) target = $region48
      $region47: #{bottleneck_forward.7} parent=43 // pred_region
        %p504 = scmp.lt.s32.totalorder %s16, 1
        %s505 = scalar_select %p504, %s16, 1
        %s506 = smul.addr %s505, 32
        %s507 = smul.addr %s506, 8
        %s508 = scalar_lea.vmem %s4, %s507
      $region48: #{bottleneck_forward.7} parent=43 // pred_fallthru
        _
    $region44: #{bottleneck_forward.7} parent=5 // pred_fallthru
      _
  $region6: #{bottleneck_forward.7} parent=0 // loop_footer
    %s14 = sadd.s32 1, %s10
  $region7: #{bottleneck_forward.7} parent=0 // loop_footer_branch
    %9 = sbr.rel target = $region3
  $region8: #{bottleneck_forward.7} parent=0 // loop_exit
    _

// kernel: bottleneck_forward.5
$region0: #{bottleneck_forward.5}
  #allocation0 [shape = 'u32[]', space=smem, size = 0x4, offset = 0x4, fixed_abs, tag = 'smem constant byte address 0x4 - core index']
  #allocation1 [shape = 'u32[144,128]{1,0:T(1,128)}', space=vmem, size = 0x12000, scoped, tag = 'internal scratch']
  #allocation2 [shape = 'f32[18,18,128]{2,1,0:T(8,128)}', space=vmem, size = 0x36000, scoped, tag = 'scratch operand']
  #allocation3 [shape = 'bf16[256,1152]{1,0:T(8,128)(2,1)}', space=vmem, size = 0x90000, scoped, tag = 'scratch operand']
  %s0 = inlined_call_operand.vmem [shape: bf16[2,16,16,128], index: 0, kind: input, shape index: {}]
  %s1 = inlined_call_operand.vmem [shape: f32[1,128], index: 1, kind: input, shape index: {}]
  %s2 = inlined_call_operand.vmem [shape: f32[1,128], index: 2, kind: input, shape index: {}]
  %s3 = inlined_call_operand.vmem [shape: bf16[1152,128], index: 3, kind: input, shape index: {}]
  %s4 = inlined_call_operand.vmem [shape: bf16[2,16,16,128], index: 4, kind: output, shape index: {0}]
  %s5 = inlined_call_operand.vmem [shape: f32[2,2,128], index: 5, kind: output, shape index: {1}]
  %6 = xla_tuple %s4, %s5
  %s7 = sld [smem:[#allocation0]]
  $region57: #{bottleneck_forward.5} parent=0
    _
  %s9 = ssub.s32 1, %s7
  %s10 = scalar_select 0, %s9, %s7
  loop: start=0, step=1, limit=4
  $region2: #{bottleneck_forward.5} parent=0 // loop_pre_header
    _
  $region3: #{bottleneck_forward.5} parent=0 // loop_header
    %s12 = sphi 0, %s16
    %p13 = scmp.ge.s32.totalorder %s12, 4
    %s22 = sphi 0, %s24
    %s25 = sphi 0, %s22
    %s26 = sphi 0, %s25
    %s42 = sphi 0, %s26
    %s46 = sphi 0, %s46
    %s48 = sphi 0, %s46
    %s49 = sphi 0, %s48
    %s63 = sphi 0, %s49
    %s67 = sphi 0, %s67
    %s69 = sphi 0, %s67
    %s70 = sphi 0, %s69
    %s84 = sphi 0, %s70
    %s88 = sphi 0, %s88
    %s90 = sphi 0, %s88
    %s91 = sphi 0, %s90
    %s105 = sphi 0, %s91
    %s111 = sphi 0, %s113
    %s114 = sphi 0, %s111
    %s115 = sphi 0, %s114
    %s131 = sphi 0, %s115
    %s137 = sphi 0, %s139
    %s140 = sphi 0, %s137
    %s141 = sphi 0, %s140
    %s157 = sphi 0, %s141
  $region4: #{bottleneck_forward.5} parent=0 // loop_header_branch
    %15 = sbr.rel (%p13) target = $region8
  $region5: #{bottleneck_forward.5} parent=0 // loop_body
    %s17 = ssub.s32 %s12, 1
    %s18 = ssub.s32 %s12, 2
    %s19 = sadd.s32 %s12, 1
    %s20 = ssub.s32 %s12, %s19
    %p21 = scmp.eq.s32.totalorder %s20, 0
    %s23 = sadd.s32 %s22, 1
    %s24 = scalar_select %p21, %s22, %s23
    %p27 = pneg %p21
    %p28 = scmp.eq.s32.totalorder %s12, 1
    %p29 = por %p27, %p28
    %p30 = scmp.ne.s32.totalorder %s22, %s25
    %p31 = scmp.eq.s32.totalorder %s12, 0
    %p32 = por %p30, %p31
    %p33 = scmp.ne.s32.totalorder %s22, %s25
    %p34 = scmp.eq.s32.totalorder %s17, 1
    %p35 = por %p33, %p34
    %p36 = scmp.ne.s32.totalorder %s25, %s26
    %p37 = scmp.eq.s32.totalorder %s17, 0
    %p38 = por %p36, %p37
    %p39 = scmp.ne.s32.totalorder %s25, %s26
    %p40 = scmp.eq.s32.totalorder %s18, 1
    %p41 = por %p39, %p40
    %p43 = scmp.ne.s32.totalorder %s26, %s42
    %p44 = scmp.eq.s32.totalorder %s18, 0
    %p45 = por %p43, %p44
    %s47 = sadd.s32 %s46, 1
    %p50 = scmp.eq.s32.totalorder %s12, 1
    %p51 = scmp.ne.s32.totalorder %s46, %s48
    %p52 = scmp.eq.s32.totalorder %s12, 0
    %p53 = por %p51, %p52
    %p54 = scmp.ne.s32.totalorder %s46, %s48
    %p55 = scmp.eq.s32.totalorder %s17, 1
    %p56 = por %p54, %p55
    %p57 = scmp.ne.s32.totalorder %s48, %s49
    %p58 = scmp.eq.s32.totalorder %s17, 0
    %p59 = por %p57, %p58
    %p60 = scmp.ne.s32.totalorder %s48, %s49
    %p61 = scmp.eq.s32.totalorder %s18, 1
    %p62 = por %p60, %p61
    %p64 = scmp.ne.s32.totalorder %s49, %s63
    %p65 = scmp.eq.s32.totalorder %s18, 0
    %p66 = por %p64, %p65
    %s68 = sadd.s32 %s67, 1
    %p71 = scmp.eq.s32.totalorder %s12, 1
    %p72 = scmp.ne.s32.totalorder %s67, %s69
    %p73 = scmp.eq.s32.totalorder %s12, 0
    %p74 = por %p72, %p73
    %p75 = scmp.ne.s32.totalorder %s67, %s69
    %p76 = scmp.eq.s32.totalorder %s17, 1
    %p77 = por %p75, %p76
    %p78 = scmp.ne.s32.totalorder %s69, %s70
    %p79 = scmp.eq.s32.totalorder %s17, 0
    %p80 = por %p78, %p79
    %p81 = scmp.ne.s32.totalorder %s69, %s70
    %p82 = scmp.eq.s32.totalorder %s18, 1
    %p83 = por %p81, %p82
    %p85 = scmp.ne.s32.totalorder %s70, %s84
    %p86 = scmp.eq.s32.totalorder %s18, 0
    %p87 = por %p85, %p86
    %s89 = sadd.s32 %s88, 1
    %p92 = scmp.eq.s32.totalorder %s12, 1
    %p93 = scmp.ne.s32.totalorder %s88, %s90
    %p94 = scmp.eq.s32.totalorder %s12, 0
    %p95 = por %p93, %p94
    %p96 = scmp.ne.s32.totalorder %s88, %s90
    %p97 = scmp.eq.s32.totalorder %s17, 1
    %p98 = por %p96, %p97
    %p99 = scmp.ne.s32.totalorder %s90, %s91
    %p100 = scmp.eq.s32.totalorder %s17, 0
    %p101 = por %p99, %p100
    %p102 = scmp.ne.s32.totalorder %s90, %s91
    %p103 = scmp.eq.s32.totalorder %s18, 1
    %p104 = por %p102, %p103
    %p106 = scmp.ne.s32.totalorder %s91, %s105
    %p107 = scmp.eq.s32.totalorder %s18, 0
    %p108 = por %p106, %p107
    %s109 = ssub.s32 %s12, %s19
    %p110 = scmp.eq.s32.totalorder %s109, 0
    %s112 = sadd.s32 %s111, 1
    %s113 = scalar_select %p110, %s111, %s112
    %p116 = pneg %p110
    %p117 = scmp.eq.s32.totalorder %s12, 1
    %p118 = por %p116, %p117
    %p119 = scmp.ne.s32.totalorder %s111, %s114
    %p120 = scmp.eq.s32.totalorder %s12, 0
    %p121 = por %p119, %p120
    %p122 = scmp.ne.s32.totalorder %s111, %s114
    %p123 = scmp.eq.s32.totalorder %s17, 1
    %p124 = por %p122, %p123
    %p125 = scmp.ne.s32.totalorder %s114, %s115
    %p126 = scmp.eq.s32.totalorder %s17, 0
    %p127 = por %p125, %p126
    %p128 = scmp.ne.s32.totalorder %s114, %s115
    %p129 = scmp.eq.s32.totalorder %s18, 1
    %p130 = por %p128, %p129
    %p132 = scmp.ne.s32.totalorder %s115, %s131
    %p133 = scmp.eq.s32.totalorder %s18, 0
    %p134 = por %p132, %p133
    %s135 = ssub.s32 %s12, %s19
    %p136 = scmp.eq.s32.totalorder %s135, 0
    %s138 = sadd.s32 %s137, 1
    %s139 = scalar_select %p136, %s137, %s138
    %p142 = pneg %p136
    %p143 = scmp.eq.s32.totalorder %s12, 1
    %p144 = por %p142, %p143
    %p145 = scmp.ne.s32.totalorder %s137, %s140
    %p146 = scmp.eq.s32.totalorder %s12, 0
    %p147 = por %p145, %p146
    %p148 = scmp.ne.s32.totalorder %s137, %s140
    %p149 = scmp.eq.s32.totalorder %s17, 1
    %p150 = por %p148, %p149
    %p151 = scmp.ne.s32.totalorder %s140, %s141
    %p152 = scmp.eq.s32.totalorder %s17, 0
    %p153 = por %p151, %p152
    %p154 = scmp.ne.s32.totalorder %s140, %s141
    %p155 = scmp.eq.s32.totalorder %s18, 1
    %p156 = por %p154, %p155
    %p158 = scmp.ne.s32.totalorder %s141, %s157
    %p159 = scmp.eq.s32.totalorder %s18, 0
    %p160 = por %p158, %p159
    %p161 = scmp.le.s32.totalorder 1, %s12
    %p162 = scmp.lt.s32.totalorder %s12, 3
    %p163 = pnand %p161, %p162
    %p164 = pneg %p163
    // Predicated region
    $region9: #{bottleneck_forward.5} parent=5 // pred_check
      _
    $region10: #{bottleneck_forward.5} parent=5 // pred_check_branch
      %166 = sbr.rel (%p163) target = $region12
    $region11: #{bottleneck_forward.5} parent=5 // pred_region
      %s167 = ssub.s32 %s12, 1
      // Predicated region
      $region13: #{bottleneck_forward.5} parent=11 // pred_check
        %p168 = pneg %p59
      $region14: #{bottleneck_forward.5} parent=11 // pred_check_branch
        %170 = sbr.rel (%p168) target = $region16
      $region15: #{bottleneck_forward.5} parent=11 // pred_region
        _
      $region16: #{bottleneck_forward.5} parent=11 // pred_fallthru
        _
      // Predicated region
      $region17: #{bottleneck_forward.5} parent=11 // pred_check
        %p171 = pneg %p80
      $region18: #{bottleneck_forward.5} parent=11 // pred_check_branch
        %173 = sbr.rel (%p171) target = $region20
      $region19: #{bottleneck_forward.5} parent=11 // pred_region
        _
      $region20: #{bottleneck_forward.5} parent=11 // pred_fallthru
        _
      // Predicated region
      $region21: #{bottleneck_forward.5} parent=11 // pred_check
        %p174 = pneg %p101
      $region22: #{bottleneck_forward.5} parent=11 // pred_check_branch
        %176 = sbr.rel (%p174) target = $region24
      $region23: #{bottleneck_forward.5} parent=11 // pred_region
        _
      $region24: #{bottleneck_forward.5} parent=11 // pred_fallthru
        _
    $region12: #{bottleneck_forward.5} parent=5 // pred_fallthru
      _
    %p177 = scmp.lt.s32.totalorder %s12, 2
    // Predicated region
    $region25: #{bottleneck_forward.5} parent=5 // pred_check
      %p178 = pneg %p177
    $region26: #{bottleneck_forward.5} parent=5 // pred_check_branch
      %180 = sbr.rel (%p178) target = $region28
    $region27: #{bottleneck_forward.5} parent=5 // pred_region
      // Predicated region
      $region29: #{bottleneck_forward.5} parent=27 // pred_check
        %p181 = pneg %p32
      $region30: #{bottleneck_forward.5} parent=27 // pred_check_branch
        %183 = sbr.rel (%p181) target = $region32
      $region31: #{bottleneck_forward.5} parent=27 // pred_region
        %p184 = scmp.lt.s32.totalorder %s12, 1
        %s185 = scalar_select %p184, %s12, 1
        %s186 = smul.addr %s185, 32
        %s187 = smul.addr %s186, 4
        %s188 = scalar_lea.vmem %s0, %s187
      $region32: #{bottleneck_forward.5} parent=27 // pred_fallthru
        _
    $region28: #{bottleneck_forward.5} parent=5 // pred_fallthru
      _
    %p189 = scmp.le.s32.totalorder 1, %s12
    %p190 = scmp.lt.s32.totalorder %s12, 3
    %p191 = pnand %p189, %p190
    %p192 = pneg %p191
    // Predicated region
    $region33: #{bottleneck_forward.5} parent=5 // pred_check
      _
    $region34: #{bottleneck_forward.5} parent=5 // pred_check_branch
      %194 = sbr.rel (%p191) target = $region36
    $region35: #{bottleneck_forward.5} parent=5 // pred_region
      %s195 = ssub.s32 %s12, 1
      %p196 = scmp.lt.s32.totalorder %s17, 1
      %s197 = scalar_select %p196, %s17, 1
      %s198 = smul.addr %s197, 32
      %s199 = smul.addr %s198, 4
      %s200 = scalar_lea.vmem %s0, %s199
      %p201 = pneg %p38
      %p202 = pneg %p35
      %p203 = pneg %p59
      %p204 = pneg %p56
      %p205 = pneg %p80
      %p206 = pneg %p77
      %p207 = pneg %p101
      %p208 = pneg %p98
      %p209 = pneg %p127
      %p210 = pneg %p124
      %p211 = scmp.lt.s32.totalorder %s17, 1
      %s212 = scalar_select %p211, %s17, 1
      %s213 = smul.addr %s212, 32
      %s214 = smul.addr %s213, 4
      %s215 = scalar_lea.vmem %s4, %s214
      %p216 = pneg %p153
      %p217 = pneg %p150
      %p218 = scmp.lt.s32.totalorder %s17, 1
      %s219 = scalar_select %p218, %s17, 1
      %s220 = smul.addr %s219, 2
      %s221 = scalar_lea.vmem %s5, %s220
      %p222 = scmp.lt.s32.totalorder %s17, 1
      %s223 = scalar_select %p222, %s17, 1
      %s224 = smul.addr %s223, 32
      %s225 = smul.addr %s224, 4
      %s226 = scalar_lea.vmem %s0, %s225
      %p227 = scmp.lt.s32.totalorder %s17, 1
      %s228 = scalar_select %p227, %s17, 1
      %s229 = smul.addr %s228, 32
      %s230 = smul.addr %s229, 4
      %s231 = scalar_lea.vmem %s4, %s230
      %p232 = scmp.lt.s32.totalorder %s17, 1
      %s233 = scalar_select %p232, %s17, 1
      %s234 = smul.addr %s233, 2
      %s235 = scalar_lea.vmem %s5, %s234
      %v237 = vld [vmem:[%s226] sm:$0xf]
      %v238 = vld [vmem:[%s226 + $0x4] sm:$0xf]
      %v239 = vld [vmem:[%s226 + $0x8] sm:$0xf]
      %v240 = vld [vmem:[%s226 + $0xc] sm:$0xf]
      %v241 = vld [vmem:[%s226 + $0x10] sm:$0xf]
      %v242 = vld [vmem:[%s226 + $0x14] sm:$0xf]
      %v243 = vld [vmem:[%s226 + $0x18] sm:$0xf]
      %v244 = vld [vmem:[%s226 + $0x1c] sm:$0xf]
      %v245 = vld [vmem:[%s226 + $0x20] sm:$0xf]
      %v246 = vld [vmem:[%s226 + $0x24] sm:$0xf]
      %v247 = vld [vmem:[%s226 + $0x28] sm:$0xf]
      %v248 = vld [vmem:[%s226 + $0x2c] sm:$0xf]
      %v249 = vld [vmem:[%s226 + $0x30] sm:$0xf]
      %v250 = vld [vmem:[%s226 + $0x34] sm:$0xf]
      %v251 = vld [vmem:[%s226 + $0x38] sm:$0xf]
      %v252 = vld [vmem:[%s226 + $0x3c] sm:$0xf]
      %v253 = vld [vmem:[%s226 + $0x40] sm:$0xf]
      %v254 = vld [vmem:[%s226 + $0x44] sm:$0xf]
      %v255 = vld [vmem:[%s226 + $0x48] sm:$0xf]
      %v256 = vld [vmem:[%s226 + $0x4c] sm:$0xf]
      %v257 = vld [vmem:[%s226 + $0x50] sm:$0xf]
      %v258 = vld [vmem:[%s226 + $0x54] sm:$0xf]
      %v259 = vld [vmem:[%s226 + $0x58] sm:$0xf]
      %v260 = vld [vmem:[%s226 + $0x5c] sm:$0xf]
      %v261 = vld [vmem:[%s226 + $0x60] sm:$0xf]
      %v262 = vld [vmem:[%s226 + $0x64] sm:$0xf]
      %v263 = vld [vmem:[%s226 + $0x68] sm:$0xf]
      %v264 = vld [vmem:[%s226 + $0x6c] sm:$0xf]
      %v265 = vld [vmem:[%s226 + $0x70] sm:$0xf]
      %v266 = vld [vmem:[%s226 + $0x74] sm:$0xf]
      %v267 = vld [vmem:[%s226 + $0x78] sm:$0xf]
      %v268 = vld [vmem:[%s226 + $0x7c] sm:$0xf]
      %v269 = vunpack.c.l.bf16 %v237
      %v270 = vunpack.c.l.bf16 %v238
      %v271 = vunpack.c.l.bf16 %v239
      %v272 = vunpack.c.l.bf16 %v240
      %v273 = vunpack.c.l.bf16 %v241
      %v274 = vunpack.c.l.bf16 %v242
      %v275 = vunpack.c.l.bf16 %v243
      %v276 = vunpack.c.l.bf16 %v244
      %v277 = vunpack.c.l.bf16 %v245
      %v278 = vunpack.c.l.bf16 %v246
      %v279 = vunpack.c.l.bf16 %v247
      %v280 = vunpack.c.l.bf16 %v248
      %v281 = vunpack.c.l.bf16 %v249
      %v282 = vunpack.c.l.bf16 %v250
      %v283 = vunpack.c.l.bf16 %v251
      %v284 = vunpack.c.l.bf16 %v252
      %v285 = vunpack.c.l.bf16 %v253
      %v286 = vunpack.c.l.bf16 %v254
      %v287 = vunpack.c.l.bf16 %v255
      %v288 = vunpack.c.l.bf16 %v256
      %v289 = vunpack.c.l.bf16 %v257
      %v290 = vunpack.c.l.bf16 %v258
      %v291 = vunpack.c.l.bf16 %v259
      %v292 = vunpack.c.l.bf16 %v260
      %v293 = vunpack.c.l.bf16 %v261
      %v294 = vunpack.c.l.bf16 %v262
      %v295 = vunpack.c.l.bf16 %v263
      %v296 = vunpack.c.l.bf16 %v264
      %v297 = vunpack.c.l.bf16 %v265
      %v298 = vunpack.c.l.bf16 %v266
      %v299 = vunpack.c.l.bf16 %v267
      %v300 = vunpack.c.l.bf16 %v268
      %v301 = vld [vmem:[%s1] sm:$0x1]
      %v303 = vlaneseq
      %v304 = vshrl.u32 %v303, 7
      %v305 = vsub.s32 0, %v304
      %v306 = vrot.slane %v301, %v305
      %v308 = vmul.f32 %v269, %v306
      %v309 = vmul.f32 %v270, %v306
      %v310 = vmul.f32 %v271, %v306
      %v311 = vmul.f32 %v272, %v306
      %v312 = vmul.f32 %v273, %v306
      %v313 = vmul.f32 %v274, %v306
      %v314 = vmul.f32 %v275, %v306
      %v315 = vmul.f32 %v276, %v306
      %v316 = vmul.f32 %v277, %v306
      %v317 = vmul.f32 %v278, %v306
      %v318 = vmul.f32 %v279, %v306
      %v319 = vmul.f32 %v280, %v306
      %v320 = vmul.f32 %v281, %v306
      %v321 = vmul.f32 %v282, %v306
      %v322 = vmul.f32 %v283, %v306
      %v323 = vmul.f32 %v284, %v306
      %v324 = vmul.f32 %v285, %v306
      %v325 = vmul.f32 %v286, %v306
      %v326 = vmul.f32 %v287, %v306
      %v327 = vmul.f32 %v288, %v306
      %v328 = vmul.f32 %v289, %v306
      %v329 = vmul.f32 %v290, %v306
      %v330 = vmul.f32 %v291, %v306
      %v331 = vmul.f32 %v292, %v306
      %v332 = vmul.f32 %v293, %v306
      %v333 = vmul.f32 %v294, %v306
      %v334 = vmul.f32 %v295, %v306
      %v335 = vmul.f32 %v296, %v306
      %v336 = vmul.f32 %v297, %v306
      %v337 = vmul.f32 %v298, %v306
      %v338 = vmul.f32 %v299, %v306
      %v339 = vmul.f32 %v300, %v306
      %v340 = vld [vmem:[%s2] sm:$0x1]
      %v342 = vlaneseq
      %v343 = vshrl.u32 %v342, 7
      %v344 = vsub.s32 0, %v343
      %v345 = vrot.slane %v340, %v344
      %v347 = vadd.f32 %v308, %v345
      %v348 = vadd.f32 %v309, %v345
      %v349 = vadd.f32 %v310, %v345
      %v350 = vadd.f32 %v311, %v345
      %v351 = vadd.f32 %v312, %v345
      %v352 = vadd.f32 %v313, %v345
      %v353 = vadd.f32 %v314, %v345
      %v354 = vadd.f32 %v315, %v345
      %v355 = vadd.f32 %v316, %v345
      %v356 = vadd.f32 %v317, %v345
      %v357 = vadd.f32 %v318, %v345
      %v358 = vadd.f32 %v319, %v345
      %v359 = vadd.f32 %v320, %v345
      %v360 = vadd.f32 %v321, %v345
      %v361 = vadd.f32 %v322, %v345
      %v362 = vadd.f32 %v323, %v345
      %v363 = vadd.f32 %v324, %v345
      %v364 = vadd.f32 %v325, %v345
      %v365 = vadd.f32 %v326, %v345
      %v366 = vadd.f32 %v327, %v345
      %v367 = vadd.f32 %v328, %v345
      %v368 = vadd.f32 %v329, %v345
      %v369 = vadd.f32 %v330, %v345
      %v370 = vadd.f32 %v331, %v345
      %v371 = vadd.f32 %v332, %v345
      %v372 = vadd.f32 %v333, %v345
      %v373 = vadd.f32 %v334, %v345
      %v374 = vadd.f32 %v335, %v345
      %v375 = vadd.f32 %v336, %v345
      %v376 = vadd.f32 %v337, %v345
      %v377 = vadd.f32 %v338, %v345
      %v378 = vadd.f32 %v339, %v345
      %v379 = vmax.f32 %v347, 0.0
      %v380 = vmax.f32 %v348, 0.0
      %v381 = vmax.f32 %v349, 0.0
      %v382 = vmax.f32 %v350, 0.0
      %v383 = vmax.f32 %v351, 0.0
      %v384 = vmax.f32 %v352, 0.0
      %v385 = vmax.f32 %v353, 0.0
      %v386 = vmax.f32 %v354, 0.0
      %v387 = vmax.f32 %v355, 0.0
      %v388 = vmax.f32 %v356, 0.0
      %v389 = vmax.f32 %v357, 0.0
      %v390 = vmax.f32 %v358, 0.0
      %v391 = vmax.f32 %v359, 0.0
      %v392 = vmax.f32 %v360, 0.0
      %v393 = vmax.f32 %v361, 0.0
      %v394 = vmax.f32 %v362, 0.0
      %v395 = vmax.f32 %v363, 0.0
      %v396 = vmax.f32 %v364, 0.0
      %v397 = vmax.f32 %v365, 0.0
      %v398 = vmax.f32 %v366, 0.0
      %v399 = vmax.f32 %v367, 0.0
      %v400 = vmax.f32 %v368, 0.0
      %v401 = vmax.f32 %v369, 0.0
      %v402 = vmax.f32 %v370, 0.0
      %v403 = vmax.f32 %v371, 0.0
      %v404 = vmax.f32 %v372, 0.0
      %v405 = vmax.f32 %v373, 0.0
      %v406 = vmax.f32 %v374, 0.0
      %v407 = vmax.f32 %v375, 0.0
      %v408 = vmax.f32 %v376, 0.0
      %v409 = vmax.f32 %v377, 0.0
      %v410 = vmax.f32 %v378, 0.0
      %411 = vst [vmem:[#allocation2] sm:$0xff] 0.0
      %412 = vst [vmem:[#allocation2 + $0x8] sm:$0xff] 0.0
      %413 = vst [vmem:[#allocation2 + $0x10] sm:$0x3] 0.0
      %s414 = scalar_lea.vmem [#allocation2], 408
      %415 = vst [vmem:[%s414] sm:$0xff] 0.0
      %416 = vst [vmem:[%s414 + $0x8] sm:$0xff] 0.0
      %417 = vst [vmem:[%s414 + $0x10] sm:$0x3] 0.0
      %418 = vst [vmem:[#allocation2] sm:$0x1] 0.0
      %419 = vst [vmem:[#allocation2 + $0x18] sm:$0x1] 0.0
      %420 = vst [vmem:[#allocation2 + $0x30] sm:$0x1] 0.0
      %421 = vst [vmem:[#allocation2 + $0x48] sm:$0x1] 0.0
      %422 = vst [vmem:[#allocation2 + $0x60] sm:$0x1] 0.0
      %423 = vst [vmem:[#allocation2 + $0x78] sm:$0x1] 0.0
      %424 = vst [vmem:[#allocation2 + $0x90] sm:$0x1] 0.0
      %425 = vst [vmem:[#allocation2 + $0xa8] sm:$0x1] 0.0
      %426 = vst [vmem:[#allocation2 + $0xc0] sm:$0x1] 0.0
      %427 = vst [vmem:[#allocation2 + $0xd8] sm:$0x1] 0.0
      %428 = vst [vmem:[#allocation2 + $0xf0] sm:$0x1] 0.0
      %429 = vst [vmem:[#allocation2 + $0x108] sm:$0x1] 0.0
      %430 = vst [vmem:[#allocation2 + $0x120] sm:$0x1] 0.0
      %431 = vst [vmem:[#allocation2 + $0x138] sm:$0x1] 0.0
      %432 = vst [vmem:[#allocation2 + $0x150] sm:$0x1] 0.0
      %433 = vst [vmem:[#allocation2 + $0x168] sm:$0x1] 0.0
      %434 = vst [vmem:[#allocation2 + $0x180] sm:$0x1] 0.0
      %435 = vst [vmem:[#allocation2 + $0x198] sm:$0x1] 0.0
      %436 = vst [vmem:[#allocation2 + $0x11] sm:$0x1] 0.0
      %437 = vst [vmem:[#allocation2 + $0x29] sm:$0x1] 0.0
      %438 = vst [vmem:[#allocation2 + $0x41] sm:$0x1] 0.0
      %439 = vst [vmem:[#allocation2 + $0x59] sm:$0x1] 0.0
      %440 = vst [vmem:[#allocation2 + $0x71] sm:$0x1] 0.0
      %441 = vst [vmem:[#allocation2 + $0x89] sm:$0x1] 0.0
      %442 = vst [vmem:[#allocation2 + $0xa1] sm:$0x1] 0.0
      %443 = vst [vmem:[#allocation2 + $0xb9] sm:$0x1] 0.0
      %444 = vst [vmem:[#allocation2 + $0xd1] sm:$0x1] 0.0
      %445 = vst [vmem:[#allocation2 + $0xe9] sm:$0x1] 0.0
      %446 = vst [vmem:[#allocation2 + $0x101] sm:$0x1] 0.0
      %447 = vst [vmem:[#allocation2 + $0x119] sm:$0x1] 0.0
      %448 = vst [vmem:[#allocation2 + $0x131] sm:$0x1] 0.0
      %449 = vst [vmem:[#allocation2 + $0x149] sm:$0x1] 0.0
      %450 = vst [vmem:[#allocation2 + $0x161] sm:$0x1] 0.0
      %451 = vst [vmem:[#allocation2 + $0x179] sm:$0x1] 0.0
      %452 = vst [vmem:[#allocation2 + $0x191] sm:$0x1] 0.0
      %453 = vst [vmem:[#allocation2 + $0x1a9] sm:$0x1] 0.0
      %s454 = scalar_lea.vmem [#allocation2], 24
      %455 = vst [vmem:[%s454 + $0x1] sm:$0xff] %v379
      %456 = vst [vmem:[%s454 + $0x9] sm:$0xff] %v380
      %457 = vst [vmem:[%s454 + $0x19] sm:$0xff] %v381
      %458 = vst [vmem:[%s454 + $0x21] sm:$0xff] %v382
      %459 = vst [vmem:[%s454 + $0x31] sm:$0xff] %v383
      %460 = vst [vmem:[%s454 + $0x39] sm:$0xff] %v384
      %461 = vst [vmem:[%s454 + $0x49] sm:$0xff] %v385
      %462 = vst [vmem:[%s454 + $0x51] sm:$0xff] %v386
      %463 = vst [vmem:[%s454 + $0x61] sm:$0xff] %v387
      %464 = vst [vmem:[%s454 + $0x69] sm:$0xff] %v388
      %465 = vst [vmem:[%s454 + $0x79] sm:$0xff] %v389
      %466 = vst [vmem:[%s454 + $0x81] sm:$0xff] %v390
      %467 = vst [vmem:[%s454 + $0x91] sm:$0xff] %v391
      %468 = vst [vmem:[%s454 + $0x99] sm:$0xff] %v392
      %469 = vst [vmem:[%s454 + $0xa9] sm:$0xff] %v393
      %470 = vst [vmem:[%s454 + $0xb1] sm:$0xff] %v394
      %471 = vst [vmem:[%s454 + $0xc1] sm:$0xff] %v395
      %472 = vst [vmem:[%s454 + $0xc9] sm:$0xff] %v396
      %473 = vst [vmem:[%s454 + $0xd9] sm:$0xff] %v397
      %474 = vst [vmem:[%s454 + $0xe1] sm:$0xff] %v398
      %475 = vst [vmem:[%s454 + $0xf1] sm:$0xff] %v399
      %476 = vst [vmem:[%s454 + $0xf9] sm:$0xff] %v400
      %477 = vst [vmem:[%s454 + $0x109] sm:$0xff] %v401
      %478 = vst [vmem:[%s454 + $0x111] sm:$0xff] %v402
      %479 = vst [vmem:[%s454 + $0x121] sm:$0xff] %v403
      %480 = vst [vmem:[%s454 + $0x129] sm:$0xff] %v404
      %481 = vst [vmem:[%s454 + $0x139] sm:$0xff] %v405
      %482 = vst [vmem:[%s454 + $0x141] sm:$0xff] %v406
      %483 = vst [vmem:[%s454 + $0x151] sm:$0xff] %v407
      %484 = vst [vmem:[%s454 + $0x159] sm:$0xff] %v408
      %485 = vst [vmem:[%s454 + $0x169] sm:$0xff] %v409
      %486 = vst [vmem:[%s454 + $0x171] sm:$0xff] %v410
      %v487 = vld [vmem:[#allocation2] sm:$0xff]
      %v488 = vld [vmem:[#allocation2 + $0x8] sm:$0xff]
      %v489 = vld [vmem:[#allocation2 + $0x18] sm:$0xff]
      %v490 = vld [vmem:[#allocation2 + $0x20] sm:$0xff]
      %v491 = vld [vmem:[#allocation2 + $0x30] sm:$0xff]
      %v492 = vld [vmem:[#allocation2 + $0x38] sm:$0xff]
      %v493 = vld [vmem:[#allocation2 + $0x48] sm:$0xff]
      %v494 = vld [vmem:[#allocation2 + $0x50] sm:$0xff]
      %v495 = vld [vmem:[#allocation2 + $0x60] sm:$0xff]
      %v496 = vld [vmem:[#allocation2 + $0x68] sm:$0xff]
      %v497 = vld [vmem:[#allocation2 + $0x78] sm:$0xff]
      %v498 = vld [vmem:[#allocation2 + $0x80] sm:$0xff]
      %v499 = vld [vmem:[#allocation2 + $0x90] sm:$0xff]
      %v500 = vld [vmem:[#allocation2 + $0x98] sm:$0xff]
      %v501 = vld [vmem:[#allocation2 + $0xa8] sm:$0xff]
      %v502 = vld [vmem:[#allocation2 + $0xb0] sm:$0xff]
      %v503 = vld [vmem:[#allocation2 + $0xc0] sm:$0xff]
      %v504 = vld [vmem:[#allocation2 + $0xc8] sm:$0xff]
      %v505 = vld [vmem:[#allocation2 + $0xd8] sm:$0xff]
      %v506 = vld [vmem:[#allocation2 + $0xe0] sm:$0xff]
      %v507 = vld [vmem:[#allocation2 + $0xf0] sm:$0xff]
      %v508 = vld [vmem:[#allocation2 + $0xf8] sm:$0xff]
      %v509 = vld [vmem:[#allocation2 + $0x108] sm:$0xff]
      %v510 = vld [vmem:[#allocation2 + $0x110] sm:$0xff]
      %v511 = vld [vmem:[#allocation2 + $0x120] sm:$0xff]
      %v512 = vld [vmem:[#allocation2 + $0x128] sm:$0xff]
      %v513 = vld [vmem:[#allocation2 + $0x138] sm:$0xff]
      %v514 = vld [vmem:[#allocation2 + $0x140] sm:$0xff]
      %v515 = vld [vmem:[#allocation2 + $0x150] sm:$0xff]
      %v516 = vld [vmem:[#allocation2 + $0x158] sm:$0xff]
      %v517 = vld [vmem:[#allocation2 + $0x168] sm:$0xff]
      %v518 = vld [vmem:[#allocation2 + $0x170] sm:$0xff]
      %v519 = vpack.c.bf16 %v488, %v487
      %v520 = vpack.c.bf16 %v490, %v489
      %v521 = vpack.c.bf16 %v492, %v491
      %v522 = vpack.c.bf16 %v494, %v493
      %v523 = vpack.c.bf16 %v496, %v495
      %v524 = vpack.c.bf16 %v498, %v497
      %v525 = vpack.c.bf16 %v500, %v499
      %v526 = vpack.c.bf16 %v502, %v501
      %v527 = vpack.c.bf16 %v504, %v503
      %v528 = vpack.c.bf16 %v506, %v505
      %v529 = vpack.c.bf16 %v508, %v507
      %v530 = vpack.c.bf16 %v510, %v509
      %v531 = vpack.c.bf16 %v512, %v511
      %v532 = vpack.c.bf16 %v514, %v513
      %v533 = vpack.c.bf16 %v516, %v515
      %v534 = vpack.c.bf16 %v518, %v517
      %v551 = vunpack.c.l.b16 %v519
      %v552 = vunpack.c.h.b16 %v519
      %v553 = vunpack.c.l.b16 %v520
      %v554 = vunpack.c.h.b16 %v520
      %v555 = vunpack.c.l.b16 %v521
      %v556 = vunpack.c.h.b16 %v521
      %v557 = vunpack.c.l.b16 %v522
      %v558 = vunpack.c.h.b16 %v522
      %v559 = vunpack.c.l.b16 %v523
      %v560 = vunpack.c.h.b16 %v523
      %v561 = vunpack.c.l.b16 %v524
      %v562 = vunpack.c.h.b16 %v524
      %v563 = vunpack.c.l.b16 %v525
      %v564 = vunpack.c.h.b16 %v525
      %v565 = vunpack.c.l.b16 %v526
      %v566 = vunpack.c.h.b16 %v526
      %v567 = vunpack.c.l.b16 %v527
      %v568 = vunpack.c.h.b16 %v527
      %v569 = vunpack.c.l.b16 %v528
      %v570 = vunpack.c.h.b16 %v528
      %v571 = vunpack.c.l.b16 %v529
      %v572 = vunpack.c.h.b16 %v529
      %v573 = vunpack.c.l.b16 %v530
      %v574 = vunpack.c.h.b16 %v530
      %v575 = vunpack.c.l.b16 %v531
      %v576 = vunpack.c.h.b16 %v531
      %v577 = vunpack.c.l.b16 %v532
      %v578 = vunpack.c.h.b16 %v532
      %v579 = vunpack.c.l.b16 %v533
      %v580 = vunpack.c.h.b16 %v533
      %v581 = vunpack.c.l.b16 %v534
      %v582 = vunpack.c.h.b16 %v534
      %v583 = vpack.c.b16 %v551, %v551
      %v584 = vpack.c.b16 %v552, %v552
      %v585 = vpack.c.b16 %v553, %v553
      %v586 = vpack.c.b16 %v554, %v554
      %v587 = vpack.c.b16 %v555, %v555
      %v588 = vpack.c.b16 %v556, %v556
      %v589 = vpack.c.b16 %v557, %v557
      %v590 = vpack.c.b16 %v558, %v558
      %v591 = vpack.c.b16 %v559, %v559
      %v592 = vpack.c.b16 %v560, %v560
      %v593 = vpack.c.b16 %v561, %v561
      %v594 = vpack.c.b16 %v562, %v562
      %v595 = vpack.c.b16 %v563, %v563
      %v596 = vpack.c.b16 %v564, %v564
      %v597 = vpack.c.b16 %v565, %v565
      %v598 = vpack.c.b16 %v566, %v566
      %v599 = vpack.c.b16 %v567, %v567
      %v600 = vpack.c.b16 %v568, %v568
      %v601 = vpack.c.b16 %v569, %v569
      %v602 = vpack.c.b16 %v570, %v570
      %v603 = vpack.c.b16 %v571, %v571
      %v604 = vpack.c.b16 %v572, %v572
      %v605 = vpack.c.b16 %v573, %v573
      %v606 = vpack.c.b16 %v574, %v574
      %v607 = vpack.c.b16 %v575, %v575
      %v608 = vpack.c.b16 %v576, %v576
      %v609 = vpack.c.b16 %v577, %v577
      %v610 = vpack.c.b16 %v578, %v578
      %v611 = vpack.c.b16 %v579, %v579
      %v612 = vpack.c.b16 %v580, %v580
      %v613 = vpack.c.b16 %v581, %v581
      %v614 = vpack.c.b16 %v582, %v582
      %647 = vst [vmem:[#allocation3] sm:$0xf] %v583
      %648 = vst [vmem:[#allocation3 + $0x24] sm:$0xf] %v584
      %649 = vst [vmem:[#allocation3 + $0x48] sm:$0xf] %v585
      %650 = vst [vmem:[#allocation3 + $0x6c] sm:$0xf] %v586
      %651 = vst [vmem:[#allocation3 + $0x90] sm:$0xf] %v587
      %652 = vst [vmem:[#allocation3 + $0xb4] sm:$0xf] %v588
      %653 = vst [vmem:[#allocation3 + $0xd8] sm:$0xf] %v589
      %654 = vst [vmem:[#allocation3 + $0xfc] sm:$0xf] %v590
      %655 = vst [vmem:[#allocation3 + $0x120] sm:$0xf] %v591
      %656 = vst [vmem:[#allocation3 + $0x144] sm:$0xf] %v592
      %657 = vst [vmem:[#allocation3 + $0x168] sm:$0xf] %v593
      %658 = vst [vmem:[#allocation3 + $0x18c] sm:$0xf] %v594
      %659 = vst [vmem:[#allocation3 + $0x1b0] sm:$0xf] %v595
      %660 = vst [vmem:[#allocation3 + $0x1d4] sm:$0xf] %v596
      %661 = vst [vmem:[#allocation3 + $0x1f8] sm:$0xf] %v597
      %662 = vst [vmem:[#allocation3 + $0x21c] sm:$0xf] %v598
      %663 = vst [vmem:[#allocation3 + $0x240] sm:$0xf] %v599
      %664 = vst [vmem:[#allocation3 + $0x264] sm:$0xf] %v600
      %665 = vst [vmem:[#allocation3 + $0x288] sm:$0xf] %v601
      %666 = vst [vmem:[#allocation3 + $0x2ac] sm:$0xf] %v602
      %667 = vst [vmem:[#allocation3 + $0x2d0] sm:$0xf] %v603
      %668 = vst [vmem:[#allocation3 + $0x2f4] sm:$0xf] %v604
      %669 = vst [vmem:[#allocation3 + $0x318] sm:$0xf] %v605
      %670 = vst [vmem:[#allocation3 + $0x33c] sm:$0xf] %v606
      %671 = vst [vmem:[#allocation3 + $0x360] sm:$0xf] %v607
      %672 = vst [vmem:[#allocation3 + $0x384] sm:$0xf] %v608
      %673 = vst [vmem:[#allocation3 + $0x3a8] sm:$0xf] %v609
      %674 = vst [vmem:[#allocation3 + $0x3cc] sm:$0xf] %v610
      %675 = vst [vmem:[#allocation3 + $0x3f0] sm:$0xf] %v611
      %676 = vst [vmem:[#allocation3 + $0x414] sm:$0xf] %v612
      %677 = vst [vmem:[#allocation3 + $0x438] sm:$0xf] %v613
      %678 = vst [vmem:[#allocation3 + $0x45c] sm:$0xf] %v614
      %v679 = vld [vmem:[#allocation2 + $0x1] sm:$0xff]
      %v680 = vld [vmem:[#allocation2 + $0x9] sm:$0xff]
      %v681 = vld [vmem:[#allocation2 + $0x19] sm:$0xff]
      %v682 = vld [vmem:[#allocation2 + $0x21] sm:$0xff]
      %v683 = vld [vmem:[#allocation2 + $0x31] sm:$0xff]
      %v684 = vld [vmem:[#allocation2 + $0x39] sm:$0xff]
      %v685 = vld [vmem:[#allocation2 + $0x49] sm:$0xff]
      %v686 = vld [vmem:[#allocation2 + $0x51] sm:$0xff]
      %v687 = vld [vmem:[#allocation2 + $0x61] sm:$0xff]
      %v688 = vld [vmem:[#allocation2 + $0x69] sm:$0xff]
      %v689 = vld [vmem:[#allocation2 + $0x79] sm:$0xff]
      %v690 = vld [vmem:[#allocation2 + $0x81] sm:$0xff]
      %v691 = vld [vmem:[#allocation2 + $0x91] sm:$0xff]
      %v692 = vld [vmem:[#allocation2 + $0x99] sm:$0xff]
      %v693 = vld [vmem:[#allocation2 + $0xa9] sm:$0xff]
      %v694 = vld [vmem:[#allocation2 + $0xb1] sm:$0xff]
      %v695 = vld [vmem:[#allocation2 + $0xc1] sm:$0xff]
      %v696 = vld [vmem:[#allocation2 + $0xc9] sm:$0xff]
      %v697 = vld [vmem:[#allocation2 + $0xd9] sm:$0xff]
      %v698 = vld [vmem:[#allocation2 + $0xe1] sm:$0xff]
      %v699 = vld [vmem:[#allocation2 + $0xf1] sm:$0xff]
      %v700 = vld [vmem:[#allocation2 + $0xf9] sm:$0xff]
      %v701 = vld [vmem:[#allocation2 + $0x109] sm:$0xff]
      %v702 = vld [vmem:[#allocation2 + $0x111] sm:$0xff]
      %v703 = vld [vmem:[#allocation2 + $0x121] sm:$0xff]
      %v704 = vld [vmem:[#allocation2 + $0x129] sm:$0xff]
      %v705 = vld [vmem:[#allocation2 + $0x139] sm:$0xff]
      %v706 = vld [vmem:[#allocation2 + $0x141] sm:$0xff]
      %v707 = vld [vmem:[#allocation2 + $0x151] sm:$0xff]
      %v708 = vld [vmem:[#allocation2 + $0x159] sm:$0xff]
      %v709 = vld [vmem:[#allocation2 + $0x169] sm:$0xff]
      %v710 = vld [vmem:[#allocation2 + $0x171] sm:$0xff]
      %v711 = vpack.c.bf16 %v680, %v679
      %v712 = vpack.c.bf16 %v682, %v681
      %v713 = vpack.c.bf16 %v684, %v683
      %v714 = vpack.c.bf16 %v686, %v685
      %v715 = vpack.c.bf16 %v688, %v687
      %v716 = vpack.c.bf16 %v690, %v689
      %v717 = vpack.c.bf16 %v692, %v691
      %v718 = vpack.c.bf16 %v694, %v693
      %v719 = vpack.c.bf16 %v696, %v695
      %v720 = vpack.c.bf16 %v698, %v697
      %v721 = vpack.c.bf16 %v700, %v699
      %v722 = vpack.c.bf16 %v702, %v701
      %v723 = vpack.c.bf16 %v704, %v703
      %v724 = vpack.c.bf16 %v706, %v705
      %v725 = vpack.c.bf16 %v708, %v707
      %v726 = vpack.c.bf16 %v710, %v709
      %v743 = vunpack.c.l.b16 %v711
      %v744 = vunpack.c.h.b16 %v711
      %v745 = vunpack.c.l.b16 %v712
      %v746 = vunpack.c.h.b16 %v712
      %v747 = vunpack.c.l.b16 %v713
      %v748 = vunpack.c.h.b16 %v713
      %v749 = vunpack.c.l.b16 %v714
      %v750 = vunpack.c.h.b16 %v714
      %v751 = vunpack.c.l.b16 %v715
      %v752 = vunpack.c.h.b16 %v715
      %v753 = vunpack.c.l.b16 %v716
      %v754 = vunpack.c.h.b16 %v716
      %v755 = vunpack.c.l.b16 %v717
      %v756 = vunpack.c.h.b16 %v717
      %v757 = vunpack.c.l.b16 %v718
      %v758 = vunpack.c.h.b16 %v718
      %v759 = vunpack.c.l.b16 %v719
      %v760 = vunpack.c.h.b16 %v719
      %v761 = vunpack.c.l.b16 %v720
      %v762 = vunpack.c.h.b16 %v720
      %v763 = vunpack.c.l.b16 %v721
      %v764 = vunpack.c.h.b16 %v721
      %v765 = vunpack.c.l.b16 %v722
      %v766 = vunpack.c.h.b16 %v722
      %v767 = vunpack.c.l.b16 %v723
      %v768 = vunpack.c.h.b16 %v723
      %v769 = vunpack.c.l.b16 %v724
      %v770 = vunpack.c.h.b16 %v724
      %v771 = vunpack.c.l.b16 %v725
      %v772 = vunpack.c.h.b16 %v725
      %v773 = vunpack.c.l.b16 %v726
      %v774 = vunpack.c.h.b16 %v726
      %v775 = vpack.c.b16 %v743, %v743
      %v776 = vpack.c.b16 %v744, %v744
      %v777 = vpack.c.b16 %v745, %v745
      %v778 = vpack.c.b16 %v746, %v746
      %v779 = vpack.c.b16 %v747, %v747
      %v780 = vpack.c.b16 %v748, %v748
      %v781 = vpack.c.b16 %v749, %v749
      %v782 = vpack.c.b16 %v750, %v750
      %v783 = vpack.c.b16 %v751, %v751
      %v784 = vpack.c.b16 %v752, %v752
      %v785 = vpack.c.b16 %v753, %v753
      %v786 = vpack.c.b16 %v754, %v754
      %v787 = vpack.c.b16 %v755, %v755
      %v788 = vpack.c.b16 %v756, %v756
      %v789 = vpack.c.b16 %v757, %v757
      %v790 = vpack.c.b16 %v758, %v758
      %v791 = vpack.c.b16 %v759, %v759
      %v792 = vpack.c.b16 %v760, %v760
      %v793 = vpack.c.b16 %v761, %v761
      %v794 = vpack.c.b16 %v762, %v762
      %v795 = vpack.c.b16 %v763, %v763
      %v796 = vpack.c.b16 %v764, %v764
      %v797 = vpack.c.b16 %v765, %v765
      %v798 = vpack.c.b16 %v766, %v766
      %v799 = vpack.c.b16 %v767, %v767
      %v800 = vpack.c.b16 %v768, %v768
      %v801 = vpack.c.b16 %v769, %v769
      %v802 = vpack.c.b16 %v770, %v770
      %v803 = vpack.c.b16 %v771, %v771
      %v804 = vpack.c.b16 %v772, %v772
      %v805 = vpack.c.b16 %v773, %v773
      %v806 = vpack.c.b16 %v774, %v774
      %839 = vst [vmem:[#allocation3 + $0x4] sm:$0xf] %v775
      %840 = vst [vmem:[#allocation3 + $0x28] sm:$0xf] %v776
      %841 = vst [vmem:[#allocation3 + $0x4c] sm:$0xf] %v777
      %842 = vst [vmem:[#allocation3 + $0x70] sm:$0xf] %v778
      %843 = vst [vmem:[#allocation3 + $0x94] sm:$0xf] %v779
      %844 = vst [vmem:[#allocation3 + $0xb8] sm:$0xf] %v780
      %845 = vst [vmem:[#allocation3 + $0xdc] sm:$0xf] %v781
      %846 = vst [vmem:[#allocation3 + $0x100] sm:$0xf] %v782
      %847 = vst [vmem:[#allocation3 + $0x124] sm:$0xf] %v783
      %848 = vst [vmem:[#allocation3 + $0x148] sm:$0xf] %v784
      %849 = vst [vmem:[#allocation3 + $0x16c] sm:$0xf] %v785
      %850 = vst [vmem:[#allocation3 + $0x190] sm:$0xf] %v786
      %851 = vst [vmem:[#allocation3 + $0x1b4] sm:$0xf] %v787
      %852 = vst [vmem:[#allocation3 + $0x1d8] sm:$0xf] %v788
      %853 = vst [vmem:[#allocation3 + $0x1fc] sm:$0xf] %v789
      %854 = vst [vmem:[#allocation3 + $0x220] sm:$0xf] %v790
      %855 = vst [vmem:[#allocation3 + $0x244] sm:$0xf] %v791
      %856 = vst [vmem:[#allocation3 + $0x268] sm:$0xf] %v792
      %857 = vst [vmem:[#allocation3 + $0x28c] sm:$0xf] %v793
      %858 = vst [vmem:[#allocation3 + $0x2b0] sm:$0xf] %v794
      %859 = vst [vmem:[#allocation3 + $0x2d4] sm:$0xf] %v795
      %860 = vst [vmem:[#allocation3 + $0x2f8] sm:$0xf] %v796
      %861 = vst [vmem:[#allocation3 + $0x31c] sm:$0xf] %v797
      %862 = vst [vmem:[#allocation3 + $0x340] sm:$0xf] %v798
      %863 = vst [vmem:[#allocation3 + $0x364] sm:$0xf] %v799
      %864 = vst [vmem:[#allocation3 + $0x388] sm:$0xf] %v800
      %865 = vst [vmem:[#allocation3 + $0x3ac] sm:$0xf] %v801
      %866 = vst [vmem:[#allocation3 + $0x3d0] sm:$0xf] %v802
      %867 = vst [vmem:[#allocation3 + $0x3f4] sm:$0xf] %v803
      %868 = vst [vmem:[#allocation3 + $0x418] sm:$0xf] %v804
      %869 = vst [vmem:[#allocation3 + $0x43c] sm:$0xf] %v805
      %870 = vst [vmem:[#allocation3 + $0x460] sm:$0xf] %v806
      %v871 = vld [vmem:[#allocation2 + $0x2] sm:$0xff]
      %v872 = vld [vmem:[#allocation2 + $0xa] sm:$0xff]
      %v873 = vld [vmem:[#allocation2 + $0x1a] sm:$0xff]
      %v874 = vld [vmem:[#allocation2 + $0x22] sm:$0xff]
      %v875 = vld [vmem:[#allocation2 + $0x32] sm:$0xff]
      %v876 = vld [vmem:[#allocation2 + $0x3a] sm:$0xff]
      %v877 = vld [vmem:[#allocation2 + $0x4a] sm:$0xff]
      %v878 = vld [vmem:[#allocation2 + $0x52] sm:$0xff]
      %v879 = vld [vmem:[#allocation2 + $0x62] sm:$0xff]
      %v880 = vld [vmem:[#allocation2 + $0x6a] sm:$0xff]
      %v881 = vld [vmem:[#allocation2 + $0x7a] sm:$0xff]
      %v882 = vld [vmem:[#allocation2 + $0x82] sm:$0xff]
      %v883 = vld [vmem:[#allocation2 + $0x92] sm:$0xff]
      %v884 = vld [vmem:[#allocation2 + $0x9a] sm:$0xff]
      %v885 = vld [vmem:[#allocation2 + $0xaa] sm:$0xff]
      %v886 = vld [vmem:[#allocation2 + $0xb2] sm:$0xff]
      %v887 = vld [vmem:[#allocation2 + $0xc2] sm:$0xff]
      %v888 = vld [vmem:[#allocation2 + $0xca] sm:$0xff]
      %v889 = vld [vmem:[#allocation2 + $0xda] sm:$0xff]
      %v890 = vld [vmem:[#allocation2 + $0xe2] sm:$0xff]
      %v891 = vld [vmem:[#allocation2 + $0xf2] sm:$0xff]
      %v892 = vld [vmem:[#allocation2 + $0xfa] sm:$0xff]
      %v893 = vld [vmem:[#allocation2 + $0x10a] sm:$0xff]
      %v894 = vld [vmem:[#allocation2 + $0x112] sm:$0xff]
      %v895 = vld [vmem:[#allocation2 + $0x122] sm:$0xff]
      %v896 = vld [vmem:[#allocation2 + $0x12a] sm:$0xff]
      %v897 = vld [vmem:[#allocation2 + $0x13a] sm:$0xff]
      %v898 = vld [vmem:[#allocation2 + $0x142] sm:$0xff]
      %v899 = vld [vmem:[#allocation2 + $0x152] sm:$0xff]
      %v900 = vld [vmem:[#allocation2 + $0x15a] sm:$0xff]
      %v901 = vld [vmem:[#allocation2 + $0x16a] sm:$0xff]
      %v902 = vld [vmem:[#allocation2 + $0x172] sm:$0xff]
      %v903 = vpack.c.bf16 %v872, %v871
      %v904 = vpack.c.bf16 %v874, %v873
      %v905 = vpack.c.bf16 %v876, %v875
      %v906 = vpack.c.bf16 %v878, %v877
      %v907 = vpack.c.bf16 %v880, %v879
      %v908 = vpack.c.bf16 %v882, %v881
      %v909 = vpack.c.bf16 %v884, %v883
      %v910 = vpack.c.bf16 %v886, %v885
      %v911 = vpack.c.bf16 %v888, %v887
      %v912 = vpack.c.bf16 %v890, %v889
      %v913 = vpack.c.bf16 %v892, %v891
      %v914 = vpack.c.bf16 %v894, %v893
      %v915 = vpack.c.bf16 %v896, %v895
      %v916 = vpack.c.bf16 %v898, %v897
      %v917 = vpack.c.bf16 %v900, %v899
      %v918 = vpack.c.bf16 %v902, %v901
      %v935 = vunpack.c.l.b16 %v903
      %v936 = vunpack.c.h.b16 %v903
      %v937 = vunpack.c.l.b16 %v904
      %v938 = vunpack.c.h.b16 %v904
      %v939 = vunpack.c.l.b16 %v905
      %v940 = vunpack.c.h.b16 %v905
      %v941 = vunpack.c.l.b16 %v906
      %v942 = vunpack.c.h.b16 %v906
      %v943 = vunpack.c.l.b16 %v907
      %v944 = vunpack.c.h.b16 %v907
      %v945 = vunpack.c.l.b16 %v908
      %v946 = vunpack.c.h.b16 %v908
      %v947 = vunpack.c.l.b16 %v909
      %v948 = vunpack.c.h.b16 %v909
      %v949 = vunpack.c.l.b16 %v910
      %v950 = vunpack.c.h.b16 %v910
      %v951 = vunpack.c.l.b16 %v911
      %v952 = vunpack.c.h.b16 %v911
      %v953 = vunpack.c.l.b16 %v912
      %v954 = vunpack.c.h.b16 %v912
      %v955 = vunpack.c.l.b16 %v913
      %v956 = vunpack.c.h.b16 %v913
      %v957 = vunpack.c.l.b16 %v914
      %v958 = vunpack.c.h.b16 %v914
      %v959 = vunpack.c.l.b16 %v915
      %v960 = vunpack.c.h.b16 %v915
      %v961 = vunpack.c.l.b16 %v916
      %v962 = vunpack.c.h.b16 %v916
      %v963 = vunpack.c.l.b16 %v917
      %v964 = vunpack.c.h.b16 %v917
      %v965 = vunpack.c.l.b16 %v918
      %v966 = vunpack.c.h.b16 %v918
      %v967 = vpack.c.b16 %v935, %v935
      %v968 = vpack.c.b16 %v936, %v936
      %v969 = vpack.c.b16 %v937, %v937
      %v970 = vpack.c.b16 %v938, %v938
      %v971 = vpack.c.b16 %v939, %v939
      %v972 = vpack.c.b16 %v940, %v940
      %v973 = vpack.c.b16 %v941, %v941
      %v974 = vpack.c.b16 %v942, %v942
      %v975 = vpack.c.b16 %v943, %v943
      %v976 = vpack.c.b16 %v944, %v944
      %v977 = vpack.c.b16 %v945, %v945
      %v978 = vpack.c.b16 %v946, %v946
      %v979 = vpack.c.b16 %v947, %v947
      %v980 = vpack.c.b16 %v948, %v948
      %v981 = vpack.c.b16 %v949, %v949
      %v982 = vpack.c.b16 %v950, %v950
      %v983 = vpack.c.b16 %v951, %v951
      %v984 = vpack.c.b16 %v952, %v952
      %v985 = vpack.c.b16 %v953, %v953
      %v986 = vpack.c.b16 %v954, %v954
      %v987 = vpack.c.b16 %v955, %v955
      %v988 = vpack.c.b16 %v956, %v956
      %v989 = vpack.c.b16 %v957, %v957
      %v990 = vpack.c.b16 %v958, %v958
      %v991 = vpack.c.b16 %v959, %v959
      %v992 = vpack.c.b16 %v960, %v960
      %v993 = vpack.c.b16 %v961, %v961
      %v994 = vpack.c.b16 %v962, %v962
      %v995 = vpack.c.b16 %v963, %v963
      %v996 = vpack.c.b16 %v964, %v964
      %v997 = vpack.c.b16 %v965, %v965
      %v998 = vpack.c.b16 %v966, %v966
      %1031 = vst [vmem:[#allocation3 + $0x8] sm:$0xf] %v967
      %1032 = vst [vmem:[#allocation3 + $0x2c] sm:$0xf] %v968
      %1033 = vst [vmem:[#allocation3 + $0x50] sm:$0xf] %v969
      %1034 = vst [vmem:[#allocation3 + $0x74] sm:$0xf] %v970
      %1035 = vst [vmem:[#allocation3 + $0x98] sm:$0xf] %v971
      %1036 = vst [vmem:[#allocation3 + $0xbc] sm:$0xf] %v972
      %1037 = vst [vmem:[#allocation3 + $0xe0] sm:$0xf] %v973
      %1038 = vst [vmem:[#allocation3 + $0x104] sm:$0xf] %v974
      %1039 = vst [vmem:[#allocation3 + $0x128] sm:$0xf] %v975
      %1040 = vst [vmem:[#allocation3 + $0x14c] sm:$0xf] %v976
      %1041 = vst [vmem:[#allocation3 + $0x170] sm:$0xf] %v977
      %1042 = vst [vmem:[#allocation3 + $0x194] sm:$0xf] %v978
      %1043 = vst [vmem:[#allocation3 + $0x1b8] sm:$0xf] %v979
      %1044 = vst [vmem:[#allocation3 + $0x1dc] sm:$0xf] %v980
      %1045 = vst [vmem:[#allocation3 + $0x200] sm:$0xf] %v981
      %1046 = vst [vmem:[#allocation3 + $0x224] sm:$0xf] %v982
      %1047 = vst [vmem:[#allocation3 + $0x248] sm:$0xf] %v983
      %1048 = vst [vmem:[#allocation3 + $0x26c] sm:$0xf] %v984
      %1049 = vst [vmem:[#allocation3 + $0x290] sm:$0xf] %v985
      %1050 = vst [vmem:[#allocation3 + $0x2b4] sm:$0xf] %v986
      %1051 = vst [vmem:[#allocation3 + $0x2d8] sm:$0xf] %v987
      %1052 = vst [vmem:[#allocation3 + $0x2fc] sm:$0xf] %v988
      %1053 = vst [vmem:[#allocation3 + $0x320] sm:$0xf] %v989
      %1054 = vst [vmem:[#allocation3 + $0x344] sm:$0xf] %v990
      %1055 = vst [vmem:[#allocation3 + $0x368] sm:$0xf] %v991
      %1056 = vst [vmem:[#allocation3 + $0x38c] sm:$0xf] %v992
      %1057 = vst [vmem:[#allocation3 + $0x3b0] sm:$0xf] %v993
      %1058 = vst [vmem:[#allocation3 + $0x3d4] sm:$0xf] %v994
      %1059 = vst [vmem:[#allocation3 + $0x3f8] sm:$0xf] %v995
      %1060 = vst [vmem:[#allocation3 + $0x41c] sm:$0xf] %v996
      %1061 = vst [vmem:[#allocation3 + $0x440] sm:$0xf] %v997
      %1062 = vst [vmem:[#allocation3 + $0x464] sm:$0xf] %v998
      %v1063 = vld [vmem:[%s454] sm:$0xff]
      %v1064 = vld [vmem:[%s454 + $0x8] sm:$0xff]
      %v1065 = vld [vmem:[%s454 + $0x18] sm:$0xff]
      %v1066 = vld [vmem:[%s454 + $0x20] sm:$0xff]
      %v1067 = vld [vmem:[%s454 + $0x30] sm:$0xff]
      %v1068 = vld [vmem:[%s454 + $0x38] sm:$0xff]
      %v1069 = vld [vmem:[%s454 + $0x48] sm:$0xff]
      %v1070 = vld [vmem:[%s454 + $0x50] sm:$0xff]
      %v1071 = vld [vmem:[%s454 + $0x60] sm:$0xff]
      %v1072 = vld [vmem:[%s454 + $0x68] sm:$0xff]
      %v1073 = vld [vmem:[%s454 + $0x78] sm:$0xff]
      %v1074 = vld [vmem:[%s454 + $0x80] sm:$0xff]
      %v1075 = vld [vmem:[%s454 + $0x90] sm:$0xff]
      %v1076 = vld [vmem:[%s454 + $0x98] sm:$0xff]
      %v1077 = vld [vmem:[%s454 + $0xa8] sm:$0xff]
      %v1078 = vld [vmem:[%s454 + $0xb0] sm:$0xff]
      %v1079 = vld [vmem:[%s454 + $0xc0] sm:$0xff]
      %v1080 = vld [vmem:[%s454 + $0xc8] sm:$0xff]
      %v1081 = vld [vmem:[%s454 + $0xd8] sm:$0xff]
      %v1082 = vld [vmem:[%s454 + $0xe0] sm:$0xff]
      %v1083 = vld [vmem:[%s454 + $0xf0] sm:$0xff]
      %v1084 = vld [vmem:[%s454 + $0xf8] sm:$0xff]
      %v1085 = vld [vmem:[%s454 + $0x108] sm:$0xff]
      %v1086 = vld [vmem:[%s454 + $0x110] sm:$0xff]
      %v1087 = vld [vmem:[%s454 + $0x120] sm:$0xff]
      %v1088 = vld [vmem:[%s454 + $0x128] sm:$0xff]
      %v1089 = vld [vmem:[%s454 + $0x138] sm:$0xff]
      %v1090 = vld [vmem:[%s454 + $0x140] sm:$0xff]
      %v1091 = vld [vmem:[%s454 + $0x150] sm:$0xff]
      %v1092 = vld [vmem:[%s454 + $0x158] sm:$0xff]
      %v1093 = vld [vmem:[%s454 + $0x168] sm:$0xff]
      %v1094 = vld [vmem:[%s454 + $0x170] sm:$0xff]
      %v1095 = vpack.c.bf16 %v1064, %v1063
      %v1096 = vpack.c.bf16 %v1066, %v1065
      %v1097 = vpack.c.bf16 %v1068, %v1067
      %v1098 = vpack.c.bf16 %v1070, %v1069
      %v1099 = vpack.c.bf16 %v1072, %v1071
      %v1100 = vpack.c.bf16 %v1074, %v1073
      %v1101 = vpack.c.bf16 %v1076, %v1075
      %v1102 = vpack.c.bf16 %v1078, %v1077
      %v1103 = vpack.c.bf16 %v1080, %v1079
      %v1104 = vpack.c.bf16 %v1082, %v1081
      %v1105 = vpack.c.bf16 %v1084, %v1083
      %v1106 = vpack.c.bf16 %v1086, %v1085
      %v1107 = vpack.c.bf16 %v1088, %v1087
      %v1108 = vpack.c.bf16 %v1090, %v1089
      %v1109 = vpack.c.bf16 %v1092, %v1091
      %v1110 = vpack.c.bf16 %v1094, %v1093
      %v1127 = vunpack.c.l.b16 %v1095
      %v1128 = vunpack.c.h.b16 %v1095
      %v1129 = vunpack.c.l.b16 %v1096
      %v1130 = vunpack.c.h.b16 %v1096
      %v1131 = vunpack.c.l.b16 %v1097
      %v1132 = vunpack.c.h.b16 %v1097
      %v1133 = vunpack.c.l.b16 %v1098
      %v1134 = vunpack.c.h.b16 %v1098
      %v1135 = vunpack.c.l.b16 %v1099
      %v1136 = vunpack.c.h.b16 %v1099
      %v1137 = vunpack.c.l.b16 %v1100
      %v1138 = vunpack.c.h.b16 %v1100
      %v1139 = vunpack.c.l.b16 %v1101
      %v1140 = vunpack.c.h.b16 %v1101
      %v1141 = vunpack.c.l.b16 %v1102
      %v1142 = vunpack.c.h.b16 %v1102
      %v1143 = vunpack.c.l.b16 %v1103
      %v1144 = vunpack.c.h.b16 %v1103
      %v1145 = vunpack.c.l.b16 %v1104
      %v1146 = vunpack.c.h.b16 %v1104
      %v1147 = vunpack.c.l.b16 %v1105
      %v1148 = vunpack.c.h.b16 %v1105
      %v1149 = vunpack.c.l.b16 %v1106
      %v1150 = vunpack.c.h.b16 %v1106
      %v1151 = vunpack.c.l.b16 %v1107
      %v1152 = vunpack.c.h.b16 %v1107
      %v1153 = vunpack.c.l.b16 %v1108
      %v1154 = vunpack.c.h.b16 %v1108
      %v1155 = vunpack.c.l.b16 %v1109
      %v1156 = vunpack.c.h.b16 %v1109
      %v1157 = vunpack.c.l.b16 %v1110
      %v1158 = vunpack.c.h.b16 %v1110
      %v1159 = vpack.c.b16 %v1127, %v1127
      %v1160 = vpack.c.b16 %v1128, %v1128
      %v1161 = vpack.c.b16 %v1129, %v1129
      %v1162 = vpack.c.b16 %v1130, %v1130
      %v1163 = vpack.c.b16 %v1131, %v1131
      %v1164 = vpack.c.b16 %v1132, %v1132
      %v1165 = vpack.c.b16 %v1133, %v1133
      %v1166 = vpack.c.b16 %v1134, %v1134
      %v1167 = vpack.c.b16 %v1135, %v1135
      %v1168 = vpack.c.b16 %v1136, %v1136
      %v1169 = vpack.c.b16 %v1137, %v1137
      %v1170 = vpack.c.b16 %v1138, %v1138
      %v1171 = vpack.c.b16 %v1139, %v1139
      %v1172 = vpack.c.b16 %v1140, %v1140
      %v1173 = vpack.c.b16 %v1141, %v1141
      %v1174 = vpack.c.b16 %v1142, %v1142
      %v1175 = vpack.c.b16 %v1143, %v1143
      %v1176 = vpack.c.b16 %v1144, %v1144
      %v1177 = vpack.c.b16 %v1145, %v1145
      %v1178 = vpack.c.b16 %v1146, %v1146
      %v1179 = vpack.c.b16 %v1147, %v1147
      %v1180 = vpack.c.b16 %v1148, %v1148
      %v1181 = vpack.c.b16 %v1149, %v1149
      %v1182 = vpack.c.b16 %v1150, %v1150
      %v1183 = vpack.c.b16 %v1151, %v1151
      %v1184 = vpack.c.b16 %v1152, %v1152
      %v1185 = vpack.c.b16 %v1153, %v1153
      %v1186 = vpack.c.b16 %v1154, %v1154
      %v1187 = vpack.c.b16 %v1155, %v1155
      %v1188 = vpack.c.b16 %v1156, %v1156
      %v1189 = vpack.c.b16 %v1157, %v1157
      %v1190 = vpack.c.b16 %v1158, %v1158
      %1223 = vst [vmem:[#allocation3 + $0xc] sm:$0xf] %v1159
      %1224 = vst [vmem:[#allocation3 + $0x30] sm:$0xf] %v1160
      %1225 = vst [vmem:[#allocation3 + $0x54] sm:$0xf] %v1161
      %1226 = vst [vmem:[#allocation3 + $0x78] sm:$0xf] %v1162
      %1227 = vst [vmem:[#allocation3 + $0x9c] sm:$0xf] %v1163
      %1228 = vst [vmem:[#allocation3 + $0xc0] sm:$0xf] %v1164
      %1229 = vst [vmem:[#allocation3 + $0xe4] sm:$0xf] %v1165
      %1230 = vst [vmem:[#allocation3 + $0x108] sm:$0xf] %v1166
      %1231 = vst [vmem:[#allocation3 + $0x12c] sm:$0xf] %v1167
      %1232 = vst [vmem:[#allocation3 + $0x150] sm:$0xf] %v1168
      %1233 = vst [vmem:[#allocation3 + $0x174] sm:$0xf] %v1169
      %1234 = vst [vmem:[#allocation3 + $0x198] sm:$0xf] %v1170
      %1235 = vst [vmem:[#allocation3 + $0x1bc] sm:$0xf] %v1171
      %1236 = vst [vmem:[#allocation3 + $0x1e0] sm:$0xf] %v1172
      %1237 = vst [vmem:[#allocation3 + $0x204] sm:$0xf] %v1173
      %1238 = vst [vmem:[#allocation3 + $0x228] sm:$0xf] %v1174
      %1239 = vst [vmem:[#allocation3 + $0x24c] sm:$0xf] %v1175
      %1240 = vst [vmem:[#allocation3 + $0x270] sm:$0xf] %v1176
      %1241 = vst [vmem:[#allocation3 + $0x294] sm:$0xf] %v1177
      %1242 = vst [vmem:[#allocation3 + $0x2b8] sm:$0xf] %v1178
      %1243 = vst [vmem:[#allocation3 + $0x2dc] sm:$0xf] %v1179
      %1244 = vst [vmem:[#allocation3 + $0x300] sm:$0xf] %v1180
      %1245 = vst [vmem:[#allocation3 + $0x324] sm:$0xf] %v1181
      %1246 = vst [vmem:[#allocation3 + $0x348] sm:$0xf] %v1182
      %1247 = vst [vmem:[#allocation3 + $0x36c] sm:$0xf] %v1183
      %1248 = vst [vmem:[#allocation3 + $0x390] sm:$0xf] %v1184
      %1249 = vst [vmem:[#allocation3 + $0x3b4] sm:$0xf] %v1185
      %1250 = vst [vmem:[#allocation3 + $0x3d8] sm:$0xf] %v1186
      %1251 = vst [vmem:[#allocation3 + $0x3fc] sm:$0xf] %v1187
      %1252 = vst [vmem:[#allocation3 + $0x420] sm:$0xf] %v1188
      %1253 = vst [vmem:[#allocation3 + $0x444] sm:$0xf] %v1189
      %1254 = vst [vmem:[#allocation3 + $0x468] sm:$0xf] %v1190
      %v1255 = vld [vmem:[%s454 + $0x1] sm:$0xff]
      %v1256 = vld [vmem:[%s454 + $0x9] sm:$0xff]
      %v1257 = vld [vmem:[%s454 + $0x19] sm:$0xff]
      %v1258 = vld [vmem:[%s454 + $0x21] sm:$0xff]
      %v1259 = vld [vmem:[%s454 + $0x31] sm:$0xff]
      %v1260 = vld [vmem:[%s454 + $0x39] sm:$0xff]
      %v1261 = vld [vmem:[%s454 + $0x49] sm:$0xff]
      %v1262 = vld [vmem:[%s454 + $0x51] sm:$0xff]
      %v1263 = vld [vmem:[%s454 + $0x61] sm:$0xff]
      %v1264 = vld [vmem:[%s454 + $0x69] sm:$0xff]
      %v1265 = vld [vmem:[%s454 + $0x79] sm:$0xff]
      %v1266 = vld [vmem:[%s454 + $0x81] sm:$0xff]
      %v1267 = vld [vmem:[%s454 + $0x91] sm:$0xff]
      %v1268 = vld [vmem:[%s454 + $0x99] sm:$0xff]
      %v1269 = vld [vmem:[%s454 + $0xa9] sm:$0xff]
      %v1270 = vld [vmem:[%s454 + $0xb1] sm:$0xff]
      %v1271 = vld [vmem:[%s454 + $0xc1] sm:$0xff]
      %v1272 = vld [vmem:[%s454 + $0xc9] sm:$0xff]
      %v1273 = vld [vmem:[%s454 + $0xd9] sm:$0xff]
      %v1274 = vld [vmem:[%s454 + $0xe1] sm:$0xff]
      %v1275 = vld [vmem:[%s454 + $0xf1] sm:$0xff]
      %v1276 = vld [vmem:[%s454 + $0xf9] sm:$0xff]
      %v1277 = vld [vmem:[%s454 + $0x109] sm:$0xff]
      %v1278 = vld [vmem:[%s454 + $0x111] sm:$0xff]
      %v1279 = vld [vmem:[%s454 + $0x121] sm:$0xff]
      %v1280 = vld [vmem:[%s454 + $0x129] sm:$0xff]
      %v1281 = vld [vmem:[%s454 + $0x139] sm:$0xff]
      %v1282 = vld [vmem:[%s454 + $0x141] sm:$0xff]
      %v1283 = vld [vmem:[%s454 + $0x151] sm:$0xff]
      %v1284 = vld [vmem:[%s454 + $0x159] sm:$0xff]
      %v1285 = vld [vmem:[%s454 + $0x169] sm:$0xff]
      %v1286 = vld [vmem:[%s454 + $0x171] sm:$0xff]
      %v1287 = vpack.c.bf16 %v1256, %v1255
      %v1288 = vpack.c.bf16 %v1258, %v1257
      %v1289 = vpack.c.bf16 %v1260, %v1259
      %v1290 = vpack.c.bf16 %v1262, %v1261
      %v1291 = vpack.c.bf16 %v1264, %v1263
      %v1292 = vpack.c.bf16 %v1266, %v1265
      %v1293 = vpack.c.bf16 %v1268, %v1267
      %v1294 = vpack.c.bf16 %v1270, %v1269
      %v1295 = vpack.c.bf16 %v1272, %v1271
      %v1296 = vpack.c.bf16 %v1274, %v1273
      %v1297 = vpack.c.bf16 %v1276, %v1275
      %v1298 = vpack.c.bf16 %v1278, %v1277
      %v1299 = vpack.c.bf16 %v1280, %v1279
      %v1300 = vpack.c.bf16 %v1282, %v1281
      %v1301 = vpack.c.bf16 %v1284, %v1283
      %v1302 = vpack.c.bf16 %v1286, %v1285
      %v1319 = vunpack.c.l.b16 %v1287
      %v1320 = vunpack.c.h.b16 %v1287
      %v1321 = vunpack.c.l.b16 %v1288
      %v1322 = vunpack.c.h.b16 %v1288
      %v1323 = vunpack.c.l.b16 %v1289
      %v1324 = vunpack.c.h.b16 %v1289
      %v1325 = vunpack.c.l.b16 %v1290
      %v1326 = vunpack.c.h.b16 %v1290
      %v1327 = vunpack.c.l.b16 %v1291
      %v1328 = vunpack.c.h.b16 %v1291
      %v1329 = vunpack.c.l.b16 %v1292
      %v1330 = vunpack.c.h.b16 %v1292
      %v1331 = vunpack.c.l.b16 %v1293
      %v1332 = vunpack.c.h.b16 %v1293
      %v1333 = vunpack.c.l.b16 %v1294
      %v1334 = vunpack.c.h.b16 %v1294
      %v1335 = vunpack.c.l.b16 %v1295
      %v1336 = vunpack.c.h.b16 %v1295
      %v1337 = vunpack.c.l.b16 %v1296
      %v1338 = vunpack.c.h.b16 %v1296
      %v1339 = vunpack.c.l.b16 %v1297
      %v1340 = vunpack.c.h.b16 %v1297
      %v1341 = vunpack.c.l.b16 %v1298
      %v1342 = vunpack.c.h.b16 %v1298
      %v1343 = vunpack.c.l.b16 %v1299
      %v1344 = vunpack.c.h.b16 %v1299
      %v1345 = vunpack.c.l.b16 %v1300
      %v1346 = vunpack.c.h.b16 %v1300
      %v1347 = vunpack.c.l.b16 %v1301
      %v1348 = vunpack.c.h.b16 %v1301
      %v1349 = vunpack.c.l.b16 %v1302
      %v1350 = vunpack.c.h.b16 %v1302
      %v1351 = vpack.c.b16 %v1319, %v1319
      %v1352 = vpack.c.b16 %v1320, %v1320
      %v1353 = vpack.c.b16 %v1321, %v1321
      %v1354 = vpack.c.b16 %v1322, %v1322
      %v1355 = vpack.c.b16 %v1323, %v1323
      %v1356 = vpack.c.b16 %v1324, %v1324
      %v1357 = vpack.c.b16 %v1325, %v1325
      %v1358 = vpack.c.b16 %v1326, %v1326
      %v1359 = vpack.c.b16 %v1327, %v1327
      %v1360 = vpack.c.b16 %v1328, %v1328
      %v1361 = vpack.c.b16 %v1329, %v1329
      %v1362 = vpack.c.b16 %v1330, %v1330
      %v1363 = vpack.c.b16 %v1331, %v1331
      %v1364 = vpack.c.b16 %v1332, %v1332
      %v1365 = vpack.c.b16 %v1333, %v1333
      %v1366 = vpack.c.b16 %v1334, %v1334
      %v1367 = vpack.c.b16 %v1335, %v1335
      %v1368 = vpack.c.b16 %v1336, %v1336
      %v1369 = vpack.c.b16 %v1337, %v1337
      %v1370 = vpack.c.b16 %v1338, %v1338
      %v1371 = vpack.c.b16 %v1339, %v1339
      %v1372 = vpack.c.b16 %v1340, %v1340
      %v1373 = vpack.c.b16 %v1341, %v1341
      %v1374 = vpack.c.b16 %v1342, %v1342
      %v1375 = vpack.c.b16 %v1343, %v1343
      %v1376 = vpack.c.b16 %v1344, %v1344
      %v1377 = vpack.c.b16 %v1345, %v1345
      %v1378 = vpack.c.b16 %v1346, %v1346
      %v1379 = vpack.c.b16 %v1347, %v1347
      %v1380 = vpack.c.b16 %v1348, %v1348
      %v1381 = vpack.c.b16 %v1349, %v1349
      %v1382 = vpack.c.b16 %v1350, %v1350
      %1415 = vst [vmem:[#allocation3 + $0x10] sm:$0xf] %v1351
      %1416 = vst [vmem:[#allocation3 + $0x34] sm:$0xf] %v1352
      %1417 = vst [vmem:[#allocation3 + $0x58] sm:$0xf] %v1353
      %1418 = vst [vmem:[#allocation3 + $0x7c] sm:$0xf] %v1354
      %1419 = vst [vmem:[#allocation3 + $0xa0] sm:$0xf] %v1355
      %1420 = vst [vmem:[#allocation3 + $0xc4] sm:$0xf] %v1356
      %1421 = vst [vmem:[#allocation3 + $0xe8] sm:$0xf] %v1357
      %1422 = vst [vmem:[#allocation3 + $0x10c] sm:$0xf] %v1358
      %1423 = vst [vmem:[#allocation3 + $0x130] sm:$0xf] %v1359
      %1424 = vst [vmem:[#allocation3 + $0x154] sm:$0xf] %v1360
      %1425 = vst [vmem:[#allocation3 + $0x178] sm:$0xf] %v1361
      %1426 = vst [vmem:[#allocation3 + $0x19c] sm:$0xf] %v1362
      %1427 = vst [vmem:[#allocation3 + $0x1c0] sm:$0xf] %v1363
      %1428 = vst [vmem:[#allocation3 + $0x1e4] sm:$0xf] %v1364
      %1429 = vst [vmem:[#allocation3 + $0x208] sm:$0xf] %v1365
      %1430 = vst [vmem:[#allocation3 + $0x22c] sm:$0xf] %v1366
      %1431 = vst [vmem:[#allocation3 + $0x250] sm:$0xf] %v1367
      %1432 = vst [vmem:[#allocation3 + $0x274] sm:$0xf] %v1368
      %1433 = vst [vmem:[#allocation3 + $0x298] sm:$0xf] %v1369
      %1434 = vst [vmem:[#allocation3 + $0x2bc] sm:$0xf] %v1370
      %1435 = vst [vmem:[#allocation3 + $0x2e0] sm:$0xf] %v1371
      %1436 = vst [vmem:[#allocation3 + $0x304] sm:$0xf] %v1372
      %1437 = vst [vmem:[#allocation3 + $0x328] sm:$0xf] %v1373
      %1438 = vst [vmem:[#allocation3 + $0x34c] sm:$0xf] %v1374
      %1439 = vst [vmem:[#allocation3 + $0x370] sm:$0xf] %v1375
      %1440 = vst [vmem:[#allocation3 + $0x394] sm:$0xf] %v1376
      %1441 = vst [vmem:[#allocation3 + $0x3b8] sm:$0xf] %v1377
      %1442 = vst [vmem:[#allocation3 + $0x3dc] sm:$0xf] %v1378
      %1443 = vst [vmem:[#allocation3 + $0x400] sm:$0xf] %v1379
      %1444 = vst [vmem:[#allocation3 + $0x424] sm:$0xf] %v1380
      %1445 = vst [vmem:[#allocation3 + $0x448] sm:$0xf] %v1381
      %1446 = vst [vmem:[#allocation3 + $0x46c] sm:$0xf] %v1382
      %v1447 = vld [vmem:[%s454 + $0x2] sm:$0xff]
      %v1448 = vld [vmem:[%s454 + $0xa] sm:$0xff]
      %v1449 = vld [vmem:[%s454 + $0x1a] sm:$0xff]
      %v1450 = vld [vmem:[%s454 + $0x22] sm:$0xff]
      %v1451 = vld [vmem:[%s454 + $0x32] sm:$0xff]
      %v1452 = vld [vmem:[%s454 + $0x3a] sm:$0xff]
      %v1453 = vld [vmem:[%s454 + $0x4a] sm:$0xff]
      %v1454 = vld [vmem:[%s454 + $0x52] sm:$0xff]
      %v1455 = vld [vmem:[%s454 + $0x62] sm:$0xff]
      %v1456 = vld [vmem:[%s454 + $0x6a] sm:$0xff]
      %v1457 = vld [vmem:[%s454 + $0x7a] sm:$0xff]
      %v1458 = vld [vmem:[%s454 + $0x82] sm:$0xff]
      %v1459 = vld [vmem:[%s454 + $0x92] sm:$0xff]
      %v1460 = vld [vmem:[%s454 + $0x9a] sm:$0xff]
      %v1461 = vld [vmem:[%s454 + $0xaa] sm:$0xff]
      %v1462 = vld [vmem:[%s454 + $0xb2] sm:$0xff]
      %v1463 = vld [vmem:[%s454 + $0xc2] sm:$0xff]
      %v1464 = vld [vmem:[%s454 + $0xca] sm:$0xff]
      %v1465 = vld [vmem:[%s454 + $0xda] sm:$0xff]
      %v1466 = vld [vmem:[%s454 + $0xe2] sm:$0xff]
      %v1467 = vld [vmem:[%s454 + $0xf2] sm:$0xff]
      %v1468 = vld [vmem:[%s454 + $0xfa] sm:$0xff]
      %v1469 = vld [vmem:[%s454 + $0x10a] sm:$0xff]
      %v1470 = vld [vmem:[%s454 + $0x112] sm:$0xff]
      %v1471 = vld [vmem:[%s454 + $0x122] sm:$0xff]
      %v1472 = vld [vmem:[%s454 + $0x12a] sm:$0xff]
      %v1473 = vld [vmem:[%s454 + $0x13a] sm:$0xff]
      %v1474 = vld [vmem:[%s454 + $0x142] sm:$0xff]
      %v1475 = vld [vmem:[%s454 + $0x152] sm:$0xff]
      %v1476 = vld [vmem:[%s454 + $0x15a] sm:$0xff]
      %v1477 = vld [vmem:[%s454 + $0x16a] sm:$0xff]
      %v1478 = vld [vmem:[%s454 + $0x172] sm:$0xff]
      %v1479 = vpack.c.bf16 %v1448, %v1447
      %v1480 = vpack.c.bf16 %v1450, %v1449
      %v1481 = vpack.c.bf16 %v1452, %v1451
      %v1482 = vpack.c.bf16 %v1454, %v1453
      %v1483 = vpack.c.bf16 %v1456, %v1455
      %v1484 = vpack.c.bf16 %v1458, %v1457
      %v1485 = vpack.c.bf16 %v1460, %v1459
      %v1486 = vpack.c.bf16 %v1462, %v1461
      %v1487 = vpack.c.bf16 %v1464, %v1463
      %v1488 = vpack.c.bf16 %v1466, %v1465
      %v1489 = vpack.c.bf16 %v1468, %v1467
      %v1490 = vpack.c.bf16 %v1470, %v1469
      %v1491 = vpack.c.bf16 %v1472, %v1471
      %v1492 = vpack.c.bf16 %v1474, %v1473
      %v1493 = vpack.c.bf16 %v1476, %v1475
      %v1494 = vpack.c.bf16 %v1478, %v1477
      %v1511 = vunpack.c.l.b16 %v1479
      %v1512 = vunpack.c.h.b16 %v1479
      %v1513 = vunpack.c.l.b16 %v1480
      %v1514 = vunpack.c.h.b16 %v1480
      %v1515 = vunpack.c.l.b16 %v1481
      %v1516 = vunpack.c.h.b16 %v1481
      %v1517 = vunpack.c.l.b16 %v1482
      %v1518 = vunpack.c.h.b16 %v1482
      %v1519 = vunpack.c.l.b16 %v1483
      %v1520 = vunpack.c.h.b16 %v1483
      %v1521 = vunpack.c.l.b16 %v1484
      %v1522 = vunpack.c.h.b16 %v1484
      %v1523 = vunpack.c.l.b16 %v1485
      %v1524 = vunpack.c.h.b16 %v1485
      %v1525 = vunpack.c.l.b16 %v1486
      %v1526 = vunpack.c.h.b16 %v1486
      %v1527 = vunpack.c.l.b16 %v1487
      %v1528 = vunpack.c.h.b16 %v1487
      %v1529 = vunpack.c.l.b16 %v1488
      %v1530 = vunpack.c.h.b16 %v1488
      %v1531 = vunpack.c.l.b16 %v1489
      %v1532 = vunpack.c.h.b16 %v1489
      %v1533 = vunpack.c.l.b16 %v1490
      %v1534 = vunpack.c.h.b16 %v1490
      %v1535 = vunpack.c.l.b16 %v1491
      %v1536 = vunpack.c.h.b16 %v1491
      %v1537 = vunpack.c.l.b16 %v1492
      %v1538 = vunpack.c.h.b16 %v1492
      %v1539 = vunpack.c.l.b16 %v1493
      %v1540 = vunpack.c.h.b16 %v1493
      %v1541 = vunpack.c.l.b16 %v1494
      %v1542 = vunpack.c.h.b16 %v1494
      %v1543 = vpack.c.b16 %v1511, %v1511
      %v1544 = vpack.c.b16 %v1512, %v1512
      %v1545 = vpack.c.b16 %v1513, %v1513
      %v1546 = vpack.c.b16 %v1514, %v1514
      %v1547 = vpack.c.b16 %v1515, %v1515
      %v1548 = vpack.c.b16 %v1516, %v1516
      %v1549 = vpack.c.b16 %v1517, %v1517
      %v1550 = vpack.c.b16 %v1518, %v1518
      %v1551 = vpack.c.b16 %v1519, %v1519
      %v1552 = vpack.c.b16 %v1520, %v1520
      %v1553 = vpack.c.b16 %v1521, %v1521
      %v1554 = vpack.c.b16 %v1522, %v1522
      %v1555 = vpack.c.b16 %v1523, %v1523
      %v1556 = vpack.c.b16 %v1524, %v1524
      %v1557 = vpack.c.b16 %v1525, %v1525
      %v1558 = vpack.c.b16 %v1526, %v1526
      %v1559 = vpack.c.b16 %v1527, %v1527
      %v1560 = vpack.c.b16 %v1528, %v1528
      %v1561 = vpack.c.b16 %v1529, %v1529
      %v1562 = vpack.c.b16 %v1530, %v1530
      %v1563 = vpack.c.b16 %v1531, %v1531
      %v1564 = vpack.c.b16 %v1532, %v1532
      %v1565 = vpack.c.b16 %v1533, %v1533
      %v1566 = vpack.c.b16 %v1534, %v1534
      %v1567 = vpack.c.b16 %v1535, %v1535
      %v1568 = vpack.c.b16 %v1536, %v1536
      %v1569 = vpack.c.b16 %v1537, %v1537
      %v1570 = vpack.c.b16 %v1538, %v1538
      %v1571 = vpack.c.b16 %v1539, %v1539
      %v1572 = vpack.c.b16 %v1540, %v1540
      %v1573 = vpack.c.b16 %v1541, %v1541
      %v1574 = vpack.c.b16 %v1542, %v1542
      %1607 = vst [vmem:[#allocation3 + $0x14] sm:$0xf] %v1543
      %1608 = vst [vmem:[#allocation3 + $0x38] sm:$0xf] %v1544
      %1609 = vst [vmem:[#allocation3 + $0x5c] sm:$0xf] %v1545
      %1610 = vst [vmem:[#allocation3 + $0x80] sm:$0xf] %v1546
      %1611 = vst [vmem:[#allocation3 + $0xa4] sm:$0xf] %v1547
      %1612 = vst [vmem:[#allocation3 + $0xc8] sm:$0xf] %v1548
      %1613 = vst [vmem:[#allocation3 + $0xec] sm:$0xf] %v1549
      %1614 = vst [vmem:[#allocation3 + $0x110] sm:$0xf] %v1550
      %1615 = vst [vmem:[#allocation3 + $0x134] sm:$0xf] %v1551
      %1616 = vst [vmem:[#allocation3 + $0x158] sm:$0xf] %v1552
      %1617 = vst [vmem:[#allocation3 + $0x17c] sm:$0xf] %v1553
      %1618 = vst [vmem:[#allocation3 + $0x1a0] sm:$0xf] %v1554
      %1619 = vst [vmem:[#allocation3 + $0x1c4] sm:$0xf] %v1555
      %1620 = vst [vmem:[#allocation3 + $0x1e8] sm:$0xf] %v1556
      %1621 = vst [vmem:[#allocation3 + $0x20c] sm:$0xf] %v1557
      %1622 = vst [vmem:[#allocation3 + $0x230] sm:$0xf] %v1558
      %1623 = vst [vmem:[#allocation3 + $0x254] sm:$0xf] %v1559
      %1624 = vst [vmem:[#allocation3 + $0x278] sm:$0xf] %v1560
      %1625 = vst [vmem:[#allocation3 + $0x29c] sm:$0xf] %v1561
      %1626 = vst [vmem:[#allocation3 + $0x2c0] sm:$0xf] %v1562
      %1627 = vst [vmem:[#allocation3 + $0x2e4] sm:$0xf] %v1563
      %1628 = vst [vmem:[#allocation3 + $0x308] sm:$0xf] %v1564
      %1629 = vst [vmem:[#allocation3 + $0x32c] sm:$0xf] %v1565
      %1630 = vst [vmem:[#allocation3 + $0x350] sm:$0xf] %v1566
      %1631 = vst [vmem:[#allocation3 + $0x374] sm:$0xf] %v1567
      %1632 = vst [vmem:[#allocation3 + $0x398] sm:$0xf] %v1568
      %1633 = vst [vmem:[#allocation3 + $0x3bc] sm:$0xf] %v1569
      %1634 = vst [vmem:[#allocation3 + $0x3e0] sm:$0xf] %v1570
      %1635 = vst [vmem:[#allocation3 + $0x404] sm:$0xf] %v1571
      %1636 = vst [vmem:[#allocation3 + $0x428] sm:$0xf] %v1572
      %1637 = vst [vmem:[#allocation3 + $0x44c] sm:$0xf] %v1573
      %1638 = vst [vmem:[#allocation3 + $0x470] sm:$0xf] %v1574
      %s1639 = scalar_lea.vmem [#allocation2], 48
      %v1640 = vld [vmem:[%s1639] sm:$0xff]
      %v1641 = vld [vmem:[%s1639 + $0x8] sm:$0xff]
      %v1642 = vld [vmem:[%s1639 + $0x18] sm:$0xff]
      %v1643 = vld [vmem:[%s1639 + $0x20] sm:$0xff]
      %v1644 = vld [vmem:[%s1639 + $0x30] sm:$0xff]
      %v1645 = vld [vmem:[%s1639 + $0x38] sm:$0xff]
      %v1646 = vld [vmem:[%s1639 + $0x48] sm:$0xff]
      %v1647 = vld [vmem:[%s1639 + $0x50] sm:$0xff]
      %v1648 = vld [vmem:[%s1639 + $0x60] sm:$0xff]
      %v1649 = vld [vmem:[%s1639 + $0x68] sm:$0xff]
      %v1650 = vld [vmem:[%s1639 + $0x78] sm:$0xff]
      %v1651 = vld [vmem:[%s1639 + $0x80] sm:$0xff]
      %v1652 = vld [vmem:[%s1639 + $0x90] sm:$0xff]
      %v1653 = vld [vmem:[%s1639 + $0x98] sm:$0xff]
      %v1654 = vld [vmem:[%s1639 + $0xa8] sm:$0xff]
      %v1655 = vld [vmem:[%s1639 + $0xb0] sm:$0xff]
      %v1656 = vld [vmem:[%s1639 + $0xc0] sm:$0xff]
      %v1657 = vld [vmem:[%s1639 + $0xc8] sm:$0xff]
      %v1658 = vld [vmem:[%s1639 + $0xd8] sm:$0xff]
      %v1659 = vld [vmem:[%s1639 + $0xe0] sm:$0xff]
      %v1660 = vld [vmem:[%s1639 + $0xf0] sm:$0xff]
      %v1661 = vld [vmem:[%s1639 + $0xf8] sm:$0xff]
      %v1662 = vld [vmem:[%s1639 + $0x108] sm:$0xff]
      %v1663 = vld [vmem:[%s1639 + $0x110] sm:$0xff]
      %v1664 = vld [vmem:[%s1639 + $0x120] sm:$0xff]
      %v1665 = vld [vmem:[%s1639 + $0x128] sm:$0xff]
      %v1666 = vld [vmem:[%s1639 + $0x138] sm:$0xff]
      %v1667 = vld [vmem:[%s1639 + $0x140] sm:$0xff]
      %v1668 = vld [vmem:[%s1639 + $0x150] sm:$0xff]
      %v1669 = vld [vmem:[%s1639 + $0x158] sm:$0xff]
      %v1670 = vld [vmem:[%s1639 + $0x168] sm:$0xff]
      %v1671 = vld [vmem:[%s1639 + $0x170] sm:$0xff]
      %v1672 = vpack.c.bf16 %v1641, %v1640
      %v1673 = vpack.c.bf16 %v1643, %v1642
      %v1674 = vpack.c.bf16 %v1645, %v1644
      %v1675 = vpack.c.bf16 %v1647, %v1646
      %v1676 = vpack.c.bf16 %v1649, %v1648
      %v1677 = vpack.c.bf16 %v1651, %v1650
      %v1678 = vpack.c.bf16 %v1653, %v1652
      %v1679 = vpack.c.bf16 %v1655, %v1654
      %v1680 = vpack.c.bf16 %v1657, %v1656
      %v1681 = vpack.c.bf16 %v1659, %v1658
      %v1682 = vpack.c.bf16 %v1661, %v1660
      %v1683 = vpack.c.bf16 %v1663, %v1662
      %v1684 = vpack.c.bf16 %v1665, %v1664
      %v1685 = vpack.c.bf16 %v1667, %v1666
      %v1686 = vpack.c.bf16 %v1669, %v1668
      %v1687 = vpack.c.bf16 %v1671, %v1670
      %v1704 = vunpack.c.l.b16 %v1672
      %v1705 = vunpack.c.h.b16 %v1672
      %v1706 = vunpack.c.l.b16 %v1673
      %v1707 = vunpack.c.h.b16 %v1673
      %v1708 = vunpack.c.l.b16 %v1674
      %v1709 = vunpack.c.h.b16 %v1674
      %v1710 = vunpack.c.l.b16 %v1675
      %v1711 = vunpack.c.h.b16 %v1675
      %v1712 = vunpack.c.l.b16 %v1676
      %v1713 = vunpack.c.h.b16 %v1676
      %v1714 = vunpack.c.l.b16 %v1677
      %v1715 = vunpack.c.h.b16 %v1677
      %v1716 = vunpack.c.l.b16 %v1678
      %v1717 = vunpack.c.h.b16 %v1678
      %v1718 = vunpack.c.l.b16 %v1679
      %v1719 = vunpack.c.h.b16 %v1679
      %v1720 = vunpack.c.l.b16 %v1680
      %v1721 = vunpack.c.h.b16 %v1680
      %v1722 = vunpack.c.l.b16 %v1681
      %v1723 = vunpack.c.h.b16 %v1681
      %v1724 = vunpack.c.l.b16 %v1682
      %v1725 = vunpack.c.h.b16 %v1682
      %v1726 = vunpack.c.l.b16 %v1683
      %v1727 = vunpack.c.h.b16 %v1683
      %v1728 = vunpack.c.l.b16 %v1684
      %v1729 = vunpack.c.h.b16 %v1684
      %v1730 = vunpack.c.l.b16 %v1685
      %v1731 = vunpack.c.h.b16 %v1685
      %v1732 = vunpack.c.l.b16 %v1686
      %v1733 = vunpack.c.h.b16 %v1686
      %v1734 = vunpack.c.l.b16 %v1687
      %v1735 = vunpack.c.h.b16 %v1687
      %v1736 = vpack.c.b16 %v1704, %v1704
      %v1737 = vpack.c.b16 %v1705, %v1705
      %v1738 = vpack.c.b16 %v1706, %v1706
      %v1739 = vpack.c.b16 %v1707, %v1707
      %v1740 = vpack.c.b16 %v1708, %v1708
      %v1741 = vpack.c.b16 %v1709, %v1709
      %v1742 = vpack.c.b16 %v1710, %v1710
      %v1743 = vpack.c.b16 %v1711, %v1711
      %v1744 = vpack.c.b16 %v1712, %v1712
      %v1745 = vpack.c.b16 %v1713, %v1713
      %v1746 = vpack.c.b16 %v1714, %v1714
      %v1747 = vpack.c.b16 %v1715, %v1715
      %v1748 = vpack.c.b16 %v1716, %v1716
      %v1749 = vpack.c.b16 %v1717, %v1717
      %v1750 = vpack.c.b16 %v1718, %v1718
      %v1751 = vpack.c.b16 %v1719, %v1719
      %v1752 = vpack.c.b16 %v1720, %v1720
      %v1753 = vpack.c.b16 %v1721, %v1721
      %v1754 = vpack.c.b16 %v1722, %v1722
      %v1755 = vpack.c.b16 %v1723, %v1723
      %v1756 = vpack.c.b16 %v1724, %v1724
      %v1757 = vpack.c.b16 %v1725, %v1725
      %v1758 = vpack.c.b16 %v1726, %v1726
      %v1759 = vpack.c.b16 %v1727, %v1727
      %v1760 = vpack.c.b16 %v1728, %v1728
      %v1761 = vpack.c.b16 %v1729, %v1729
      %v1762 = vpack.c.b16 %v1730, %v1730
      %v1763 = vpack.c.b16 %v1731, %v1731
      %v1764 = vpack.c.b16 %v1732, %v1732
      %v1765 = vpack.c.b16 %v1733, %v1733
      %v1766 = vpack.c.b16 %v1734, %v1734
      %v1767 = vpack.c.b16 %v1735, %v1735
      %1800 = vst [vmem:[#allocation3 + $0x18] sm:$0xf] %v1736
      %1801 = vst [vmem:[#allocation3 + $0x3c] sm:$0xf] %v1737
      %1802 = vst [vmem:[#allocation3 + $0x60] sm:$0xf] %v1738
      %1803 = vst [vmem:[#allocation3 + $0x84] sm:$0xf] %v1739
      %1804 = vst [vmem:[#allocation3 + $0xa8] sm:$0xf] %v1740
      %1805 = vst [vmem:[#allocation3 + $0xcc] sm:$0xf] %v1741
      %1806 = vst [vmem:[#allocation3 + $0xf0] sm:$0xf] %v1742
      %1807 = vst [vmem:[#allocation3 + $0x114] sm:$0xf] %v1743
      %1808 = vst [vmem:[#allocation3 + $0x138] sm:$0xf] %v1744
      %1809 = vst [vmem:[#allocation3 + $0x15c] sm:$0xf] %v1745
      %1810 = vst [vmem:[#allocation3 + $0x180] sm:$0xf] %v1746
      %1811 = vst [vmem:[#allocation3 + $0x1a4] sm:$0xf] %v1747
      %1812 = vst [vmem:[#allocation3 + $0x1c8] sm:$0xf] %v1748
      %1813 = vst [vmem:[#allocation3 + $0x1ec] sm:$0xf] %v1749
      %1814 = vst [vmem:[#allocation3 + $0x210] sm:$0xf] %v1750
      %1815 = vst [vmem:[#allocation3 + $0x234] sm:$0xf] %v1751
      %1816 = vst [vmem:[#allocation3 + $0x258] sm:$0xf] %v1752
      %1817 = vst [vmem:[#allocation3 + $0x27c] sm:$0xf] %v1753
      %1818 = vst [vmem:[#allocation3 + $0x2a0] sm:$0xf] %v1754
      %1819 = vst [vmem:[#allocation3 + $0x2c4] sm:$0xf] %v1755
      %1820 = vst [vmem:[#allocation3 + $0x2e8] sm:$0xf] %v1756
      %1821 = vst [vmem:[#allocation3 + $0x30c] sm:$0xf] %v1757
      %1822 = vst [vmem:[#allocation3 + $0x330] sm:$0xf] %v1758
      %1823 = vst [vmem:[#allocation3 + $0x354] sm:$0xf] %v1759
      %1824 = vst [vmem:[#allocation3 + $0x378] sm:$0xf] %v1760
      %1825 = vst [vmem:[#allocation3 + $0x39c] sm:$0xf] %v1761
      %1826 = vst [vmem:[#allocation3 + $0x3c0] sm:$0xf] %v1762
      %1827 = vst [vmem:[#allocation3 + $0x3e4] sm:$0xf] %v1763
      %1828 = vst [vmem:[#allocation3 + $0x408] sm:$0xf] %v1764
      %1829 = vst [vmem:[#allocation3 + $0x42c] sm:$0xf] %v1765
      %1830 = vst [vmem:[#allocation3 + $0x450] sm:$0xf] %v1766
      %1831 = vst [vmem:[#allocation3 + $0x474] sm:$0xf] %v1767
      %v1832 = vld [vmem:[%s1639 + $0x1] sm:$0xff]
      %v1833 = vld [vmem:[%s1639 + $0x9] sm:$0xff]
      %v1834 = vld [vmem:[%s1639 + $0x19] sm:$0xff]
      %v1835 = vld [vmem:[%s1639 + $0x21] sm:$0xff]
      %v1836 = vld [vmem:[%s1639 + $0x31] sm:$0xff]
      %v1837 = vld [vmem:[%s1639 + $0x39] sm:$0xff]
      %v1838 = vld [vmem:[%s1639 + $0x49] sm:$0xff]
      %v1839 = vld [vmem:[%s1639 + $0x51] sm:$0xff]
      %v1840 = vld [vmem:[%s1639 + $0x61] sm:$0xff]
      %v1841 = vld [vmem:[%s1639 + $0x69] sm:$0xff]
      %v1842 = vld [vmem:[%s1639 + $0x79] sm:$0xff]
      %v1843 = vld [vmem:[%s1639 + $0x81] sm:$0xff]
      %v1844 = vld [vmem:[%s1639 + $0x91] sm:$0xff]
      %v1845 = vld [vmem:[%s1639 + $0x99] sm:$0xff]
      %v1846 = vld [vmem:[%s1639 + $0xa9] sm:$0xff]
      %v1847 = vld [vmem:[%s1639 + $0xb1] sm:$0xff]
      %v1848 = vld [vmem:[%s1639 + $0xc1] sm:$0xff]
      %v1849 = vld [vmem:[%s1639 + $0xc9] sm:$0xff]
      %v1850 = vld [vmem:[%s1639 + $0xd9] sm:$0xff]
      %v1851 = vld [vmem:[%s1639 + $0xe1] sm:$0xff]
      %v1852 = vld [vmem:[%s1639 + $0xf1] sm:$0xff]
      %v1853 = vld [vmem:[%s1639 + $0xf9] sm:$0xff]
      %v1854 = vld [vmem:[%s1639 + $0x109] sm:$0xff]
      %v1855 = vld [vmem:[%s1639 + $0x111] sm:$0xff]
      %v1856 = vld [vmem:[%s1639 + $0x121] sm:$0xff]
      %v1857 = vld [vmem:[%s1639 + $0x129] sm:$0xff]
      %v1858 = vld [vmem:[%s1639 + $0x139] sm:$0xff]
      %v1859 = vld [vmem:[%s1639 + $0x141] sm:$0xff]
      %v1860 = vld [vmem:[%s1639 + $0x151] sm:$0xff]
      %v1861 = vld [vmem:[%s1639 + $0x159] sm:$0xff]
      %v1862 = vld [vmem:[%s1639 + $0x169] sm:$0xff]
      %v1863 = vld [vmem:[%s1639 + $0x171] sm:$0xff]
      %v1864 = vpack.c.bf16 %v1833, %v1832
      %v1865 = vpack.c.bf16 %v1835, %v1834
      %v1866 = vpack.c.bf16 %v1837, %v1836
      %v1867 = vpack.c.bf16 %v1839, %v1838
      %v1868 = vpack.c.bf16 %v1841, %v1840
      %v1869 = vpack.c.bf16 %v1843, %v1842
      %v1870 = vpack.c.bf16 %v1845, %v1844
      %v1871 = vpack.c.bf16 %v1847, %v1846
      %v1872 = vpack.c.bf16 %v1849, %v1848
      %v1873 = vpack.c.bf16 %v1851, %v1850
      %v1874 = vpack.c.bf16 %v1853, %v1852
      %v1875 = vpack.c.bf16 %v1855, %v1854
      %v1876 = vpack.c.bf16 %v1857, %v1856
      %v1877 = vpack.c.bf16 %v1859, %v1858
      %v1878 = vpack.c.bf16 %v1861, %v1860
      %v1879 = vpack.c.bf16 %v1863, %v1862
      %v1896 = vunpack.c.l.b16 %v1864
      %v1897 = vunpack.c.h.b16 %v1864
      %v1898 = vunpack.c.l.b16 %v1865
      %v1899 = vunpack.c.h.b16 %v1865
      %v1900 = vunpack.c.l.b16 %v1866
      %v1901 = vunpack.c.h.b16 %v1866
      %v1902 = vunpack.c.l.b16 %v1867
      %v1903 = vunpack.c.h.b16 %v1867
      %v1904 = vunpack.c.l.b16 %v1868
      %v1905 = vunpack.c.h.b16 %v1868
      %v1906 = vunpack.c.l.b16 %v1869
      %v1907 = vunpack.c.h.b16 %v1869
      %v1908 = vunpack.c.l.b16 %v1870
      %v1909 = vunpack.c.h.b16 %v1870
      %v1910 = vunpack.c.l.b16 %v1871
      %v1911 = vunpack.c.h.b16 %v1871
      %v1912 = vunpack.c.l.b16 %v1872
      %v1913 = vunpack.c.h.b16 %v1872
      %v1914 = vunpack.c.l.b16 %v1873
      %v1915 = vunpack.c.h.b16 %v1873
      %v1916 = vunpack.c.l.b16 %v1874
      %v1917 = vunpack.c.h.b16 %v1874
      %v1918 = vunpack.c.l.b16 %v1875
      %v1919 = vunpack.c.h.b16 %v1875
      %v1920 = vunpack.c.l.b16 %v1876
      %v1921 = vunpack.c.h.b16 %v1876
      %v1922 = vunpack.c.l.b16 %v1877
      %v1923 = vunpack.c.h.b16 %v1877
      %v1924 = vunpack.c.l.b16 %v1878
      %v1925 = vunpack.c.h.b16 %v1878
      %v1926 = vunpack.c.l.b16 %v1879
      %v1927 = vunpack.c.h.b16 %v1879
      %v1928 = vpack.c.b16 %v1896, %v1896
      %v1929 = vpack.c.b16 %v1897, %v1897
      %v1930 = vpack.c.b16 %v1898, %v1898
      %v1931 = vpack.c.b16 %v1899, %v1899
      %v1932 = vpack.c.b16 %v1900, %v1900
      %v1933 = vpack.c.b16 %v1901, %v1901
      %v1934 = vpack.c.b16 %v1902, %v1902
      %v1935 = vpack.c.b16 %v1903, %v1903
      %v1936 = vpack.c.b16 %v1904, %v1904
      %v1937 = vpack.c.b16 %v1905, %v1905
      %v1938 = vpack.c.b16 %v1906, %v1906
      %v1939 = vpack.c.b16 %v1907, %v1907
      %v1940 = vpack.c.b16 %v1908, %v1908
      %v1941 = vpack.c.b16 %v1909, %v1909
      %v1942 = vpack.c.b16 %v1910, %v1910
      %v1943 = vpack.c.b16 %v1911, %v1911
      %v1944 = vpack.c.b16 %v1912, %v1912
      %v1945 = vpack.c.b16 %v1913, %v1913
      %v1946 = vpack.c.b16 %v1914, %v1914
      %v1947 = vpack.c.b16 %v1915, %v1915
      %v1948 = vpack.c.b16 %v1916, %v1916
      %v1949 = vpack.c.b16 %v1917, %v1917
      %v1950 = vpack.c.b16 %v1918, %v1918
      %v1951 = vpack.c.b16 %v1919, %v1919
      %v1952 = vpack.c.b16 %v1920, %v1920
      %v1953 = vpack.c.b16 %v1921, %v1921
      %v1954 = vpack.c.b16 %v1922, %v1922
      %v1955 = vpack.c.b16 %v1923, %v1923
      %v1956 = vpack.c.b16 %v1924, %v1924
      %v1957 = vpack.c.b16 %v1925, %v1925
      %v1958 = vpack.c.b16 %v1926, %v1926
      %v1959 = vpack.c.b16 %v1927, %v1927
      %1992 = vst [vmem:[#allocation3 + $0x1c] sm:$0xf] %v1928
      %1993 = vst [vmem:[#allocation3 + $0x40] sm:$0xf] %v1929
      %1994 = vst [vmem:[#allocation3 + $0x64] sm:$0xf] %v1930
      %1995 = vst [vmem:[#allocation3 + $0x88] sm:$0xf] %v1931
      %1996 = vst [vmem:[#allocation3 + $0xac] sm:$0xf] %v1932
      %1997 = vst [vmem:[#allocation3 + $0xd0] sm:$0xf] %v1933
      %1998 = vst [vmem:[#allocation3 + $0xf4] sm:$0xf] %v1934
      %1999 = vst [vmem:[#allocation3 + $0x118] sm:$0xf] %v1935
      %2000 = vst [vmem:[#allocation3 + $0x13c] sm:$0xf] %v1936
      %2001 = vst [vmem:[#allocation3 + $0x160] sm:$0xf] %v1937
      %2002 = vst [vmem:[#allocation3 + $0x184] sm:$0xf] %v1938
      %2003 = vst [vmem:[#allocation3 + $0x1a8] sm:$0xf] %v1939
      %2004 = vst [vmem:[#allocation3 + $0x1cc] sm:$0xf] %v1940
      %2005 = vst [vmem:[#allocation3 + $0x1f0] sm:$0xf] %v1941
      %2006 = vst [vmem:[#allocation3 + $0x214] sm:$0xf] %v1942
      %2007 = vst [vmem:[#allocation3 + $0x238] sm:$0xf] %v1943
      %2008 = vst [vmem:[#allocation3 + $0x25c] sm:$0xf] %v1944
      %2009 = vst [vmem:[#allocation3 + $0x280] sm:$0xf] %v1945
      %2010 = vst [vmem:[#allocation3 + $0x2a4] sm:$0xf] %v1946
      %2011 = vst [vmem:[#allocation3 + $0x2c8] sm:$0xf] %v1947
      %2012 = vst [vmem:[#allocation3 + $0x2ec] sm:$0xf] %v1948
      %2013 = vst [vmem:[#allocation3 + $0x310] sm:$0xf] %v1949
      %2014 = vst [vmem:[#allocation3 + $0x334] sm:$0xf] %v1950
      %2015 = vst [vmem:[#allocation3 + $0x358] sm:$0xf] %v1951
      %2016 = vst [vmem:[#allocation3 + $0x37c] sm:$0xf] %v1952
      %2017 = vst [vmem:[#allocation3 + $0x3a0] sm:$0xf] %v1953
      %2018 = vst [vmem:[#allocation3 + $0x3c4] sm:$0xf] %v1954
      %2019 = vst [vmem:[#allocation3 + $0x3e8] sm:$0xf] %v1955
      %2020 = vst [vmem:[#allocation3 + $0x40c] sm:$0xf] %v1956
      %2021 = vst [vmem:[#allocation3 + $0x430] sm:$0xf] %v1957
      %2022 = vst [vmem:[#allocation3 + $0x454] sm:$0xf] %v1958
      %2023 = vst [vmem:[#allocation3 + $0x478] sm:$0xf] %v1959
      %v2024 = vld [vmem:[%s1639 + $0x2] sm:$0xff]
      %v2025 = vld [vmem:[%s1639 + $0xa] sm:$0xff]
      %v2026 = vld [vmem:[%s1639 + $0x1a] sm:$0xff]
      %v2027 = vld [vmem:[%s1639 + $0x22] sm:$0xff]
      %v2028 = vld [vmem:[%s1639 + $0x32] sm:$0xff]
      %v2029 = vld [vmem:[%s1639 + $0x3a] sm:$0xff]
      %v2030 = vld [vmem:[%s1639 + $0x4a] sm:$0xff]
      %v2031 = vld [vmem:[%s1639 + $0x52] sm:$0xff]
      %v2032 = vld [vmem:[%s1639 + $0x62] sm:$0xff]
      %v2033 = vld [vmem:[%s1639 + $0x6a] sm:$0xff]
      %v2034 = vld [vmem:[%s1639 + $0x7a] sm:$0xff]
      %v2035 = vld [vmem:[%s1639 + $0x82] sm:$0xff]
      %v2036 = vld [vmem:[%s1639 + $0x92] sm:$0xff]
      %v2037 = vld [vmem:[%s1639 + $0x9a] sm:$0xff]
      %v2038 = vld [vmem:[%s1639 + $0xaa] sm:$0xff]
      %v2039 = vld [vmem:[%s1639 + $0xb2] sm:$0xff]
      %v2040 = vld [vmem:[%s1639 + $0xc2] sm:$0xff]
      %v2041 = vld [vmem:[%s1639 + $0xca] sm:$0xff]
      %v2042 = vld [vmem:[%s1639 + $0xda] sm:$0xff]
      %v2043 = vld [vmem:[%s1639 + $0xe2] sm:$0xff]
      %v2044 = vld [vmem:[%s1639 + $0xf2] sm:$0xff]
      %v2045 = vld [vmem:[%s1639 + $0xfa] sm:$0xff]
      %v2046 = vld [vmem:[%s1639 + $0x10a] sm:$0xff]
      %v2047 = vld [vmem:[%s1639 + $0x112] sm:$0xff]
      %v2048 = vld [vmem:[%s1639 + $0x122] sm:$0xff]
      %v2049 = vld [vmem:[%s1639 + $0x12a] sm:$0xff]
      %v2050 = vld [vmem:[%s1639 + $0x13a] sm:$0xff]
      %v2051 = vld [vmem:[%s1639 + $0x142] sm:$0xff]
      %v2052 = vld [vmem:[%s1639 + $0x152] sm:$0xff]
      %v2053 = vld [vmem:[%s1639 + $0x15a] sm:$0xff]
      %v2054 = vld [vmem:[%s1639 + $0x16a] sm:$0xff]
      %v2055 = vld [vmem:[%s1639 + $0x172] sm:$0xff]
      %v2056 = vpack.c.bf16 %v2025, %v2024
      %v2057 = vpack.c.bf16 %v2027, %v2026
      %v2058 = vpack.c.bf16 %v2029, %v2028
      %v2059 = vpack.c.bf16 %v2031, %v2030
      %v2060 = vpack.c.bf16 %v2033, %v2032
      %v2061 = vpack.c.bf16 %v2035, %v2034
      %v2062 = vpack.c.bf16 %v2037, %v2036
      %v2063 = vpack.c.bf16 %v2039, %v2038
      %v2064 = vpack.c.bf16 %v2041, %v2040
      %v2065 = vpack.c.bf16 %v2043, %v2042
      %v2066 = vpack.c.bf16 %v2045, %v2044
      %v2067 = vpack.c.bf16 %v2047, %v2046
      %v2068 = vpack.c.bf16 %v2049, %v2048
      %v2069 = vpack.c.bf16 %v2051, %v2050
      %v2070 = vpack.c.bf16 %v2053, %v2052
      %v2071 = vpack.c.bf16 %v2055, %v2054
      %v2088 = vunpack.c.l.b16 %v2056
      %v2089 = vunpack.c.h.b16 %v2056
      %v2090 = vunpack.c.l.b16 %v2057
      %v2091 = vunpack.c.h.b16 %v2057
      %v2092 = vunpack.c.l.b16 %v2058
      %v2093 = vunpack.c.h.b16 %v2058
      %v2094 = vunpack.c.l.b16 %v2059
      %v2095 = vunpack.c.h.b16 %v2059
      %v2096 = vunpack.c.l.b16 %v2060
      %v2097 = vunpack.c.h.b16 %v2060
      %v2098 = vunpack.c.l.b16 %v2061
      %v2099 = vunpack.c.h.b16 %v2061
      %v2100 = vunpack.c.l.b16 %v2062
      %v2101 = vunpack.c.h.b16 %v2062
      %v2102 = vunpack.c.l.b16 %v2063
      %v2103 = vunpack.c.h.b16 %v2063
      %v2104 = vunpack.c.l.b16 %v2064
      %v2105 = vunpack.c.h.b16 %v2064
      %v2106 = vunpack.c.l.b16 %v2065
      %v2107 = vunpack.c.h.b16 %v2065
      %v2108 = vunpack.c.l.b16 %v2066
      %v2109 = vunpack.c.h.b16 %v2066
      %v2110 = vunpack.c.l.b16 %v2067
      %v2111 = vunpack.c.h.b16 %v2067
      %v2112 = vunpack.c.l.b16 %v2068
      %v2113 = vunpack.c.h.b16 %v2068
      %v2114 = vunpack.c.l.b16 %v2069
      %v2115 = vunpack.c.h.b16 %v2069
      %v2116 = vunpack.c.l.b16 %v2070
      %v2117 = vunpack.c.h.b16 %v2070
      %v2118 = vunpack.c.l.b16 %v2071
      %v2119 = vunpack.c.h.b16 %v2071
      %v2120 = vpack.c.b16 %v2088, %v2088
      %v2121 = vpack.c.b16 %v2089, %v2089
      %v2122 = vpack.c.b16 %v2090, %v2090
      %v2123 = vpack.c.b16 %v2091, %v2091
      %v2124 = vpack.c.b16 %v2092, %v2092
      %v2125 = vpack.c.b16 %v2093, %v2093
      %v2126 = vpack.c.b16 %v2094, %v2094
      %v2127 = vpack.c.b16 %v2095, %v2095
      %v2128 = vpack.c.b16 %v2096, %v2096
      %v2129 = vpack.c.b16 %v2097, %v2097
      %v2130 = vpack.c.b16 %v2098, %v2098
      %v2131 = vpack.c.b16 %v2099, %v2099
      %v2132 = vpack.c.b16 %v2100, %v2100
      %v2133 = vpack.c.b16 %v2101, %v2101
      %v2134 = vpack.c.b16 %v2102, %v2102
      %v2135 = vpack.c.b16 %v2103, %v2103
      %v2136 = vpack.c.b16 %v2104, %v2104
      %v2137 = vpack.c.b16 %v2105, %v2105
      %v2138 = vpack.c.b16 %v2106, %v2106
      %v2139 = vpack.c.b16 %v2107, %v2107
      %v2140 = vpack.c.b16 %v2108, %v2108
      %v2141 = vpack.c.b16 %v2109, %v2109
      %v2142 = vpack.c.b16 %v2110, %v2110
      %v2143 = vpack.c.b16 %v2111, %v2111
      %v2144 = vpack.c.b16 %v2112, %v2112
      %v2145 = vpack.c.b16 %v2113, %v2113
      %v2146 = vpack.c.b16 %v2114, %v2114
      %v2147 = vpack.c.b16 %v2115, %v2115
      %v2148 = vpack.c.b16 %v2116, %v2116
      %v2149 = vpack.c.b16 %v2117, %v2117
      %v2150 = vpack.c.b16 %v2118, %v2118
      %v2151 = vpack.c.b16 %v2119, %v2119
      %2184 = vst [vmem:[#allocation3 + $0x20] sm:$0xf] %v2120
      %2185 = vst [vmem:[#allocation3 + $0x44] sm:$0xf] %v2121
      %2186 = vst [vmem:[#allocation3 + $0x68] sm:$0xf] %v2122
      %2187 = vst [vmem:[#allocation3 + $0x8c] sm:$0xf] %v2123
      %2188 = vst [vmem:[#allocation3 + $0xb0] sm:$0xf] %v2124
      %2189 = vst [vmem:[#allocation3 + $0xd4] sm:$0xf] %v2125
      %2190 = vst [vmem:[#allocation3 + $0xf8] sm:$0xf] %v2126
      %2191 = vst [vmem:[#allocation3 + $0x11c] sm:$0xf] %v2127
      %2192 = vst [vmem:[#allocation3 + $0x140] sm:$0xf] %v2128
      %2193 = vst [vmem:[#allocation3 + $0x164] sm:$0xf] %v2129
      %2194 = vst [vmem:[#allocation3 + $0x188] sm:$0xf] %v2130
      %2195 = vst [vmem:[#allocation3 + $0x1ac] sm:$0xf] %v2131
      %2196 = vst [vmem:[#allocation3 + $0x1d0] sm:$0xf] %v2132
      %2197 = vst [vmem:[#allocation3 + $0x1f4] sm:$0xf] %v2133
      %2198 = vst [vmem:[#allocation3 + $0x218] sm:$0xf] %v2134
      %2199 = vst [vmem:[#allocation3 + $0x23c] sm:$0xf] %v2135
      %2200 = vst [vmem:[#allocation3 + $0x260] sm:$0xf] %v2136
      %2201 = vst [vmem:[#allocation3 + $0x284] sm:$0xf] %v2137
      %2202 = vst [vmem:[#allocation3 + $0x2a8] sm:$0xf] %v2138
      %2203 = vst [vmem:[#allocation3 + $0x2cc] sm:$0xf] %v2139
      %2204 = vst [vmem:[#allocation3 + $0x2f0] sm:$0xf] %v2140
      %2205 = vst [vmem:[#allocation3 + $0x314] sm:$0xf] %v2141
      %2206 = vst [vmem:[#allocation3 + $0x338] sm:$0xf] %v2142
      %2207 = vst [vmem:[#allocation3 + $0x35c] sm:$0xf] %v2143
      %2208 = vst [vmem:[#allocation3 + $0x380] sm:$0xf] %v2144
      %2209 = vst [vmem:[#allocation3 + $0x3a4] sm:$0xf] %v2145
      %2210 = vst [vmem:[#allocation3 + $0x3c8] sm:$0xf] %v2146
      %2211 = vst [vmem:[#allocation3 + $0x3ec] sm:$0xf] %v2147
      %2212 = vst [vmem:[#allocation3 + $0x410] sm:$0xf] %v2148
      %2213 = vst [vmem:[#allocation3 + $0x434] sm:$0xf] %v2149
      %2214 = vst [vmem:[#allocation3 + $0x458] sm:$0xf] %v2150
      %2215 = vst [vmem:[#allocation3 + $0x47c] sm:$0xf] %v2151
      %v2216 = vld [vmem:[#allocation3] sm:$0xff]
      %v2217 = vld [vmem:[#allocation3 + $0x8] sm:$0xff]
      %v2218 = vld [vmem:[#allocation3 + $0x10] sm:$0xff]
      %v2219 = vld [vmem:[#allocation3 + $0x18] sm:$0xff]
      %v2220 = vld [vmem:[#allocation3 + $0x20] sm:$0xf]
      %v2221 = vld [vmem:[#allocation3 + $0x24] sm:$0xff]
      %v2222 = vld [vmem:[#allocation3 + $0x2c] sm:$0xff]
      %v2223 = vld [vmem:[#allocation3 + $0x34] sm:$0xff]
      %v2224 = vld [vmem:[#allocation3 + $0x3c] sm:$0xff]
      %v2225 = vld [vmem:[#allocation3 + $0x44] sm:$0xf]
      %v2226 = vld [vmem:[#allocation3 + $0x48] sm:$0xff]
      %v2227 = vld [vmem:[#allocation3 + $0x50] sm:$0xff]
      %v2228 = vld [vmem:[#allocation3 + $0x58] sm:$0xff]
      %v2229 = vld [vmem:[#allocation3 + $0x60] sm:$0xff]
      %v2230 = vld [vmem:[#allocation3 + $0x68] sm:$0xf]
      %v2231 = vld [vmem:[#allocation3 + $0x6c] sm:$0xff]
      %v2232 = vld [vmem:[#allocation3 + $0x74] sm:$0xff]
      %v2233 = vld [vmem:[#allocation3 + $0x7c] sm:$0xff]
      %v2234 = vld [vmem:[#allocation3 + $0x84] sm:$0xff]
      %v2235 = vld [vmem:[#allocation3 + $0x8c] sm:$0xf]
      %v2236 = vld [vmem:[#allocation3 + $0x90] sm:$0xff]
      %v2237 = vld [vmem:[#allocation3 + $0x98] sm:$0xff]
      %v2238 = vld [vmem:[#allocation3 + $0xa0] sm:$0xff]
      %v2239 = vld [vmem:[#allocation3 + $0xa8] sm:$0xff]
      %v2240 = vld [vmem:[#allocation3 + $0xb0] sm:$0xf]
      %v2241 = vld [vmem:[#allocation3 + $0xb4] sm:$0xff]
      %v2242 = vld [vmem:[#allocation3 + $0xbc] sm:$0xff]
      %v2243 = vld [vmem:[#allocation3 + $0xc4] sm:$0xff]
      %v2244 = vld [vmem:[#allocation3 + $0xcc] sm:$0xff]
      %v2245 = vld [vmem:[#allocation3 + $0xd4] sm:$0xf]
      %v2246 = vld [vmem:[#allocation3 + $0xd8] sm:$0xff]
      %v2247 = vld [vmem:[#allocation3 + $0xe0] sm:$0xff]
      %v2248 = vld [vmem:[#allocation3 + $0xe8] sm:$0xff]
      %v2249 = vld [vmem:[#allocation3 + $0xf0] sm:$0xff]
      %v2250 = vld [vmem:[#allocation3 + $0xf8] sm:$0xf]
      %v2251 = vld [vmem:[#allocation3 + $0xfc] sm:$0xff]
      %v2252 = vld [vmem:[#allocation3 + $0x104] sm:$0xff]
      %v2253 = vld [vmem:[#allocation3 + $0x10c] sm:$0xff]
      %v2254 = vld [vmem:[#allocation3 + $0x114] sm:$0xff]
      %v2255 = vld [vmem:[#allocation3 + $0x11c] sm:$0xf]
      %v2256 = vld [vmem:[#allocation3 + $0x120] sm:$0xff]
      %v2257 = vld [vmem:[#allocation3 + $0x128] sm:$0xff]
      %v2258 = vld [vmem:[#allocation3 + $0x130] sm:$0xff]
      %v2259 = vld [vmem:[#allocation3 + $0x138] sm:$0xff]
      %v2260 = vld [vmem:[#allocation3 + $0x140] sm:$0xf]
      %v2261 = vld [vmem:[#allocation3 + $0x144] sm:$0xff]
      %v2262 = vld [vmem:[#allocation3 + $0x14c] sm:$0xff]
      %v2263 = vld [vmem:[#allocation3 + $0x154] sm:$0xff]
      %v2264 = vld [vmem:[#allocation3 + $0x15c] sm:$0xff]
      %v2265 = vld [vmem:[#allocation3 + $0x164] sm:$0xf]
      %v2266 = vld [vmem:[#allocation3 + $0x168] sm:$0xff]
      %v2267 = vld [vmem:[#allocation3 + $0x170] sm:$0xff]
      %v2268 = vld [vmem:[#allocation3 + $0x178] sm:$0xff]
      %v2269 = vld [vmem:[#allocation3 + $0x180] sm:$0xff]
      %v2270 = vld [vmem:[#allocation3 + $0x188] sm:$0xf]
      %v2271 = vld [vmem:[#allocation3 + $0x18c] sm:$0xff]
      %v2272 = vld [vmem:[#allocation3 + $0x194] sm:$0xff]
      %v2273 = vld [vmem:[#allocation3 + $0x19c] sm:$0xff]
      %v2274 = vld [vmem:[#allocation3 + $0x1a4] sm:$0xff]
      %v2275 = vld [vmem:[#allocation3 + $0x1ac] sm:$0xf]
      %v2276 = vld [vmem:[#allocation3 + $0x1b0] sm:$0xff]
      %v2277 = vld [vmem:[#allocation3 + $0x1b8] sm:$0xff]
      %v2278 = vld [vmem:[#allocation3 + $0x1c0] sm:$0xff]
      %v2279 = vld [vmem:[#allocation3 + $0x1c8] sm:$0xff]
      %v2280 = vld [vmem:[#allocation3 + $0x1d0] sm:$0xf]
      %v2281 = vld [vmem:[#allocation3 + $0x1d4] sm:$0xff]
      %v2282 = vld [vmem:[#allocation3 + $0x1dc] sm:$0xff]
      %v2283 = vld [vmem:[#allocation3 + $0x1e4] sm:$0xff]
      %v2284 = vld [vmem:[#allocation3 + $0x1ec] sm:$0xff]
      %v2285 = vld [vmem:[#allocation3 + $0x1f4] sm:$0xf]
      %v2286 = vld [vmem:[#allocation3 + $0x1f8] sm:$0xff]
      %v2287 = vld [vmem:[#allocation3 + $0x200] sm:$0xff]
      %v2288 = vld [vmem:[#allocation3 + $0x208] sm:$0xff]
      %v2289 = vld [vmem:[#allocation3 + $0x210] sm:$0xff]
      %v2290 = vld [vmem:[#allocation3 + $0x218] sm:$0xf]
      %v2291 = vld [vmem:[#allocation3 + $0x21c] sm:$0xff]
      %v2292 = vld [vmem:[#allocation3 + $0x224] sm:$0xff]
      %v2293 = vld [vmem:[#allocation3 + $0x22c] sm:$0xff]
      %v2294 = vld [vmem:[#allocation3 + $0x234] sm:$0xff]
      %v2295 = vld [vmem:[#allocation3 + $0x23c] sm:$0xf]
      %v2296 = vld [vmem:[#allocation3 + $0x240] sm:$0xff]
      %v2297 = vld [vmem:[#allocation3 + $0x248] sm:$0xff]
      %v2298 = vld [vmem:[#allocation3 + $0x250] sm:$0xff]
      %v2299 = vld [vmem:[#allocation3 + $0x258] sm:$0xff]
      %v2300 = vld [vmem:[#allocation3 + $0x260] sm:$0xf]
      %v2301 = vld [vmem:[#allocation3 + $0x264] sm:$0xff]
      %v2302 = vld [vmem:[#allocation3 + $0x26c] sm:$0xff]
      %v2303 = vld [vmem:[#allocation3 + $0x274] sm:$0xff]
      %v2304 = vld [vmem:[#allocation3 + $0x27c] sm:$0xff]
      %v2305 = vld [vmem:[#allocation3 + $0x284] sm:$0xf]
      %v2306 = vld [vmem:[#allocation3 + $0x288] sm:$0xff]
      %v2307 = vld [vmem:[#allocation3 + $0x290] sm:$0xff]
      %v2308 = vld [vmem:[#allocation3 + $0x298] sm:$0xff]
      %v2309 = vld [vmem:[#allocation3 + $0x2a0] sm:$0xff]
      %v2310 = vld [vmem:[#allocation3 + $0x2a8] sm:$0xf]
      %v2311 = vld [vmem:[#allocation3 + $0x2ac] sm:$0xff]
      %v2312 = vld [vmem:[#allocation3 + $0x2b4] sm:$0xff]
      %v2313 = vld [vmem:[#allocation3 + $0x2bc] sm:$0xff]
      %v2314 = vld [vmem:[#allocation3 + $0x2c4] sm:$0xff]
      %v2315 = vld [vmem:[#allocation3 + $0x2cc] sm:$0xf]
      %v2316 = vld [vmem:[#allocation3 + $0x2d0] sm:$0xff]
      %v2317 = vld [vmem:[#allocation3 + $0x2d8] sm:$0xff]
      %v2318 = vld [vmem:[#allocation3 + $0x2e0] sm:$0xff]
      %v2319 = vld [vmem:[#allocation3 + $0x2e8] sm:$0xff]
      %v2320 = vld [vmem:[#allocation3 + $0x2f0] sm:$0xf]
      %v2321 = vld [vmem:[#allocation3 + $0x2f4] sm:$0xff]
      %v2322 = vld [vmem:[#allocation3 + $0x2fc] sm:$0xff]
      %v2323 = vld [vmem:[#allocation3 + $0x304] sm:$0xff]
      %v2324 = vld [vmem:[#allocation3 + $0x30c] sm:$0xff]
      %v2325 = vld [vmem:[#allocation3 + $0x314] sm:$0xf]
      %v2326 = vld [vmem:[#allocation3 + $0x318] sm:$0xff]
      %v2327 = vld [vmem:[#allocation3 + $0x320] sm:$0xff]
      %v2328 = vld [vmem:[#allocation3 + $0x328] sm:$0xff]
      %v2329 = vld [vmem:[#allocation3 + $0x330] sm:$0xff]
      %v2330 = vld [vmem:[#allocation3 + $0x338] sm:$0xf]
      %v2331 = vld [vmem:[#allocation3 + $0x33c] sm:$0xff]
      %v2332 = vld [vmem:[#allocation3 + $0x344] sm:$0xff]
      %v2333 = vld [vmem:[#allocation3 + $0x34c] sm:$0xff]
      %v2334 = vld [vmem:[#allocation3 + $0x354] sm:$0xff]
      %v2335 = vld [vmem:[#allocation3 + $0x35c] sm:$0xf]
      %v2336 = vld [vmem:[#allocation3 + $0x360] sm:$0xff]
      %v2337 = vld [vmem:[#allocation3 + $0x368] sm:$0xff]
      %v2338 = vld [vmem:[#allocation3 + $0x370] sm:$0xff]
      %v2339 = vld [vmem:[#allocation3 + $0x378] sm:$0xff]
      %v2340 = vld [vmem:[#allocation3 + $0x380] sm:$0xf]
      %v2341 = vld [vmem:[#allocation3 + $0x384] sm:$0xff]
      %v2342 = vld [vmem:[#allocation3 + $0x38c] sm:$0xff]
      %v2343 = vld [vmem:[#allocation3 + $0x394] sm:$0xff]
      %v2344 = vld [vmem:[#allocation3 + $0x39c] sm:$0xff]
      %v2345 = vld [vmem:[#allocation3 + $0x3a4] sm:$0xf]
      %v2346 = vld [vmem:[#allocation3 + $0x3a8] sm:$0xff]
      %v2347 = vld [vmem:[#allocation3 + $0x3b0] sm:$0xff]
      %v2348 = vld [vmem:[#allocation3 + $0x3b8] sm:$0xff]
      %v2349 = vld [vmem:[#allocation3 + $0x3c0] sm:$0xff]
      %v2350 = vld [vmem:[#allocation3 + $0x3c8] sm:$0xf]
      %v2351 = vld [vmem:[#allocation3 + $0x3cc] sm:$0xff]
      %v2352 = vld [vmem:[#allocation3 + $0x3d4] sm:$0xff]
      %v2353 = vld [vmem:[#allocation3 + $0x3dc] sm:$0xff]
      %v2354 = vld [vmem:[#allocation3 + $0x3e4] sm:$0xff]
      %v2355 = vld [vmem:[#allocation3 + $0x3ec] sm:$0xf]
      %v2356 = vld [vmem:[#allocation3 + $0x3f0] sm:$0xff]
      %v2357 = vld [vmem:[#allocation3 + $0x3f8] sm:$0xff]
      %v2358 = vld [vmem:[#allocation3 + $0x400] sm:$0xff]
      %v2359 = vld [vmem:[#allocation3 + $0x408] sm:$0xff]
      %v2360 = vld [vmem:[#allocation3 + $0x410] sm:$0xf]
      %v2361 = vld [vmem:[#allocation3 + $0x414] sm:$0xff]
      %v2362 = vld [vmem:[#allocation3 + $0x41c] sm:$0xff]
      %v2363 = vld [vmem:[#allocation3 + $0x424] sm:$0xff]
      %v2364 = vld [vmem:[#allocation3 + $0x42c] sm:$0xff]
      %v2365 = vld [vmem:[#allocation3 + $0x434] sm:$0xf]
      %v2366 = vld [vmem:[#allocation3 + $0x438] sm:$0xff]
      %v2367 = vld [vmem:[#allocation3 + $0x440] sm:$0xff]
      %v2368 = vld [vmem:[#allocation3 + $0x448] sm:$0xff]
      %v2369 = vld [vmem:[#allocation3 + $0x450] sm:$0xff]
      %v2370 = vld [vmem:[#allocation3 + $0x458] sm:$0xf]
      %v2371 = vld [vmem:[#allocation3 + $0x45c] sm:$0xff]
      %v2372 = vld [vmem:[#allocation3 + $0x464] sm:$0xff]
      %v2373 = vld [vmem:[#allocation3 + $0x46c] sm:$0xff]
      %v2374 = vld [vmem:[#allocation3 + $0x474] sm:$0xff]
      %v2375 = vld [vmem:[#allocation3 + $0x47c] sm:$0xf]
      %v2376 = vld [vmem:[%s3] sm:$0xf]
      %v2377 = vld [vmem:[%s3 + $0x4] sm:$0xf]
      %v2378 = vld [vmem:[%s3 + $0x8] sm:$0xf]
      %v2379 = vld [vmem:[%s3 + $0xc] sm:$0xf]
      %v2380 = vld [vmem:[%s3 + $0x10] sm:$0xf]
      %v2381 = vld [vmem:[%s3 + $0x14] sm:$0xf]
      %v2382 = vld [vmem:[%s3 + $0x18] sm:$0xf]
      %v2383 = vld [vmem:[%s3 + $0x1c] sm:$0xf]
      %v2384 = vld [vmem:[%s3 + $0x20] sm:$0xf]
      %v2385 = vld [vmem:[%s3 + $0x24] sm:$0xf]
      %v2386 = vld [vmem:[%s3 + $0x28] sm:$0xf]
      %v2387 = vld [vmem:[%s3 + $0x2c] sm:$0xf]
      %v2388 = vld [vmem:[%s3 + $0x30] sm:$0xf]
      %v2389 = vld [vmem:[%s3 + $0x34] sm:$0xf]
      %v2390 = vld [vmem:[%s3 + $0x38] sm:$0xf]
      %v2391 = vld [vmem:[%s3 + $0x3c] sm:$0xf]
      %v2392 = vld [vmem:[%s3 + $0x40] sm:$0xf]
      %v2393 = vld [vmem:[%s3 + $0x44] sm:$0xf]
      %v2394 = vld [vmem:[%s3 + $0x48] sm:$0xf]
      %v2395 = vld [vmem:[%s3 + $0x4c] sm:$0xf]
      %v2396 = vld [vmem:[%s3 + $0x50] sm:$0xf]
      %v2397 = vld [vmem:[%s3 + $0x54] sm:$0xf]
      %v2398 = vld [vmem:[%s3 + $0x58] sm:$0xf]
      %v2399 = vld [vmem:[%s3 + $0x5c] sm:$0xf]
      %v2400 = vld [vmem:[%s3 + $0x60] sm:$0xf]
      %v2401 = vld [vmem:[%s3 + $0x64] sm:$0xf]
      %v2402 = vld [vmem:[%s3 + $0x68] sm:$0xf]
      %v2403 = vld [vmem:[%s3 + $0x6c] sm:$0xf]
      %v2404 = vld [vmem:[%s3 + $0x70] sm:$0xf]
      %v2405 = vld [vmem:[%s3 + $0x74] sm:$0xf]
      %v2406 = vld [vmem:[%s3 + $0x78] sm:$0xf]
      %v2407 = vld [vmem:[%s3 + $0x7c] sm:$0xf]
      %v2408 = vld [vmem:[%s3 + $0x80] sm:$0xf]
      %v2409 = vld [vmem:[%s3 + $0x84] sm:$0xf]
      %v2410 = vld [vmem:[%s3 + $0x88] sm:$0xf]
      %v2411 = vld [vmem:[%s3 + $0x8c] sm:$0xf]
      %v2412 = vld [vmem:[%s3 + $0x90] sm:$0xf]
      %v2413 = vld [vmem:[%s3 + $0x94] sm:$0xf]
      %v2414 = vld [vmem:[%s3 + $0x98] sm:$0xf]
      %v2415 = vld [vmem:[%s3 + $0x9c] sm:$0xf]
      %v2416 = vld [vmem:[%s3 + $0xa0] sm:$0xf]
      %v2417 = vld [vmem:[%s3 + $0xa4] sm:$0xf]
      %v2418 = vld [vmem:[%s3 + $0xa8] sm:$0xf]
      %v2419 = vld [vmem:[%s3 + $0xac] sm:$0xf]
      %v2420 = vld [vmem:[%s3 + $0xb0] sm:$0xf]
      %v2421 = vld [vmem:[%s3 + $0xb4] sm:$0xf]
      %v2422 = vld [vmem:[%s3 + $0xb8] sm:$0xf]
      %v2423 = vld [vmem:[%s3 + $0xbc] sm:$0xf]
      %v2424 = vld [vmem:[%s3 + $0xc0] sm:$0xf]
      %v2425 = vld [vmem:[%s3 + $0xc4] sm:$0xf]
      %v2426 = vld [vmem:[%s3 + $0xc8] sm:$0xf]
      %v2427 = vld [vmem:[%s3 + $0xcc] sm:$0xf]
      %v2428 = vld [vmem:[%s3 + $0xd0] sm:$0xf]
      %v2429 = vld [vmem:[%s3 + $0xd4] sm:$0xf]
      %v2430 = vld [vmem:[%s3 + $0xd8] sm:$0xf]
      %v2431 = vld [vmem:[%s3 + $0xdc] sm:$0xf]
      %v2432 = vld [vmem:[%s3 + $0xe0] sm:$0xf]
      %v2433 = vld [vmem:[%s3 + $0xe4] sm:$0xf]
      %v2434 = vld [vmem:[%s3 + $0xe8] sm:$0xf]
      %v2435 = vld [vmem:[%s3 + $0xec] sm:$0xf]
      %v2436 = vld [vmem:[%s3 + $0xf0] sm:$0xf]
      %v2437 = vld [vmem:[%s3 + $0xf4] sm:$0xf]
      %v2438 = vld [vmem:[%s3 + $0xf8] sm:$0xf]
      %v2439 = vld [vmem:[%s3 + $0xfc] sm:$0xf]
      %v2440 = vld [vmem:[%s3 + $0x100] sm:$0xf]
      %v2441 = vld [vmem:[%s3 + $0x104] sm:$0xf]
      %v2442 = vld [vmem:[%s3 + $0x108] sm:$0xf]
      %v2443 = vld [vmem:[%s3 + $0x10c] sm:$0xf]
      %v2444 = vld [vmem:[%s3 + $0x110] sm:$0xf]
      %v2445 = vld [vmem:[%s3 + $0x114] sm:$0xf]
      %v2446 = vld [vmem:[%s3 + $0x118] sm:$0xf]
      %v2447 = vld [vmem:[%s3 + $0x11c] sm:$0xf]
      %v2448 = vld [vmem:[%s3 + $0x120] sm:$0xf]
      %v2449 = vld [vmem:[%s3 + $0x124] sm:$0xf]
      %v2450 = vld [vmem:[%s3 + $0x128] sm:$0xf]
      %v2451 = vld [vmem:[%s3 + $0x12c] sm:$0xf]
      %v2452 = vld [vmem:[%s3 + $0x130] sm:$0xf]
      %v2453 = vld [vmem:[%s3 + $0x134] sm:$0xf]
      %v2454 = vld [vmem:[%s3 + $0x138] sm:$0xf]
      %v2455 = vld [vmem:[%s3 + $0x13c] sm:$0xf]
      %v2456 = vld [vmem:[%s3 + $0x140] sm:$0xf]
      %v2457 = vld [vmem:[%s3 + $0x144] sm:$0xf]
      %v2458 = vld [vmem:[%s3 + $0x148] sm:$0xf]
      %v2459 = vld [vmem:[%s3 + $0x14c] sm:$0xf]
      %v2460 = vld [vmem:[%s3 + $0x150] sm:$0xf]
      %v2461 = vld [vmem:[%s3 + $0x154] sm:$0xf]
      %v2462 = vld [vmem:[%s3 + $0x158] sm:$0xf]
      %v2463 = vld [vmem:[%s3 + $0x15c] sm:$0xf]
      %v2464 = vld [vmem:[%s3 + $0x160] sm:$0xf]
      %v2465 = vld [vmem:[%s3 + $0x164] sm:$0xf]
      %v2466 = vld [vmem:[%s3 + $0x168] sm:$0xf]
      %v2467 = vld [vmem:[%s3 + $0x16c] sm:$0xf]
      %v2468 = vld [vmem:[%s3 + $0x170] sm:$0xf]
      %v2469 = vld [vmem:[%s3 + $0x174] sm:$0xf]
      %v2470 = vld [vmem:[%s3 + $0x178] sm:$0xf]
      %v2471 = vld [vmem:[%s3 + $0x17c] sm:$0xf]
      %v2472 = vld [vmem:[%s3 + $0x180] sm:$0xf]
      %v2473 = vld [vmem:[%s3 + $0x184] sm:$0xf]
      %v2474 = vld [vmem:[%s3 + $0x188] sm:$0xf]
      %v2475 = vld [vmem:[%s3 + $0x18c] sm:$0xf]
      %v2476 = vld [vmem:[%s3 + $0x190] sm:$0xf]
      %v2477 = vld [vmem:[%s3 + $0x194] sm:$0xf]
      %v2478 = vld [vmem:[%s3 + $0x198] sm:$0xf]
      %v2479 = vld [vmem:[%s3 + $0x19c] sm:$0xf]
      %v2480 = vld [vmem:[%s3 + $0x1a0] sm:$0xf]
      %v2481 = vld [vmem:[%s3 + $0x1a4] sm:$0xf]
      %v2482 = vld [vmem:[%s3 + $0x1a8] sm:$0xf]
      %v2483 = vld [vmem:[%s3 + $0x1ac] sm:$0xf]
      %v2484 = vld [vmem:[%s3 + $0x1b0] sm:$0xf]
      %v2485 = vld [vmem:[%s3 + $0x1b4] sm:$0xf]
      %v2486 = vld [vmem:[%s3 + $0x1b8] sm:$0xf]
      %v2487 = vld [vmem:[%s3 + $0x1bc] sm:$0xf]
      %v2488 = vld [vmem:[%s3 + $0x1c0] sm:$0xf]
      %v2489 = vld [vmem:[%s3 + $0x1c4] sm:$0xf]
      %v2490 = vld [vmem:[%s3 + $0x1c8] sm:$0xf]
      %v2491 = vld [vmem:[%s3 + $0x1cc] sm:$0xf]
      %v2492 = vld [vmem:[%s3 + $0x1d0] sm:$0xf]
      %v2493 = vld [vmem:[%s3 + $0x1d4] sm:$0xf]
      %v2494 = vld [vmem:[%s3 + $0x1d8] sm:$0xf]
      %v2495 = vld [vmem:[%s3 + $0x1dc] sm:$0xf]
      %v2496 = vld [vmem:[%s3 + $0x1e0] sm:$0xf]
      %v2497 = vld [vmem:[%s3 + $0x1e4] sm:$0xf]
      %v2498 = vld [vmem:[%s3 + $0x1e8] sm:$0xf]
      %v2499 = vld [vmem:[%s3 + $0x1ec] sm:$0xf]
      %v2500 = vld [vmem:[%s3 + $0x1f0] sm:$0xf]
      %v2501 = vld [vmem:[%s3 + $0x1f4] sm:$0xf]
      %v2502 = vld [vmem:[%s3 + $0x1f8] sm:$0xf]
      %v2503 = vld [vmem:[%s3 + $0x1fc] sm:$0xf]
      %v2504 = vld [vmem:[%s3 + $0x200] sm:$0xf]
      %v2505 = vld [vmem:[%s3 + $0x204] sm:$0xf]
      %v2506 = vld [vmem:[%s3 + $0x208] sm:$0xf]
      %v2507 = vld [vmem:[%s3 + $0x20c] sm:$0xf]
      %v2508 = vld [vmem:[%s3 + $0x210] sm:$0xf]
      %v2509 = vld [vmem:[%s3 + $0x214] sm:$0xf]
      %v2510 = vld [vmem:[%s3 + $0x218] sm:$0xf]
      %v2511 = vld [vmem:[%s3 + $0x21c] sm:$0xf]
      %v2512 = vld [vmem:[%s3 + $0x220] sm:$0xf]
      %v2513 = vld [vmem:[%s3 + $0x224] sm:$0xf]
      %v2514 = vld [vmem:[%s3 + $0x228] sm:$0xf]
      %v2515 = vld [vmem:[%s3 + $0x22c] sm:$0xf]
      %v2516 = vld [vmem:[%s3 + $0x230] sm:$0xf]
      %v2517 = vld [vmem:[%s3 + $0x234] sm:$0xf]
      %v2518 = vld [vmem:[%s3 + $0x238] sm:$0xf]
      %v2519 = vld [vmem:[%s3 + $0x23c] sm:$0xf]
      %v2680 = vunpack.c.l.b16 %v2216
      %v2681 = vunpack.c.h.b16 %v2216
      %v2682 = vunpack.c.l.b16 %v2217
      %v2683 = vunpack.c.h.b16 %v2217
      %v2684 = vunpack.c.l.b16 %v2218
      %v2685 = vunpack.c.h.b16 %v2218
      %v2686 = vunpack.c.l.b16 %v2219
      %v2687 = vunpack.c.h.b16 %v2219
      %v2688 = vunpack.c.l.b16 %v2220
      %v2689 = vunpack.c.l.b16 %v2221
      %v2690 = vunpack.c.h.b16 %v2221
      %v2691 = vunpack.c.l.b16 %v2222
      %v2692 = vunpack.c.h.b16 %v2222
      %v2693 = vunpack.c.l.b16 %v2223
      %v2694 = vunpack.c.h.b16 %v2223
      %v2695 = vunpack.c.l.b16 %v2224
      %v2696 = vunpack.c.h.b16 %v2224
      %v2697 = vunpack.c.l.b16 %v2225
      %v2698 = vunpack.c.l.b16 %v2226
      %v2699 = vunpack.c.h.b16 %v2226
      %v2700 = vunpack.c.l.b16 %v2227
      %v2701 = vunpack.c.h.b16 %v2227
      %v2702 = vunpack.c.l.b16 %v2228
      %v2703 = vunpack.c.h.b16 %v2228
      %v2704 = vunpack.c.l.b16 %v2229
      %v2705 = vunpack.c.h.b16 %v2229
      %v2706 = vunpack.c.l.b16 %v2230
      %v2707 = vunpack.c.l.b16 %v2231
      %v2708 = vunpack.c.h.b16 %v2231
      %v2709 = vunpack.c.l.b16 %v2232
      %v2710 = vunpack.c.h.b16 %v2232
      %v2711 = vunpack.c.l.b16 %v2233
      %v2712 = vunpack.c.h.b16 %v2233
      %v2713 = vunpack.c.l.b16 %v2234
      %v2714 = vunpack.c.h.b16 %v2234
      %v2715 = vunpack.c.l.b16 %v2235
      %v2716 = vunpack.c.l.b16 %v2236
      %v2717 = vunpack.c.h.b16 %v2236
      %v2718 = vunpack.c.l.b16 %v2237
      %v2719 = vunpack.c.h.b16 %v2237
      %v2720 = vunpack.c.l.b16 %v2238
      %v2721 = vunpack.c.h.b16 %v2238
      %v2722 = vunpack.c.l.b16 %v2239
      %v2723 = vunpack.c.h.b16 %v2239
      %v2724 = vunpack.c.l.b16 %v2240
      %v2725 = vunpack.c.l.b16 %v2241
      %v2726 = vunpack.c.h.b16 %v2241
      %v2727 = vunpack.c.l.b16 %v2242
      %v2728 = vunpack.c.h.b16 %v2242
      %v2729 = vunpack.c.l.b16 %v2243
      %v2730 = vunpack.c.h.b16 %v2243
      %v2731 = vunpack.c.l.b16 %v2244
      %v2732 = vunpack.c.h.b16 %v2244
      %v2733 = vunpack.c.l.b16 %v2245
      %v2734 = vunpack.c.l.b16 %v2246
      %v2735 = vunpack.c.h.b16 %v2246
      %v2736 = vunpack.c.l.b16 %v2247
      %v2737 = vunpack.c.h.b16 %v2247
      %v2738 = vunpack.c.l.b16 %v2248
      %v2739 = vunpack.c.h.b16 %v2248
      %v2740 = vunpack.c.l.b16 %v2249
      %v2741 = vunpack.c.h.b16 %v2249
      %v2742 = vunpack.c.l.b16 %v2250
      %v2743 = vunpack.c.l.b16 %v2251
      %v2744 = vunpack.c.h.b16 %v2251
      %v2745 = vunpack.c.l.b16 %v2252
      %v2746 = vunpack.c.h.b16 %v2252
      %v2747 = vunpack.c.l.b16 %v2253
      %v2748 = vunpack.c.h.b16 %v2253
      %v2749 = vunpack.c.l.b16 %v2254
      %v2750 = vunpack.c.h.b16 %v2254
      %v2751 = vunpack.c.l.b16 %v2255
      %v2752 = vunpack.c.l.b16 %v2256
      %v2753 = vunpack.c.h.b16 %v2256
      %v2754 = vunpack.c.l.b16 %v2257
      %v2755 = vunpack.c.h.b16 %v2257
      %v2756 = vunpack.c.l.b16 %v2258
      %v2757 = vunpack.c.h.b16 %v2258
      %v2758 = vunpack.c.l.b16 %v2259
      %v2759 = vunpack.c.h.b16 %v2259
      %v2760 = vunpack.c.l.b16 %v2260
      %v2761 = vunpack.c.l.b16 %v2261
      %v2762 = vunpack.c.h.b16 %v2261
      %v2763 = vunpack.c.l.b16 %v2262
      %v2764 = vunpack.c.h.b16 %v2262
      %v2765 = vunpack.c.l.b16 %v2263
      %v2766 = vunpack.c.h.b16 %v2263
      %v2767 = vunpack.c.l.b16 %v2264
      %v2768 = vunpack.c.h.b16 %v2264
      %v2769 = vunpack.c.l.b16 %v2265
      %v2770 = vunpack.c.l.b16 %v2266
      %v2771 = vunpack.c.h.b16 %v2266
      %v2772 = vunpack.c.l.b16 %v2267
      %v2773 = vunpack.c.h.b16 %v2267
      %v2774 = vunpack.c.l.b16 %v2268
      %v2775 = vunpack.c.h.b16 %v2268
      %v2776 = vunpack.c.l.b16 %v2269
      %v2777 = vunpack.c.h.b16 %v2269
      %v2778 = vunpack.c.l.b16 %v2270
      %v2779 = vunpack.c.l.b16 %v2271
      %v2780 = vunpack.c.h.b16 %v2271
      %v2781 = vunpack.c.l.b16 %v2272
      %v2782 = vunpack.c.h.b16 %v2272
      %v2783 = vunpack.c.l.b16 %v2273
      %v2784 = vunpack.c.h.b16 %v2273
      %v2785 = vunpack.c.l.b16 %v2274
      %v2786 = vunpack.c.h.b16 %v2274
      %v2787 = vunpack.c.l.b16 %v2275
      %v2788 = vunpack.c.l.b16 %v2276
      %v2789 = vunpack.c.h.b16 %v2276
      %v2790 = vunpack.c.l.b16 %v2277
      %v2791 = vunpack.c.h.b16 %v2277
      %v2792 = vunpack.c.l.b16 %v2278
      %v2793 = vunpack.c.h.b16 %v2278
      %v2794 = vunpack.c.l.b16 %v2279
      %v2795 = vunpack.c.h.b16 %v2279
      %v2796 = vunpack.c.l.b16 %v2280
      %v2797 = vunpack.c.l.b16 %v2281
      %v2798 = vunpack.c.h.b16 %v2281
      %v2799 = vunpack.c.l.b16 %v2282
      %v2800 = vunpack.c.h.b16 %v2282
      %v2801 = vunpack.c.l.b16 %v2283
      %v2802 = vunpack.c.h.b16 %v2283
      %v2803 = vunpack.c.l.b16 %v2284
      %v2804 = vunpack.c.h.b16 %v2284
      %v2805 = vunpack.c.l.b16 %v2285
      %v2806 = vunpack.c.l.b16 %v2286
      %v2807 = vunpack.c.h.b16 %v2286
      %v2808 = vunpack.c.l.b16 %v2287
      %v2809 = vunpack.c.h.b16 %v2287
      %v2810 = vunpack.c.l.b16 %v2288
      %v2811 = vunpack.c.h.b16 %v2288
      %v2812 = vunpack.c.l.b16 %v2289
      %v2813 = vunpack.c.h.b16 %v2289
      %v2814 = vunpack.c.l.b16 %v2290
      %v2815 = vunpack.c.l.b16 %v2291
      %v2816 = vunpack.c.h.b16 %v2291
      %v2817 = vunpack.c.l.b16 %v2292
      %v2818 = vunpack.c.h.b16 %v2292
      %v2819 = vunpack.c.l.b16 %v2293
      %v2820 = vunpack.c.h.b16 %v2293
      %v2821 = vunpack.c.l.b16 %v2294
      %v2822 = vunpack.c.h.b16 %v2294
      %v2823 = vunpack.c.l.b16 %v2295
      %v2824 = vunpack.c.l.b16 %v2296
      %v2825 = vunpack.c.h.b16 %v2296
      %v2826 = vunpack.c.l.b16 %v2297
      %v2827 = vunpack.c.h.b16 %v2297
      %v2828 = vunpack.c.l.b16 %v2298
      %v2829 = vunpack.c.h.b16 %v2298
      %v2830 = vunpack.c.l.b16 %v2299
      %v2831 = vunpack.c.h.b16 %v2299
      %v2832 = vunpack.c.l.b16 %v2300
      %v2833 = vunpack.c.l.b16 %v2301
      %v2834 = vunpack.c.h.b16 %v2301
      %v2835 = vunpack.c.l.b16 %v2302
      %v2836 = vunpack.c.h.b16 %v2302
      %v2837 = vunpack.c.l.b16 %v2303
      %v2838 = vunpack.c.h.b16 %v2303
      %v2839 = vunpack.c.l.b16 %v2304
      %v2840 = vunpack.c.h.b16 %v2304
      %v2841 = vunpack.c.l.b16 %v2305
      %v2842 = vunpack.c.l.b16 %v2306
      %v2843 = vunpack.c.h.b16 %v2306
      %v2844 = vunpack.c.l.b16 %v2307
      %v2845 = vunpack.c.h.b16 %v2307
      %v2846 = vunpack.c.l.b16 %v2308
      %v2847 = vunpack.c.h.b16 %v2308
      %v2848 = vunpack.c.l.b16 %v2309
      %v2849 = vunpack.c.h.b16 %v2309
      %v2850 = vunpack.c.l.b16 %v2310
      %v2851 = vunpack.c.l.b16 %v2311
      %v2852 = vunpack.c.h.b16 %v2311
      %v2853 = vunpack.c.l.b16 %v2312
      %v2854 = vunpack.c.h.b16 %v2312
      %v2855 = vunpack.c.l.b16 %v2313
      %v2856 = vunpack.c.h.b16 %v2313
      %v2857 = vunpack.c.l.b16 %v2314
      %v2858 = vunpack.c.h.b16 %v2314
      %v2859 = vunpack.c.l.b16 %v2315
      %v2860 = vunpack.c.l.b16 %v2316
      %v2861 = vunpack.c.h.b16 %v2316
      %v2862 = vunpack.c.l.b16 %v2317
      %v2863 = vunpack.c.h.b16 %v2317
      %v2864 = vunpack.c.l.b16 %v2318
      %v2865 = vunpack.c.h.b16 %v2318
      %v2866 = vunpack.c.l.b16 %v2319
      %v2867 = vunpack.c.h.b16 %v2319
      %v2868 = vunpack.c.l.b16 %v2320
      %v2869 = vunpack.c.l.b16 %v2321
      %v2870 = vunpack.c.h.b16 %v2321
      %v2871 = vunpack.c.l.b16 %v2322
      %v2872 = vunpack.c.h.b16 %v2322
      %v2873 = vunpack.c.l.b16 %v2323
      %v2874 = vunpack.c.h.b16 %v2323
      %v2875 = vunpack.c.l.b16 %v2324
      %v2876 = vunpack.c.h.b16 %v2324
      %v2877 = vunpack.c.l.b16 %v2325
      %v2878 = vunpack.c.l.b16 %v2326
      %v2879 = vunpack.c.h.b16 %v2326
      %v2880 = vunpack.c.l.b16 %v2327
      %v2881 = vunpack.c.h.b16 %v2327
      %v2882 = vunpack.c.l.b16 %v2328
      %v2883 = vunpack.c.h.b16 %v2328
      %v2884 = vunpack.c.l.b16 %v2329
      %v2885 = vunpack.c.h.b16 %v2329
      %v2886 = vunpack.c.l.b16 %v2330
      %v2887 = vunpack.c.l.b16 %v2331
      %v2888 = vunpack.c.h.b16 %v2331
      %v2889 = vunpack.c.l.b16 %v2332
      %v2890 = vunpack.c.h.b16 %v2332
      %v2891 = vunpack.c.l.b16 %v2333
      %v2892 = vunpack.c.h.b16 %v2333
      %v2893 = vunpack.c.l.b16 %v2334
      %v2894 = vunpack.c.h.b16 %v2334
      %v2895 = vunpack.c.l.b16 %v2335
      %v2896 = vunpack.c.l.b16 %v2336
      %v2897 = vunpack.c.h.b16 %v2336
      %v2898 = vunpack.c.l.b16 %v2337
      %v2899 = vunpack.c.h.b16 %v2337
      %v2900 = vunpack.c.l.b16 %v2338
      %v2901 = vunpack.c.h.b16 %v2338
      %v2902 = vunpack.c.l.b16 %v2339
      %v2903 = vunpack.c.h.b16 %v2339
      %v2904 = vunpack.c.l.b16 %v2340
      %v2905 = vunpack.c.l.b16 %v2341
      %v2906 = vunpack.c.h.b16 %v2341
      %v2907 = vunpack.c.l.b16 %v2342
      %v2908 = vunpack.c.h.b16 %v2342
      %v2909 = vunpack.c.l.b16 %v2343
      %v2910 = vunpack.c.h.b16 %v2343
      %v2911 = vunpack.c.l.b16 %v2344
      %v2912 = vunpack.c.h.b16 %v2344
      %v2913 = vunpack.c.l.b16 %v2345
      %v2914 = vunpack.c.l.b16 %v2346
      %v2915 = vunpack.c.h.b16 %v2346
      %v2916 = vunpack.c.l.b16 %v2347
      %v2917 = vunpack.c.h.b16 %v2347
      %v2918 = vunpack.c.l.b16 %v2348
      %v2919 = vunpack.c.h.b16 %v2348
      %v2920 = vunpack.c.l.b16 %v2349
      %v2921 = vunpack.c.h.b16 %v2349
      %v2922 = vunpack.c.l.b16 %v2350
      %v2923 = vunpack.c.l.b16 %v2351
      %v2924 = vunpack.c.h.b16 %v2351
      %v2925 = vunpack.c.l.b16 %v2352
      %v2926 = vunpack.c.h.b16 %v2352
      %v2927 = vunpack.c.l.b16 %v2353
      %v2928 = vunpack.c.h.b16 %v2353
      %v2929 = vunpack.c.l.b16 %v2354
      %v2930 = vunpack.c.h.b16 %v2354
      %v2931 = vunpack.c.l.b16 %v2355
      %v2932 = vunpack.c.l.b16 %v2356
      %v2933 = vunpack.c.h.b16 %v2356
      %v2934 = vunpack.c.l.b16 %v2357
      %v2935 = vunpack.c.h.b16 %v2357
      %v2936 = vunpack.c.l.b16 %v2358
      %v2937 = vunpack.c.h.b16 %v2358
      %v2938 = vunpack.c.l.b16 %v2359
      %v2939 = vunpack.c.h.b16 %v2359
      %v2940 = vunpack.c.l.b16 %v2360
      %v2941 = vunpack.c.l.b16 %v2361
      %v2942 = vunpack.c.h.b16 %v2361
      %v2943 = vunpack.c.l.b16 %v2362
      %v2944 = vunpack.c.h.b16 %v2362
      %v2945 = vunpack.c.l.b16 %v2363
      %v2946 = vunpack.c.h.b16 %v2363
      %v2947 = vunpack.c.l.b16 %v2364
      %v2948 = vunpack.c.h.b16 %v2364
      %v2949 = vunpack.c.l.b16 %v2365
      %v2950 = vunpack.c.l.b16 %v2366
      %v2951 = vunpack.c.h.b16 %v2366
      %v2952 = vunpack.c.l.b16 %v2367
      %v2953 = vunpack.c.h.b16 %v2367
      %v2954 = vunpack.c.l.b16 %v2368
      %v2955 = vunpack.c.h.b16 %v2368
      %v2956 = vunpack.c.l.b16 %v2369
      %v2957 = vunpack.c.h.b16 %v2369
      %v2958 = vunpack.c.l.b16 %v2370
      %v2959 = vunpack.c.l.b16 %v2371
      %v2960 = vunpack.c.h.b16 %v2371
      %v2961 = vunpack.c.l.b16 %v2372
      %v2962 = vunpack.c.h.b16 %v2372
      %v2963 = vunpack.c.l.b16 %v2373
      %v2964 = vunpack.c.h.b16 %v2373
      %v2965 = vunpack.c.l.b16 %v2374
      %v2966 = vunpack.c.h.b16 %v2374
      %v2967 = vunpack.c.l.b16 %v2375
      %v2968 = vpack.c.b16 %v2689, %v2680
      %v2969 = vpack.c.b16 %v2690, %v2681
      %v2970 = vpack.c.b16 %v2691, %v2682
      %v2971 = vpack.c.b16 %v2692, %v2683
      %v2972 = vpack.c.b16 %v2693, %v2684
      %v2973 = vpack.c.b16 %v2694, %v2685
      %v2974 = vpack.c.b16 %v2695, %v2686
      %v2975 = vpack.c.b16 %v2696, %v2687
      %v2976 = vpack.c.b16 %v2697, %v2688
      %v2977 = vpack.c.b16 %v2707, %v2698
      %v2978 = vpack.c.b16 %v2708, %v2699
      %v2979 = vpack.c.b16 %v2709, %v2700
      %v2980 = vpack.c.b16 %v2710, %v2701
      %v2981 = vpack.c.b16 %v2711, %v2702
      %v2982 = vpack.c.b16 %v2712, %v2703
      %v2983 = vpack.c.b16 %v2713, %v2704
      %v2984 = vpack.c.b16 %v2714, %v2705
      %v2985 = vpack.c.b16 %v2715, %v2706
      %v2986 = vpack.c.b16 %v2725, %v2716
      %v2987 = vpack.c.b16 %v2726, %v2717
      %v2988 = vpack.c.b16 %v2727, %v2718
      %v2989 = vpack.c.b16 %v2728, %v2719
      %v2990 = vpack.c.b16 %v2729, %v2720
      %v2991 = vpack.c.b16 %v2730, %v2721
      %v2992 = vpack.c.b16 %v2731, %v2722
      %v2993 = vpack.c.b16 %v2732, %v2723
      %v2994 = vpack.c.b16 %v2733, %v2724
      %v2995 = vpack.c.b16 %v2743, %v2734
      %v2996 = vpack.c.b16 %v2744, %v2735
      %v2997 = vpack.c.b16 %v2745, %v2736
      %v2998 = vpack.c.b16 %v2746, %v2737
      %v2999 = vpack.c.b16 %v2747, %v2738
      %v3000 = vpack.c.b16 %v2748, %v2739
      %v3001 = vpack.c.b16 %v2749, %v2740
      %v3002 = vpack.c.b16 %v2750, %v2741
      %v3003 = vpack.c.b16 %v2751, %v2742
      %v3004 = vpack.c.b16 %v2761, %v2752
      %v3005 = vpack.c.b16 %v2762, %v2753
      %v3006 = vpack.c.b16 %v2763, %v2754
      %v3007 = vpack.c.b16 %v2764, %v2755
      %v3008 = vpack.c.b16 %v2765, %v2756
      %v3009 = vpack.c.b16 %v2766, %v2757
      %v3010 = vpack.c.b16 %v2767, %v2758
      %v3011 = vpack.c.b16 %v2768, %v2759
      %v3012 = vpack.c.b16 %v2769, %v2760
      %v3013 = vpack.c.b16 %v2779, %v2770
      %v3014 = vpack.c.b16 %v2780, %v2771
      %v3015 = vpack.c.b16 %v2781, %v2772
      %v3016 = vpack.c.b16 %v2782, %v2773
      %v3017 = vpack.c.b16 %v2783, %v2774
      %v3018 = vpack.c.b16 %v2784, %v2775
      %v3019 = vpack.c.b16 %v2785, %v2776
      %v3020 = vpack.c.b16 %v2786, %v2777
      %v3021 = vpack.c.b16 %v2787, %v2778
      %v3022 = vpack.c.b16 %v2797, %v2788
      %v3023 = vpack.c.b16 %v2798, %v2789
      %v3024 = vpack.c.b16 %v2799, %v2790
      %v3025 = vpack.c.b16 %v2800, %v2791
      %v3026 = vpack.c.b16 %v2801, %v2792
      %v3027 = vpack.c.b16 %v2802, %v2793
      %v3028 = vpack.c.b16 %v2803, %v2794
      %v3029 = vpack.c.b16 %v2804, %v2795
      %v3030 = vpack.c.b16 %v2805, %v2796
      %v3031 = vpack.c.b16 %v2815, %v2806
      %v3032 = vpack.c.b16 %v2816, %v2807
      %v3033 = vpack.c.b16 %v2817, %v2808
      %v3034 = vpack.c.b16 %v2818, %v2809
      %v3035 = vpack.c.b16 %v2819, %v2810
      %v3036 = vpack.c.b16 %v2820, %v2811
      %v3037 = vpack.c.b16 %v2821, %v2812
      %v3038 = vpack.c.b16 %v2822, %v2813
      %v3039 = vpack.c.b16 %v2823, %v2814
      %v3040 = vpack.c.b16 %v2833, %v2824
      %v3041 = vpack.c.b16 %v2834, %v2825
      %v3042 = vpack.c.b16 %v2835, %v2826
      %v3043 = vpack.c.b16 %v2836, %v2827
      %v3044 = vpack.c.b16 %v2837, %v2828
      %v3045 = vpack.c.b16 %v2838, %v2829
      %v3046 = vpack.c.b16 %v2839, %v2830
      %v3047 = vpack.c.b16 %v2840, %v2831
      %v3048 = vpack.c.b16 %v2841, %v2832
      %v3049 = vpack.c.b16 %v2851, %v2842
      %v3050 = vpack.c.b16 %v2852, %v2843
      %v3051 = vpack.c.b16 %v2853, %v2844
      %v3052 = vpack.c.b16 %v2854, %v2845
      %v3053 = vpack.c.b16 %v2855, %v2846
      %v3054 = vpack.c.b16 %v2856, %v2847
      %v3055 = vpack.c.b16 %v2857, %v2848
      %v3056 = vpack.c.b16 %v2858, %v2849
      %v3057 = vpack.c.b16 %v2859, %v2850
      %v3058 = vpack.c.b16 %v2869, %v2860
      %v3059 = vpack.c.b16 %v2870, %v2861
      %v3060 = vpack.c.b16 %v2871, %v2862
      %v3061 = vpack.c.b16 %v2872, %v2863
      %v3062 = vpack.c.b16 %v2873, %v2864
      %v3063 = vpack.c.b16 %v2874, %v2865
      %v3064 = vpack.c.b16 %v2875, %v2866
      %v3065 = vpack.c.b16 %v2876, %v2867
      %v3066 = vpack.c.b16 %v2877, %v2868
      %v3067 = vpack.c.b16 %v2887, %v2878
      %v3068 = vpack.c.b16 %v2888, %v2879
      %v3069 = vpack.c.b16 %v2889, %v2880
      %v3070 = vpack.c.b16 %v2890, %v2881
      %v3071 = vpack.c.b16 %v2891, %v2882
      %v3072 = vpack.c.b16 %v2892, %v2883
      %v3073 = vpack.c.b16 %v2893, %v2884
      %v3074 = vpack.c.b16 %v2894, %v2885
      %v3075 = vpack.c.b16 %v2895, %v2886
      %v3076 = vpack.c.b16 %v2905, %v2896
      %v3077 = vpack.c.b16 %v2906, %v2897
      %v3078 = vpack.c.b16 %v2907, %v2898
      %v3079 = vpack.c.b16 %v2908, %v2899
      %v3080 = vpack.c.b16 %v2909, %v2900
      %v3081 = vpack.c.b16 %v2910, %v2901
      %v3082 = vpack.c.b16 %v2911, %v2902
      %v3083 = vpack.c.b16 %v2912, %v2903
      %v3084 = vpack.c.b16 %v2913, %v2904
      %v3085 = vpack.c.b16 %v2923, %v2914
      %v3086 = vpack.c.b16 %v2924, %v2915
      %v3087 = vpack.c.b16 %v2925, %v2916
      %v3088 = vpack.c.b16 %v2926, %v2917
      %v3089 = vpack.c.b16 %v2927, %v2918
      %v3090 = vpack.c.b16 %v2928, %v2919
      %v3091 = vpack.c.b16 %v2929, %v2920
      %v3092 = vpack.c.b16 %v2930, %v2921
      %v3093 = vpack.c.b16 %v2931, %v2922
      %v3094 = vpack.c.b16 %v2941, %v2932
      %v3095 = vpack.c.b16 %v2942, %v2933
      %v3096 = vpack.c.b16 %v2943, %v2934
      %v3097 = vpack.c.b16 %v2944, %v2935
      %v3098 = vpack.c.b16 %v2945, %v2936
      %v3099 = vpack.c.b16 %v2946, %v2937
      %v3100 = vpack.c.b16 %v2947, %v2938
      %v3101 = vpack.c.b16 %v2948, %v2939
      %v3102 = vpack.c.b16 %v2949, %v2940
      %v3103 = vpack.c.b16 %v2959, %v2950
      %v3104 = vpack.c.b16 %v2960, %v2951
      %v3105 = vpack.c.b16 %v2961, %v2952
      %v3106 = vpack.c.b16 %v2962, %v2953
      %v3107 = vpack.c.b16 %v2963, %v2954
      %v3108 = vpack.c.b16 %v2964, %v2955
      %v3109 = vpack.c.b16 %v2965, %v2956
      %v3110 = vpack.c.b16 %v2966, %v2957
      %v3111 = vpack.c.b16 %v2967, %v2958
      %v3400 = vunpack.c.l.b16 %v2376
      %v3401 = vunpack.c.l.b16 %v2377
      %v3402 = vunpack.c.l.b16 %v2378
      %v3403 = vunpack.c.l.b16 %v2379
      %v3404 = vunpack.c.l.b16 %v2380
      %v3405 = vunpack.c.l.b16 %v2381
      %v3406 = vunpack.c.l.b16 %v2382
      %v3407 = vunpack.c.l.b16 %v2383
      %v3408 = vunpack.c.l.b16 %v2384
      %v3409 = vunpack.c.l.b16 %v2385
      %v3410 = vunpack.c.l.b16 %v2386
      %v3411 = vunpack.c.l.b16 %v2387
      %v3412 = vunpack.c.l.b16 %v2388
      %v3413 = vunpack.c.l.b16 %v2389
      %v3414 = vunpack.c.l.b16 %v2390
      %v3415 = vunpack.c.l.b16 %v2391
      %v3416 = vunpack.c.l.b16 %v2392
      %v3417 = vunpack.c.l.b16 %v2393
      %v3418 = vunpack.c.l.b16 %v2394
      %v3419 = vunpack.c.l.b16 %v2395
      %v3420 = vunpack.c.l.b16 %v2396
      %v3421 = vunpack.c.l.b16 %v2397
      %v3422 = vunpack.c.l.b16 %v2398
      %v3423 = vunpack.c.l.b16 %v2399
      %v3424 = vunpack.c.l.b16 %v2400
      %v3425 = vunpack.c.l.b16 %v2401
      %v3426 = vunpack.c.l.b16 %v2402
      %v3427 = vunpack.c.l.b16 %v2403
      %v3428 = vunpack.c.l.b16 %v2404
      %v3429 = vunpack.c.l.b16 %v2405
      %v3430 = vunpack.c.l.b16 %v2406
      %v3431 = vunpack.c.l.b16 %v2407
      %v3432 = vunpack.c.l.b16 %v2408
      %v3433 = vunpack.c.l.b16 %v2409
      %v3434 = vunpack.c.l.b16 %v2410
      %v3435 = vunpack.c.l.b16 %v2411
      %v3436 = vunpack.c.l.b16 %v2412
      %v3437 = vunpack.c.l.b16 %v2413
      %v3438 = vunpack.c.l.b16 %v2414
      %v3439 = vunpack.c.l.b16 %v2415
      %v3440 = vunpack.c.l.b16 %v2416
      %v3441 = vunpack.c.l.b16 %v2417
      %v3442 = vunpack.c.l.b16 %v2418
      %v3443 = vunpack.c.l.b16 %v2419
      %v3444 = vunpack.c.l.b16 %v2420
      %v3445 = vunpack.c.l.b16 %v2421
      %v3446 = vunpack.c.l.b16 %v2422
      %v3447 = vunpack.c.l.b16 %v2423
      %v3448 = vunpack.c.l.b16 %v2424
      %v3449 = vunpack.c.l.b16 %v2425
      %v3450 = vunpack.c.l.b16 %v2426
      %v3451 = vunpack.c.l.b16 %v2427
      %v3452 = vunpack.c.l.b16 %v2428
      %v3453 = vunpack.c.l.b16 %v2429
      %v3454 = vunpack.c.l.b16 %v2430
      %v3455 = vunpack.c.l.b16 %v2431
      %v3456 = vunpack.c.l.b16 %v2432
      %v3457 = vunpack.c.l.b16 %v2433
      %v3458 = vunpack.c.l.b16 %v2434
      %v3459 = vunpack.c.l.b16 %v2435
      %v3460 = vunpack.c.l.b16 %v2436
      %v3461 = vunpack.c.l.b16 %v2437
      %v3462 = vunpack.c.l.b16 %v2438
      %v3463 = vunpack.c.l.b16 %v2439
      %v3464 = vunpack.c.l.b16 %v2440
      %v3465 = vunpack.c.l.b16 %v2441
      %v3466 = vunpack.c.l.b16 %v2442
      %v3467 = vunpack.c.l.b16 %v2443
      %v3468 = vunpack.c.l.b16 %v2444
      %v3469 = vunpack.c.l.b16 %v2445
      %v3470 = vunpack.c.l.b16 %v2446
      %v3471 = vunpack.c.l.b16 %v2447
      %v3472 = vunpack.c.l.b16 %v2448
      %v3473 = vunpack.c.l.b16 %v2449
      %v3474 = vunpack.c.l.b16 %v2450
      %v3475 = vunpack.c.l.b16 %v2451
      %v3476 = vunpack.c.l.b16 %v2452
      %v3477 = vunpack.c.l.b16 %v2453
      %v3478 = vunpack.c.l.b16 %v2454
      %v3479 = vunpack.c.l.b16 %v2455
      %v3480 = vunpack.c.l.b16 %v2456
      %v3481 = vunpack.c.l.b16 %v2457
      %v3482 = vunpack.c.l.b16 %v2458
      %v3483 = vunpack.c.l.b16 %v2459
      %v3484 = vunpack.c.l.b16 %v2460
      %v3485 = vunpack.c.l.b16 %v2461
      %v3486 = vunpack.c.l.b16 %v2462
      %v3487 = vunpack.c.l.b16 %v2463
      %v3488 = vunpack.c.l.b16 %v2464
      %v3489 = vunpack.c.l.b16 %v2465
      %v3490 = vunpack.c.l.b16 %v2466
      %v3491 = vunpack.c.l.b16 %v2467
      %v3492 = vunpack.c.l.b16 %v2468
      %v3493 = vunpack.c.l.b16 %v2469
      %v3494 = vunpack.c.l.b16 %v2470
      %v3495 = vunpack.c.l.b16 %v2471
      %v3496 = vunpack.c.l.b16 %v2472
      %v3497 = vunpack.c.l.b16 %v2473
      %v3498 = vunpack.c.l.b16 %v2474
      %v3499 = vunpack.c.l.b16 %v2475
      %v3500 = vunpack.c.l.b16 %v2476
      %v3501 = vunpack.c.l.b16 %v2477
      %v3502 = vunpack.c.l.b16 %v2478
      %v3503 = vunpack.c.l.b16 %v2479
      %v3504 = vunpack.c.l.b16 %v2480
      %v3505 = vunpack.c.l.b16 %v2481
      %v3506 = vunpack.c.l.b16 %v2482
      %v3507 = vunpack.c.l.b16 %v2483
      %v3508 = vunpack.c.l.b16 %v2484
      %v3509 = vunpack.c.l.b16 %v2485
      %v3510 = vunpack.c.l.b16 %v2486
      %v3511 = vunpack.c.l.b16 %v2487
      %v3512 = vunpack.c.l.b16 %v2488
      %v3513 = vunpack.c.l.b16 %v2489
      %v3514 = vunpack.c.l.b16 %v2490
      %v3515 = vunpack.c.l.b16 %v2491
      %v3516 = vunpack.c.l.b16 %v2492
      %v3517 = vunpack.c.l.b16 %v2493
      %v3518 = vunpack.c.l.b16 %v2494
      %v3519 = vunpack.c.l.b16 %v2495
      %v3520 = vunpack.c.l.b16 %v2496
      %v3521 = vunpack.c.l.b16 %v2497
      %v3522 = vunpack.c.l.b16 %v2498
      %v3523 = vunpack.c.l.b16 %v2499
      %v3524 = vunpack.c.l.b16 %v2500
      %v3525 = vunpack.c.l.b16 %v2501
      %v3526 = vunpack.c.l.b16 %v2502
      %v3527 = vunpack.c.l.b16 %v2503
      %v3528 = vunpack.c.l.b16 %v2504
      %v3529 = vunpack.c.l.b16 %v2505
      %v3530 = vunpack.c.l.b16 %v2506
      %v3531 = vunpack.c.l.b16 %v2507
      %v3532 = vunpack.c.l.b16 %v2508
      %v3533 = vunpack.c.l.b16 %v2509
      %v3534 = vunpack.c.l.b16 %v2510
      %v3535 = vunpack.c.l.b16 %v2511
      %v3536 = vunpack.c.l.b16 %v2512
      %v3537 = vunpack.c.l.b16 %v2513
      %v3538 = vunpack.c.l.b16 %v2514
      %v3539 = vunpack.c.l.b16 %v2515
      %v3540 = vunpack.c.l.b16 %v2516
      %v3541 = vunpack.c.l.b16 %v2517
      %v3542 = vunpack.c.l.b16 %v2518
      %v3543 = vunpack.c.l.b16 %v2519
      %v3544 = vpack.c.b16 %v3401, %v3400
      %v3545 = vpack.c.b16 %v3403, %v3402
      %v3546 = vpack.c.b16 %v3405, %v3404
      %v3547 = vpack.c.b16 %v3407, %v3406
      %v3548 = vpack.c.b16 %v3409, %v3408
      %v3549 = vpack.c.b16 %v3411, %v3410
      %v3550 = vpack.c.b16 %v3413, %v3412
      %v3551 = vpack.c.b16 %v3415, %v3414
      %v3552 = vpack.c.b16 %v3417, %v3416
      %v3553 = vpack.c.b16 %v3419, %v3418
      %v3554 = vpack.c.b16 %v3421, %v3420
      %v3555 = vpack.c.b16 %v3423, %v3422
      %v3556 = vpack.c.b16 %v3425, %v3424
      %v3557 = vpack.c.b16 %v3427, %v3426
      %v3558 = vpack.c.b16 %v3429, %v3428
      %v3559 = vpack.c.b16 %v3431, %v3430
      %v3560 = vpack.c.b16 %v3433, %v3432
      %v3561 = vpack.c.b16 %v3435, %v3434
      %v3562 = vpack.c.b16 %v3437, %v3436
      %v3563 = vpack.c.b16 %v3439, %v3438
      %v3564 = vpack.c.b16 %v3441, %v3440
      %v3565 = vpack.c.b16 %v3443, %v3442
      %v3566 = vpack.c.b16 %v3445, %v3444
      %v3567 = vpack.c.b16 %v3447, %v3446
      %v3568 = vpack.c.b16 %v3449, %v3448
      %v3569 = vpack.c.b16 %v3451, %v3450
      %v3570 = vpack.c.b16 %v3453, %v3452
      %v3571 = vpack.c.b16 %v3455, %v3454
      %v3572 = vpack.c.b16 %v3457, %v3456
      %v3573 = vpack.c.b16 %v3459, %v3458
      %v3574 = vpack.c.b16 %v3461, %v3460
      %v3575 = vpack.c.b16 %v3463, %v3462
      %v3576 = vpack.c.b16 %v3465, %v3464
      %v3577 = vpack.c.b16 %v3467, %v3466
      %v3578 = vpack.c.b16 %v3469, %v3468
      %v3579 = vpack.c.b16 %v3471, %v3470
      %v3580 = vpack.c.b16 %v3473, %v3472
      %v3581 = vpack.c.b16 %v3475, %v3474
      %v3582 = vpack.c.b16 %v3477, %v3476
      %v3583 = vpack.c.b16 %v3479, %v3478
      %v3584 = vpack.c.b16 %v3481, %v3480
      %v3585 = vpack.c.b16 %v3483, %v3482
      %v3586 = vpack.c.b16 %v3485, %v3484
      %v3587 = vpack.c.b16 %v3487, %v3486
      %v3588 = vpack.c.b16 %v3489, %v3488
      %v3589 = vpack.c.b16 %v3491, %v3490
      %v3590 = vpack.c.b16 %v3493, %v3492
      %v3591 = vpack.c.b16 %v3495, %v3494
      %v3592 = vpack.c.b16 %v3497, %v3496
      %v3593 = vpack.c.b16 %v3499, %v3498
      %v3594 = vpack.c.b16 %v3501, %v3500
      %v3595 = vpack.c.b16 %v3503, %v3502
      %v3596 = vpack.c.b16 %v3505, %v3504
      %v3597 = vpack.c.b16 %v3507, %v3506
      %v3598 = vpack.c.b16 %v3509, %v3508
      %v3599 = vpack.c.b16 %v3511, %v3510
      %v3600 = vpack.c.b16 %v3513, %v3512
      %v3601 = vpack.c.b16 %v3515, %v3514
      %v3602 = vpack.c.b16 %v3517, %v3516
      %v3603 = vpack.c.b16 %v3519, %v3518
      %v3604 = vpack.c.b16 %v3521, %v3520
      %v3605 = vpack.c.b16 %v3523, %v3522
      %v3606 = vpack.c.b16 %v3525, %v3524
      %v3607 = vpack.c.b16 %v3527, %v3526
      %v3608 = vpack.c.b16 %v3529, %v3528
      %v3609 = vpack.c.b16 %v3531, %v3530
      %v3610 = vpack.c.b16 %v3533, %v3532
      %v3611 = vpack.c.b16 %v3535, %v3534
      %v3612 = vpack.c.b16 %v3537, %v3536
      %v3613 = vpack.c.b16 %v3539, %v3538
      %v3614 = vpack.c.b16 %v3541, %v3540
      %v3615 = vpack.c.b16 %v3543, %v3542
      %3688 = vmatprep.subr.bf16.mxu0 0
      %3689 = vmatpush1.bf16.msra.mxu0 %v3551
      %3690 = vmatprep.subr.bf16.mxu0 0
      %3691 = vmatpush1.bf16.msra.mxu0 %v3550
      %3692 = vmatprep.subr.bf16.mxu0 0
      %3693 = vmatpush1.bf16.msra.mxu0 %v3549
      %3694 = vmatprep.subr.bf16.mxu0 0
      %3695 = vmatpush1.bf16.msra.mxu0 %v3548
      %3696 = vmatprep.subr.bf16.mxu0 0
      %3697 = vmatpush1.bf16.msra.mxu0 %v3547
      %3698 = vmatprep.subr.bf16.mxu0 0
      %3699 = vmatpush1.bf16.msra.mxu0 %v3546
      %3700 = vmatprep.subr.bf16.mxu0 0
      %3701 = vmatpush1.bf16.msra.mxu0 %v3545
      %3702 = vmatprep.subr.bf16.mxu0 0
      %3703 = vmatpush1.bf16.msra.mxu0 %v3544
      %3704 = vmatprep.subr.bf16.mxu0 0
      %3705 = vmatpush2.bf16.msra.mxu0 %v3559
      %3706 = vmatprep.subr.bf16.mxu0 0
      %3707 = vmatpush2.bf16.msra.mxu0 %v3558
      %3708 = vmatprep.subr.bf16.mxu0 0
      %3709 = vmatpush2.bf16.msra.mxu0 %v3557
      %3710 = vmatprep.subr.bf16.mxu0 0
      %3711 = vmatpush2.bf16.msra.mxu0 %v3556
      %3712 = vmatprep.subr.bf16.mxu0 0
      %3713 = vmatpush2.bf16.msra.mxu0 %v3555
      %3714 = vmatprep.subr.bf16.mxu0 0
      %3715 = vmatpush2.bf16.msra.mxu0 %v3554
      %3716 = vmatprep.subr.bf16.mxu0 0
      %3717 = vmatpush2.bf16.msra.mxu0 %v3553
      %3718 = vmatprep.subr.bf16.mxu0 0
      %3719 = vmatpush2.bf16.msra.mxu0 %v3552
      %3720 = vmatprep.mubr.bf16.mxu0 %v2969
      %3721 = vmatmul.mubr.bf16.gmra.mxu0 %v2968
      %v3722 = vpop.f32.mrf.mxu0
      %v3723 = vadd.f32 0.0, %v3722
      %v3724 = vpop.f32.mrf.mxu0
      %v3725 = vpop.f32.mrf.mxu0
      %v3726 = vadd.f32 0.0, %v3725
      %v3727 = vpop.f32.mrf.mxu0
      %3728 = vmatprep.mubr.bf16.mxu0 %v2978
      %3729 = vmatmul.mubr.bf16.gmra.mxu0 %v2977
      %v3730 = vpop.f32.mrf.mxu0
      %v3731 = vadd.f32 0.0, %v3730
      %v3732 = vpop.f32.mrf.mxu0
      %v3733 = vpop.f32.mrf.mxu0
      %v3734 = vadd.f32 0.0, %v3733
      %v3735 = vpop.f32.mrf.mxu0
      %3736 = vmatprep.mubr.bf16.mxu0 %v2987
      %3737 = vmatmul.mubr.bf16.gmra.mxu0 %v2986
      %v3738 = vpop.f32.mrf.mxu0
      %v3739 = vadd.f32 0.0, %v3738
      %v3740 = vpop.f32.mrf.mxu0
      %v3741 = vpop.f32.mrf.mxu0
      %v3742 = vadd.f32 0.0, %v3741
      %v3743 = vpop.f32.mrf.mxu0
      %3744 = vmatprep.mubr.bf16.mxu0 %v2996
      %3745 = vmatmul.mubr.bf16.gmra.mxu0 %v2995
      %v3746 = vpop.f32.mrf.mxu0
      %v3747 = vadd.f32 0.0, %v3746
      %v3748 = vpop.f32.mrf.mxu0
      %v3749 = vpop.f32.mrf.mxu0
      %v3750 = vadd.f32 0.0, %v3749
      %v3751 = vpop.f32.mrf.mxu0
      %3752 = vmatprep.mubr.bf16.mxu0 %v3005
      %3753 = vmatmul.mubr.bf16.gmra.mxu0 %v3004
      %v3754 = vpop.f32.mrf.mxu0
      %v3755 = vadd.f32 0.0, %v3754
      %v3756 = vpop.f32.mrf.mxu0
      %v3757 = vpop.f32.mrf.mxu0
      %v3758 = vadd.f32 0.0, %v3757
      %v3759 = vpop.f32.mrf.mxu0
      %3760 = vmatprep.mubr.bf16.mxu0 %v3014
      %3761 = vmatmul.mubr.bf16.gmra.mxu0 %v3013
      %v3762 = vpop.f32.mrf.mxu0
      %v3763 = vadd.f32 0.0, %v3762
      %v3764 = vpop.f32.mrf.mxu0
      %v3765 = vpop.f32.mrf.mxu0
      %v3766 = vadd.f32 0.0, %v3765
      %v3767 = vpop.f32.mrf.mxu0
      %3768 = vmatprep.mubr.bf16.mxu0 %v3023
      %3769 = vmatmul.mubr.bf16.gmra.mxu0 %v3022
      %v3770 = vpop.f32.mrf.mxu0
      %v3771 = vadd.f32 0.0, %v3770
      %v3772 = vpop.f32.mrf.mxu0
      %v3773 = vpop.f32.mrf.mxu0
      %v3774 = vadd.f32 0.0, %v3773
      %v3775 = vpop.f32.mrf.mxu0
      %3776 = vmatprep.mubr.bf16.mxu0 %v3032
      %3777 = vmatmul.mubr.bf16.gmra.mxu0 %v3031
      %v3778 = vpop.f32.mrf.mxu0
      %v3779 = vadd.f32 0.0, %v3778
      %v3780 = vpop.f32.mrf.mxu0
      %v3781 = vpop.f32.mrf.mxu0
      %v3782 = vadd.f32 0.0, %v3781
      %v3783 = vpop.f32.mrf.mxu0
      %3784 = vmatprep.mubr.bf16.mxu0 %v3041
      %3785 = vmatmul.mubr.bf16.gmra.mxu0 %v3040
      %v3786 = vpop.f32.mrf.mxu0
      %v3787 = vadd.f32 0.0, %v3786
      %v3788 = vpop.f32.mrf.mxu0
      %v3789 = vpop.f32.mrf.mxu0
      %v3790 = vadd.f32 0.0, %v3789
      %v3791 = vpop.f32.mrf.mxu0
      %3792 = vmatprep.mubr.bf16.mxu0 %v3050
      %3793 = vmatmul.mubr.bf16.gmra.mxu0 %v3049
      %v3794 = vpop.f32.mrf.mxu0
      %v3795 = vadd.f32 0.0, %v3794
      %v3796 = vpop.f32.mrf.mxu0
      %v3797 = vpop.f32.mrf.mxu0
      %v3798 = vadd.f32 0.0, %v3797
      %v3799 = vpop.f32.mrf.mxu0
      %3800 = vmatprep.mubr.bf16.mxu0 %v3059
      %3801 = vmatmul.mubr.bf16.gmra.mxu0 %v3058
      %v3802 = vpop.f32.mrf.mxu0
      %v3803 = vadd.f32 0.0, %v3802
      %v3804 = vpop.f32.mrf.mxu0
      %v3805 = vpop.f32.mrf.mxu0
      %v3806 = vadd.f32 0.0, %v3805
      %v3807 = vpop.f32.mrf.mxu0
      %3808 = vmatprep.mubr.bf16.mxu0 %v3068
      %3809 = vmatmul.mubr.bf16.gmra.mxu0 %v3067
      %v3810 = vpop.f32.mrf.mxu0
      %v3811 = vadd.f32 0.0, %v3810
      %v3812 = vpop.f32.mrf.mxu0
      %v3813 = vpop.f32.mrf.mxu0
      %v3814 = vadd.f32 0.0, %v3813
      %v3815 = vpop.f32.mrf.mxu0
      %3816 = vmatprep.mubr.bf16.mxu0 %v3077
      %3817 = vmatmul.mubr.bf16.gmra.mxu0 %v3076
      %v3818 = vpop.f32.mrf.mxu0
      %v3819 = vadd.f32 0.0, %v3818
      %v3820 = vpop.f32.mrf.mxu0
      %v3821 = vpop.f32.mrf.mxu0
      %v3822 = vadd.f32 0.0, %v3821
      %v3823 = vpop.f32.mrf.mxu0
      %3824 = vmatprep.mubr.bf16.mxu0 %v3086
      %3825 = vmatmul.mubr.bf16.gmra.mxu0 %v3085
      %v3826 = vpop.f32.mrf.mxu0
      %v3827 = vadd.f32 0.0, %v3826
      %v3828 = vpop.f32.mrf.mxu0
      %v3829 = vpop.f32.mrf.mxu0
      %v3830 = vadd.f32 0.0, %v3829
      %v3831 = vpop.f32.mrf.mxu0
      %3832 = vmatprep.mubr.bf16.mxu0 %v3095
      %3833 = vmatmul.mubr.bf16.gmra.mxu0 %v3094
      %v3834 = vpop.f32.mrf.mxu0
      %v3835 = vadd.f32 0.0, %v3834
      %v3836 = vpop.f32.mrf.mxu0
      %v3837 = vpop.f32.mrf.mxu0
      %v3838 = vadd.f32 0.0, %v3837
      %v3839 = vpop.f32.mrf.mxu0
      %3840 = vmatprep.mubr.bf16.mxu0 %v3104
      %3841 = vmatmul.mubr.bf16.gmra.mxu0 %v3103
      %v3842 = vpop.f32.mrf.mxu0
      %v3843 = vadd.f32 0.0, %v3842
      %v3844 = vpop.f32.mrf.mxu0
      %v3845 = vpop.f32.mrf.mxu0
      %v3846 = vadd.f32 0.0, %v3845
      %v3847 = vpop.f32.mrf.mxu0
      %3848 = vdwg.mxu0
      %3849 = vmatprep.subr.bf16.mxu0 0
      %3850 = vmatpush1.bf16.msra.mxu0 %v3567
      %3851 = vmatprep.subr.bf16.mxu0 0
      %3852 = vmatpush1.bf16.msra.mxu0 %v3566
      %3853 = vmatprep.subr.bf16.mxu0 0
      %3854 = vmatpush1.bf16.msra.mxu0 %v3565
      %3855 = vmatprep.subr.bf16.mxu0 0
      %3856 = vmatpush1.bf16.msra.mxu0 %v3564
      %3857 = vmatprep.subr.bf16.mxu0 0
      %3858 = vmatpush1.bf16.msra.mxu0 %v3563
      %3859 = vmatprep.subr.bf16.mxu0 0
      %3860 = vmatpush1.bf16.msra.mxu0 %v3562
      %3861 = vmatprep.subr.bf16.mxu0 0
      %3862 = vmatpush1.bf16.msra.mxu0 %v3561
      %3863 = vmatprep.subr.bf16.mxu0 0
      %3864 = vmatpush1.bf16.msra.mxu0 %v3560
      %3865 = vmatprep.subr.bf16.mxu0 0
      %3866 = vmatpush2.bf16.msra.mxu0 %v3575
      %3867 = vmatprep.subr.bf16.mxu0 0
      %3868 = vmatpush2.bf16.msra.mxu0 %v3574
      %3869 = vmatprep.subr.bf16.mxu0 0
      %3870 = vmatpush2.bf16.msra.mxu0 %v3573
      %3871 = vmatprep.subr.bf16.mxu0 0
      %3872 = vmatpush2.bf16.msra.mxu0 %v3572
      %3873 = vmatprep.subr.bf16.mxu0 0
      %3874 = vmatpush2.bf16.msra.mxu0 %v3571
      %3875 = vmatprep.subr.bf16.mxu0 0
      %3876 = vmatpush2.bf16.msra.mxu0 %v3570
      %3877 = vmatprep.subr.bf16.mxu0 0
      %3878 = vmatpush2.bf16.msra.mxu0 %v3569
      %3879 = vmatprep.subr.bf16.mxu0 0
      %3880 = vmatpush2.bf16.msra.mxu0 %v3568
      %3881 = vmatprep.mubr.bf16.mxu0 %v2971
      %3882 = vmatmul.mubr.bf16.gmra.mxu0 %v2970
      %v3883 = vpop.f32.mrf.mxu0
      %v3884 = vadd.f32 %v3723, %v3883
      %v3885 = vpop.f32.mrf.mxu0
      %v3886 = vpop.f32.mrf.mxu0
      %v3887 = vadd.f32 %v3726, %v3886
      %v3888 = vpop.f32.mrf.mxu0
      %3889 = vmatprep.mubr.bf16.mxu0 %v2980
      %3890 = vmatmul.mubr.bf16.gmra.mxu0 %v2979
      %v3891 = vpop.f32.mrf.mxu0
      %v3892 = vadd.f32 %v3731, %v3891
      %v3893 = vpop.f32.mrf.mxu0
      %v3894 = vpop.f32.mrf.mxu0
      %v3895 = vadd.f32 %v3734, %v3894
      %v3896 = vpop.f32.mrf.mxu0
      %3897 = vmatprep.mubr.bf16.mxu0 %v2989
      %3898 = vmatmul.mubr.bf16.gmra.mxu0 %v2988
      %v3899 = vpop.f32.mrf.mxu0
      %v3900 = vadd.f32 %v3739, %v3899
      %v3901 = vpop.f32.mrf.mxu0
      %v3902 = vpop.f32.mrf.mxu0
      %v3903 = vadd.f32 %v3742, %v3902
      %v3904 = vpop.f32.mrf.mxu0
      %3905 = vmatprep.mubr.bf16.mxu0 %v2998
      %3906 = vmatmul.mubr.bf16.gmra.mxu0 %v2997
      %v3907 = vpop.f32.mrf.mxu0
      %v3908 = vadd.f32 %v3747, %v3907
      %v3909 = vpop.f32.mrf.mxu0
      %v3910 = vpop.f32.mrf.mxu0
      %v3911 = vadd.f32 %v3750, %v3910
      %v3912 = vpop.f32.mrf.mxu0
      %3913 = vmatprep.mubr.bf16.mxu0 %v3007
      %3914 = vmatmul.mubr.bf16.gmra.mxu0 %v3006
      %v3915 = vpop.f32.mrf.mxu0
      %v3916 = vadd.f32 %v3755, %v3915
      %v3917 = vpop.f32.mrf.mxu0
      %v3918 = vpop.f32.mrf.mxu0
      %v3919 = vadd.f32 %v3758, %v3918
      %v3920 = vpop.f32.mrf.mxu0
      %3921 = vmatprep.mubr.bf16.mxu0 %v3016
      %3922 = vmatmul.mubr.bf16.gmra.mxu0 %v3015
      %v3923 = vpop.f32.mrf.mxu0
      %v3924 = vadd.f32 %v3763, %v3923
      %v3925 = vpop.f32.mrf.mxu0
      %v3926 = vpop.f32.mrf.mxu0
      %v3927 = vadd.f32 %v3766, %v3926
      %v3928 = vpop.f32.mrf.mxu0
      %3929 = vmatprep.mubr.bf16.mxu0 %v3025
      %3930 = vmatmul.mubr.bf16.gmra.mxu0 %v3024
      %v3931 = vpop.f32.mrf.mxu0
      %v3932 = vadd.f32 %v3771, %v3931
      %v3933 = vpop.f32.mrf.mxu0
      %v3934 = vpop.f32.mrf.mxu0
      %v3935 = vadd.f32 %v3774, %v3934
      %v3936 = vpop.f32.mrf.mxu0
      %3937 = vmatprep.mubr.bf16.mxu0 %v3034
      %3938 = vmatmul.mubr.bf16.gmra.mxu0 %v3033
      %v3939 = vpop.f32.mrf.mxu0
      %v3940 = vadd.f32 %v3779, %v3939
      %v3941 = vpop.f32.mrf.mxu0
      %v3942 = vpop.f32.mrf.mxu0
      %v3943 = vadd.f32 %v3782, %v3942
      %v3944 = vpop.f32.mrf.mxu0
      %3945 = vmatprep.mubr.bf16.mxu0 %v3043
      %3946 = vmatmul.mubr.bf16.gmra.mxu0 %v3042
      %v3947 = vpop.f32.mrf.mxu0
      %v3948 = vadd.f32 %v3787, %v3947
      %v3949 = vpop.f32.mrf.mxu0
      %v3950 = vpop.f32.mrf.mxu0
      %v3951 = vadd.f32 %v3790, %v3950
      %v3952 = vpop.f32.mrf.mxu0
      %3953 = vmatprep.mubr.bf16.mxu0 %v3052
      %3954 = vmatmul.mubr.bf16.gmra.mxu0 %v3051
      %v3955 = vpop.f32.mrf.mxu0
      %v3956 = vadd.f32 %v3795, %v3955
      %v3957 = vpop.f32.mrf.mxu0
      %v3958 = vpop.f32.mrf.mxu0
      %v3959 = vadd.f32 %v3798, %v3958
      %v3960 = vpop.f32.mrf.mxu0
      %3961 = vmatprep.mubr.bf16.mxu0 %v3061
      %3962 = vmatmul.mubr.bf16.gmra.mxu0 %v3060
      %v3963 = vpop.f32.mrf.mxu0
      %v3964 = vadd.f32 %v3803, %v3963
      %v3965 = vpop.f32.mrf.mxu0
      %v3966 = vpop.f32.mrf.mxu0
      %v3967 = vadd.f32 %v3806, %v3966
      %v3968 = vpop.f32.mrf.mxu0
      %3969 = vmatprep.mubr.bf16.mxu0 %v3070
      %3970 = vmatmul.mubr.bf16.gmra.mxu0 %v3069
      %v3971 = vpop.f32.mrf.mxu0
      %v3972 = vadd.f32 %v3811, %v3971
      %v3973 = vpop.f32.mrf.mxu0
      %v3974 = vpop.f32.mrf.mxu0
      %v3975 = vadd.f32 %v3814, %v3974
      %v3976 = vpop.f32.mrf.mxu0
      %3977 = vmatprep.mubr.bf16.mxu0 %v3079
      %3978 = vmatmul.mubr.bf16.gmra.mxu0 %v3078
      %v3979 = vpop.f32.mrf.mxu0
      %v3980 = vadd.f32 %v3819, %v3979
      %v3981 = vpop.f32.mrf.mxu0
      %v3982 = vpop.f32.mrf.mxu0
      %v3983 = vadd.f32 %v3822, %v3982
      %v3984 = vpop.f32.mrf.mxu0
      %3985 = vmatprep.mubr.bf16.mxu0 %v3088
      %3986 = vmatmul.mubr.bf16.gmra.mxu0 %v3087
      %v3987 = vpop.f32.mrf.mxu0
      %v3988 = vadd.f32 %v3827, %v3987
      %v3989 = vpop.f32.mrf.mxu0
      %v3990 = vpop.f32.mrf.mxu0
      %v3991 = vadd.f32 %v3830, %v3990
      %v3992 = vpop.f32.mrf.mxu0
      %3993 = vmatprep.mubr.bf16.mxu0 %v3097
      %3994 = vmatmul.mubr.bf16.gmra.mxu0 %v3096
      %v3995 = vpop.f32.mrf.mxu0
      %v3996 = vadd.f32 %v3835, %v3995
      %v3997 = vpop.f32.mrf.mxu0
      %v3998 = vpop.f32.mrf.mxu0
      %v3999 = vadd.f32 %v3838, %v3998
      %v4000 = vpop.f32.mrf.mxu0
      %4001 = vmatprep.mubr.bf16.mxu0 %v3106
      %4002 = vmatmul.mubr.bf16.gmra.mxu0 %v3105
      %v4003 = vpop.f32.mrf.mxu0
      %v4004 = vadd.f32 %v3843, %v4003
      %v4005 = vpop.f32.mrf.mxu0
      %v4006 = vpop.f32.mrf.mxu0
      %v4007 = vadd.f32 %v3846, %v4006
      %v4008 = vpop.f32.mrf.mxu0
      %4009 = vdwg.mxu0
      %4010 = vmatprep.subr.bf16.mxu0 0
      %4011 = vmatpush1.bf16.msra.mxu0 %v3583
      %4012 = vmatprep.subr.bf16.mxu0 0
      %4013 = vmatpush1.bf16.msra.mxu0 %v3582
      %4014 = vmatprep.subr.bf16.mxu0 0
      %4015 = vmatpush1.bf16.msra.mxu0 %v3581
      %4016 = vmatprep.subr.bf16.mxu0 0
      %4017 = vmatpush1.bf16.msra.mxu0 %v3580
      %4018 = vmatprep.subr.bf16.mxu0 0
      %4019 = vmatpush1.bf16.msra.mxu0 %v3579
      %4020 = vmatprep.subr.bf16.mxu0 0
      %4021 = vmatpush1.bf16.msra.mxu0 %v3578
      %4022 = vmatprep.subr.bf16.mxu0 0
      %4023 = vmatpush1.bf16.msra.mxu0 %v3577
      %4024 = vmatprep.subr.bf16.mxu0 0
      %4025 = vmatpush1.bf16.msra.mxu0 %v3576
      %4026 = vmatprep.subr.bf16.mxu0 0
      %4027 = vmatpush2.bf16.msra.mxu0 %v3591
      %4028 = vmatprep.subr.bf16.mxu0 0
      %4029 = vmatpush2.bf16.msra.mxu0 %v3590
      %4030 = vmatprep.subr.bf16.mxu0 0
      %4031 = vmatpush2.bf16.msra.mxu0 %v3589
      %4032 = vmatprep.subr.bf16.mxu0 0
      %4033 = vmatpush2.bf16.msra.mxu0 %v3588
      %4034 = vmatprep.subr.bf16.mxu0 0
      %4035 = vmatpush2.bf16.msra.mxu0 %v3587
      %4036 = vmatprep.subr.bf16.mxu0 0
      %4037 = vmatpush2.bf16.msra.mxu0 %v3586
      %4038 = vmatprep.subr.bf16.mxu0 0
      %4039 = vmatpush2.bf16.msra.mxu0 %v3585
      %4040 = vmatprep.subr.bf16.mxu0 0
      %4041 = vmatpush2.bf16.msra.mxu0 %v3584
      %4042 = vmatprep.mubr.bf16.mxu0 %v2973
      %4043 = vmatmul.mubr.bf16.gmra.mxu0 %v2972
      %v4044 = vpop.f32.mrf.mxu0
      %v4045 = vadd.f32 %v3884, %v4044
      %v4046 = vpop.f32.mrf.mxu0
      %v4047 = vpop.f32.mrf.mxu0
      %v4048 = vadd.f32 %v3887, %v4047
      %v4049 = vpop.f32.mrf.mxu0
      %4050 = vmatprep.mubr.bf16.mxu0 %v2982
      %4051 = vmatmul.mubr.bf16.gmra.mxu0 %v2981
      %v4052 = vpop.f32.mrf.mxu0
      %v4053 = vadd.f32 %v3892, %v4052
      %v4054 = vpop.f32.mrf.mxu0
      %v4055 = vpop.f32.mrf.mxu0
      %v4056 = vadd.f32 %v3895, %v4055
      %v4057 = vpop.f32.mrf.mxu0
      %4058 = vmatprep.mubr.bf16.mxu0 %v2991
      %4059 = vmatmul.mubr.bf16.gmra.mxu0 %v2990
      %v4060 = vpop.f32.mrf.mxu0
      %v4061 = vadd.f32 %v3900, %v4060
      %v4062 = vpop.f32.mrf.mxu0
      %v4063 = vpop.f32.mrf.mxu0
      %v4064 = vadd.f32 %v3903, %v4063
      %v4065 = vpop.f32.mrf.mxu0
      %4066 = vmatprep.mubr.bf16.mxu0 %v3000
      %4067 = vmatmul.mubr.bf16.gmra.mxu0 %v2999
      %v4068 = vpop.f32.mrf.mxu0
      %v4069 = vadd.f32 %v3908, %v4068
      %v4070 = vpop.f32.mrf.mxu0
      %v4071 = vpop.f32.mrf.mxu0
      %v4072 = vadd.f32 %v3911, %v4071
      %v4073 = vpop.f32.mrf.mxu0
      %4074 = vmatprep.mubr.bf16.mxu0 %v3009
      %4075 = vmatmul.mubr.bf16.gmra.mxu0 %v3008
      %v4076 = vpop.f32.mrf.mxu0
      %v4077 = vadd.f32 %v3916, %v4076
      %v4078 = vpop.f32.mrf.mxu0
      %v4079 = vpop.f32.mrf.mxu0
      %v4080 = vadd.f32 %v3919, %v4079
      %v4081 = vpop.f32.mrf.mxu0
      %4082 = vmatprep.mubr.bf16.mxu0 %v3018
      %4083 = vmatmul.mubr.bf16.gmra.mxu0 %v3017
      %v4084 = vpop.f32.mrf.mxu0
      %v4085 = vadd.f32 %v3924, %v4084
      %v4086 = vpop.f32.mrf.mxu0
      %v4087 = vpop.f32.mrf.mxu0
      %v4088 = vadd.f32 %v3927, %v4087
      %v4089 = vpop.f32.mrf.mxu0
      %4090 = vmatprep.mubr.bf16.mxu0 %v3027
      %4091 = vmatmul.mubr.bf16.gmra.mxu0 %v3026
      %v4092 = vpop.f32.mrf.mxu0
      %v4093 = vadd.f32 %v3932, %v4092
      %v4094 = vpop.f32.mrf.mxu0
      %v4095 = vpop.f32.mrf.mxu0
      %v4096 = vadd.f32 %v3935, %v4095
      %v4097 = vpop.f32.mrf.mxu0
      %4098 = vmatprep.mubr.bf16.mxu0 %v3036
      %4099 = vmatmul.mubr.bf16.gmra.mxu0 %v3035
      %v4100 = vpop.f32.mrf.mxu0
      %v4101 = vadd.f32 %v3940, %v4100
      %v4102 = vpop.f32.mrf.mxu0
      %v4103 = vpop.f32.mrf.mxu0
      %v4104 = vadd.f32 %v3943, %v4103
      %v4105 = vpop.f32.mrf.mxu0
      %4106 = vmatprep.mubr.bf16.mxu0 %v3045
      %4107 = vmatmul.mubr.bf16.gmra.mxu0 %v3044
      %v4108 = vpop.f32.mrf.mxu0
      %v4109 = vadd.f32 %v3948, %v4108
      %v4110 = vpop.f32.mrf.mxu0
      %v4111 = vpop.f32.mrf.mxu0
      %v4112 = vadd.f32 %v3951, %v4111
      %v4113 = vpop.f32.mrf.mxu0
      %4114 = vmatprep.mubr.bf16.mxu0 %v3054
      %4115 = vmatmul.mubr.bf16.gmra.mxu0 %v3053
      %v4116 = vpop.f32.mrf.mxu0
      %v4117 = vadd.f32 %v3956, %v4116
      %v4118 = vpop.f32.mrf.mxu0
      %v4119 = vpop.f32.mrf.mxu0
      %v4120 = vadd.f32 %v3959, %v4119
      %v4121 = vpop.f32.mrf.mxu0
      %4122 = vmatprep.mubr.bf16.mxu0 %v3063
      %4123 = vmatmul.mubr.bf16.gmra.mxu0 %v3062
      %v4124 = vpop.f32.mrf.mxu0
      %v4125 = vadd.f32 %v3964, %v4124
      %v4126 = vpop.f32.mrf.mxu0
      %v4127 = vpop.f32.mrf.mxu0
      %v4128 = vadd.f32 %v3967, %v4127
      %v4129 = vpop.f32.mrf.mxu0
      %4130 = vmatprep.mubr.bf16.mxu0 %v3072
      %4131 = vmatmul.mubr.bf16.gmra.mxu0 %v3071
      %v4132 = vpop.f32.mrf.mxu0
      %v4133 = vadd.f32 %v3972, %v4132
      %v4134 = vpop.f32.mrf.mxu0
      %v4135 = vpop.f32.mrf.mxu0
      %v4136 = vadd.f32 %v3975, %v4135
      %v4137 = vpop.f32.mrf.mxu0
      %4138 = vmatprep.mubr.bf16.mxu0 %v3081
      %4139 = vmatmul.mubr.bf16.gmra.mxu0 %v3080
      %v4140 = vpop.f32.mrf.mxu0
      %v4141 = vadd.f32 %v3980, %v4140
      %v4142 = vpop.f32.mrf.mxu0
      %v4143 = vpop.f32.mrf.mxu0
      %v4144 = vadd.f32 %v3983, %v4143
      %v4145 = vpop.f32.mrf.mxu0
      %4146 = vmatprep.mubr.bf16.mxu0 %v3090
      %4147 = vmatmul.mubr.bf16.gmra.mxu0 %v3089
      %v4148 = vpop.f32.mrf.mxu0
      %v4149 = vadd.f32 %v3988, %v4148
      %v4150 = vpop.f32.mrf.mxu0
      %v4151 = vpop.f32.mrf.mxu0
      %v4152 = vadd.f32 %v3991, %v4151
      %v4153 = vpop.f32.mrf.mxu0
      %4154 = vmatprep.mubr.bf16.mxu0 %v3099
      %4155 = vmatmul.mubr.bf16.gmra.mxu0 %v3098
      %v4156 = vpop.f32.mrf.mxu0
      %v4157 = vadd.f32 %v3996, %v4156
      %v4158 = vpop.f32.mrf.mxu0
      %v4159 = vpop.f32.mrf.mxu0
      %v4160 = vadd.f32 %v3999, %v4159
      %v4161 = vpop.f32.mrf.mxu0
      %4162 = vmatprep.mubr.bf16.mxu0 %v3108
      %4163 = vmatmul.mubr.bf16.gmra.mxu0 %v3107
      %v4164 = vpop.f32.mrf.mxu0
      %v4165 = vadd.f32 %v4004, %v4164
      %v4166 = vpop.f32.mrf.mxu0
      %v4167 = vpop.f32.mrf.mxu0
      %v4168 = vadd.f32 %v4007, %v4167
      %v4169 = vpop.f32.mrf.mxu0
      %4170 = vdwg.mxu0
      %4171 = vmatprep.subr.bf16.mxu0 0
      %4172 = vmatpush1.bf16.msra.mxu0 %v3599
      %4173 = vmatprep.subr.bf16.mxu0 0
      %4174 = vmatpush1.bf16.msra.mxu0 %v3598
      %4175 = vmatprep.subr.bf16.mxu0 0
      %4176 = vmatpush1.bf16.msra.mxu0 %v3597
      %4177 = vmatprep.subr.bf16.mxu0 0
      %4178 = vmatpush1.bf16.msra.mxu0 %v3596
      %4179 = vmatprep.subr.bf16.mxu0 0
      %4180 = vmatpush1.bf16.msra.mxu0 %v3595
      %4181 = vmatprep.subr.bf16.mxu0 0
      %4182 = vmatpush1.bf16.msra.mxu0 %v3594
      %4183 = vmatprep.subr.bf16.mxu0 0
      %4184 = vmatpush1.bf16.msra.mxu0 %v3593
      %4185 = vmatprep.subr.bf16.mxu0 0
      %4186 = vmatpush1.bf16.msra.mxu0 %v3592
      %4187 = vmatprep.subr.bf16.mxu0 0
      %4188 = vmatpush2.bf16.msra.mxu0 %v3607
      %4189 = vmatprep.subr.bf16.mxu0 0
      %4190 = vmatpush2.bf16.msra.mxu0 %v3606
      %4191 = vmatprep.subr.bf16.mxu0 0
      %4192 = vmatpush2.bf16.msra.mxu0 %v3605
      %4193 = vmatprep.subr.bf16.mxu0 0
      %4194 = vmatpush2.bf16.msra.mxu0 %v3604
      %4195 = vmatprep.subr.bf16.mxu0 0
      %4196 = vmatpush2.bf16.msra.mxu0 %v3603
      %4197 = vmatprep.subr.bf16.mxu0 0
      %4198 = vmatpush2.bf16.msra.mxu0 %v3602
      %4199 = vmatprep.subr.bf16.mxu0 0
      %4200 = vmatpush2.bf16.msra.mxu0 %v3601
      %4201 = vmatprep.subr.bf16.mxu0 0
      %4202 = vmatpush2.bf16.msra.mxu0 %v3600
      %4203 = vmatprep.mubr.bf16.mxu0 %v2975
      %4204 = vmatmul.mubr.bf16.gmra.mxu0 %v2974
      %v4205 = vpop.f32.mrf.mxu0
      %v4206 = vadd.f32 %v4045, %v4205
      %v4207 = vpop.f32.mrf.mxu0
      %v4208 = vpop.f32.mrf.mxu0
      %v4209 = vadd.f32 %v4048, %v4208
      %v4210 = vpop.f32.mrf.mxu0
      %4211 = vmatprep.mubr.bf16.mxu0 %v2984
      %4212 = vmatmul.mubr.bf16.gmra.mxu0 %v2983
      %v4213 = vpop.f32.mrf.mxu0
      %v4214 = vadd.f32 %v4053, %v4213
      %v4215 = vpop.f32.mrf.mxu0
      %v4216 = vpop.f32.mrf.mxu0
      %v4217 = vadd.f32 %v4056, %v4216
      %v4218 = vpop.f32.mrf.mxu0
      %4219 = vmatprep.mubr.bf16.mxu0 %v2993
      %4220 = vmatmul.mubr.bf16.gmra.mxu0 %v2992
      %v4221 = vpop.f32.mrf.mxu0
      %v4222 = vadd.f32 %v4061, %v4221
      %v4223 = vpop.f32.mrf.mxu0
      %v4224 = vpop.f32.mrf.mxu0
      %v4225 = vadd.f32 %v4064, %v4224
      %v4226 = vpop.f32.mrf.mxu0
      %4227 = vmatprep.mubr.bf16.mxu0 %v3002
      %4228 = vmatmul.mubr.bf16.gmra.mxu0 %v3001
      %v4229 = vpop.f32.mrf.mxu0
      %v4230 = vadd.f32 %v4069, %v4229
      %v4231 = vpop.f32.mrf.mxu0
      %v4232 = vpop.f32.mrf.mxu0
      %v4233 = vadd.f32 %v4072, %v4232
      %v4234 = vpop.f32.mrf.mxu0
      %4235 = vmatprep.mubr.bf16.mxu0 %v3011
      %4236 = vmatmul.mubr.bf16.gmra.mxu0 %v3010
      %v4237 = vpop.f32.mrf.mxu0
      %v4238 = vadd.f32 %v4077, %v4237
      %v4239 = vpop.f32.mrf.mxu0
      %v4240 = vpop.f32.mrf.mxu0
      %v4241 = vadd.f32 %v4080, %v4240
      %v4242 = vpop.f32.mrf.mxu0
      %4243 = vmatprep.mubr.bf16.mxu0 %v3020
      %4244 = vmatmul.mubr.bf16.gmra.mxu0 %v3019
      %v4245 = vpop.f32.mrf.mxu0
      %v4246 = vadd.f32 %v4085, %v4245
      %v4247 = vpop.f32.mrf.mxu0
      %v4248 = vpop.f32.mrf.mxu0
      %v4249 = vadd.f32 %v4088, %v4248
      %v4250 = vpop.f32.mrf.mxu0
      %4251 = vmatprep.mubr.bf16.mxu0 %v3029
      %4252 = vmatmul.mubr.bf16.gmra.mxu0 %v3028
      %v4253 = vpop.f32.mrf.mxu0
      %v4254 = vadd.f32 %v4093, %v4253
      %v4255 = vpop.f32.mrf.mxu0
      %v4256 = vpop.f32.mrf.mxu0
      %v4257 = vadd.f32 %v4096, %v4256
      %v4258 = vpop.f32.mrf.mxu0
      %4259 = vmatprep.mubr.bf16.mxu0 %v3038
      %4260 = vmatmul.mubr.bf16.gmra.mxu0 %v3037
      %v4261 = vpop.f32.mrf.mxu0
      %v4262 = vadd.f32 %v4101, %v4261
      %v4263 = vpop.f32.mrf.mxu0
      %v4264 = vpop.f32.mrf.mxu0
      %v4265 = vadd.f32 %v4104, %v4264
      %v4266 = vpop.f32.mrf.mxu0
      %4267 = vmatprep.mubr.bf16.mxu0 %v3047
      %4268 = vmatmul.mubr.bf16.gmra.mxu0 %v3046
      %v4269 = vpop.f32.mrf.mxu0
      %v4270 = vadd.f32 %v4109, %v4269
      %v4271 = vpop.f32.mrf.mxu0
      %v4272 = vpop.f32.mrf.mxu0
      %v4273 = vadd.f32 %v4112, %v4272
      %v4274 = vpop.f32.mrf.mxu0
      %4275 = vmatprep.mubr.bf16.mxu0 %v3056
      %4276 = vmatmul.mubr.bf16.gmra.mxu0 %v3055
      %v4277 = vpop.f32.mrf.mxu0
      %v4278 = vadd.f32 %v4117, %v4277
      %v4279 = vpop.f32.mrf.mxu0
      %v4280 = vpop.f32.mrf.mxu0
      %v4281 = vadd.f32 %v4120, %v4280
      %v4282 = vpop.f32.mrf.mxu0
      %4283 = vmatprep.mubr.bf16.mxu0 %v3065
      %4284 = vmatmul.mubr.bf16.gmra.mxu0 %v3064
      %v4285 = vpop.f32.mrf.mxu0
      %v4286 = vadd.f32 %v4125, %v4285
      %v4287 = vpop.f32.mrf.mxu0
      %v4288 = vpop.f32.mrf.mxu0
      %v4289 = vadd.f32 %v4128, %v4288
      %v4290 = vpop.f32.mrf.mxu0
      %4291 = vmatprep.mubr.bf16.mxu0 %v3074
      %4292 = vmatmul.mubr.bf16.gmra.mxu0 %v3073
      %v4293 = vpop.f32.mrf.mxu0
      %v4294 = vadd.f32 %v4133, %v4293
      %v4295 = vpop.f32.mrf.mxu0
      %v4296 = vpop.f32.mrf.mxu0
      %v4297 = vadd.f32 %v4136, %v4296
      %v4298 = vpop.f32.mrf.mxu0
      %4299 = vmatprep.mubr.bf16.mxu0 %v3083
      %4300 = vmatmul.mubr.bf16.gmra.mxu0 %v3082
      %v4301 = vpop.f32.mrf.mxu0
      %v4302 = vadd.f32 %v4141, %v4301
      %v4303 = vpop.f32.mrf.mxu0
      %v4304 = vpop.f32.mrf.mxu0
      %v4305 = vadd.f32 %v4144, %v4304
      %v4306 = vpop.f32.mrf.mxu0
      %4307 = vmatprep.mubr.bf16.mxu0 %v3092
      %4308 = vmatmul.mubr.bf16.gmra.mxu0 %v3091
      %v4309 = vpop.f32.mrf.mxu0
      %v4310 = vadd.f32 %v4149, %v4309
      %v4311 = vpop.f32.mrf.mxu0
      %v4312 = vpop.f32.mrf.mxu0
      %v4313 = vadd.f32 %v4152, %v4312
      %v4314 = vpop.f32.mrf.mxu0
      %4315 = vmatprep.mubr.bf16.mxu0 %v3101
      %4316 = vmatmul.mubr.bf16.gmra.mxu0 %v3100
      %v4317 = vpop.f32.mrf.mxu0
      %v4318 = vadd.f32 %v4157, %v4317
      %v4319 = vpop.f32.mrf.mxu0
      %v4320 = vpop.f32.mrf.mxu0
      %v4321 = vadd.f32 %v4160, %v4320
      %v4322 = vpop.f32.mrf.mxu0
      %4323 = vmatprep.mubr.bf16.mxu0 %v3110
      %4324 = vmatmul.mubr.bf16.gmra.mxu0 %v3109
      %v4325 = vpop.f32.mrf.mxu0
      %v4326 = vadd.f32 %v4165, %v4325
      %v4327 = vpop.f32.mrf.mxu0
      %v4328 = vpop.f32.mrf.mxu0
      %v4329 = vadd.f32 %v4168, %v4328
      %v4330 = vpop.f32.mrf.mxu0
      %4331 = vdwg.mxu0
      %4332 = vmatprep.subr.bf16.mxu0 0
      %4333 = vmatpush1.bf16.msra.mxu0 %v3615
      %4334 = vmatprep.subr.bf16.mxu0 0
      %4335 = vmatpush1.bf16.msra.mxu0 %v3614
      %4336 = vmatprep.subr.bf16.mxu0 0
      %4337 = vmatpush1.bf16.msra.mxu0 %v3613
      %4338 = vmatprep.subr.bf16.mxu0 0
      %4339 = vmatpush1.bf16.msra.mxu0 %v3612
      %4340 = vmatprep.subr.bf16.mxu0 0
      %4341 = vmatpush1.bf16.msra.mxu0 %v3611
      %4342 = vmatprep.subr.bf16.mxu0 0
      %4343 = vmatpush1.bf16.msra.mxu0 %v3610
      %4344 = vmatprep.subr.bf16.mxu0 0
      %4345 = vmatpush1.bf16.msra.mxu0 %v3609
      %4346 = vmatprep.subr.bf16.mxu0 0
      %4347 = vmatpush1.bf16.msra.mxu0 %v3608
      %4348 = vmatprep.subr.bf16.mxu0 0
      %4349 = vmatpush2.bf16.msra.mxu0 0
      %4350 = vmatprep.subr.bf16.mxu0 0
      %4351 = vmatpush2.bf16.msra.mxu0 0
      %4352 = vmatprep.subr.bf16.mxu0 0
      %4353 = vmatpush2.bf16.msra.mxu0 0
      %4354 = vmatprep.subr.bf16.mxu0 0
      %4355 = vmatpush2.bf16.msra.mxu0 0
      %4356 = vmatprep.subr.bf16.mxu0 0
      %4357 = vmatpush2.bf16.msra.mxu0 0
      %4358 = vmatprep.subr.bf16.mxu0 0
      %4359 = vmatpush2.bf16.msra.mxu0 0
      %4360 = vmatprep.subr.bf16.mxu0 0
      %4361 = vmatpush2.bf16.msra.mxu0 0
      %4362 = vmatprep.subr.bf16.mxu0 0
      %4363 = vmatpush2.bf16.msra.mxu0 0
      %4364 = vmatprep.mubr.bf16.mxu0 0
      %4365 = vmatmul.mubr.bf16.gmra.mxu0 %v2976
      %v4366 = vpop.f32.mrf.mxu0
      %v4367 = vadd.f32 %v4206, %v4366
      %v4368 = vpop.f32.mrf.mxu0
      %v4369 = vpop.f32.mrf.mxu0
      %v4370 = vadd.f32 %v4209, %v4369
      %v4371 = vpop.f32.mrf.mxu0
      %4372 = vmatprep.mubr.bf16.mxu0 0
      %4373 = vmatmul.mubr.bf16.gmra.mxu0 %v2985
      %v4374 = vpop.f32.mrf.mxu0
      %v4375 = vadd.f32 %v4214, %v4374
      %v4376 = vpop.f32.mrf.mxu0
      %v4377 = vpop.f32.mrf.mxu0
      %v4378 = vadd.f32 %v4217, %v4377
      %v4379 = vpop.f32.mrf.mxu0
      %4380 = vmatprep.mubr.bf16.mxu0 0
      %4381 = vmatmul.mubr.bf16.gmra.mxu0 %v2994
      %v4382 = vpop.f32.mrf.mxu0
      %v4383 = vadd.f32 %v4222, %v4382
      %v4384 = vpop.f32.mrf.mxu0
      %v4385 = vpop.f32.mrf.mxu0
      %v4386 = vadd.f32 %v4225, %v4385
      %v4387 = vpop.f32.mrf.mxu0
      %4388 = vmatprep.mubr.bf16.mxu0 0
      %4389 = vmatmul.mubr.bf16.gmra.mxu0 %v3003
      %v4390 = vpop.f32.mrf.mxu0
      %v4391 = vadd.f32 %v4230, %v4390
      %v4392 = vpop.f32.mrf.mxu0
      %v4393 = vpop.f32.mrf.mxu0
      %v4394 = vadd.f32 %v4233, %v4393
      %v4395 = vpop.f32.mrf.mxu0
      %4396 = vmatprep.mubr.bf16.mxu0 0
      %4397 = vmatmul.mubr.bf16.gmra.mxu0 %v3012
      %v4398 = vpop.f32.mrf.mxu0
      %v4399 = vadd.f32 %v4238, %v4398
      %v4400 = vpop.f32.mrf.mxu0
      %v4401 = vpop.f32.mrf.mxu0
      %v4402 = vadd.f32 %v4241, %v4401
      %v4403 = vpop.f32.mrf.mxu0
      %4404 = vmatprep.mubr.bf16.mxu0 0
      %4405 = vmatmul.mubr.bf16.gmra.mxu0 %v3021
      %v4406 = vpop.f32.mrf.mxu0
      %v4407 = vadd.f32 %v4246, %v4406
      %v4408 = vpop.f32.mrf.mxu0
      %v4409 = vpop.f32.mrf.mxu0
      %v4410 = vadd.f32 %v4249, %v4409
      %v4411 = vpop.f32.mrf.mxu0
      %4412 = vmatprep.mubr.bf16.mxu0 0
      %4413 = vmatmul.mubr.bf16.gmra.mxu0 %v3030
      %v4414 = vpop.f32.mrf.mxu0
      %v4415 = vadd.f32 %v4254, %v4414
      %v4416 = vpop.f32.mrf.mxu0
      %v4417 = vpop.f32.mrf.mxu0
      %v4418 = vadd.f32 %v4257, %v4417
      %v4419 = vpop.f32.mrf.mxu0
      %4420 = vmatprep.mubr.bf16.mxu0 0
      %4421 = vmatmul.mubr.bf16.gmra.mxu0 %v3039
      %v4422 = vpop.f32.mrf.mxu0
      %v4423 = vadd.f32 %v4262, %v4422
      %v4424 = vpop.f32.mrf.mxu0
      %v4425 = vpop.f32.mrf.mxu0
      %v4426 = vadd.f32 %v4265, %v4425
      %v4427 = vpop.f32.mrf.mxu0
      %4428 = vmatprep.mubr.bf16.mxu0 0
      %4429 = vmatmul.mubr.bf16.gmra.mxu0 %v3048
      %v4430 = vpop.f32.mrf.mxu0
      %v4431 = vadd.f32 %v4270, %v4430
      %v4432 = vpop.f32.mrf.mxu0
      %v4433 = vpop.f32.mrf.mxu0
      %v4434 = vadd.f32 %v4273, %v4433
      %v4435 = vpop.f32.mrf.mxu0
      %4436 = vmatprep.mubr.bf16.mxu0 0
      %4437 = vmatmul.mubr.bf16.gmra.mxu0 %v3057
      %v4438 = vpop.f32.mrf.mxu0
      %v4439 = vadd.f32 %v4278, %v4438
      %v4440 = vpop.f32.mrf.mxu0
      %v4441 = vpop.f32.mrf.mxu0
      %v4442 = vadd.f32 %v4281, %v4441
      %v4443 = vpop.f32.mrf.mxu0
      %4444 = vmatprep.mubr.bf16.mxu0 0
      %4445 = vmatmul.mubr.bf16.gmra.mxu0 %v3066
      %v4446 = vpop.f32.mrf.mxu0
      %v4447 = vadd.f32 %v4286, %v4446
      %v4448 = vpop.f32.mrf.mxu0
      %v4449 = vpop.f32.mrf.mxu0
      %v4450 = vadd.f32 %v4289, %v4449
      %v4451 = vpop.f32.mrf.mxu0
      %4452 = vmatprep.mubr.bf16.mxu0 0
      %4453 = vmatmul.mubr.bf16.gmra.mxu0 %v3075
      %v4454 = vpop.f32.mrf.mxu0
      %v4455 = vadd.f32 %v4294, %v4454
      %v4456 = vpop.f32.mrf.mxu0
      %v4457 = vpop.f32.mrf.mxu0
      %v4458 = vadd.f32 %v4297, %v4457
      %v4459 = vpop.f32.mrf.mxu0
      %4460 = vmatprep.mubr.bf16.mxu0 0
      %4461 = vmatmul.mubr.bf16.gmra.mxu0 %v3084
      %v4462 = vpop.f32.mrf.mxu0
      %v4463 = vadd.f32 %v4302, %v4462
      %v4464 = vpop.f32.mrf.mxu0
      %v4465 = vpop.f32.mrf.mxu0
      %v4466 = vadd.f32 %v4305, %v4465
      %v4467 = vpop.f32.mrf.mxu0
      %4468 = vmatprep.mubr.bf16.mxu0 0
      %4469 = vmatmul.mubr.bf16.gmra.mxu0 %v3093
      %v4470 = vpop.f32.mrf.mxu0
      %v4471 = vadd.f32 %v4310, %v4470
      %v4472 = vpop.f32.mrf.mxu0
      %v4473 = vpop.f32.mrf.mxu0
      %v4474 = vadd.f32 %v4313, %v4473
      %v4475 = vpop.f32.mrf.mxu0
      %4476 = vmatprep.mubr.bf16.mxu0 0
      %4477 = vmatmul.mubr.bf16.gmra.mxu0 %v3102
      %v4478 = vpop.f32.mrf.mxu0
      %v4479 = vadd.f32 %v4318, %v4478
      %v4480 = vpop.f32.mrf.mxu0
      %v4481 = vpop.f32.mrf.mxu0
      %v4482 = vadd.f32 %v4321, %v4481
      %v4483 = vpop.f32.mrf.mxu0
      %4484 = vmatprep.mubr.bf16.mxu0 0
      %4485 = vmatmul.mubr.bf16.gmra.mxu0 %v3111
      %v4486 = vpop.f32.mrf.mxu0
      %v4487 = vadd.f32 %v4326, %v4486
      %v4488 = vpop.f32.mrf.mxu0
      %v4489 = vpop.f32.mrf.mxu0
      %v4490 = vadd.f32 %v4329, %v4489
      %v4491 = vpop.f32.mrf.mxu0
      %4492 = vdwg.mxu0
      %v4493 = vpack.c.bf16 %v4370, %v4367
      %v4494 = vpack.c.bf16 %v4378, %v4375
      %v4495 = vpack.c.bf16 %v4386, %v4383
      %v4496 = vpack.c.bf16 %v4394, %v4391
      %v4497 = vpack.c.bf16 %v4402, %v4399
      %v4498 = vpack.c.bf16 %v4410, %v4407
      %v4499 = vpack.c.bf16 %v4418, %v4415
      %v4500 = vpack.c.bf16 %v4426, %v4423
      %v4501 = vpack.c.bf16 %v4434, %v4431
      %v4502 = vpack.c.bf16 %v4442, %v4439
      %v4503 = vpack.c.bf16 %v4450, %v4447
      %v4504 = vpack.c.bf16 %v4458, %v4455
      %v4505 = vpack.c.bf16 %v4466, %v4463
      %v4506 = vpack.c.bf16 %v4474, %v4471
      %v4507 = vpack.c.bf16 %v4482, %v4479
      %v4508 = vpack.c.bf16 %v4490, %v4487
      %v4525 = vunpack.c.l.b16 %v4493
      %v4526 = vunpack.c.h.b16 %v4493
      %v4527 = vunpack.c.l.b16 %v4494
      %v4528 = vunpack.c.h.b16 %v4494
      %v4529 = vunpack.c.l.b16 %v4495
      %v4530 = vunpack.c.h.b16 %v4495
      %v4531 = vunpack.c.l.b16 %v4496
      %v4532 = vunpack.c.h.b16 %v4496
      %v4533 = vunpack.c.l.b16 %v4497
      %v4534 = vunpack.c.h.b16 %v4497
      %v4535 = vunpack.c.l.b16 %v4498
      %v4536 = vunpack.c.h.b16 %v4498
      %v4537 = vunpack.c.l.b16 %v4499
      %v4538 = vunpack.c.h.b16 %v4499
      %v4539 = vunpack.c.l.b16 %v4500
      %v4540 = vunpack.c.h.b16 %v4500
      %v4541 = vunpack.c.l.b16 %v4501
      %v4542 = vunpack.c.h.b16 %v4501
      %v4543 = vunpack.c.l.b16 %v4502
      %v4544 = vunpack.c.h.b16 %v4502
      %v4545 = vunpack.c.l.b16 %v4503
      %v4546 = vunpack.c.h.b16 %v4503
      %v4547 = vunpack.c.l.b16 %v4504
      %v4548 = vunpack.c.h.b16 %v4504
      %v4549 = vunpack.c.l.b16 %v4505
      %v4550 = vunpack.c.h.b16 %v4505
      %v4551 = vunpack.c.l.b16 %v4506
      %v4552 = vunpack.c.h.b16 %v4506
      %v4553 = vunpack.c.l.b16 %v4507
      %v4554 = vunpack.c.h.b16 %v4507
      %v4555 = vunpack.c.l.b16 %v4508
      %v4556 = vunpack.c.h.b16 %v4508
      %v4557 = vpack.c.b16 %v4525, %v4525
      %v4558 = vpack.c.b16 %v4526, %v4526
      %v4559 = vpack.c.b16 %v4527, %v4527
      %v4560 = vpack.c.b16 %v4528, %v4528
      %v4561 = vpack.c.b16 %v4529, %v4529
      %v4562 = vpack.c.b16 %v4530, %v4530
      %v4563 = vpack.c.b16 %v4531, %v4531
      %v4564 = vpack.c.b16 %v4532, %v4532
      %v4565 = vpack.c.b16 %v4533, %v4533
      %v4566 = vpack.c.b16 %v4534, %v4534
      %v4567 = vpack.c.b16 %v4535, %v4535
      %v4568 = vpack.c.b16 %v4536, %v4536
      %v4569 = vpack.c.b16 %v4537, %v4537
      %v4570 = vpack.c.b16 %v4538, %v4538
      %v4571 = vpack.c.b16 %v4539, %v4539
      %v4572 = vpack.c.b16 %v4540, %v4540
      %v4573 = vpack.c.b16 %v4541, %v4541
      %v4574 = vpack.c.b16 %v4542, %v4542
      %v4575 = vpack.c.b16 %v4543, %v4543
      %v4576 = vpack.c.b16 %v4544, %v4544
      %v4577 = vpack.c.b16 %v4545, %v4545
      %v4578 = vpack.c.b16 %v4546, %v4546
      %v4579 = vpack.c.b16 %v4547, %v4547
      %v4580 = vpack.c.b16 %v4548, %v4548
      %v4581 = vpack.c.b16 %v4549, %v4549
      %v4582 = vpack.c.b16 %v4550, %v4550
      %v4583 = vpack.c.b16 %v4551, %v4551
      %v4584 = vpack.c.b16 %v4552, %v4552
      %v4585 = vpack.c.b16 %v4553, %v4553
      %v4586 = vpack.c.b16 %v4554, %v4554
      %v4587 = vpack.c.b16 %v4555, %v4555
      %v4588 = vpack.c.b16 %v4556, %v4556
      %4621 = vst [vmem:[%s231] sm:$0xf] %v4557
      %4622 = vst [vmem:[%s231 + $0x4] sm:$0xf] %v4558
      %4623 = vst [vmem:[%s231 + $0x8] sm:$0xf] %v4559
      %4624 = vst [vmem:[%s231 + $0xc] sm:$0xf] %v4560
      %4625 = vst [vmem:[%s231 + $0x10] sm:$0xf] %v4561
      %4626 = vst [vmem:[%s231 + $0x14] sm:$0xf] %v4562
      %4627 = vst [vmem:[%s231 + $0x18] sm:$0xf] %v4563
      %4628 = vst [vmem:[%s231 + $0x1c] sm:$0xf] %v4564
      %4629 = vst [vmem:[%s231 + $0x20] sm:$0xf] %v4565
      %4630 = vst [vmem:[%s231 + $0x24] sm:$0xf] %v4566
      %4631 = vst [vmem:[%s231 + $0x28] sm:$0xf] %v4567
      %4632 = vst [vmem:[%s231 + $0x2c] sm:$0xf] %v4568
      %4633 = vst [vmem:[%s231 + $0x30] sm:$0xf] %v4569
      %4634 = vst [vmem:[%s231 + $0x34] sm:$0xf] %v4570
      %4635 = vst [vmem:[%s231 + $0x38] sm:$0xf] %v4571
      %4636 = vst [vmem:[%s231 + $0x3c] sm:$0xf] %v4572
      %4637 = vst [vmem:[%s231 + $0x40] sm:$0xf] %v4573
      %4638 = vst [vmem:[%s231 + $0x44] sm:$0xf] %v4574
      %4639 = vst [vmem:[%s231 + $0x48] sm:$0xf] %v4575
      %4640 = vst [vmem:[%s231 + $0x4c] sm:$0xf] %v4576
      %4641 = vst [vmem:[%s231 + $0x50] sm:$0xf] %v4577
      %4642 = vst [vmem:[%s231 + $0x54] sm:$0xf] %v4578
      %4643 = vst [vmem:[%s231 + $0x58] sm:$0xf] %v4579
      %4644 = vst [vmem:[%s231 + $0x5c] sm:$0xf] %v4580
      %4645 = vst [vmem:[%s231 + $0x60] sm:$0xf] %v4581
      %4646 = vst [vmem:[%s231 + $0x64] sm:$0xf] %v4582
      %4647 = vst [vmem:[%s231 + $0x68] sm:$0xf] %v4583
      %4648 = vst [vmem:[%s231 + $0x6c] sm:$0xf] %v4584
      %4649 = vst [vmem:[%s231 + $0x70] sm:$0xf] %v4585
      %4650 = vst [vmem:[%s231 + $0x74] sm:$0xf] %v4586
      %4651 = vst [vmem:[%s231 + $0x78] sm:$0xf] %v4587
      %4652 = vst [vmem:[%s231 + $0x7c] sm:$0xf] %v4588
      %v4653 = vunpack.c.l.bf16 %v4493
      %v4654 = vunpack.c.h.bf16 %v4493
      %v4655 = vunpack.c.l.bf16 %v4494
      %v4656 = vunpack.c.h.bf16 %v4494
      %v4657 = vunpack.c.l.bf16 %v4495
      %v4658 = vunpack.c.h.bf16 %v4495
      %v4659 = vunpack.c.l.bf16 %v4496
      %v4660 = vunpack.c.h.bf16 %v4496
      %v4661 = vunpack.c.l.bf16 %v4497
      %v4662 = vunpack.c.h.bf16 %v4497
      %v4663 = vunpack.c.l.bf16 %v4498
      %v4664 = vunpack.c.h.bf16 %v4498
      %v4665 = vunpack.c.l.bf16 %v4499
      %v4666 = vunpack.c.h.bf16 %v4499
      %v4667 = vunpack.c.l.bf16 %v4500
      %v4668 = vunpack.c.h.bf16 %v4500
      %v4669 = vunpack.c.l.bf16 %v4501
      %v4670 = vunpack.c.h.bf16 %v4501
      %v4671 = vunpack.c.l.bf16 %v4502
      %v4672 = vunpack.c.h.bf16 %v4502
      %v4673 = vunpack.c.l.bf16 %v4503
      %v4674 = vunpack.c.h.bf16 %v4503
      %v4675 = vunpack.c.l.bf16 %v4504
      %v4676 = vunpack.c.h.bf16 %v4504
      %v4677 = vunpack.c.l.bf16 %v4505
      %v4678 = vunpack.c.h.bf16 %v4505
      %v4679 = vunpack.c.l.bf16 %v4506
      %v4680 = vunpack.c.h.bf16 %v4506
      %v4681 = vunpack.c.l.bf16 %v4507
      %v4682 = vunpack.c.h.bf16 %v4507
      %v4683 = vunpack.c.l.bf16 %v4508
      %v4684 = vunpack.c.h.bf16 %v4508
      %v4685 = vadd.f32 %v4653, %v4654
      %v4686 = vadd.f32 %v4685, %v4655
      %v4687 = vadd.f32 %v4686, %v4656
      %v4688 = vadd.f32 %v4687, %v4657
      %v4689 = vadd.f32 %v4688, %v4658
      %v4690 = vadd.f32 %v4689, %v4659
      %v4691 = vadd.f32 %v4690, %v4660
      %v4692 = vadd.f32 %v4691, %v4661
      %v4693 = vadd.f32 %v4692, %v4662
      %v4694 = vadd.f32 %v4693, %v4663
      %v4695 = vadd.f32 %v4694, %v4664
      %v4696 = vadd.f32 %v4695, %v4665
      %v4697 = vadd.f32 %v4696, %v4666
      %v4698 = vadd.f32 %v4697, %v4667
      %v4699 = vadd.f32 %v4698, %v4668
      %v4700 = vadd.f32 %v4699, %v4669
      %v4701 = vadd.f32 %v4700, %v4670
      %v4702 = vadd.f32 %v4701, %v4671
      %v4703 = vadd.f32 %v4702, %v4672
      %v4704 = vadd.f32 %v4703, %v4673
      %v4705 = vadd.f32 %v4704, %v4674
      %v4706 = vadd.f32 %v4705, %v4675
      %v4707 = vadd.f32 %v4706, %v4676
      %v4708 = vadd.f32 %v4707, %v4677
      %v4709 = vadd.f32 %v4708, %v4678
      %v4710 = vadd.f32 %v4709, %v4679
      %v4711 = vadd.f32 %v4710, %v4680
      %v4712 = vadd.f32 %v4711, %v4681
      %v4713 = vadd.f32 %v4712, %v4682
      %v4714 = vadd.f32 %v4713, %v4683
      %v4715 = vadd.f32 %v4714, %v4684
      %v4716 = vrot.slane %v4715, 4
      %v4717 = vadd.f32 %v4715, %v4716
      %v4718 = vrot.slane %v4717, 2
      %v4719 = vadd.f32 %v4717, %v4718
      %v4720 = vrot.slane %v4719, 1
      %v4721 = vadd.f32 %v4719, %v4720
      %v4722 = vmul.f32 %v4653, %v4653
      %v4723 = vmul.f32 %v4654, %v4654
      %v4724 = vmul.f32 %v4655, %v4655
      %v4725 = vmul.f32 %v4656, %v4656
      %v4726 = vmul.f32 %v4657, %v4657
      %v4727 = vmul.f32 %v4658, %v4658
      %v4728 = vmul.f32 %v4659, %v4659
      %v4729 = vmul.f32 %v4660, %v4660
      %v4730 = vmul.f32 %v4661, %v4661
      %v4731 = vmul.f32 %v4662, %v4662
      %v4732 = vmul.f32 %v4663, %v4663
      %v4733 = vmul.f32 %v4664, %v4664
      %v4734 = vmul.f32 %v4665, %v4665
      %v4735 = vmul.f32 %v4666, %v4666
      %v4736 = vmul.f32 %v4667, %v4667
      %v4737 = vmul.f32 %v4668, %v4668
      %v4738 = vmul.f32 %v4669, %v4669
      %v4739 = vmul.f32 %v4670, %v4670
      %v4740 = vmul.f32 %v4671, %v4671
      %v4741 = vmul.f32 %v4672, %v4672
      %v4742 = vmul.f32 %v4673, %v4673
      %v4743 = vmul.f32 %v4674, %v4674
      %v4744 = vmul.f32 %v4675, %v4675
      %v4745 = vmul.f32 %v4676, %v4676
      %v4746 = vmul.f32 %v4677, %v4677
      %v4747 = vmul.f32 %v4678, %v4678
      %v4748 = vmul.f32 %v4679, %v4679
      %v4749 = vmul.f32 %v4680, %v4680
      %v4750 = vmul.f32 %v4681, %v4681
      %v4751 = vmul.f32 %v4682, %v4682
      %v4752 = vmul.f32 %v4683, %v4683
      %v4753 = vmul.f32 %v4684, %v4684
      %v4754 = vadd.f32 %v4722, %v4723
      %v4755 = vadd.f32 %v4754, %v4724
      %v4756 = vadd.f32 %v4755, %v4725
      %v4757 = vadd.f32 %v4756, %v4726
      %v4758 = vadd.f32 %v4757, %v4727
      %v4759 = vadd.f32 %v4758, %v4728
      %v4760 = vadd.f32 %v4759, %v4729
      %v4761 = vadd.f32 %v4760, %v4730
      %v4762 = vadd.f32 %v4761, %v4731
      %v4763 = vadd.f32 %v4762, %v4732
      %v4764 = vadd.f32 %v4763, %v4733
      %v4765 = vadd.f32 %v4764, %v4734
      %v4766 = vadd.f32 %v4765, %v4735
      %v4767 = vadd.f32 %v4766, %v4736
      %v4768 = vadd.f32 %v4767, %v4737
      %v4769 = vadd.f32 %v4768, %v4738
      %v4770 = vadd.f32 %v4769, %v4739
      %v4771 = vadd.f32 %v4770, %v4740
      %v4772 = vadd.f32 %v4771, %v4741
      %v4773 = vadd.f32 %v4772, %v4742
      %v4774 = vadd.f32 %v4773, %v4743
      %v4775 = vadd.f32 %v4774, %v4744
      %v4776 = vadd.f32 %v4775, %v4745
      %v4777 = vadd.f32 %v4776, %v4746
      %v4778 = vadd.f32 %v4777, %v4747
      %v4779 = vadd.f32 %v4778, %v4748
      %v4780 = vadd.f32 %v4779, %v4749
      %v4781 = vadd.f32 %v4780, %v4750
      %v4782 = vadd.f32 %v4781, %v4751
      %v4783 = vadd.f32 %v4782, %v4752
      %v4784 = vadd.f32 %v4783, %v4753
      %v4785 = vrot.slane %v4784, 4
      %v4786 = vadd.f32 %v4784, %v4785
      %v4787 = vrot.slane %v4786, 2
      %v4788 = vadd.f32 %v4786, %v4787
      %v4789 = vrot.slane %v4788, 1
      %v4790 = vadd.f32 %v4788, %v4789
      %vm4791 = vcmask 1040384
      %v4792 = vsel %vm4791, %v4721, %v4790
      %4793 = vst [vmem:[%s235] sm:$0x3] %v4792
      %p4794 = scmp.lt.s32.totalorder %s17, 1
      %s4795 = scalar_select %p4794, %s17, 1
      %s4796 = smul.addr %s4795, 32
      %s4797 = smul.addr %s4796, 4
      %s4798 = scalar_lea.vmem %s4, %s4797
      %p4799 = scmp.lt.s32.totalorder %s17, 1
      %s4800 = scalar_select %p4799, %s17, 1
      %s4801 = smul.addr %s4800, 2
      %s4802 = scalar_lea.vmem %s5, %s4801
      // Predicated region
      $region37: #{bottleneck_forward.5} parent=35 // pred_check
        %p4803 = pneg %p124
      $region38: #{bottleneck_forward.5} parent=35 // pred_check_branch
        %4805 = sbr.rel (%p4803) target = $region40
      $region39: #{bottleneck_forward.5} parent=35 // pred_region
        _
      $region40: #{bottleneck_forward.5} parent=35 // pred_fallthru
        _
      // Predicated region
      $region41: #{bottleneck_forward.5} parent=35 // pred_check
        %p4806 = pneg %p150
      $region42: #{bottleneck_forward.5} parent=35 // pred_check_branch
        %4808 = sbr.rel (%p4806) target = $region44
      $region43: #{bottleneck_forward.5} parent=35 // pred_region
        _
      $region44: #{bottleneck_forward.5} parent=35 // pred_fallthru
        _
    $region36: #{bottleneck_forward.5} parent=5 // pred_fallthru
      _
    %p4809 = scmp.le.s32.totalorder 2, %s12
    // Predicated region
    $region45: #{bottleneck_forward.5} parent=5 // pred_check
      %p4810 = pneg %p4809
    $region46: #{bottleneck_forward.5} parent=5 // pred_check_branch
      %4812 = sbr.rel (%p4810) target = $region48
    $region47: #{bottleneck_forward.5} parent=5 // pred_region
      %s4813 = ssub.s32 %s12, 2
      // Predicated region
      $region49: #{bottleneck_forward.5} parent=47 // pred_check
        %p4814 = pneg %p130
      $region50: #{bottleneck_forward.5} parent=47 // pred_check_branch
        %4816 = sbr.rel (%p4814) target = $region52
      $region51: #{bottleneck_forward.5} parent=47 // pred_region
        %p4817 = scmp.lt.s32.totalorder %s18, 1
        %s4818 = scalar_select %p4817, %s18, 1
        %s4819 = smul.addr %s4818, 32
        %s4820 = smul.addr %s4819, 4
        %s4821 = scalar_lea.vmem %s4, %s4820
      $region52: #{bottleneck_forward.5} parent=47 // pred_fallthru
        _
      // Predicated region
      $region53: #{bottleneck_forward.5} parent=47 // pred_check
        %p4822 = pneg %p156
      $region54: #{bottleneck_forward.5} parent=47 // pred_check_branch
        %4824 = sbr.rel (%p4822) target = $region56
      $region55: #{bottleneck_forward.5} parent=47 // pred_region
        %p4825 = scmp.lt.s32.totalorder %s18, 1
        %s4826 = scalar_select %p4825, %s18, 1
        %s4827 = smul.addr %s4826, 2
        %s4828 = scalar_lea.vmem %s5, %s4827
      $region56: #{bottleneck_forward.5} parent=47 // pred_fallthru
        _
    $region48: #{bottleneck_forward.5} parent=5 // pred_fallthru
      _
  $region6: #{bottleneck_forward.5} parent=0 // loop_footer
    %s16 = sadd.s32 1, %s12
  $region7: #{bottleneck_forward.5} parent=0 // loop_footer_branch
    %11 = sbr.rel target = $region3
  $region8: #{bottleneck_forward.5} parent=0 // loop_exit
    _

</llo_original>
